<compile_context>
chip_gen: v7x
topology: tpu7x:2x2x1
jax: 0.10.0
libtpu: 0.0.40
codegen_flags: <defaults>
</compile_context>

<pallas_src>
import functools

import jax
import jax.numpy as jnp
from jax.experimental import pallas as pl
from jax.experimental.pallas import tpu as pltpu


def _srcnn_fused_kernel(p_ref, w1_ref, b1_ref, w2_ref, b2_ref, w3_ref, b3_ref,
                        o_ref, a2p_ref, *, H, W):
    """Fused SRCNN forward for one image.

    p_ref  : (1, H+8, W, 9)  f32  width-patches of the pad-4 input
    w1_ref : (9, 9, 64)           conv1 weights  [kh, kw, cout]
    b1_ref : (1, 64)
    w2_ref : (64, 32)             conv2 1x1 weights [cin, cout]
    b2_ref : (1, 32)
    w3_ref : (25, 1, 32)          conv3 weights  [kh*5+kw, 1, cin]
    b3_ref : (1, 1)
    o_ref  : (1, H, W)            output, W on the lane axis
    a2p_ref: (H+4, W+4, 32)       VMEM scratch: zero-padded conv2 output (conv3 halo)
    """
    HW = H * W

    # ---- conv1 (9x9, 1 -> 64) + ReLU : 9 accumulated MXU matmuls over kh ----
    a1 = jnp.zeros((HW, 64), jnp.float32)
    for kh in range(9):
        # (H, W, 9) slab: only a leading-dim shift, then a last-dim-preserving reshape.
        lhs = p_ref[0, kh:kh + H, :, :].reshape(HW, 9)
        a1 = a1 + jnp.dot(lhs, w1_ref[kh], preferred_element_type=jnp.float32)
    a1 = jnp.maximum(a1 + b1_ref[...], 0.0)                     # (HW, 64)

    # ---- conv2 (1x1, 64 -> 32) + ReLU : per-pixel MXU matmul, fused for free ----
    a2 = jnp.dot(a1, w2_ref[...], preferred_element_type=jnp.float32)
    a2 = jnp.maximum(a2 + b2_ref[...], 0.0)                     # (HW, 32)

    # ---- conv3 (5x5, 32 -> 1) : zero-pad in VMEM, VPU weighted sum over taps ----
    a2p_ref[...] = jnp.zeros_like(a2p_ref)                      # conv3 zero padding (pad=2)
    a2p_ref[2:2 + H, 2:2 + W, :] = a2.reshape(H, W, 32)
    acc = jnp.zeros((H, W, 32), jnp.float32)
    for kh in range(5):
        for kw in range(5):
            acc = acc + a2p_ref[kh:kh + H, kw:kw + W, :] * w3_ref[kh * 5 + kw]
    y = jnp.sum(acc, axis=-1) + b3_ref[...]                     # (H, W), lane-dense
    o_ref[...] = y[None].astype(o_ref.dtype)


@jax.jit
def srcnn_forward(x_nchw, params):
    """Forward pass matching SRCNN.forward. Input/output: NCHW float32."""
    N, C, H, W = x_nchw.shape
    assert C == 1
    x = x_nchw[:, 0, :, :]                                      # drop Cin=1 -> (N, H, W)
    xp = jnp.pad(x, ((0, 0), (4, 4), (4, 4)))                   # single pad (conv1's pad=4)
    Hp = H + 8

    # Width-direction patches for conv1's MXU formulation:
    # p[n, i, w, kw] = xp[n, i, w + kw].  Only 9x the tiny 1-channel input.
    p = jnp.stack([xp[:, :, kw:kw + W] for kw in range(9)], axis=-1)   # (N, Hp, W, 9)

    w1 = params["w1"].reshape(9, 9, 64)                         # (9,9,1,64) -> (9,9,64)
    b1 = params["b1"].reshape(1, 64)
    w2 = params["w2"].reshape(64, 32)                           # (1,1,64,32) -> (64,32)
    b2 = params["b2"].reshape(1, 32)
    w3 = params["w3"].reshape(25, 1, 32)                        # (5,5,32,1) -> (25,1,32)
    b3 = params["b3"].reshape(1, 1)

    kernel = functools.partial(_srcnn_fused_kernel, H=H, W=W)

    out = pl.pallas_call(
        kernel,
        out_shape=jax.ShapeDtypeStruct((N, H, W), x_nchw.dtype),
        grid=(N,),
        in_specs=[
            pl.BlockSpec((1, Hp, W, 9), lambda n: (n, 0, 0, 0)),
            pl.BlockSpec((9, 9, 64), lambda n: (0, 0, 0)),
            pl.BlockSpec((1, 64), lambda n: (0, 0)),
            pl.BlockSpec((64, 32), lambda n: (0, 0)),
            pl.BlockSpec((1, 32), lambda n: (0, 0)),
            pl.BlockSpec((25, 1, 32), lambda n: (0, 0, 0)),
            pl.BlockSpec((1, 1), lambda n: (0, 0)),
        ],
        out_specs=pl.BlockSpec((1, H, W), lambda n: (n, 0, 0)),
        scratch_shapes=[pltpu.VMEM((H + 4, W + 4, 32), jnp.float32)],
        compiler_params=pltpu.CompilerParams(
            dimension_semantics=("parallel",),
            vmem_limit_bytes=32 * 1024 * 1024,
        ),
    )(p, w1, b1, w2, b2, w3, b3)

    return out[:, None, :, :]                                   # back to NCHW (N,1,H,W)


def init_srcnn_params(key):
    """Deterministic parameter init matching nn.Conv2d shapes (HWIO layout)."""
    def conv_init(k, kh, kw, cin, cout):
        kw_key, kb_key = jax.random.split(k)
        fan_in = cin * kh * kw
        bound = 1.0 / jnp.sqrt(fan_in)
        w = jax.random.uniform(kw_key, (kh, kw, cin, cout), jnp.float32, -bound, bound)
        b = jax.random.uniform(kb_key, (cout,), jnp.float32, -bound, bound)
        return w, b

    k1, k2, k3 = jax.random.split(key, 3)
    w1, b1 = conv_init(k1, 9, 9, 1, 64)     # conv1: 1 -> 64, 9x9, pad 4
    w2, b2 = conv_init(k2, 1, 1, 64, 32)    # conv2: 64 -> 32, 1x1, pad 0
    w3, b3 = conv_init(k3, 5, 5, 32, 1)     # conv3: 32 -> 1, 5x5, pad 2
    return dict(w1=w1, b1=b1, w2=w2, b2=b2, w3=w3, b3=b3)


def srcnn_reference(x_nchw, params):
    """Pure-JAX reference (lax conv) for correctness checking."""
    x = jnp.transpose(x_nchw, (0, 2, 3, 1))
    dn = ("NHWC", "HWIO", "NHWC")

    def conv(x, w, b, pad):
        y = jax.lax.conv_general_dilated(x, w, (1, 1), [(pad, pad), (pad, pad)],
                                         dimension_numbers=dn)
        return y + b

    x = jax.nn.relu(conv(x, params["w1"], params["b1"], 4))
    x = jax.nn.relu(conv(x, params["w2"], params["b2"], 0))
    x = conv(x, params["w3"], params["b3"], 2)
    return jnp.transpose(x, (0, 3, 1, 2))


if __name__ == "__main__":
    key = jax.random.PRNGKey(0)
    pkey, xkey = jax.random.split(key)
    params = init_srcnn_params(pkey)

    # SRCNN expects single-channel images: (N=2, C=1, H=16, W=16)
    x = jax.random.normal(xkey, (2, 1, 16, 16), dtype=jnp.float32)

    out = jax.block_until_ready(srcnn_forward(x, params))
    ref = jax.block_until_ready(srcnn_reference(x, params))

    assert out.shape == (2, 1, 16, 16), out.shape
    max_err = float(jnp.max(jnp.abs(out - ref)))
    assert jnp.allclose(out, ref, atol=1e-4, rtol=1e-4), f"max abs err {max_err}"

    print("KERNEL_OK")
</pallas_src>

<mosaic_0001>
module attributes {stable_mosaic.version = 11 : i64} {
  func.func @_srcnn_fused_kernel(%arg0: i32, %arg1: memref<1x24x16x9xf32, #tpu.memory_space<vmem>>, %arg2: memref<9x9x64xf32, #tpu.memory_space<vmem>>, %arg3: memref<1x64xf32, #tpu.memory_space<vmem>>, %arg4: memref<64x32xf32, #tpu.memory_space<vmem>>, %arg5: memref<1x32xf32, #tpu.memory_space<vmem>>, %arg6: memref<25x1x32xf32, #tpu.memory_space<vmem>>, %arg7: memref<1x1xf32, #tpu.memory_space<vmem>>, %arg8: memref<1x16x16xf32, #tpu.memory_space<vmem>>, %arg9: memref<20x20x32xf32, #tpu.memory_space<vmem>>) attributes {dimension_semantics = [#tpu.dimension_semantics<parallel>], iteration_bounds = array<i64: 2>, scalar_prefetch = 0 : i64, scratch_operands = 1 : i64, tpu.core_type = #tpu.core_type<tc>, window_params = [{transform_indices = @transform_0, window_bounds = array<i64: 1, 24, 16, 9>}, {pipeline_mode = #tpu.pipeline_mode<synchronous>, transform_indices = @transform_1, window_bounds = array<i64: 9, 9, 64>}, {pipeline_mode = #tpu.pipeline_mode<synchronous>, transform_indices = @transform_2, window_bounds = array<i64: 1, 64>}, {pipeline_mode = #tpu.pipeline_mode<synchronous>, transform_indices = @transform_3, window_bounds = array<i64: 64, 32>}, {pipeline_mode = #tpu.pipeline_mode<synchronous>, transform_indices = @transform_4, window_bounds = array<i64: 1, 32>}, {pipeline_mode = #tpu.pipeline_mode<synchronous>, transform_indices = @transform_5, window_bounds = array<i64: 25, 1, 32>}, {pipeline_mode = #tpu.pipeline_mode<synchronous>, transform_indices = @transform_6, window_bounds = array<i64: 1, 1>}, {transform_indices = @transform_7, window_bounds = array<i64: 1, 16, 16>}]} {
    %cst = arith.constant 0.000000e+00 : f32
    %0 = vector.broadcast %cst : f32 to vector<256x64xf32>
    %c0 = arith.constant 0 : index
    %c0_0 = arith.constant 0 : index
    %c0_1 = arith.constant 0 : index
    %c0_2 = arith.constant 0 : index
    %1 = vector.load %arg1[%c0, %c0_0, %c0_1, %c0_2] : memref<1x24x16x9xf32, #tpu.memory_space<vmem>>, vector<1x16x16x9xf32>
    %2 = vector.shape_cast %1 : vector<1x16x16x9xf32> to vector<16x16x9xf32>
    %3 = vector.shape_cast %2 : vector<16x16x9xf32> to vector<256x9xf32>
    %c0_3 = arith.constant 0 : index
    %c0_4 = arith.constant 0 : index
    %c0_5 = arith.constant 0 : index
    %4 = vector.load %arg2[%c0_3, %c0_4, %c0_5] : memref<9x9x64xf32, #tpu.memory_space<vmem>>, vector<1x9x64xf32>
    %5 = vector.shape_cast %4 : vector<1x9x64xf32> to vector<9x64xf32>
    %cst_6 = arith.constant dense<0.000000e+00> : vector<256x64xf32>
    %6 = tpu.matmul %3, %5, %cst_6 {dimension_numbers = #tpu.dot_dimension_numbers<[1], [0], [0], [1], [0, 0, 1, 1], [], []>} : vector<256x9xf32>, vector<9x64xf32>, vector<256x64xf32> -> vector<256x64xf32>
    %7 = arith.addf %0, %6 : vector<256x64xf32>
    %c0_7 = arith.constant 0 : index
    %c1 = arith.constant 1 : index
    %c0_8 = arith.constant 0 : index
    %c0_9 = arith.constant 0 : index
    %8 = vector.load %arg1[%c0_7, %c1, %c0_8, %c0_9] : memref<1x24x16x9xf32, #tpu.memory_space<vmem>>, vector<1x16x16x9xf32>
    %9 = vector.shape_cast %8 : vector<1x16x16x9xf32> to vector<16x16x9xf32>
    %10 = vector.shape_cast %9 : vector<16x16x9xf32> to vector<256x9xf32>
    %c1_10 = arith.constant 1 : index
    %c0_11 = arith.constant 0 : index
    %c0_12 = arith.constant 0 : index
    %11 = vector.load %arg2[%c1_10, %c0_11, %c0_12] : memref<9x9x64xf32, #tpu.memory_space<vmem>>, vector<1x9x64xf32>
    %12 = vector.shape_cast %11 : vector<1x9x64xf32> to vector<9x64xf32>
    %cst_13 = arith.constant dense<0.000000e+00> : vector<256x64xf32>
    %13 = tpu.matmul %10, %12, %cst_13 {dimension_numbers = #tpu.dot_dimension_numbers<[1], [0], [0], [1], [0, 0, 1, 1], [], []>} : vector<256x9xf32>, vector<9x64xf32>, vector<256x64xf32> -> vector<256x64xf32>
    %14 = arith.addf %7, %13 : vector<256x64xf32>
    %c0_14 = arith.constant 0 : index
    %c2 = arith.constant 2 : index
    %c0_15 = arith.constant 0 : index
    %c0_16 = arith.constant 0 : index
    %15 = vector.load %arg1[%c0_14, %c2, %c0_15, %c0_16] : memref<1x24x16x9xf32, #tpu.memory_space<vmem>>, vector<1x16x16x9xf32>
    %16 = vector.shape_cast %15 : vector<1x16x16x9xf32> to vector<16x16x9xf32>
    %17 = vector.shape_cast %16 : vector<16x16x9xf32> to vector<256x9xf32>
    %c2_17 = arith.constant 2 : index
    %c0_18 = arith.constant 0 : index
    %c0_19 = arith.constant 0 : index
    %18 = vector.load %arg2[%c2_17, %c0_18, %c0_19] : memref<9x9x64xf32, #tpu.memory_space<vmem>>, vector<1x9x64xf32>
    %19 = vector.shape_cast %18 : vector<1x9x64xf32> to vector<9x64xf32>
    %cst_20 = arith.constant dense<0.000000e+00> : vector<256x64xf32>
    %20 = tpu.matmul %17, %19, %cst_20 {dimension_numbers = #tpu.dot_dimension_numbers<[1], [0], [0], [1], [0, 0, 1, 1], [], []>} : vector<256x9xf32>, vector<9x64xf32>, vector<256x64xf32> -> vector<256x64xf32>
    %21 = arith.addf %14, %20 : vector<256x64xf32>
    %c0_21 = arith.constant 0 : index
    %c3 = arith.constant 3 : index
    %c0_22 = arith.constant 0 : index
    %c0_23 = arith.constant 0 : index
    %22 = vector.load %arg1[%c0_21, %c3, %c0_22, %c0_23] : memref<1x24x16x9xf32, #tpu.memory_space<vmem>>, vector<1x16x16x9xf32>
    %23 = vector.shape_cast %22 : vector<1x16x16x9xf32> to vector<16x16x9xf32>
    %24 = vector.shape_cast %23 : vector<16x16x9xf32> to vector<256x9xf32>
    %c3_24 = arith.constant 3 : index
    %c0_25 = arith.constant 0 : index
    %c0_26 = arith.constant 0 : index
    %25 = vector.load %arg2[%c3_24, %c0_25, %c0_26] : memref<9x9x64xf32, #tpu.memory_space<vmem>>, vector<1x9x64xf32>
    %26 = vector.shape_cast %25 : vector<1x9x64xf32> to vector<9x64xf32>
    %cst_27 = arith.constant dense<0.000000e+00> : vector<256x64xf32>
    %27 = tpu.matmul %24, %26, %cst_27 {dimension_numbers = #tpu.dot_dimension_numbers<[1], [0], [0], [1], [0, 0, 1, 1], [], []>} : vector<256x9xf32>, vector<9x64xf32>, vector<256x64xf32> -> vector<256x64xf32>
    %28 = arith.addf %21, %27 : vector<256x64xf32>
    %c0_28 = arith.constant 0 : index
    %c4 = arith.constant 4 : index
    %c0_29 = arith.constant 0 : index
    %c0_30 = arith.constant 0 : index
    %29 = vector.load %arg1[%c0_28, %c4, %c0_29, %c0_30] : memref<1x24x16x9xf32, #tpu.memory_space<vmem>>, vector<1x16x16x9xf32>
    %30 = vector.shape_cast %29 : vector<1x16x16x9xf32> to vector<16x16x9xf32>
    %31 = vector.shape_cast %30 : vector<16x16x9xf32> to vector<256x9xf32>
    %c4_31 = arith.constant 4 : index
    %c0_32 = arith.constant 0 : index
    %c0_33 = arith.constant 0 : index
    %32 = vector.load %arg2[%c4_31, %c0_32, %c0_33] : memref<9x9x64xf32, #tpu.memory_space<vmem>>, vector<1x9x64xf32>
    %33 = vector.shape_cast %32 : vector<1x9x64xf32> to vector<9x64xf32>
    %cst_34 = arith.constant dense<0.000000e+00> : vector<256x64xf32>
    %34 = tpu.matmul %31, %33, %cst_34 {dimension_numbers = #tpu.dot_dimension_numbers<[1], [0], [0], [1], [0, 0, 1, 1], [], []>} : vector<256x9xf32>, vector<9x64xf32>, vector<256x64xf32> -> vector<256x64xf32>
    %35 = arith.addf %28, %34 : vector<256x64xf32>
    %c0_35 = arith.constant 0 : index
    %c5 = arith.constant 5 : index
    %c0_36 = arith.constant 0 : index
    %c0_37 = arith.constant 0 : index
    %36 = vector.load %arg1[%c0_35, %c5, %c0_36, %c0_37] : memref<1x24x16x9xf32, #tpu.memory_space<vmem>>, vector<1x16x16x9xf32>
    %37 = vector.shape_cast %36 : vector<1x16x16x9xf32> to vector<16x16x9xf32>
    %38 = vector.shape_cast %37 : vector<16x16x9xf32> to vector<256x9xf32>
    %c5_38 = arith.constant 5 : index
    %c0_39 = arith.constant 0 : index
    %c0_40 = arith.constant 0 : index
    %39 = vector.load %arg2[%c5_38, %c0_39, %c0_40] : memref<9x9x64xf32, #tpu.memory_space<vmem>>, vector<1x9x64xf32>
    %40 = vector.shape_cast %39 : vector<1x9x64xf32> to vector<9x64xf32>
    %cst_41 = arith.constant dense<0.000000e+00> : vector<256x64xf32>
    %41 = tpu.matmul %38, %40, %cst_41 {dimension_numbers = #tpu.dot_dimension_numbers<[1], [0], [0], [1], [0, 0, 1, 1], [], []>} : vector<256x9xf32>, vector<9x64xf32>, vector<256x64xf32> -> vector<256x64xf32>
    %42 = arith.addf %35, %41 : vector<256x64xf32>
    %c0_42 = arith.constant 0 : index
    %c6 = arith.constant 6 : index
    %c0_43 = arith.constant 0 : index
    %c0_44 = arith.constant 0 : index
    %43 = vector.load %arg1[%c0_42, %c6, %c0_43, %c0_44] : memref<1x24x16x9xf32, #tpu.memory_space<vmem>>, vector<1x16x16x9xf32>
    %44 = vector.shape_cast %43 : vector<1x16x16x9xf32> to vector<16x16x9xf32>
    %45 = vector.shape_cast %44 : vector<16x16x9xf32> to vector<256x9xf32>
    %c6_45 = arith.constant 6 : index
    %c0_46 = arith.constant 0 : index
    %c0_47 = arith.constant 0 : index
    %46 = vector.load %arg2[%c6_45, %c0_46, %c0_47] : memref<9x9x64xf32, #tpu.memory_space<vmem>>, vector<1x9x64xf32>
    %47 = vector.shape_cast %46 : vector<1x9x64xf32> to vector<9x64xf32>
    %cst_48 = arith.constant dense<0.000000e+00> : vector<256x64xf32>
    %48 = tpu.matmul %45, %47, %cst_48 {dimension_numbers = #tpu.dot_dimension_numbers<[1], [0], [0], [1], [0, 0, 1, 1], [], []>} : vector<256x9xf32>, vector<9x64xf32>, vector<256x64xf32> -> vector<256x64xf32>
    %49 = arith.addf %42, %48 : vector<256x64xf32>
    %c0_49 = arith.constant 0 : index
    %c7 = arith.constant 7 : index
    %c0_50 = arith.constant 0 : index
    %c0_51 = arith.constant 0 : index
    %50 = vector.load %arg1[%c0_49, %c7, %c0_50, %c0_51] : memref<1x24x16x9xf32, #tpu.memory_space<vmem>>, vector<1x16x16x9xf32>
    %51 = vector.shape_cast %50 : vector<1x16x16x9xf32> to vector<16x16x9xf32>
    %52 = vector.shape_cast %51 : vector<16x16x9xf32> to vector<256x9xf32>
    %c7_52 = arith.constant 7 : index
    %c0_53 = arith.constant 0 : index
    %c0_54 = arith.constant 0 : index
    %53 = vector.load %arg2[%c7_52, %c0_53, %c0_54] : memref<9x9x64xf32, #tpu.memory_space<vmem>>, vector<1x9x64xf32>
    %54 = vector.shape_cast %53 : vector<1x9x64xf32> to vector<9x64xf32>
    %cst_55 = arith.constant dense<0.000000e+00> : vector<256x64xf32>
    %55 = tpu.matmul %52, %54, %cst_55 {dimension_numbers = #tpu.dot_dimension_numbers<[1], [0], [0], [1], [0, 0, 1, 1], [], []>} : vector<256x9xf32>, vector<9x64xf32>, vector<256x64xf32> -> vector<256x64xf32>
    %56 = arith.addf %49, %55 : vector<256x64xf32>
    %c0_56 = arith.constant 0 : index
    %c8 = arith.constant 8 : index
    %c0_57 = arith.constant 0 : index
    %c0_58 = arith.constant 0 : index
    %57 = vector.load %arg1[%c0_56, %c8, %c0_57, %c0_58] : memref<1x24x16x9xf32, #tpu.memory_space<vmem>>, vector<1x16x16x9xf32>
    %58 = vector.shape_cast %57 : vector<1x16x16x9xf32> to vector<16x16x9xf32>
    %59 = vector.shape_cast %58 : vector<16x16x9xf32> to vector<256x9xf32>
    %c8_59 = arith.constant 8 : index
    %c0_60 = arith.constant 0 : index
    %c0_61 = arith.constant 0 : index
    %60 = vector.load %arg2[%c8_59, %c0_60, %c0_61] : memref<9x9x64xf32, #tpu.memory_space<vmem>>, vector<1x9x64xf32>
    %61 = vector.shape_cast %60 : vector<1x9x64xf32> to vector<9x64xf32>
    %cst_62 = arith.constant dense<0.000000e+00> : vector<256x64xf32>
    %62 = tpu.matmul %59, %61, %cst_62 {dimension_numbers = #tpu.dot_dimension_numbers<[1], [0], [0], [1], [0, 0, 1, 1], [], []>} : vector<256x9xf32>, vector<9x64xf32>, vector<256x64xf32> -> vector<256x64xf32>
    %63 = arith.addf %56, %62 : vector<256x64xf32>
    %c0_63 = arith.constant 0 : index
    %c0_64 = arith.constant 0 : index
    %64 = vector.load %arg3[%c0_63, %c0_64] : memref<1x64xf32, #tpu.memory_space<vmem>>, vector<1x64xf32>
    %65 = vector.broadcast %64 : vector<1x64xf32> to vector<256x64xf32>
    %66 = arith.addf %63, %65 : vector<256x64xf32>
    %cst_65 = arith.constant 0.000000e+00 : f32
    %67 = vector.broadcast %cst_65 : f32 to vector<256x64xf32>
    %68 = arith.maximumf %66, %67 : vector<256x64xf32>
    %c0_66 = arith.constant 0 : index
    %c0_67 = arith.constant 0 : index
    %69 = vector.load %arg4[%c0_66, %c0_67] : memref<64x32xf32, #tpu.memory_space<vmem>>, vector<64x32xf32>
    %cst_68 = arith.constant dense<0.000000e+00> : vector<256x32xf32>
    %70 = tpu.matmul %68, %69, %cst_68 {dimension_numbers = #tpu.dot_dimension_numbers<[1], [0], [0], [1], [0, 0, 1, 1], [], []>} : vector<256x64xf32>, vector<64x32xf32>, vector<256x32xf32> -> vector<256x32xf32>
    %c0_69 = arith.constant 0 : index
    %c0_70 = arith.constant 0 : index
    %71 = vector.load %arg5[%c0_69, %c0_70] : memref<1x32xf32, #tpu.memory_space<vmem>>, vector<1x32xf32>
    %72 = vector.broadcast %71 : vector<1x32xf32> to vector<256x32xf32>
    %73 = arith.addf %70, %72 : vector<256x32xf32>
    %cst_71 = arith.constant 0.000000e+00 : f32
    %74 = vector.broadcast %cst_71 : f32 to vector<256x32xf32>
    %75 = arith.maximumf %73, %74 : vector<256x32xf32>
    %cst_72 = arith.constant 0.000000e+00 : f32
    %76 = vector.broadcast %cst_72 : f32 to vector<20x20x32xf32>
    %c0_73 = arith.constant 0 : index
    %c0_74 = arith.constant 0 : index
    %c0_75 = arith.constant 0 : index
    %77 = vector.load %arg9[%c0_73, %c0_74, %c0_75] : memref<20x20x32xf32, #tpu.memory_space<vmem>>, vector<20x20x32xf32>
    tpu.vector_store %arg9[%c0_73, %c0_74, %c0_75], %76 {strides = array<i32>} : memref<20x20x32xf32, #tpu.memory_space<vmem>>, vector<20x20x32xf32>,
    %78 = vector.shape_cast %75 : vector<256x32xf32> to vector<16x16x32xf32>
    %c2_76 = arith.constant 2 : index
    %c2_77 = arith.constant 2 : index
    %c0_78 = arith.constant 0 : index
    %79 = vector.load %arg9[%c2_76, %c2_77, %c0_78] : memref<20x20x32xf32, #tpu.memory_space<vmem>>, vector<16x16x32xf32>
    tpu.vector_store %arg9[%c2_76, %c2_77, %c0_78], %78 {strides = array<i32>} : memref<20x20x32xf32, #tpu.memory_space<vmem>>, vector<16x16x32xf32>,
    %cst_79 = arith.constant 0.000000e+00 : f32
    %80 = vector.broadcast %cst_79 : f32 to vector<16x16x32xf32>
    %c0_80 = arith.constant 0 : index
    %c0_81 = arith.constant 0 : index
    %c0_82 = arith.constant 0 : index
    %81 = vector.load %arg9[%c0_80, %c0_81, %c0_82] : memref<20x20x32xf32, #tpu.memory_space<vmem>>, vector<16x16x32xf32>
    %c0_83 = arith.constant 0 : index
    %c0_84 = arith.constant 0 : index
    %c0_85 = arith.constant 0 : index
    %82 = vector.load %arg6[%c0_83, %c0_84, %c0_85] : memref<25x1x32xf32, #tpu.memory_space<vmem>>, vector<1x1x32xf32>
    %83 = vector.shape_cast %82 : vector<1x1x32xf32> to vector<1x32xf32>
    %84 = vector.shape_cast %83 : vector<1x32xf32> to vector<1x1x32xf32>
    %85 = vector.broadcast %84 : vector<1x1x32xf32> to vector<16x16x32xf32>
    %86 = arith.mulf %81, %85 : vector<16x16x32xf32>
    %87 = arith.addf %80, %86 : vector<16x16x32xf32>
    %c0_86 = arith.constant 0 : index
    %c1_87 = arith.constant 1 : index
    %c0_88 = arith.constant 0 : index
    %88 = vector.load %arg9[%c0_86, %c1_87, %c0_88] : memref<20x20x32xf32, #tpu.memory_space<vmem>>, vector<16x16x32xf32>
    %c1_89 = arith.constant 1 : index
    %c0_90 = arith.constant 0 : index
    %c0_91 = arith.constant 0 : index
    %89 = vector.load %arg6[%c1_89, %c0_90, %c0_91] : memref<25x1x32xf32, #tpu.memory_space<vmem>>, vector<1x1x32xf32>
    %90 = vector.shape_cast %89 : vector<1x1x32xf32> to vector<1x32xf32>
    %91 = vector.shape_cast %90 : vector<1x32xf32> to vector<1x1x32xf32>
    %92 = vector.broadcast %91 : vector<1x1x32xf32> to vector<16x16x32xf32>
    %93 = arith.mulf %88, %92 : vector<16x16x32xf32>
    %94 = arith.addf %87, %93 : vector<16x16x32xf32>
    %c0_92 = arith.constant 0 : index
    %c2_93 = arith.constant 2 : index
    %c0_94 = arith.constant 0 : index
    %95 = vector.load %arg9[%c0_92, %c2_93, %c0_94] : memref<20x20x32xf32, #tpu.memory_space<vmem>>, vector<16x16x32xf32>
    %c2_95 = arith.constant 2 : index
    %c0_96 = arith.constant 0 : index
    %c0_97 = arith.constant 0 : index
    %96 = vector.load %arg6[%c2_95, %c0_96, %c0_97] : memref<25x1x32xf32, #tpu.memory_space<vmem>>, vector<1x1x32xf32>
    %97 = vector.shape_cast %96 : vector<1x1x32xf32> to vector<1x32xf32>
    %98 = vector.shape_cast %97 : vector<1x32xf32> to vector<1x1x32xf32>
    %99 = vector.broadcast %98 : vector<1x1x32xf32> to vector<16x16x32xf32>
    %100 = arith.mulf %95, %99 : vector<16x16x32xf32>
    %101 = arith.addf %94, %100 : vector<16x16x32xf32>
    %c0_98 = arith.constant 0 : index
    %c3_99 = arith.constant 3 : index
    %c0_100 = arith.constant 0 : index
    %102 = vector.load %arg9[%c0_98, %c3_99, %c0_100] : memref<20x20x32xf32, #tpu.memory_space<vmem>>, vector<16x16x32xf32>
    %c3_101 = arith.constant 3 : index
    %c0_102 = arith.constant 0 : index
    %c0_103 = arith.constant 0 : index
    %103 = vector.load %arg6[%c3_101, %c0_102, %c0_103] : memref<25x1x32xf32, #tpu.memory_space<vmem>>, vector<1x1x32xf32>
    %104 = vector.shape_cast %103 : vector<1x1x32xf32> to vector<1x32xf32>
    %105 = vector.shape_cast %104 : vector<1x32xf32> to vector<1x1x32xf32>
    %106 = vector.broadcast %105 : vector<1x1x32xf32> to vector<16x16x32xf32>
    %107 = arith.mulf %102, %106 : vector<16x16x32xf32>
    %108 = arith.addf %101, %107 : vector<16x16x32xf32>
    %c0_104 = arith.constant 0 : index
    %c4_105 = arith.constant 4 : index
    %c0_106 = arith.constant 0 : index
    %109 = vector.load %arg9[%c0_104, %c4_105, %c0_106] : memref<20x20x32xf32, #tpu.memory_space<vmem>>, vector<16x16x32xf32>
    %c4_107 = arith.constant 4 : index
    %c0_108 = arith.constant 0 : index
    %c0_109 = arith.constant 0 : index
    %110 = vector.load %arg6[%c4_107, %c0_108, %c0_109] : memref<25x1x32xf32, #tpu.memory_space<vmem>>, vector<1x1x32xf32>
    %111 = vector.shape_cast %110 : vector<1x1x32xf32> to vector<1x32xf32>
    %112 = vector.shape_cast %111 : vector<1x32xf32> to vector<1x1x32xf32>
    %113 = vector.broadcast %112 : vector<1x1x32xf32> to vector<16x16x32xf32>
    %114 = arith.mulf %109, %113 : vector<16x16x32xf32>
    %115 = arith.addf %108, %114 : vector<16x16x32xf32>
    %c1_110 = arith.constant 1 : index
    %c0_111 = arith.constant 0 : index
    %c0_112 = arith.constant 0 : index
    %116 = vector.load %arg9[%c1_110, %c0_111, %c0_112] : memref<20x20x32xf32, #tpu.memory_space<vmem>>, vector<16x16x32xf32>
    %c5_113 = arith.constant 5 : index
    %c0_114 = arith.constant 0 : index
    %c0_115 = arith.constant 0 : index
    %117 = vector.load %arg6[%c5_113, %c0_114, %c0_115] : memref<25x1x32xf32, #tpu.memory_space<vmem>>, vector<1x1x32xf32>
    %118 = vector.shape_cast %117 : vector<1x1x32xf32> to vector<1x32xf32>
    %119 = vector.shape_cast %118 : vector<1x32xf32> to vector<1x1x32xf32>
    %120 = vector.broadcast %119 : vector<1x1x32xf32> to vector<16x16x32xf32>
    %121 = arith.mulf %116, %120 : vector<16x16x32xf32>
    %122 = arith.addf %115, %121 : vector<16x16x32xf32>
    %c1_116 = arith.constant 1 : index
    %c1_117 = arith.constant 1 : index
    %c0_118 = arith.constant 0 : index
    %123 = vector.load %arg9[%c1_116, %c1_117, %c0_118] : memref<20x20x32xf32, #tpu.memory_space<vmem>>, vector<16x16x32xf32>
    %c6_119 = arith.constant 6 : index
    %c0_120 = arith.constant 0 : index
    %c0_121 = arith.constant 0 : index
    %124 = vector.load %arg6[%c6_119, %c0_120, %c0_121] : memref<25x1x32xf32, #tpu.memory_space<vmem>>, vector<1x1x32xf32>
    %125 = vector.shape_cast %124 : vector<1x1x32xf32> to vector<1x32xf32>
    %126 = vector.shape_cast %125 : vector<1x32xf32> to vector<1x1x32xf32>
    %127 = vector.broadcast %126 : vector<1x1x32xf32> to vector<16x16x32xf32>
    %128 = arith.mulf %123, %127 : vector<16x16x32xf32>
    %129 = arith.addf %122, %128 : vector<16x16x32xf32>
    %c1_122 = arith.constant 1 : index
    %c2_123 = arith.constant 2 : index
    %c0_124 = arith.constant 0 : index
    %130 = vector.load %arg9[%c1_122, %c2_123, %c0_124] : memref<20x20x32xf32, #tpu.memory_space<vmem>>, vector<16x16x32xf32>
    %c7_125 = arith.constant 7 : index
    %c0_126 = arith.constant 0 : index
    %c0_127 = arith.constant 0 : index
    %131 = vector.load %arg6[%c7_125, %c0_126, %c0_127] : memref<25x1x32xf32, #tpu.memory_space<vmem>>, vector<1x1x32xf32>
    %132 = vector.shape_cast %131 : vector<1x1x32xf32> to vector<1x32xf32>
    %133 = vector.shape_cast %132 : vector<1x32xf32> to vector<1x1x32xf32>
    %134 = vector.broadcast %133 : vector<1x1x32xf32> to vector<16x16x32xf32>
    %135 = arith.mulf %130, %134 : vector<16x16x32xf32>
    %136 = arith.addf %129, %135 : vector<16x16x32xf32>
    %c1_128 = arith.constant 1 : index
    %c3_129 = arith.constant 3 : index
    %c0_130 = arith.constant 0 : index
    %137 = vector.load %arg9[%c1_128, %c3_129, %c0_130] : memref<20x20x32xf32, #tpu.memory_space<vmem>>, vector<16x16x32xf32>
    %c8_131 = arith.constant 8 : index
    %c0_132 = arith.constant 0 : index
    %c0_133 = arith.constant 0 : index
    %138 = vector.load %arg6[%c8_131, %c0_132, %c0_133] : memref<25x1x32xf32, #tpu.memory_space<vmem>>, vector<1x1x32xf32>
    %139 = vector.shape_cast %138 : vector<1x1x32xf32> to vector<1x32xf32>
    %140 = vector.shape_cast %139 : vector<1x32xf32> to vector<1x1x32xf32>
    %141 = vector.broadcast %140 : vector<1x1x32xf32> to vector<16x16x32xf32>
    %142 = arith.mulf %137, %141 : vector<16x16x32xf32>
    %143 = arith.addf %136, %142 : vector<16x16x32xf32>
    %c1_134 = arith.constant 1 : index
    %c4_135 = arith.constant 4 : index
    %c0_136 = arith.constant 0 : index
    %144 = vector.load %arg9[%c1_134, %c4_135, %c0_136] : memref<20x20x32xf32, #tpu.memory_space<vmem>>, vector<16x16x32xf32>
    %c9 = arith.constant 9 : index
    %c0_137 = arith.constant 0 : index
    %c0_138 = arith.constant 0 : index
    %145 = vector.load %arg6[%c9, %c0_137, %c0_138] : memref<25x1x32xf32, #tpu.memory_space<vmem>>, vector<1x1x32xf32>
    %146 = vector.shape_cast %145 : vector<1x1x32xf32> to vector<1x32xf32>
    %147 = vector.shape_cast %146 : vector<1x32xf32> to vector<1x1x32xf32>
    %148 = vector.broadcast %147 : vector<1x1x32xf32> to vector<16x16x32xf32>
    %149 = arith.mulf %144, %148 : vector<16x16x32xf32>
    %150 = arith.addf %143, %149 : vector<16x16x32xf32>
    %c2_139 = arith.constant 2 : index
    %c0_140 = arith.constant 0 : index
    %c0_141 = arith.constant 0 : index
    %151 = vector.load %arg9[%c2_139, %c0_140, %c0_141] : memref<20x20x32xf32, #tpu.memory_space<vmem>>, vector<16x16x32xf32>
    %c10 = arith.constant 10 : index
    %c0_142 = arith.constant 0 : index
    %c0_143 = arith.constant 0 : index
    %152 = vector.load %arg6[%c10, %c0_142, %c0_143] : memref<25x1x32xf32, #tpu.memory_space<vmem>>, vector<1x1x32xf32>
    %153 = vector.shape_cast %152 : vector<1x1x32xf32> to vector<1x32xf32>
    %154 = vector.shape_cast %153 : vector<1x32xf32> to vector<1x1x32xf32>
    %155 = vector.broadcast %154 : vector<1x1x32xf32> to vector<16x16x32xf32>
    %156 = arith.mulf %151, %155 : vector<16x16x32xf32>
    %157 = arith.addf %150, %156 : vector<16x16x32xf32>
    %c2_144 = arith.constant 2 : index
    %c1_145 = arith.constant 1 : index
    %c0_146 = arith.constant 0 : index
    %158 = vector.load %arg9[%c2_144, %c1_145, %c0_146] : memref<20x20x32xf32, #tpu.memory_space<vmem>>, vector<16x16x32xf32>
    %c11 = arith.constant 11 : index
    %c0_147 = arith.constant 0 : index
    %c0_148 = arith.constant 0 : index
    %159 = vector.load %arg6[%c11, %c0_147, %c0_148] : memref<25x1x32xf32, #tpu.memory_space<vmem>>, vector<1x1x32xf32>
    %160 = vector.shape_cast %159 : vector<1x1x32xf32> to vector<1x32xf32>
    %161 = vector.shape_cast %160 : vector<1x32xf32> to vector<1x1x32xf32>
    %162 = vector.broadcast %161 : vector<1x1x32xf32> to vector<16x16x32xf32>
    %163 = arith.mulf %158, %162 : vector<16x16x32xf32>
    %164 = arith.addf %157, %163 : vector<16x16x32xf32>
    %c2_149 = arith.constant 2 : index
    %c2_150 = arith.constant 2 : index
    %c0_151 = arith.constant 0 : index
    %165 = vector.load %arg9[%c2_149, %c2_150, %c0_151] : memref<20x20x32xf32, #tpu.memory_space<vmem>>, vector<16x16x32xf32>
    %c12 = arith.constant 12 : index
    %c0_152 = arith.constant 0 : index
    %c0_153 = arith.constant 0 : index
    %166 = vector.load %arg6[%c12, %c0_152, %c0_153] : memref<25x1x32xf32, #tpu.memory_space<vmem>>, vector<1x1x32xf32>
    %167 = vector.shape_cast %166 : vector<1x1x32xf32> to vector<1x32xf32>
    %168 = vector.shape_cast %167 : vector<1x32xf32> to vector<1x1x32xf32>
    %169 = vector.broadcast %168 : vector<1x1x32xf32> to vector<16x16x32xf32>
    %170 = arith.mulf %165, %169 : vector<16x16x32xf32>
    %171 = arith.addf %164, %170 : vector<16x16x32xf32>
    %c2_154 = arith.constant 2 : index
    %c3_155 = arith.constant 3 : index
    %c0_156 = arith.constant 0 : index
    %172 = vector.load %arg9[%c2_154, %c3_155, %c0_156] : memref<20x20x32xf32, #tpu.memory_space<vmem>>, vector<16x16x32xf32>
    %c13 = arith.constant 13 : index
    %c0_157 = arith.constant 0 : index
    %c0_158 = arith.constant 0 : index
    %173 = vector.load %arg6[%c13, %c0_157, %c0_158] : memref<25x1x32xf32, #tpu.memory_space<vmem>>, vector<1x1x32xf32>
    %174 = vector.shape_cast %173 : vector<1x1x32xf32> to vector<1x32xf32>
    %175 = vector.shape_cast %174 : vector<1x32xf32> to vector<1x1x32xf32>
    %176 = vector.broadcast %175 : vector<1x1x32xf32> to vector<16x16x32xf32>
    %177 = arith.mulf %172, %176 : vector<16x16x32xf32>
    %178 = arith.addf %171, %177 : vector<16x16x32xf32>
    %c2_159 = arith.constant 2 : index
    %c4_160 = arith.constant 4 : index
    %c0_161 = arith.constant 0 : index
    %179 = vector.load %arg9[%c2_159, %c4_160, %c0_161] : memref<20x20x32xf32, #tpu.memory_space<vmem>>, vector<16x16x32xf32>
    %c14 = arith.constant 14 : index
    %c0_162 = arith.constant 0 : index
    %c0_163 = arith.constant 0 : index
    %180 = vector.load %arg6[%c14, %c0_162, %c0_163] : memref<25x1x32xf32, #tpu.memory_space<vmem>>, vector<1x1x32xf32>
    %181 = vector.shape_cast %180 : vector<1x1x32xf32> to vector<1x32xf32>
    %182 = vector.shape_cast %181 : vector<1x32xf32> to vector<1x1x32xf32>
    %183 = vector.broadcast %182 : vector<1x1x32xf32> to vector<16x16x32xf32>
    %184 = arith.mulf %179, %183 : vector<16x16x32xf32>
    %185 = arith.addf %178, %184 : vector<16x16x32xf32>
    %c3_164 = arith.constant 3 : index
    %c0_165 = arith.constant 0 : index
    %c0_166 = arith.constant 0 : index
    %186 = vector.load %arg9[%c3_164, %c0_165, %c0_166] : memref<20x20x32xf32, #tpu.memory_space<vmem>>, vector<16x16x32xf32>
    %c15 = arith.constant 15 : index
    %c0_167 = arith.constant 0 : index
    %c0_168 = arith.constant 0 : index
    %187 = vector.load %arg6[%c15, %c0_167, %c0_168] : memref<25x1x32xf32, #tpu.memory_space<vmem>>, vector<1x1x32xf32>
    %188 = vector.shape_cast %187 : vector<1x1x32xf32> to vector<1x32xf32>
    %189 = vector.shape_cast %188 : vector<1x32xf32> to vector<1x1x32xf32>
    %190 = vector.broadcast %189 : vector<1x1x32xf32> to vector<16x16x32xf32>
    %191 = arith.mulf %186, %190 : vector<16x16x32xf32>
    %192 = arith.addf %185, %191 : vector<16x16x32xf32>
    %c3_169 = arith.constant 3 : index
    %c1_170 = arith.constant 1 : index
    %c0_171 = arith.constant 0 : index
    %193 = vector.load %arg9[%c3_169, %c1_170, %c0_171] : memref<20x20x32xf32, #tpu.memory_space<vmem>>, vector<16x16x32xf32>
    %c16 = arith.constant 16 : index
    %c0_172 = arith.constant 0 : index
    %c0_173 = arith.constant 0 : index
    %194 = vector.load %arg6[%c16, %c0_172, %c0_173] : memref<25x1x32xf32, #tpu.memory_space<vmem>>, vector<1x1x32xf32>
    %195 = vector.shape_cast %194 : vector<1x1x32xf32> to vector<1x32xf32>
    %196 = vector.shape_cast %195 : vector<1x32xf32> to vector<1x1x32xf32>
    %197 = vector.broadcast %196 : vector<1x1x32xf32> to vector<16x16x32xf32>
    %198 = arith.mulf %193, %197 : vector<16x16x32xf32>
    %199 = arith.addf %192, %198 : vector<16x16x32xf32>
    %c3_174 = arith.constant 3 : index
    %c2_175 = arith.constant 2 : index
    %c0_176 = arith.constant 0 : index
    %200 = vector.load %arg9[%c3_174, %c2_175, %c0_176] : memref<20x20x32xf32, #tpu.memory_space<vmem>>, vector<16x16x32xf32>
    %c17 = arith.constant 17 : index
    %c0_177 = arith.constant 0 : index
    %c0_178 = arith.constant 0 : index
    %201 = vector.load %arg6[%c17, %c0_177, %c0_178] : memref<25x1x32xf32, #tpu.memory_space<vmem>>, vector<1x1x32xf32>
    %202 = vector.shape_cast %201 : vector<1x1x32xf32> to vector<1x32xf32>
    %203 = vector.shape_cast %202 : vector<1x32xf32> to vector<1x1x32xf32>
    %204 = vector.broadcast %203 : vector<1x1x32xf32> to vector<16x16x32xf32>
    %205 = arith.mulf %200, %204 : vector<16x16x32xf32>
    %206 = arith.addf %199, %205 : vector<16x16x32xf32>
    %c3_179 = arith.constant 3 : index
    %c3_180 = arith.constant 3 : index
    %c0_181 = arith.constant 0 : index
    %207 = vector.load %arg9[%c3_179, %c3_180, %c0_181] : memref<20x20x32xf32, #tpu.memory_space<vmem>>, vector<16x16x32xf32>
    %c18 = arith.constant 18 : index
    %c0_182 = arith.constant 0 : index
    %c0_183 = arith.constant 0 : index
    %208 = vector.load %arg6[%c18, %c0_182, %c0_183] : memref<25x1x32xf32, #tpu.memory_space<vmem>>, vector<1x1x32xf32>
    %209 = vector.shape_cast %208 : vector<1x1x32xf32> to vector<1x32xf32>
    %210 = vector.shape_cast %209 : vector<1x32xf32> to vector<1x1x32xf32>
    %211 = vector.broadcast %210 : vector<1x1x32xf32> to vector<16x16x32xf32>
    %212 = arith.mulf %207, %211 : vector<16x16x32xf32>
    %213 = arith.addf %206, %212 : vector<16x16x32xf32>
    %c3_184 = arith.constant 3 : index
    %c4_185 = arith.constant 4 : index
    %c0_186 = arith.constant 0 : index
    %214 = vector.load %arg9[%c3_184, %c4_185, %c0_186] : memref<20x20x32xf32, #tpu.memory_space<vmem>>, vector<16x16x32xf32>
    %c19 = arith.constant 19 : index
    %c0_187 = arith.constant 0 : index
    %c0_188 = arith.constant 0 : index
    %215 = vector.load %arg6[%c19, %c0_187, %c0_188] : memref<25x1x32xf32, #tpu.memory_space<vmem>>, vector<1x1x32xf32>
    %216 = vector.shape_cast %215 : vector<1x1x32xf32> to vector<1x32xf32>
    %217 = vector.shape_cast %216 : vector<1x32xf32> to vector<1x1x32xf32>
    %218 = vector.broadcast %217 : vector<1x1x32xf32> to vector<16x16x32xf32>
    %219 = arith.mulf %214, %218 : vector<16x16x32xf32>
    %220 = arith.addf %213, %219 : vector<16x16x32xf32>
    %c4_189 = arith.constant 4 : index
    %c0_190 = arith.constant 0 : index
    %c0_191 = arith.constant 0 : index
    %221 = vector.load %arg9[%c4_189, %c0_190, %c0_191] : memref<20x20x32xf32, #tpu.memory_space<vmem>>, vector<16x16x32xf32>
    %c20 = arith.constant 20 : index
    %c0_192 = arith.constant 0 : index
    %c0_193 = arith.constant 0 : index
    %222 = vector.load %arg6[%c20, %c0_192, %c0_193] : memref<25x1x32xf32, #tpu.memory_space<vmem>>, vector<1x1x32xf32>
    %223 = vector.shape_cast %222 : vector<1x1x32xf32> to vector<1x32xf32>
    %224 = vector.shape_cast %223 : vector<1x32xf32> to vector<1x1x32xf32>
    %225 = vector.broadcast %224 : vector<1x1x32xf32> to vector<16x16x32xf32>
    %226 = arith.mulf %221, %225 : vector<16x16x32xf32>
    %227 = arith.addf %220, %226 : vector<16x16x32xf32>
    %c4_194 = arith.constant 4 : index
    %c1_195 = arith.constant 1 : index
    %c0_196 = arith.constant 0 : index
    %228 = vector.load %arg9[%c4_194, %c1_195, %c0_196] : memref<20x20x32xf32, #tpu.memory_space<vmem>>, vector<16x16x32xf32>
    %c21 = arith.constant 21 : index
    %c0_197 = arith.constant 0 : index
    %c0_198 = arith.constant 0 : index
    %229 = vector.load %arg6[%c21, %c0_197, %c0_198] : memref<25x1x32xf32, #tpu.memory_space<vmem>>, vector<1x1x32xf32>
    %230 = vector.shape_cast %229 : vector<1x1x32xf32> to vector<1x32xf32>
    %231 = vector.shape_cast %230 : vector<1x32xf32> to vector<1x1x32xf32>
    %232 = vector.broadcast %231 : vector<1x1x32xf32> to vector<16x16x32xf32>
    %233 = arith.mulf %228, %232 : vector<16x16x32xf32>
    %234 = arith.addf %227, %233 : vector<16x16x32xf32>
    %c4_199 = arith.constant 4 : index
    %c2_200 = arith.constant 2 : index
    %c0_201 = arith.constant 0 : index
    %235 = vector.load %arg9[%c4_199, %c2_200, %c0_201] : memref<20x20x32xf32, #tpu.memory_space<vmem>>, vector<16x16x32xf32>
    %c22 = arith.constant 22 : index
    %c0_202 = arith.constant 0 : index
    %c0_203 = arith.constant 0 : index
    %236 = vector.load %arg6[%c22, %c0_202, %c0_203] : memref<25x1x32xf32, #tpu.memory_space<vmem>>, vector<1x1x32xf32>
    %237 = vector.shape_cast %236 : vector<1x1x32xf32> to vector<1x32xf32>
    %238 = vector.shape_cast %237 : vector<1x32xf32> to vector<1x1x32xf32>
    %239 = vector.broadcast %238 : vector<1x1x32xf32> to vector<16x16x32xf32>
    %240 = arith.mulf %235, %239 : vector<16x16x32xf32>
    %241 = arith.addf %234, %240 : vector<16x16x32xf32>
    %c4_204 = arith.constant 4 : index
    %c3_205 = arith.constant 3 : index
    %c0_206 = arith.constant 0 : index
    %242 = vector.load %arg9[%c4_204, %c3_205, %c0_206] : memref<20x20x32xf32, #tpu.memory_space<vmem>>, vector<16x16x32xf32>
    %c23 = arith.constant 23 : index
    %c0_207 = arith.constant 0 : index
    %c0_208 = arith.constant 0 : index
    %243 = vector.load %arg6[%c23, %c0_207, %c0_208] : memref<25x1x32xf32, #tpu.memory_space<vmem>>, vector<1x1x32xf32>
    %244 = vector.shape_cast %243 : vector<1x1x32xf32> to vector<1x32xf32>
    %245 = vector.shape_cast %244 : vector<1x32xf32> to vector<1x1x32xf32>
    %246 = vector.broadcast %245 : vector<1x1x32xf32> to vector<16x16x32xf32>
    %247 = arith.mulf %242, %246 : vector<16x16x32xf32>
    %248 = arith.addf %241, %247 : vector<16x16x32xf32>
    %c4_209 = arith.constant 4 : index
    %c4_210 = arith.constant 4 : index
    %c0_211 = arith.constant 0 : index
    %249 = vector.load %arg9[%c4_209, %c4_210, %c0_211] : memref<20x20x32xf32, #tpu.memory_space<vmem>>, vector<16x16x32xf32>
    %c24 = arith.constant 24 : index
    %c0_212 = arith.constant 0 : index
    %c0_213 = arith.constant 0 : index
    %250 = vector.load %arg6[%c24, %c0_212, %c0_213] : memref<25x1x32xf32, #tpu.memory_space<vmem>>, vector<1x1x32xf32>
    %251 = vector.shape_cast %250 : vector<1x1x32xf32> to vector<1x32xf32>
    %252 = vector.shape_cast %251 : vector<1x32xf32> to vector<1x1x32xf32>
    %253 = vector.broadcast %252 : vector<1x1x32xf32> to vector<16x16x32xf32>
    %254 = arith.mulf %249, %253 : vector<16x16x32xf32>
    %255 = arith.addf %248, %254 : vector<16x16x32xf32>
    %cst_214 = arith.constant dense<0.000000e+00> : vector<16x16xf32>
    %256 = vector.multi_reduction <add>, %255, %cst_214 [2] : vector<16x16x32xf32> to vector<16x16xf32>
    %c0_215 = arith.constant 0 : index
    %c0_216 = arith.constant 0 : index
    %257 = vector.load %arg7[%c0_215, %c0_216] : memref<1x1xf32, #tpu.memory_space<vmem>>, vector<1x1xf32>
    %258 = vector.broadcast %257 : vector<1x1xf32> to vector<16x16xf32>
    %259 = arith.addf %256, %258 : vector<16x16xf32>
    %260 = vector.shape_cast %259 : vector<16x16xf32> to vector<1x16x16xf32>
    %c0_217 = arith.constant 0 : index
    %c0_218 = arith.constant 0 : index
    %c0_219 = arith.constant 0 : index
    %261 = vector.load %arg8[%c0_217, %c0_218, %c0_219] : memref<1x16x16xf32, #tpu.memory_space<vmem>>, vector<1x16x16xf32>
    tpu.vector_store %arg8[%c0_217, %c0_218, %c0_219], %260 {strides = array<i32>} : memref<1x16x16xf32, #tpu.memory_space<vmem>>, vector<1x16x16xf32>,
    return
  }
  func.func @transform_0(%arg0: i32) -> (i32, i32, i32, i32) {
    %c0_i32 = arith.constant 0 : i32
    %c0_i32_0 = arith.constant 0 : i32
    %c0_i32_1 = arith.constant 0 : i32
    %c0_i32_2 = arith.constant 0 : i32
    return %arg0, %c0_i32, %c0_i32_0, %c0_i32_1 : i32, i32, i32, i32
  }
  func.func @transform_1(%arg0: i32) -> (i32, i32, i32) {
    %c0_i32 = arith.constant 0 : i32
    %c0_i32_0 = arith.constant 0 : i32
    %c0_i32_1 = arith.constant 0 : i32
    %c0_i32_2 = arith.constant 0 : i32
    return %c0_i32, %c0_i32_0, %c0_i32_1 : i32, i32, i32
  }
  func.func @transform_2(%arg0: i32) -> (i32, i32) {
    %c0_i32 = arith.constant 0 : i32
    %c0_i32_0 = arith.constant 0 : i32
    %c0_i32_1 = arith.constant 0 : i32
    return %c0_i32, %c0_i32_0 : i32, i32
  }
  func.func @transform_3(%arg0: i32) -> (i32, i32) {
    %c0_i32 = arith.constant 0 : i32
    %c0_i32_0 = arith.constant 0 : i32
    %c0_i32_1 = arith.constant 0 : i32
    return %c0_i32, %c0_i32_0 : i32, i32
  }
  func.func @transform_4(%arg0: i32) -> (i32, i32) {
    %c0_i32 = arith.constant 0 : i32
    %c0_i32_0 = arith.constant 0 : i32
    %c0_i32_1 = arith.constant 0 : i32
    return %c0_i32, %c0_i32_0 : i32, i32
  }
  func.func @transform_5(%arg0: i32) -> (i32, i32, i32) {
    %c0_i32 = arith.constant 0 : i32
    %c0_i32_0 = arith.constant 0 : i32
    %c0_i32_1 = arith.constant 0 : i32
    %c0_i32_2 = arith.constant 0 : i32
    return %c0_i32, %c0_i32_0, %c0_i32_1 : i32, i32, i32
  }
  func.func @transform_6(%arg0: i32) -> (i32, i32) {
    %c0_i32 = arith.constant 0 : i32
    %c0_i32_0 = arith.constant 0 : i32
    %c0_i32_1 = arith.constant 0 : i32
    return %c0_i32, %c0_i32_0 : i32, i32
  }
  func.func @transform_7(%arg0: i32) -> (i32, i32, i32) {
    %c0_i32 = arith.constant 0 : i32
    %c0_i32_0 = arith.constant 0 : i32
    %c0_i32_1 = arith.constant 0 : i32
    return %arg0, %c0_i32, %c0_i32_0 : i32, i32, i32
  }
}

</mosaic_0001>

<llo_original>
// kernel: srcnn_forward.1
$region0: #{srcnn_forward.1}
  #allocation0 [shape = 'u32[]', space=smem, size = 0x4, offset = 0x4, fixed_abs, tag = 'smem constant byte address 0x4 - core index']
  #allocation1 [shape = 'u32[144,128]{1,0:T(1,128)}', space=vmem, size = 0x12000, scoped, tag = 'internal scratch']
  #allocation2 [shape = 'f32[20,20,32]{2,1,0:T(8,128)}', space=vmem, size = 0x3c000, scoped, tag = 'scratch operand']
  #allocation3 [shape = 'f32[1,1]{1,0:T(1,128)S(1)}', space=vmem, size = 0x200, scoped, tag = 'scoped memory for srcnn_forward.1']
  %s0 = inlined_call_operand.vmem [shape: f32[2,24,16,9], index: 0, kind: input, shape index: {}]
  %s1 = inlined_call_operand.vmem [shape: f32[9,9,64], index: 1, kind: input, shape index: {}]
  %s2 = inlined_call_operand.vmem [shape: f32[1,64], index: 2, kind: input, shape index: {}]
  %s3 = inlined_call_operand.vmem [shape: f32[64,32], index: 3, kind: input, shape index: {}]
  %s4 = inlined_call_operand.vmem [shape: f32[1,32], index: 4, kind: input, shape index: {}]
  %s5 = inlined_call_operand.vmem [shape: f32[25,1,32], index: 5, kind: input, shape index: {}]
  %s6 = inlined_call_operand.<no memory space> [shape: f32[1,1], index: 6, kind: input, shape index: {}]
  %s7 = inlined_call_operand.hbm [shape: f32[2,16,16], index: 7, kind: output, shape index: {}]
  %s8 = sld [smem:[#allocation0]]
  $region61: #{srcnn_forward.1} parent=0
    _
  %s10 = ssub.s32 1, %s8
  %s11 = scalar_select 0, %s10, %s8
  %v12 = vstv %s6
  %13 = vst [vmem:[#allocation3] sm:$0x1] %v12
  $region1: #{srcnn_forward.1} parent=0
    #allocation4 [shape = 'u8[16384]{0}', space=vmem, size = 0x4000, scoped, tag = 'output window, operand 0']
    #allocation5 [shape = 's32[2]{0}', space=sflag, size = 0x8, scoped, tag = 'scoped memory for srcnn_forward.1']
    %14 = vsyncpa [#allocation5], 0
    %s15 = scalar_lea.sflag [#allocation5], 1
    %16 = vsyncpa %s15, 0
    loop: start=0, step=1, limit=4
    $region2: #{srcnn_forward.1} parent=1 // loop_pre_header
      _
    $region3: #{srcnn_forward.1} parent=1 // loop_header
      %s18 = sphi 0, %s22
      %p19 = scmp.ge.s32.totalorder %s18, 4
      %s28 = sphi 0, %s30
      %s31 = sphi 0, %s28
      %s32 = sphi 0, %s31
      %s48 = sphi 0, %s32
      %s52 = sphi 0, %s52
      %s54 = sphi 0, %s52
      %s55 = sphi 0, %s54
      %s69 = sphi 0, %s55
      %s73 = sphi 0, %s73
      %s75 = sphi 0, %s73
      %s76 = sphi 0, %s75
      %s90 = sphi 0, %s76
      %s94 = sphi 0, %s94
      %s96 = sphi 0, %s94
      %s97 = sphi 0, %s96
      %s111 = sphi 0, %s97
      %s115 = sphi 0, %s115
      %s117 = sphi 0, %s115
      %s118 = sphi 0, %s117
      %s132 = sphi 0, %s118
      %s136 = sphi 0, %s136
      %s138 = sphi 0, %s136
      %s139 = sphi 0, %s138
      %s153 = sphi 0, %s139
      %s157 = sphi 0, %s157
      %s159 = sphi 0, %s157
      %s160 = sphi 0, %s159
      %s174 = sphi 0, %s160
      %s180 = sphi 0, %s182
      %s183 = sphi 0, %s180
      %s184 = sphi 0, %s183
      %s200 = sphi 0, %s184
    $region4: #{srcnn_forward.1} parent=1 // loop_header_branch
      %21 = sbr.rel (%p19) target = $region8
    $region5: #{srcnn_forward.1} parent=1 // loop_body
      %s23 = ssub.s32 %s18, 1
      %s24 = ssub.s32 %s18, 2
      %s25 = sadd.s32 %s18, 1
      %s26 = ssub.s32 %s18, %s25
      %p27 = scmp.eq.s32.totalorder %s26, 0
      %s29 = sadd.s32 %s28, 1
      %s30 = scalar_select %p27, %s28, %s29
      %p33 = pneg %p27
      %p34 = scmp.eq.s32.totalorder %s18, 1
      %p35 = por %p33, %p34
      %p36 = scmp.ne.s32.totalorder %s28, %s31
      %p37 = scmp.eq.s32.totalorder %s18, 0
      %p38 = por %p36, %p37
      %p39 = scmp.ne.s32.totalorder %s28, %s31
      %p40 = scmp.eq.s32.totalorder %s23, 1
      %p41 = por %p39, %p40
      %p42 = scmp.ne.s32.totalorder %s31, %s32
      %p43 = scmp.eq.s32.totalorder %s23, 0
      %p44 = por %p42, %p43
      %p45 = scmp.ne.s32.totalorder %s31, %s32
      %p46 = scmp.eq.s32.totalorder %s24, 1
      %p47 = por %p45, %p46
      %p49 = scmp.ne.s32.totalorder %s32, %s48
      %p50 = scmp.eq.s32.totalorder %s24, 0
      %p51 = por %p49, %p50
      %s53 = sadd.s32 %s52, 1
      %p56 = scmp.eq.s32.totalorder %s18, 1
      %p57 = scmp.ne.s32.totalorder %s52, %s54
      %p58 = scmp.eq.s32.totalorder %s18, 0
      %p59 = por %p57, %p58
      %p60 = scmp.ne.s32.totalorder %s52, %s54
      %p61 = scmp.eq.s32.totalorder %s23, 1
      %p62 = por %p60, %p61
      %p63 = scmp.ne.s32.totalorder %s54, %s55
      %p64 = scmp.eq.s32.totalorder %s23, 0
      %p65 = por %p63, %p64
      %p66 = scmp.ne.s32.totalorder %s54, %s55
      %p67 = scmp.eq.s32.totalorder %s24, 1
      %p68 = por %p66, %p67
      %p70 = scmp.ne.s32.totalorder %s55, %s69
      %p71 = scmp.eq.s32.totalorder %s24, 0
      %p72 = por %p70, %p71
      %s74 = sadd.s32 %s73, 1
      %p77 = scmp.eq.s32.totalorder %s18, 1
      %p78 = scmp.ne.s32.totalorder %s73, %s75
      %p79 = scmp.eq.s32.totalorder %s18, 0
      %p80 = por %p78, %p79
      %p81 = scmp.ne.s32.totalorder %s73, %s75
      %p82 = scmp.eq.s32.totalorder %s23, 1
      %p83 = por %p81, %p82
      %p84 = scmp.ne.s32.totalorder %s75, %s76
      %p85 = scmp.eq.s32.totalorder %s23, 0
      %p86 = por %p84, %p85
      %p87 = scmp.ne.s32.totalorder %s75, %s76
      %p88 = scmp.eq.s32.totalorder %s24, 1
      %p89 = por %p87, %p88
      %p91 = scmp.ne.s32.totalorder %s76, %s90
      %p92 = scmp.eq.s32.totalorder %s24, 0
      %p93 = por %p91, %p92
      %s95 = sadd.s32 %s94, 1
      %p98 = scmp.eq.s32.totalorder %s18, 1
      %p99 = scmp.ne.s32.totalorder %s94, %s96
      %p100 = scmp.eq.s32.totalorder %s18, 0
      %p101 = por %p99, %p100
      %p102 = scmp.ne.s32.totalorder %s94, %s96
      %p103 = scmp.eq.s32.totalorder %s23, 1
      %p104 = por %p102, %p103
      %p105 = scmp.ne.s32.totalorder %s96, %s97
      %p106 = scmp.eq.s32.totalorder %s23, 0
      %p107 = por %p105, %p106
      %p108 = scmp.ne.s32.totalorder %s96, %s97
      %p109 = scmp.eq.s32.totalorder %s24, 1
      %p110 = por %p108, %p109
      %p112 = scmp.ne.s32.totalorder %s97, %s111
      %p113 = scmp.eq.s32.totalorder %s24, 0
      %p114 = por %p112, %p113
      %s116 = sadd.s32 %s115, 1
      %p119 = scmp.eq.s32.totalorder %s18, 1
      %p120 = scmp.ne.s32.totalorder %s115, %s117
      %p121 = scmp.eq.s32.totalorder %s18, 0
      %p122 = por %p120, %p121
      %p123 = scmp.ne.s32.totalorder %s115, %s117
      %p124 = scmp.eq.s32.totalorder %s23, 1
      %p125 = por %p123, %p124
      %p126 = scmp.ne.s32.totalorder %s117, %s118
      %p127 = scmp.eq.s32.totalorder %s23, 0
      %p128 = por %p126, %p127
      %p129 = scmp.ne.s32.totalorder %s117, %s118
      %p130 = scmp.eq.s32.totalorder %s24, 1
      %p131 = por %p129, %p130
      %p133 = scmp.ne.s32.totalorder %s118, %s132
      %p134 = scmp.eq.s32.totalorder %s24, 0
      %p135 = por %p133, %p134
      %s137 = sadd.s32 %s136, 1
      %p140 = scmp.eq.s32.totalorder %s18, 1
      %p141 = scmp.ne.s32.totalorder %s136, %s138
      %p142 = scmp.eq.s32.totalorder %s18, 0
      %p143 = por %p141, %p142
      %p144 = scmp.ne.s32.totalorder %s136, %s138
      %p145 = scmp.eq.s32.totalorder %s23, 1
      %p146 = por %p144, %p145
      %p147 = scmp.ne.s32.totalorder %s138, %s139
      %p148 = scmp.eq.s32.totalorder %s23, 0
      %p149 = por %p147, %p148
      %p150 = scmp.ne.s32.totalorder %s138, %s139
      %p151 = scmp.eq.s32.totalorder %s24, 1
      %p152 = por %p150, %p151
      %p154 = scmp.ne.s32.totalorder %s139, %s153
      %p155 = scmp.eq.s32.totalorder %s24, 0
      %p156 = por %p154, %p155
      %s158 = sadd.s32 %s157, 1
      %p161 = scmp.eq.s32.totalorder %s18, 1
      %p162 = scmp.ne.s32.totalorder %s157, %s159
      %p163 = scmp.eq.s32.totalorder %s18, 0
      %p164 = por %p162, %p163
      %p165 = scmp.ne.s32.totalorder %s157, %s159
      %p166 = scmp.eq.s32.totalorder %s23, 1
      %p167 = por %p165, %p166
      %p168 = scmp.ne.s32.totalorder %s159, %s160
      %p169 = scmp.eq.s32.totalorder %s23, 0
      %p170 = por %p168, %p169
      %p171 = scmp.ne.s32.totalorder %s159, %s160
      %p172 = scmp.eq.s32.totalorder %s24, 1
      %p173 = por %p171, %p172
      %p175 = scmp.ne.s32.totalorder %s160, %s174
      %p176 = scmp.eq.s32.totalorder %s24, 0
      %p177 = por %p175, %p176
      %s178 = ssub.s32 %s18, %s25
      %p179 = scmp.eq.s32.totalorder %s178, 0
      %s181 = sadd.s32 %s180, 1
      %s182 = scalar_select %p179, %s180, %s181
      %p185 = pneg %p179
      %p186 = scmp.eq.s32.totalorder %s18, 1
      %p187 = por %p185, %p186
      %p188 = scmp.ne.s32.totalorder %s180, %s183
      %p189 = scmp.eq.s32.totalorder %s18, 0
      %p190 = por %p188, %p189
      %p191 = scmp.ne.s32.totalorder %s180, %s183
      %p192 = scmp.eq.s32.totalorder %s23, 1
      %p193 = por %p191, %p192
      %p194 = scmp.ne.s32.totalorder %s183, %s184
      %p195 = scmp.eq.s32.totalorder %s23, 0
      %p196 = por %p194, %p195
      %p197 = scmp.ne.s32.totalorder %s183, %s184
      %p198 = scmp.eq.s32.totalorder %s24, 1
      %p199 = por %p197, %p198
      %p201 = scmp.ne.s32.totalorder %s184, %s200
      %p202 = scmp.eq.s32.totalorder %s24, 0
      %p203 = por %p201, %p202
      %p204 = scmp.le.s32.totalorder 1, %s18
      %p205 = scmp.lt.s32.totalorder %s18, 3
      %p206 = pnand %p204, %p205
      %p207 = pneg %p206
      // Predicated region
      $region9: #{srcnn_forward.1} parent=5 // pred_check
        _
      $region10: #{srcnn_forward.1} parent=5 // pred_check_branch
        %209 = sbr.rel (%p206) target = $region12
      $region11: #{srcnn_forward.1} parent=5 // pred_region
        %s210 = ssub.s32 %s18, 1
        // Predicated region
        $region13: #{srcnn_forward.1} parent=11 // pred_check
          %p211 = pneg %p65
        $region14: #{srcnn_forward.1} parent=11 // pred_check_branch
          %213 = sbr.rel (%p211) target = $region16
        $region15: #{srcnn_forward.1} parent=11 // pred_region
          _
        $region16: #{srcnn_forward.1} parent=11 // pred_fallthru
          _
        // Predicated region
        $region17: #{srcnn_forward.1} parent=11 // pred_check
          %p214 = pneg %p86
        $region18: #{srcnn_forward.1} parent=11 // pred_check_branch
          %216 = sbr.rel (%p214) target = $region20
        $region19: #{srcnn_forward.1} parent=11 // pred_region
          _
        $region20: #{srcnn_forward.1} parent=11 // pred_fallthru
          _
        // Predicated region
        $region21: #{srcnn_forward.1} parent=11 // pred_check
          %p217 = pneg %p107
        $region22: #{srcnn_forward.1} parent=11 // pred_check_branch
          %219 = sbr.rel (%p217) target = $region24
        $region23: #{srcnn_forward.1} parent=11 // pred_region
          _
        $region24: #{srcnn_forward.1} parent=11 // pred_fallthru
          _
        // Predicated region
        $region25: #{srcnn_forward.1} parent=11 // pred_check
          %p220 = pneg %p128
        $region26: #{srcnn_forward.1} parent=11 // pred_check_branch
          %222 = sbr.rel (%p220) target = $region28
        $region27: #{srcnn_forward.1} parent=11 // pred_region
          _
        $region28: #{srcnn_forward.1} parent=11 // pred_fallthru
          _
        // Predicated region
        $region29: #{srcnn_forward.1} parent=11 // pred_check
          %p223 = pneg %p149
        $region30: #{srcnn_forward.1} parent=11 // pred_check_branch
          %225 = sbr.rel (%p223) target = $region32
        $region31: #{srcnn_forward.1} parent=11 // pred_region
          _
        $region32: #{srcnn_forward.1} parent=11 // pred_fallthru
          _
        // Predicated region
        $region33: #{srcnn_forward.1} parent=11 // pred_check
          %p226 = pneg %p170
        $region34: #{srcnn_forward.1} parent=11 // pred_check_branch
          %228 = sbr.rel (%p226) target = $region36
        $region35: #{srcnn_forward.1} parent=11 // pred_region
          _
        $region36: #{srcnn_forward.1} parent=11 // pred_fallthru
          _
      $region12: #{srcnn_forward.1} parent=5 // pred_fallthru
        _
      %p229 = scmp.lt.s32.totalorder %s18, 2
      // Predicated region
      $region37: #{srcnn_forward.1} parent=5 // pred_check
        %p230 = pneg %p229
      $region38: #{srcnn_forward.1} parent=5 // pred_check_branch
        %232 = sbr.rel (%p230) target = $region40
      $region39: #{srcnn_forward.1} parent=5 // pred_region
        // Predicated region
        $region41: #{srcnn_forward.1} parent=39 // pred_check
          %p233 = pneg %p38
        $region42: #{srcnn_forward.1} parent=39 // pred_check_branch
          %235 = sbr.rel (%p233) target = $region44
        $region43: #{srcnn_forward.1} parent=39 // pred_region
          %p236 = scmp.lt.s32.totalorder %s18, 1
          %s237 = scalar_select %p236, %s18, 1
          %s238 = smul.addr %s237, 48
          %s239 = smul.addr %s238, 8
          %s240 = scalar_lea.vmem %s0, %s239
        $region44: #{srcnn_forward.1} parent=39 // pred_fallthru
          _
      $region40: #{srcnn_forward.1} parent=5 // pred_fallthru
        _
      %p241 = scmp.le.s32.totalorder 1, %s18
      %p242 = scmp.lt.s32.totalorder %s18, 3
      %p243 = pnand %p241, %p242
      %p244 = pneg %p243
      // Predicated region
      $region45: #{srcnn_forward.1} parent=5 // pred_check
        _
      $region46: #{srcnn_forward.1} parent=5 // pred_check_branch
        %246 = sbr.rel (%p243) target = $region48
      $region47: #{srcnn_forward.1} parent=5 // pred_region
        %s247 = ssub.s32 %s18, 1
        %p248 = scmp.lt.s32.totalorder %s23, 1
        %s249 = scalar_select %p248, %s23, 1
        %s250 = smul.addr %s249, 48
        %s251 = smul.addr %s250, 8
        %s252 = scalar_lea.vmem %s0, %s251
        %p253 = pneg %p44
        %p254 = pneg %p41
        %p255 = pneg %p65
        %p256 = pneg %p62
        %p257 = pneg %p86
        %p258 = pneg %p83
        %p259 = pneg %p107
        %p260 = pneg %p104
        %p261 = pneg %p128
        %p262 = pneg %p125
        %p263 = pneg %p149
        %p264 = pneg %p146
        %p265 = pneg %p170
        %p266 = pneg %p167
        %p267 = pneg %p196
        %p268 = pneg %p193
        %s269 = sand.u32 %s183, 1
        %s270 = scalar_lea.sflag [#allocation5], %s269
        %s271 = sand.u32 %s183, 1
        %s272 = smul.addr %s271, 16
        %s273 = scalar_lea.vmem [#allocation4], %s272
        %p274 = scmp.lt.s32.totalorder %s23, 1
        %s275 = scalar_select %p274, %s23, 1
        %s276 = smul.addr %s275, 48
        %s277 = smul.addr %s276, 8
        %s278 = scalar_lea.vmem %s0, %s277
        %v279 = vld [vmem:[%s278] sm:$0xff]
        %v280 = vld [vmem:[%s278 + $0x8] sm:$0xff]
        %v281 = vld [vmem:[%s278 + $0x10] sm:$0xff]
        %v282 = vld [vmem:[%s278 + $0x18] sm:$0xff]
        %v283 = vld [vmem:[%s278 + $0x20] sm:$0xff]
        %v284 = vld [vmem:[%s278 + $0x28] sm:$0xff]
        %v285 = vld [vmem:[%s278 + $0x30] sm:$0xff]
        %v286 = vld [vmem:[%s278 + $0x38] sm:$0xff]
        %v287 = vld [vmem:[%s278 + $0x40] sm:$0xff]
        %v288 = vld [vmem:[%s278 + $0x48] sm:$0xff]
        %v289 = vld [vmem:[%s278 + $0x50] sm:$0xff]
        %v290 = vld [vmem:[%s278 + $0x58] sm:$0xff]
        %v291 = vld [vmem:[%s278 + $0x60] sm:$0xff]
        %v292 = vld [vmem:[%s278 + $0x68] sm:$0xff]
        %v293 = vld [vmem:[%s278 + $0x70] sm:$0xff]
        %v294 = vld [vmem:[%s278 + $0x78] sm:$0xff]
        %v295 = vld [vmem:[%s278 + $0x80] sm:$0xff]
        %v296 = vld [vmem:[%s278 + $0x88] sm:$0xff]
        %v297 = vld [vmem:[%s278 + $0x90] sm:$0xff]
        %v298 = vld [vmem:[%s278 + $0x98] sm:$0xff]
        %v299 = vld [vmem:[%s278 + $0xa0] sm:$0xff]
        %v300 = vld [vmem:[%s278 + $0xa8] sm:$0xff]
        %v301 = vld [vmem:[%s278 + $0xb0] sm:$0xff]
        %v302 = vld [vmem:[%s278 + $0xb8] sm:$0xff]
        %v303 = vld [vmem:[%s278 + $0xc0] sm:$0xff]
        %v304 = vld [vmem:[%s278 + $0xc8] sm:$0xff]
        %v305 = vld [vmem:[%s278 + $0xd0] sm:$0xff]
        %v306 = vld [vmem:[%s278 + $0xd8] sm:$0xff]
        %v307 = vld [vmem:[%s278 + $0xe0] sm:$0xff]
        %v308 = vld [vmem:[%s278 + $0xe8] sm:$0xff]
        %v309 = vld [vmem:[%s278 + $0xf0] sm:$0xff]
        %v310 = vld [vmem:[%s278 + $0xf8] sm:$0xff]
        %v311 = vld [vmem:[%s1] sm:$0xff]
        %v312 = vld [vmem:[%s1 + $0x8] sm:$0x1]
        %s313 = scalar_lea.vmem %s278, 16
        %v314 = vld [vmem:[%s313] sm:$0xff]
        %v315 = vld [vmem:[%s313 + $0x8] sm:$0xff]
        %v316 = vld [vmem:[%s313 + $0x10] sm:$0xff]
        %v317 = vld [vmem:[%s313 + $0x18] sm:$0xff]
        %v318 = vld [vmem:[%s313 + $0x20] sm:$0xff]
        %v319 = vld [vmem:[%s313 + $0x28] sm:$0xff]
        %v320 = vld [vmem:[%s313 + $0x30] sm:$0xff]
        %v321 = vld [vmem:[%s313 + $0x38] sm:$0xff]
        %v322 = vld [vmem:[%s313 + $0x40] sm:$0xff]
        %v323 = vld [vmem:[%s313 + $0x48] sm:$0xff]
        %v324 = vld [vmem:[%s313 + $0x50] sm:$0xff]
        %v325 = vld [vmem:[%s313 + $0x58] sm:$0xff]
        %v326 = vld [vmem:[%s313 + $0x60] sm:$0xff]
        %v327 = vld [vmem:[%s313 + $0x68] sm:$0xff]
        %v328 = vld [vmem:[%s313 + $0x70] sm:$0xff]
        %v329 = vld [vmem:[%s313 + $0x78] sm:$0xff]
        %v330 = vld [vmem:[%s313 + $0x80] sm:$0xff]
        %v331 = vld [vmem:[%s313 + $0x88] sm:$0xff]
        %v332 = vld [vmem:[%s313 + $0x90] sm:$0xff]
        %v333 = vld [vmem:[%s313 + $0x98] sm:$0xff]
        %v334 = vld [vmem:[%s313 + $0xa0] sm:$0xff]
        %v335 = vld [vmem:[%s313 + $0xa8] sm:$0xff]
        %v336 = vld [vmem:[%s313 + $0xb0] sm:$0xff]
        %v337 = vld [vmem:[%s313 + $0xb8] sm:$0xff]
        %v338 = vld [vmem:[%s313 + $0xc0] sm:$0xff]
        %v339 = vld [vmem:[%s313 + $0xc8] sm:$0xff]
        %v340 = vld [vmem:[%s313 + $0xd0] sm:$0xff]
        %v341 = vld [vmem:[%s313 + $0xd8] sm:$0xff]
        %v342 = vld [vmem:[%s313 + $0xe0] sm:$0xff]
        %v343 = vld [vmem:[%s313 + $0xe8] sm:$0xff]
        %v344 = vld [vmem:[%s313 + $0xf0] sm:$0xff]
        %v345 = vld [vmem:[%s313 + $0xf8] sm:$0xff]
        %s346 = scalar_lea.vmem %s1, 16
        %v347 = vld [vmem:[%s346] sm:$0xff]
        %v348 = vld [vmem:[%s346 + $0x8] sm:$0x1]
        %vm349 = vcmask 72704
        %v351 = vsel %vm349, %v314, 0
        %v354 = vsel %vm349, %v315, 0
        %v357 = vsel %vm349, %v316, 0
        %v360 = vsel %vm349, %v317, 0
        %v363 = vsel %vm349, %v318, 0
        %v366 = vsel %vm349, %v319, 0
        %v369 = vsel %vm349, %v320, 0
        %v372 = vsel %vm349, %v321, 0
        %v375 = vsel %vm349, %v322, 0
        %v378 = vsel %vm349, %v323, 0
        %v381 = vsel %vm349, %v324, 0
        %v384 = vsel %vm349, %v325, 0
        %v387 = vsel %vm349, %v326, 0
        %v390 = vsel %vm349, %v327, 0
        %v393 = vsel %vm349, %v328, 0
        %v396 = vsel %vm349, %v329, 0
        %v399 = vsel %vm349, %v330, 0
        %v402 = vsel %vm349, %v331, 0
        %v405 = vsel %vm349, %v332, 0
        %v408 = vsel %vm349, %v333, 0
        %v411 = vsel %vm349, %v334, 0
        %v414 = vsel %vm349, %v335, 0
        %v417 = vsel %vm349, %v336, 0
        %v420 = vsel %vm349, %v337, 0
        %v423 = vsel %vm349, %v338, 0
        %v426 = vsel %vm349, %v339, 0
        %v429 = vsel %vm349, %v340, 0
        %v432 = vsel %vm349, %v341, 0
        %v435 = vsel %vm349, %v342, 0
        %v438 = vsel %vm349, %v343, 0
        %v441 = vsel %vm349, %v344, 0
        %v444 = vsel %vm349, %v345, 0
        %vm446 = vcmask 1040384
        %v448 = vsel %vm446, %v348, 0
        %450 = vmatprep.subr.mxu0 0.0
        %451 = vmatpush1.msra.mxu0 %v347
        %452 = vmatprep.subr.mxu0 0.0
        %453 = vmatpush1.msra.mxu0 %v448
        %454 = vmatprep.subr.mxu0 0.0
        %455 = vmatpush1.msra.mxu0 0.0
        %456 = vmatprep.subr.mxu0 0.0
        %457 = vmatpush1.msra.mxu0 0.0
        %458 = vmatprep.subr.mxu0 0.0
        %459 = vmatpush1.msra.mxu0 0.0
        %460 = vmatprep.subr.mxu0 0.0
        %461 = vmatpush1.msra.mxu0 0.0
        %462 = vmatprep.subr.mxu0 0.0
        %463 = vmatpush1.msra.mxu0 0.0
        %464 = vmatprep.subr.mxu0 0.0
        %465 = vmatpush1.msra.mxu0 0.0
        %466 = vmatprep.subr.mxu0 0.0
        %467 = vmatpush1.msra.mxu0 0.0
        %468 = vmatprep.subr.mxu0 0.0
        %469 = vmatpush1.msra.mxu0 0.0
        %470 = vmatprep.subr.mxu0 0.0
        %471 = vmatpush1.msra.mxu0 0.0
        %472 = vmatprep.subr.mxu0 0.0
        %473 = vmatpush1.msra.mxu0 0.0
        %474 = vmatprep.subr.mxu0 0.0
        %475 = vmatpush1.msra.mxu0 0.0
        %476 = vmatprep.subr.mxu0 0.0
        %477 = vmatpush1.msra.mxu0 0.0
        %478 = vmatprep.subr.mxu0 0.0
        %479 = vmatpush1.msra.mxu0 0.0
        %480 = vmatprep.subr.mxu0 0.0
        %481 = vmatpush1.msra.mxu0 0.0
        %482 = vmatprep.subr.mxu0 0.0
        %483 = vmatpush1.msra.mxu0 0.0
        %484 = vmatprep.subr.mxu0 0.0
        %485 = vmatpush1.msra.mxu0 0.0
        %486 = vmatprep.subr.mxu0 0.0
        %487 = vmatpush1.msra.mxu0 0.0
        %488 = vmatprep.subr.mxu0 0.0
        %489 = vmatpush1.msra.mxu0 0.0
        %490 = vmatprep.subr.mxu0 0.0
        %491 = vmatpush1.msra.mxu0 0.0
        %492 = vmatprep.subr.mxu0 0.0
        %493 = vmatpush1.msra.mxu0 0.0
        %494 = vmatprep.subr.mxu0 0.0
        %495 = vmatpush1.msra.mxu0 0.0
        %496 = vmatprep.subr.mxu0 0.0
        %497 = vmatpush1.msra.mxu0 0.0
        %498 = vmatprep.subr.mxu0 0.0
        %499 = vmatpush1.msra.mxu0 0.0
        %500 = vmatprep.subr.mxu0 0.0
        %501 = vmatpush1.msra.mxu0 0.0
        %502 = vmatprep.subr.mxu0 0.0
        %503 = vmatpush1.msra.mxu0 0.0
        %504 = vmatprep.subr.mxu0 0.0
        %505 = vmatpush1.msra.mxu0 0.0
        %506 = vmatprep.subr.mxu0 0.0
        %507 = vmatpush1.msra.mxu0 0.0
        %508 = vmatprep.subr.mxu0 0.0
        %509 = vmatpush1.msra.mxu0 0.0
        %510 = vmatprep.subr.mxu0 0.0
        %511 = vmatpush1.msra.mxu0 0.0
        %512 = vmatprep.subr.mxu0 0.0
        %513 = vmatpush1.msra.mxu0 0.0
        %514 = vmatprep.mubr.f32.mxu0 0.0
        %515 = vmatmul.mubr.f32.gmra.mrb[0].mxu0 %v351
        %v516 = vpop.f32.mrb[0].mxu0
        %v517 = vadd.f32 0.0, %v516
        %v518 = vpop.f32.mrb[0].mxu0
        %519 = vmatprep.mubr.f32.mxu0 0.0
        %520 = vmatmul.mubr.f32.gmra.mrb[0].mxu0 %v354
        %v521 = vpop.f32.mrb[0].mxu0
        %v522 = vadd.f32 0.0, %v521
        %v523 = vpop.f32.mrb[0].mxu0
        %524 = vmatprep.mubr.f32.mxu0 0.0
        %525 = vmatmul.mubr.f32.gmra.mrb[0].mxu0 %v357
        %v526 = vpop.f32.mrb[0].mxu0
        %v527 = vadd.f32 0.0, %v526
        %v528 = vpop.f32.mrb[0].mxu0
        %529 = vmatprep.mubr.f32.mxu0 0.0
        %530 = vmatmul.mubr.f32.gmra.mrb[0].mxu0 %v360
        %v531 = vpop.f32.mrb[0].mxu0
        %v532 = vadd.f32 0.0, %v531
        %v533 = vpop.f32.mrb[0].mxu0
        %534 = vmatprep.mubr.f32.mxu0 0.0
        %535 = vmatmul.mubr.f32.gmra.mrb[0].mxu0 %v363
        %v536 = vpop.f32.mrb[0].mxu0
        %v537 = vadd.f32 0.0, %v536
        %v538 = vpop.f32.mrb[0].mxu0
        %539 = vmatprep.mubr.f32.mxu0 0.0
        %540 = vmatmul.mubr.f32.gmra.mrb[0].mxu0 %v366
        %v541 = vpop.f32.mrb[0].mxu0
        %v542 = vadd.f32 0.0, %v541
        %v543 = vpop.f32.mrb[0].mxu0
        %544 = vmatprep.mubr.f32.mxu0 0.0
        %545 = vmatmul.mubr.f32.gmra.mrb[0].mxu0 %v369
        %v546 = vpop.f32.mrb[0].mxu0
        %v547 = vadd.f32 0.0, %v546
        %v548 = vpop.f32.mrb[0].mxu0
        %549 = vmatprep.mubr.f32.mxu0 0.0
        %550 = vmatmul.mubr.f32.gmra.mrb[0].mxu0 %v372
        %v551 = vpop.f32.mrb[0].mxu0
        %v552 = vadd.f32 0.0, %v551
        %v553 = vpop.f32.mrb[0].mxu0
        %554 = vmatprep.mubr.f32.mxu0 0.0
        %555 = vmatmul.mubr.f32.gmra.mrb[0].mxu0 %v375
        %v556 = vpop.f32.mrb[0].mxu0
        %v557 = vadd.f32 0.0, %v556
        %v558 = vpop.f32.mrb[0].mxu0
        %559 = vmatprep.mubr.f32.mxu0 0.0
        %560 = vmatmul.mubr.f32.gmra.mrb[0].mxu0 %v378
        %v561 = vpop.f32.mrb[0].mxu0
        %v562 = vadd.f32 0.0, %v561
        %v563 = vpop.f32.mrb[0].mxu0
        %564 = vmatprep.mubr.f32.mxu0 0.0
        %565 = vmatmul.mubr.f32.gmra.mrb[0].mxu0 %v381
        %v566 = vpop.f32.mrb[0].mxu0
        %v567 = vadd.f32 0.0, %v566
        %v568 = vpop.f32.mrb[0].mxu0
        %569 = vmatprep.mubr.f32.mxu0 0.0
        %570 = vmatmul.mubr.f32.gmra.mrb[0].mxu0 %v384
        %v571 = vpop.f32.mrb[0].mxu0
        %v572 = vadd.f32 0.0, %v571
        %v573 = vpop.f32.mrb[0].mxu0
        %574 = vmatprep.mubr.f32.mxu0 0.0
        %575 = vmatmul.mubr.f32.gmra.mrb[0].mxu0 %v387
        %v576 = vpop.f32.mrb[0].mxu0
        %v577 = vadd.f32 0.0, %v576
        %v578 = vpop.f32.mrb[0].mxu0
        %579 = vmatprep.mubr.f32.mxu0 0.0
        %580 = vmatmul.mubr.f32.gmra.mrb[0].mxu0 %v390
        %v581 = vpop.f32.mrb[0].mxu0
        %v582 = vadd.f32 0.0, %v581
        %v583 = vpop.f32.mrb[0].mxu0
        %584 = vmatprep.mubr.f32.mxu0 0.0
        %585 = vmatmul.mubr.f32.gmra.mrb[0].mxu0 %v393
        %v586 = vpop.f32.mrb[0].mxu0
        %v587 = vadd.f32 0.0, %v586
        %v588 = vpop.f32.mrb[0].mxu0
        %589 = vmatprep.mubr.f32.mxu0 0.0
        %590 = vmatmul.mubr.f32.gmra.mrb[0].mxu0 %v396
        %v591 = vpop.f32.mrb[0].mxu0
        %v592 = vadd.f32 0.0, %v591
        %v593 = vpop.f32.mrb[0].mxu0
        %594 = vmatprep.mubr.f32.mxu0 0.0
        %595 = vmatmul.mubr.f32.gmra.mrb[0].mxu0 %v399
        %v596 = vpop.f32.mrb[0].mxu0
        %v597 = vadd.f32 0.0, %v596
        %v598 = vpop.f32.mrb[0].mxu0
        %599 = vmatprep.mubr.f32.mxu0 0.0
        %600 = vmatmul.mubr.f32.gmra.mrb[0].mxu0 %v402
        %v601 = vpop.f32.mrb[0].mxu0
        %v602 = vadd.f32 0.0, %v601
        %v603 = vpop.f32.mrb[0].mxu0
        %604 = vmatprep.mubr.f32.mxu0 0.0
        %605 = vmatmul.mubr.f32.gmra.mrb[0].mxu0 %v405
        %v606 = vpop.f32.mrb[0].mxu0
        %v607 = vadd.f32 0.0, %v606
        %v608 = vpop.f32.mrb[0].mxu0
        %609 = vmatprep.mubr.f32.mxu0 0.0
        %610 = vmatmul.mubr.f32.gmra.mrb[0].mxu0 %v408
        %v611 = vpop.f32.mrb[0].mxu0
        %v612 = vadd.f32 0.0, %v611
        %v613 = vpop.f32.mrb[0].mxu0
        %614 = vmatprep.mubr.f32.mxu0 0.0
        %615 = vmatmul.mubr.f32.gmra.mrb[0].mxu0 %v411
        %v616 = vpop.f32.mrb[0].mxu0
        %v617 = vadd.f32 0.0, %v616
        %v618 = vpop.f32.mrb[0].mxu0
        %619 = vmatprep.mubr.f32.mxu0 0.0
        %620 = vmatmul.mubr.f32.gmra.mrb[0].mxu0 %v414
        %v621 = vpop.f32.mrb[0].mxu0
        %v622 = vadd.f32 0.0, %v621
        %v623 = vpop.f32.mrb[0].mxu0
        %624 = vmatprep.mubr.f32.mxu0 0.0
        %625 = vmatmul.mubr.f32.gmra.mrb[0].mxu0 %v417
        %v626 = vpop.f32.mrb[0].mxu0
        %v627 = vadd.f32 0.0, %v626
        %v628 = vpop.f32.mrb[0].mxu0
        %629 = vmatprep.mubr.f32.mxu0 0.0
        %630 = vmatmul.mubr.f32.gmra.mrb[0].mxu0 %v420
        %v631 = vpop.f32.mrb[0].mxu0
        %v632 = vadd.f32 0.0, %v631
        %v633 = vpop.f32.mrb[0].mxu0
        %634 = vmatprep.mubr.f32.mxu0 0.0
        %635 = vmatmul.mubr.f32.gmra.mrb[0].mxu0 %v423
        %v636 = vpop.f32.mrb[0].mxu0
        %v637 = vadd.f32 0.0, %v636
        %v638 = vpop.f32.mrb[0].mxu0
        %639 = vmatprep.mubr.f32.mxu0 0.0
        %640 = vmatmul.mubr.f32.gmra.mrb[0].mxu0 %v426
        %v641 = vpop.f32.mrb[0].mxu0
        %v642 = vadd.f32 0.0, %v641
        %v643 = vpop.f32.mrb[0].mxu0
        %644 = vmatprep.mubr.f32.mxu0 0.0
        %645 = vmatmul.mubr.f32.gmra.mrb[0].mxu0 %v429
        %v646 = vpop.f32.mrb[0].mxu0
        %v647 = vadd.f32 0.0, %v646
        %v648 = vpop.f32.mrb[0].mxu0
        %649 = vmatprep.mubr.f32.mxu0 0.0
        %650 = vmatmul.mubr.f32.gmra.mrb[0].mxu0 %v432
        %v651 = vpop.f32.mrb[0].mxu0
        %v652 = vadd.f32 0.0, %v651
        %v653 = vpop.f32.mrb[0].mxu0
        %654 = vmatprep.mubr.f32.mxu0 0.0
        %655 = vmatmul.mubr.f32.gmra.mrb[0].mxu0 %v435
        %v656 = vpop.f32.mrb[0].mxu0
        %v657 = vadd.f32 0.0, %v656
        %v658 = vpop.f32.mrb[0].mxu0
        %659 = vmatprep.mubr.f32.mxu0 0.0
        %660 = vmatmul.mubr.f32.gmra.mrb[0].mxu0 %v438
        %v661 = vpop.f32.mrb[0].mxu0
        %v662 = vadd.f32 0.0, %v661
        %v663 = vpop.f32.mrb[0].mxu0
        %664 = vmatprep.mubr.f32.mxu0 0.0
        %665 = vmatmul.mubr.f32.gmra.mrb[0].mxu0 %v441
        %v666 = vpop.f32.mrb[0].mxu0
        %v667 = vadd.f32 0.0, %v666
        %v668 = vpop.f32.mrb[0].mxu0
        %669 = vmatprep.mubr.f32.mxu0 0.0
        %670 = vmatmul.mubr.f32.gmra.mrb[0].mxu0 %v444
        %v671 = vpop.f32.mrb[0].mxu0
        %v672 = vadd.f32 0.0, %v671
        %v673 = vpop.f32.mrb[0].mxu0
        %674 = vdwg.mxu0
        %v676 = vsel %vm349, %v279, 0
        %v679 = vsel %vm349, %v280, 0
        %v682 = vsel %vm349, %v281, 0
        %v685 = vsel %vm349, %v282, 0
        %v688 = vsel %vm349, %v283, 0
        %v691 = vsel %vm349, %v284, 0
        %v694 = vsel %vm349, %v285, 0
        %v697 = vsel %vm349, %v286, 0
        %v700 = vsel %vm349, %v287, 0
        %v703 = vsel %vm349, %v288, 0
        %v706 = vsel %vm349, %v289, 0
        %v709 = vsel %vm349, %v290, 0
        %v712 = vsel %vm349, %v291, 0
        %v715 = vsel %vm349, %v292, 0
        %v718 = vsel %vm349, %v293, 0
        %v721 = vsel %vm349, %v294, 0
        %v724 = vsel %vm349, %v295, 0
        %v727 = vsel %vm349, %v296, 0
        %v730 = vsel %vm349, %v297, 0
        %v733 = vsel %vm349, %v298, 0
        %v736 = vsel %vm349, %v299, 0
        %v739 = vsel %vm349, %v300, 0
        %v742 = vsel %vm349, %v301, 0
        %v745 = vsel %vm349, %v302, 0
        %v748 = vsel %vm349, %v303, 0
        %v751 = vsel %vm349, %v304, 0
        %v754 = vsel %vm349, %v305, 0
        %v757 = vsel %vm349, %v306, 0
        %v760 = vsel %vm349, %v307, 0
        %v763 = vsel %vm349, %v308, 0
        %v766 = vsel %vm349, %v309, 0
        %v769 = vsel %vm349, %v310, 0
        %v772 = vsel %vm446, %v312, 0
        %774 = vmatprep.subr.mxu0 0.0
        %775 = vmatpush1.msra.mxu0 %v311
        %776 = vmatprep.subr.mxu0 0.0
        %777 = vmatpush1.msra.mxu0 %v772
        %778 = vmatprep.subr.mxu0 0.0
        %779 = vmatpush1.msra.mxu0 0.0
        %780 = vmatprep.subr.mxu0 0.0
        %781 = vmatpush1.msra.mxu0 0.0
        %782 = vmatprep.subr.mxu0 0.0
        %783 = vmatpush1.msra.mxu0 0.0
        %784 = vmatprep.subr.mxu0 0.0
        %785 = vmatpush1.msra.mxu0 0.0
        %786 = vmatprep.subr.mxu0 0.0
        %787 = vmatpush1.msra.mxu0 0.0
        %788 = vmatprep.subr.mxu0 0.0
        %789 = vmatpush1.msra.mxu0 0.0
        %790 = vmatprep.subr.mxu0 0.0
        %791 = vmatpush1.msra.mxu0 0.0
        %792 = vmatprep.subr.mxu0 0.0
        %793 = vmatpush1.msra.mxu0 0.0
        %794 = vmatprep.subr.mxu0 0.0
        %795 = vmatpush1.msra.mxu0 0.0
        %796 = vmatprep.subr.mxu0 0.0
        %797 = vmatpush1.msra.mxu0 0.0
        %798 = vmatprep.subr.mxu0 0.0
        %799 = vmatpush1.msra.mxu0 0.0
        %800 = vmatprep.subr.mxu0 0.0
        %801 = vmatpush1.msra.mxu0 0.0
        %802 = vmatprep.subr.mxu0 0.0
        %803 = vmatpush1.msra.mxu0 0.0
        %804 = vmatprep.subr.mxu0 0.0
        %805 = vmatpush1.msra.mxu0 0.0
        %806 = vmatprep.subr.mxu0 0.0
        %807 = vmatpush1.msra.mxu0 0.0
        %808 = vmatprep.subr.mxu0 0.0
        %809 = vmatpush1.msra.mxu0 0.0
        %810 = vmatprep.subr.mxu0 0.0
        %811 = vmatpush1.msra.mxu0 0.0
        %812 = vmatprep.subr.mxu0 0.0
        %813 = vmatpush1.msra.mxu0 0.0
        %814 = vmatprep.subr.mxu0 0.0
        %815 = vmatpush1.msra.mxu0 0.0
        %816 = vmatprep.subr.mxu0 0.0
        %817 = vmatpush1.msra.mxu0 0.0
        %818 = vmatprep.subr.mxu0 0.0
        %819 = vmatpush1.msra.mxu0 0.0
        %820 = vmatprep.subr.mxu0 0.0
        %821 = vmatpush1.msra.mxu0 0.0
        %822 = vmatprep.subr.mxu0 0.0
        %823 = vmatpush1.msra.mxu0 0.0
        %824 = vmatprep.subr.mxu0 0.0
        %825 = vmatpush1.msra.mxu0 0.0
        %826 = vmatprep.subr.mxu0 0.0
        %827 = vmatpush1.msra.mxu0 0.0
        %828 = vmatprep.subr.mxu0 0.0
        %829 = vmatpush1.msra.mxu0 0.0
        %830 = vmatprep.subr.mxu0 0.0
        %831 = vmatpush1.msra.mxu0 0.0
        %832 = vmatprep.subr.mxu0 0.0
        %833 = vmatpush1.msra.mxu0 0.0
        %834 = vmatprep.subr.mxu0 0.0
        %835 = vmatpush1.msra.mxu0 0.0
        %836 = vmatprep.subr.mxu0 0.0
        %837 = vmatpush1.msra.mxu0 0.0
        %838 = vmatprep.mubr.f32.mxu0 0.0
        %839 = vmatmul.mubr.f32.gmra.mrb[0].mxu0 %v676
        %v840 = vpop.f32.mrb[0].mxu0
        %v841 = vadd.f32 %v517, %v840
        %v842 = vpop.f32.mrb[0].mxu0
        %843 = vmatprep.mubr.f32.mxu0 0.0
        %844 = vmatmul.mubr.f32.gmra.mrb[0].mxu0 %v679
        %v845 = vpop.f32.mrb[0].mxu0
        %v846 = vadd.f32 %v522, %v845
        %v847 = vpop.f32.mrb[0].mxu0
        %848 = vmatprep.mubr.f32.mxu0 0.0
        %849 = vmatmul.mubr.f32.gmra.mrb[0].mxu0 %v682
        %v850 = vpop.f32.mrb[0].mxu0
        %v851 = vadd.f32 %v527, %v850
        %v852 = vpop.f32.mrb[0].mxu0
        %853 = vmatprep.mubr.f32.mxu0 0.0
        %854 = vmatmul.mubr.f32.gmra.mrb[0].mxu0 %v685
        %v855 = vpop.f32.mrb[0].mxu0
        %v856 = vadd.f32 %v532, %v855
        %v857 = vpop.f32.mrb[0].mxu0
        %858 = vmatprep.mubr.f32.mxu0 0.0
        %859 = vmatmul.mubr.f32.gmra.mrb[0].mxu0 %v688
        %v860 = vpop.f32.mrb[0].mxu0
        %v861 = vadd.f32 %v537, %v860
        %v862 = vpop.f32.mrb[0].mxu0
        %863 = vmatprep.mubr.f32.mxu0 0.0
        %864 = vmatmul.mubr.f32.gmra.mrb[0].mxu0 %v691
        %v865 = vpop.f32.mrb[0].mxu0
        %v866 = vadd.f32 %v542, %v865
        %v867 = vpop.f32.mrb[0].mxu0
        %868 = vmatprep.mubr.f32.mxu0 0.0
        %869 = vmatmul.mubr.f32.gmra.mrb[0].mxu0 %v694
        %v870 = vpop.f32.mrb[0].mxu0
        %v871 = vadd.f32 %v547, %v870
        %v872 = vpop.f32.mrb[0].mxu0
        %873 = vmatprep.mubr.f32.mxu0 0.0
        %874 = vmatmul.mubr.f32.gmra.mrb[0].mxu0 %v697
        %v875 = vpop.f32.mrb[0].mxu0
        %v876 = vadd.f32 %v552, %v875
        %v877 = vpop.f32.mrb[0].mxu0
        %878 = vmatprep.mubr.f32.mxu0 0.0
        %879 = vmatmul.mubr.f32.gmra.mrb[0].mxu0 %v700
        %v880 = vpop.f32.mrb[0].mxu0
        %v881 = vadd.f32 %v557, %v880
        %v882 = vpop.f32.mrb[0].mxu0
        %883 = vmatprep.mubr.f32.mxu0 0.0
        %884 = vmatmul.mubr.f32.gmra.mrb[0].mxu0 %v703
        %v885 = vpop.f32.mrb[0].mxu0
        %v886 = vadd.f32 %v562, %v885
        %v887 = vpop.f32.mrb[0].mxu0
        %888 = vmatprep.mubr.f32.mxu0 0.0
        %889 = vmatmul.mubr.f32.gmra.mrb[0].mxu0 %v706
        %v890 = vpop.f32.mrb[0].mxu0
        %v891 = vadd.f32 %v567, %v890
        %v892 = vpop.f32.mrb[0].mxu0
        %893 = vmatprep.mubr.f32.mxu0 0.0
        %894 = vmatmul.mubr.f32.gmra.mrb[0].mxu0 %v709
        %v895 = vpop.f32.mrb[0].mxu0
        %v896 = vadd.f32 %v572, %v895
        %v897 = vpop.f32.mrb[0].mxu0
        %898 = vmatprep.mubr.f32.mxu0 0.0
        %899 = vmatmul.mubr.f32.gmra.mrb[0].mxu0 %v712
        %v900 = vpop.f32.mrb[0].mxu0
        %v901 = vadd.f32 %v577, %v900
        %v902 = vpop.f32.mrb[0].mxu0
        %903 = vmatprep.mubr.f32.mxu0 0.0
        %904 = vmatmul.mubr.f32.gmra.mrb[0].mxu0 %v715
        %v905 = vpop.f32.mrb[0].mxu0
        %v906 = vadd.f32 %v582, %v905
        %v907 = vpop.f32.mrb[0].mxu0
        %908 = vmatprep.mubr.f32.mxu0 0.0
        %909 = vmatmul.mubr.f32.gmra.mrb[0].mxu0 %v718
        %v910 = vpop.f32.mrb[0].mxu0
        %v911 = vadd.f32 %v587, %v910
        %v912 = vpop.f32.mrb[0].mxu0
        %913 = vmatprep.mubr.f32.mxu0 0.0
        %914 = vmatmul.mubr.f32.gmra.mrb[0].mxu0 %v721
        %v915 = vpop.f32.mrb[0].mxu0
        %v916 = vadd.f32 %v592, %v915
        %v917 = vpop.f32.mrb[0].mxu0
        %918 = vmatprep.mubr.f32.mxu0 0.0
        %919 = vmatmul.mubr.f32.gmra.mrb[0].mxu0 %v724
        %v920 = vpop.f32.mrb[0].mxu0
        %v921 = vadd.f32 %v597, %v920
        %v922 = vpop.f32.mrb[0].mxu0
        %923 = vmatprep.mubr.f32.mxu0 0.0
        %924 = vmatmul.mubr.f32.gmra.mrb[0].mxu0 %v727
        %v925 = vpop.f32.mrb[0].mxu0
        %v926 = vadd.f32 %v602, %v925
        %v927 = vpop.f32.mrb[0].mxu0
        %928 = vmatprep.mubr.f32.mxu0 0.0
        %929 = vmatmul.mubr.f32.gmra.mrb[0].mxu0 %v730
        %v930 = vpop.f32.mrb[0].mxu0
        %v931 = vadd.f32 %v607, %v930
        %v932 = vpop.f32.mrb[0].mxu0
        %933 = vmatprep.mubr.f32.mxu0 0.0
        %934 = vmatmul.mubr.f32.gmra.mrb[0].mxu0 %v733
        %v935 = vpop.f32.mrb[0].mxu0
        %v936 = vadd.f32 %v612, %v935
        %v937 = vpop.f32.mrb[0].mxu0
        %938 = vmatprep.mubr.f32.mxu0 0.0
        %939 = vmatmul.mubr.f32.gmra.mrb[0].mxu0 %v736
        %v940 = vpop.f32.mrb[0].mxu0
        %v941 = vadd.f32 %v617, %v940
        %v942 = vpop.f32.mrb[0].mxu0
        %943 = vmatprep.mubr.f32.mxu0 0.0
        %944 = vmatmul.mubr.f32.gmra.mrb[0].mxu0 %v739
        %v945 = vpop.f32.mrb[0].mxu0
        %v946 = vadd.f32 %v622, %v945
        %v947 = vpop.f32.mrb[0].mxu0
        %948 = vmatprep.mubr.f32.mxu0 0.0
        %949 = vmatmul.mubr.f32.gmra.mrb[0].mxu0 %v742
        %v950 = vpop.f32.mrb[0].mxu0
        %v951 = vadd.f32 %v627, %v950
        %v952 = vpop.f32.mrb[0].mxu0
        %953 = vmatprep.mubr.f32.mxu0 0.0
        %954 = vmatmul.mubr.f32.gmra.mrb[0].mxu0 %v745
        %v955 = vpop.f32.mrb[0].mxu0
        %v956 = vadd.f32 %v632, %v955
        %v957 = vpop.f32.mrb[0].mxu0
        %958 = vmatprep.mubr.f32.mxu0 0.0
        %959 = vmatmul.mubr.f32.gmra.mrb[0].mxu0 %v748
        %v960 = vpop.f32.mrb[0].mxu0
        %v961 = vadd.f32 %v637, %v960
        %v962 = vpop.f32.mrb[0].mxu0
        %963 = vmatprep.mubr.f32.mxu0 0.0
        %964 = vmatmul.mubr.f32.gmra.mrb[0].mxu0 %v751
        %v965 = vpop.f32.mrb[0].mxu0
        %v966 = vadd.f32 %v642, %v965
        %v967 = vpop.f32.mrb[0].mxu0
        %968 = vmatprep.mubr.f32.mxu0 0.0
        %969 = vmatmul.mubr.f32.gmra.mrb[0].mxu0 %v754
        %v970 = vpop.f32.mrb[0].mxu0
        %v971 = vadd.f32 %v647, %v970
        %v972 = vpop.f32.mrb[0].mxu0
        %973 = vmatprep.mubr.f32.mxu0 0.0
        %974 = vmatmul.mubr.f32.gmra.mrb[0].mxu0 %v757
        %v975 = vpop.f32.mrb[0].mxu0
        %v976 = vadd.f32 %v652, %v975
        %v977 = vpop.f32.mrb[0].mxu0
        %978 = vmatprep.mubr.f32.mxu0 0.0
        %979 = vmatmul.mubr.f32.gmra.mrb[0].mxu0 %v760
        %v980 = vpop.f32.mrb[0].mxu0
        %v981 = vadd.f32 %v657, %v980
        %v982 = vpop.f32.mrb[0].mxu0
        %983 = vmatprep.mubr.f32.mxu0 0.0
        %984 = vmatmul.mubr.f32.gmra.mrb[0].mxu0 %v763
        %v985 = vpop.f32.mrb[0].mxu0
        %v986 = vadd.f32 %v662, %v985
        %v987 = vpop.f32.mrb[0].mxu0
        %988 = vmatprep.mubr.f32.mxu0 0.0
        %989 = vmatmul.mubr.f32.gmra.mrb[0].mxu0 %v766
        %v990 = vpop.f32.mrb[0].mxu0
        %v991 = vadd.f32 %v667, %v990
        %v992 = vpop.f32.mrb[0].mxu0
        %993 = vmatprep.mubr.f32.mxu0 0.0
        %994 = vmatmul.mubr.f32.gmra.mrb[0].mxu0 %v769
        %v995 = vpop.f32.mrb[0].mxu0
        %v996 = vadd.f32 %v672, %v995
        %v997 = vpop.f32.mrb[0].mxu0
        %998 = vdwg.mxu0
        %s999 = scalar_lea.vmem %s278, 32
        %v1000 = vld [vmem:[%s999] sm:$0xff]
        %v1001 = vld [vmem:[%s999 + $0x8] sm:$0xff]
        %v1002 = vld [vmem:[%s999 + $0x10] sm:$0xff]
        %v1003 = vld [vmem:[%s999 + $0x18] sm:$0xff]
        %v1004 = vld [vmem:[%s999 + $0x20] sm:$0xff]
        %v1005 = vld [vmem:[%s999 + $0x28] sm:$0xff]
        %v1006 = vld [vmem:[%s999 + $0x30] sm:$0xff]
        %v1007 = vld [vmem:[%s999 + $0x38] sm:$0xff]
        %v1008 = vld [vmem:[%s999 + $0x40] sm:$0xff]
        %v1009 = vld [vmem:[%s999 + $0x48] sm:$0xff]
        %v1010 = vld [vmem:[%s999 + $0x50] sm:$0xff]
        %v1011 = vld [vmem:[%s999 + $0x58] sm:$0xff]
        %v1012 = vld [vmem:[%s999 + $0x60] sm:$0xff]
        %v1013 = vld [vmem:[%s999 + $0x68] sm:$0xff]
        %v1014 = vld [vmem:[%s999 + $0x70] sm:$0xff]
        %v1015 = vld [vmem:[%s999 + $0x78] sm:$0xff]
        %v1016 = vld [vmem:[%s999 + $0x80] sm:$0xff]
        %v1017 = vld [vmem:[%s999 + $0x88] sm:$0xff]
        %v1018 = vld [vmem:[%s999 + $0x90] sm:$0xff]
        %v1019 = vld [vmem:[%s999 + $0x98] sm:$0xff]
        %v1020 = vld [vmem:[%s999 + $0xa0] sm:$0xff]
        %v1021 = vld [vmem:[%s999 + $0xa8] sm:$0xff]
        %v1022 = vld [vmem:[%s999 + $0xb0] sm:$0xff]
        %v1023 = vld [vmem:[%s999 + $0xb8] sm:$0xff]
        %v1024 = vld [vmem:[%s999 + $0xc0] sm:$0xff]
        %v1025 = vld [vmem:[%s999 + $0xc8] sm:$0xff]
        %v1026 = vld [vmem:[%s999 + $0xd0] sm:$0xff]
        %v1027 = vld [vmem:[%s999 + $0xd8] sm:$0xff]
        %v1028 = vld [vmem:[%s999 + $0xe0] sm:$0xff]
        %v1029 = vld [vmem:[%s999 + $0xe8] sm:$0xff]
        %v1030 = vld [vmem:[%s999 + $0xf0] sm:$0xff]
        %v1031 = vld [vmem:[%s999 + $0xf8] sm:$0xff]
        %s1032 = scalar_lea.vmem %s1, 32
        %v1033 = vld [vmem:[%s1032] sm:$0xff]
        %v1034 = vld [vmem:[%s1032 + $0x8] sm:$0x1]
        %v1036 = vsel %vm349, %v1000, 0
        %v1039 = vsel %vm349, %v1001, 0
        %v1042 = vsel %vm349, %v1002, 0
        %v1045 = vsel %vm349, %v1003, 0
        %v1048 = vsel %vm349, %v1004, 0
        %v1051 = vsel %vm349, %v1005, 0
        %v1054 = vsel %vm349, %v1006, 0
        %v1057 = vsel %vm349, %v1007, 0
        %v1060 = vsel %vm349, %v1008, 0
        %v1063 = vsel %vm349, %v1009, 0
        %v1066 = vsel %vm349, %v1010, 0
        %v1069 = vsel %vm349, %v1011, 0
        %v1072 = vsel %vm349, %v1012, 0
        %v1075 = vsel %vm349, %v1013, 0
        %v1078 = vsel %vm349, %v1014, 0
        %v1081 = vsel %vm349, %v1015, 0
        %v1084 = vsel %vm349, %v1016, 0
        %v1087 = vsel %vm349, %v1017, 0
        %v1090 = vsel %vm349, %v1018, 0
        %v1093 = vsel %vm349, %v1019, 0
        %v1096 = vsel %vm349, %v1020, 0
        %v1099 = vsel %vm349, %v1021, 0
        %v1102 = vsel %vm349, %v1022, 0
        %v1105 = vsel %vm349, %v1023, 0
        %v1108 = vsel %vm349, %v1024, 0
        %v1111 = vsel %vm349, %v1025, 0
        %v1114 = vsel %vm349, %v1026, 0
        %v1117 = vsel %vm349, %v1027, 0
        %v1120 = vsel %vm349, %v1028, 0
        %v1123 = vsel %vm349, %v1029, 0
        %v1126 = vsel %vm349, %v1030, 0
        %v1129 = vsel %vm349, %v1031, 0
        %v1132 = vsel %vm446, %v1034, 0
        %1134 = vmatprep.subr.mxu0 0.0
        %1135 = vmatpush1.msra.mxu0 %v1033
        %1136 = vmatprep.subr.mxu0 0.0
        %1137 = vmatpush1.msra.mxu0 %v1132
        %1138 = vmatprep.subr.mxu0 0.0
        %1139 = vmatpush1.msra.mxu0 0.0
        %1140 = vmatprep.subr.mxu0 0.0
        %1141 = vmatpush1.msra.mxu0 0.0
        %1142 = vmatprep.subr.mxu0 0.0
        %1143 = vmatpush1.msra.mxu0 0.0
        %1144 = vmatprep.subr.mxu0 0.0
        %1145 = vmatpush1.msra.mxu0 0.0
        %1146 = vmatprep.subr.mxu0 0.0
        %1147 = vmatpush1.msra.mxu0 0.0
        %1148 = vmatprep.subr.mxu0 0.0
        %1149 = vmatpush1.msra.mxu0 0.0
        %1150 = vmatprep.subr.mxu0 0.0
        %1151 = vmatpush1.msra.mxu0 0.0
        %1152 = vmatprep.subr.mxu0 0.0
        %1153 = vmatpush1.msra.mxu0 0.0
        %1154 = vmatprep.subr.mxu0 0.0
        %1155 = vmatpush1.msra.mxu0 0.0
        %1156 = vmatprep.subr.mxu0 0.0
        %1157 = vmatpush1.msra.mxu0 0.0
        %1158 = vmatprep.subr.mxu0 0.0
        %1159 = vmatpush1.msra.mxu0 0.0
        %1160 = vmatprep.subr.mxu0 0.0
        %1161 = vmatpush1.msra.mxu0 0.0
        %1162 = vmatprep.subr.mxu0 0.0
        %1163 = vmatpush1.msra.mxu0 0.0
        %1164 = vmatprep.subr.mxu0 0.0
        %1165 = vmatpush1.msra.mxu0 0.0
        %1166 = vmatprep.subr.mxu0 0.0
        %1167 = vmatpush1.msra.mxu0 0.0
        %1168 = vmatprep.subr.mxu0 0.0
        %1169 = vmatpush1.msra.mxu0 0.0
        %1170 = vmatprep.subr.mxu0 0.0
        %1171 = vmatpush1.msra.mxu0 0.0
        %1172 = vmatprep.subr.mxu0 0.0
        %1173 = vmatpush1.msra.mxu0 0.0
        %1174 = vmatprep.subr.mxu0 0.0
        %1175 = vmatpush1.msra.mxu0 0.0
        %1176 = vmatprep.subr.mxu0 0.0
        %1177 = vmatpush1.msra.mxu0 0.0
        %1178 = vmatprep.subr.mxu0 0.0
        %1179 = vmatpush1.msra.mxu0 0.0
        %1180 = vmatprep.subr.mxu0 0.0
        %1181 = vmatpush1.msra.mxu0 0.0
        %1182 = vmatprep.subr.mxu0 0.0
        %1183 = vmatpush1.msra.mxu0 0.0
        %1184 = vmatprep.subr.mxu0 0.0
        %1185 = vmatpush1.msra.mxu0 0.0
        %1186 = vmatprep.subr.mxu0 0.0
        %1187 = vmatpush1.msra.mxu0 0.0
        %1188 = vmatprep.subr.mxu0 0.0
        %1189 = vmatpush1.msra.mxu0 0.0
        %1190 = vmatprep.subr.mxu0 0.0
        %1191 = vmatpush1.msra.mxu0 0.0
        %1192 = vmatprep.subr.mxu0 0.0
        %1193 = vmatpush1.msra.mxu0 0.0
        %1194 = vmatprep.subr.mxu0 0.0
        %1195 = vmatpush1.msra.mxu0 0.0
        %1196 = vmatprep.subr.mxu0 0.0
        %1197 = vmatpush1.msra.mxu0 0.0
        %1198 = vmatprep.mubr.f32.mxu0 0.0
        %1199 = vmatmul.mubr.f32.gmra.mrb[0].mxu0 %v1036
        %v1200 = vpop.f32.mrb[0].mxu0
        %v1201 = vadd.f32 0.0, %v1200
        %v1202 = vpop.f32.mrb[0].mxu0
        %1203 = vmatprep.mubr.f32.mxu0 0.0
        %1204 = vmatmul.mubr.f32.gmra.mrb[0].mxu0 %v1039
        %v1205 = vpop.f32.mrb[0].mxu0
        %v1206 = vadd.f32 0.0, %v1205
        %v1207 = vpop.f32.mrb[0].mxu0
        %1208 = vmatprep.mubr.f32.mxu0 0.0
        %1209 = vmatmul.mubr.f32.gmra.mrb[0].mxu0 %v1042
        %v1210 = vpop.f32.mrb[0].mxu0
        %v1211 = vadd.f32 0.0, %v1210
        %v1212 = vpop.f32.mrb[0].mxu0
        %1213 = vmatprep.mubr.f32.mxu0 0.0
        %1214 = vmatmul.mubr.f32.gmra.mrb[0].mxu0 %v1045
        %v1215 = vpop.f32.mrb[0].mxu0
        %v1216 = vadd.f32 0.0, %v1215
        %v1217 = vpop.f32.mrb[0].mxu0
        %1218 = vmatprep.mubr.f32.mxu0 0.0
        %1219 = vmatmul.mubr.f32.gmra.mrb[0].mxu0 %v1048
        %v1220 = vpop.f32.mrb[0].mxu0
        %v1221 = vadd.f32 0.0, %v1220
        %v1222 = vpop.f32.mrb[0].mxu0
        %1223 = vmatprep.mubr.f32.mxu0 0.0
        %1224 = vmatmul.mubr.f32.gmra.mrb[0].mxu0 %v1051
        %v1225 = vpop.f32.mrb[0].mxu0
        %v1226 = vadd.f32 0.0, %v1225
        %v1227 = vpop.f32.mrb[0].mxu0
        %1228 = vmatprep.mubr.f32.mxu0 0.0
        %1229 = vmatmul.mubr.f32.gmra.mrb[0].mxu0 %v1054
        %v1230 = vpop.f32.mrb[0].mxu0
        %v1231 = vadd.f32 0.0, %v1230
        %v1232 = vpop.f32.mrb[0].mxu0
        %1233 = vmatprep.mubr.f32.mxu0 0.0
        %1234 = vmatmul.mubr.f32.gmra.mrb[0].mxu0 %v1057
        %v1235 = vpop.f32.mrb[0].mxu0
        %v1236 = vadd.f32 0.0, %v1235
        %v1237 = vpop.f32.mrb[0].mxu0
        %1238 = vmatprep.mubr.f32.mxu0 0.0
        %1239 = vmatmul.mubr.f32.gmra.mrb[0].mxu0 %v1060
        %v1240 = vpop.f32.mrb[0].mxu0
        %v1241 = vadd.f32 0.0, %v1240
        %v1242 = vpop.f32.mrb[0].mxu0
        %1243 = vmatprep.mubr.f32.mxu0 0.0
        %1244 = vmatmul.mubr.f32.gmra.mrb[0].mxu0 %v1063
        %v1245 = vpop.f32.mrb[0].mxu0
        %v1246 = vadd.f32 0.0, %v1245
        %v1247 = vpop.f32.mrb[0].mxu0
        %1248 = vmatprep.mubr.f32.mxu0 0.0
        %1249 = vmatmul.mubr.f32.gmra.mrb[0].mxu0 %v1066
        %v1250 = vpop.f32.mrb[0].mxu0
        %v1251 = vadd.f32 0.0, %v1250
        %v1252 = vpop.f32.mrb[0].mxu0
        %1253 = vmatprep.mubr.f32.mxu0 0.0
        %1254 = vmatmul.mubr.f32.gmra.mrb[0].mxu0 %v1069
        %v1255 = vpop.f32.mrb[0].mxu0
        %v1256 = vadd.f32 0.0, %v1255
        %v1257 = vpop.f32.mrb[0].mxu0
        %1258 = vmatprep.mubr.f32.mxu0 0.0
        %1259 = vmatmul.mubr.f32.gmra.mrb[0].mxu0 %v1072
        %v1260 = vpop.f32.mrb[0].mxu0
        %v1261 = vadd.f32 0.0, %v1260
        %v1262 = vpop.f32.mrb[0].mxu0
        %1263 = vmatprep.mubr.f32.mxu0 0.0
        %1264 = vmatmul.mubr.f32.gmra.mrb[0].mxu0 %v1075
        %v1265 = vpop.f32.mrb[0].mxu0
        %v1266 = vadd.f32 0.0, %v1265
        %v1267 = vpop.f32.mrb[0].mxu0
        %1268 = vmatprep.mubr.f32.mxu0 0.0
        %1269 = vmatmul.mubr.f32.gmra.mrb[0].mxu0 %v1078
        %v1270 = vpop.f32.mrb[0].mxu0
        %v1271 = vadd.f32 0.0, %v1270
        %v1272 = vpop.f32.mrb[0].mxu0
        %1273 = vmatprep.mubr.f32.mxu0 0.0
        %1274 = vmatmul.mubr.f32.gmra.mrb[0].mxu0 %v1081
        %v1275 = vpop.f32.mrb[0].mxu0
        %v1276 = vadd.f32 0.0, %v1275
        %v1277 = vpop.f32.mrb[0].mxu0
        %1278 = vmatprep.mubr.f32.mxu0 0.0
        %1279 = vmatmul.mubr.f32.gmra.mrb[0].mxu0 %v1084
        %v1280 = vpop.f32.mrb[0].mxu0
        %v1281 = vadd.f32 0.0, %v1280
        %v1282 = vpop.f32.mrb[0].mxu0
        %1283 = vmatprep.mubr.f32.mxu0 0.0
        %1284 = vmatmul.mubr.f32.gmra.mrb[0].mxu0 %v1087
        %v1285 = vpop.f32.mrb[0].mxu0
        %v1286 = vadd.f32 0.0, %v1285
        %v1287 = vpop.f32.mrb[0].mxu0
        %1288 = vmatprep.mubr.f32.mxu0 0.0
        %1289 = vmatmul.mubr.f32.gmra.mrb[0].mxu0 %v1090
        %v1290 = vpop.f32.mrb[0].mxu0
        %v1291 = vadd.f32 0.0, %v1290
        %v1292 = vpop.f32.mrb[0].mxu0
        %1293 = vmatprep.mubr.f32.mxu0 0.0
        %1294 = vmatmul.mubr.f32.gmra.mrb[0].mxu0 %v1093
        %v1295 = vpop.f32.mrb[0].mxu0
        %v1296 = vadd.f32 0.0, %v1295
        %v1297 = vpop.f32.mrb[0].mxu0
        %1298 = vmatprep.mubr.f32.mxu0 0.0
        %1299 = vmatmul.mubr.f32.gmra.mrb[0].mxu0 %v1096
        %v1300 = vpop.f32.mrb[0].mxu0
        %v1301 = vadd.f32 0.0, %v1300
        %v1302 = vpop.f32.mrb[0].mxu0
        %1303 = vmatprep.mubr.f32.mxu0 0.0
        %1304 = vmatmul.mubr.f32.gmra.mrb[0].mxu0 %v1099
        %v1305 = vpop.f32.mrb[0].mxu0
        %v1306 = vadd.f32 0.0, %v1305
        %v1307 = vpop.f32.mrb[0].mxu0
        %1308 = vmatprep.mubr.f32.mxu0 0.0
        %1309 = vmatmul.mubr.f32.gmra.mrb[0].mxu0 %v1102
        %v1310 = vpop.f32.mrb[0].mxu0
        %v1311 = vadd.f32 0.0, %v1310
        %v1312 = vpop.f32.mrb[0].mxu0
        %1313 = vmatprep.mubr.f32.mxu0 0.0
        %1314 = vmatmul.mubr.f32.gmra.mrb[0].mxu0 %v1105
        %v1315 = vpop.f32.mrb[0].mxu0
        %v1316 = vadd.f32 0.0, %v1315
        %v1317 = vpop.f32.mrb[0].mxu0
        %1318 = vmatprep.mubr.f32.mxu0 0.0
        %1319 = vmatmul.mubr.f32.gmra.mrb[0].mxu0 %v1108
        %v1320 = vpop.f32.mrb[0].mxu0
        %v1321 = vadd.f32 0.0, %v1320
        %v1322 = vpop.f32.mrb[0].mxu0
        %1323 = vmatprep.mubr.f32.mxu0 0.0
        %1324 = vmatmul.mubr.f32.gmra.mrb[0].mxu0 %v1111
        %v1325 = vpop.f32.mrb[0].mxu0
        %v1326 = vadd.f32 0.0, %v1325
        %v1327 = vpop.f32.mrb[0].mxu0
        %1328 = vmatprep.mubr.f32.mxu0 0.0
        %1329 = vmatmul.mubr.f32.gmra.mrb[0].mxu0 %v1114
        %v1330 = vpop.f32.mrb[0].mxu0
        %v1331 = vadd.f32 0.0, %v1330
        %v1332 = vpop.f32.mrb[0].mxu0
        %1333 = vmatprep.mubr.f32.mxu0 0.0
        %1334 = vmatmul.mubr.f32.gmra.mrb[0].mxu0 %v1117
        %v1335 = vpop.f32.mrb[0].mxu0
        %v1336 = vadd.f32 0.0, %v1335
        %v1337 = vpop.f32.mrb[0].mxu0
        %1338 = vmatprep.mubr.f32.mxu0 0.0
        %1339 = vmatmul.mubr.f32.gmra.mrb[0].mxu0 %v1120
        %v1340 = vpop.f32.mrb[0].mxu0
        %v1341 = vadd.f32 0.0, %v1340
        %v1342 = vpop.f32.mrb[0].mxu0
        %1343 = vmatprep.mubr.f32.mxu0 0.0
        %1344 = vmatmul.mubr.f32.gmra.mrb[0].mxu0 %v1123
        %v1345 = vpop.f32.mrb[0].mxu0
        %v1346 = vadd.f32 0.0, %v1345
        %v1347 = vpop.f32.mrb[0].mxu0
        %1348 = vmatprep.mubr.f32.mxu0 0.0
        %1349 = vmatmul.mubr.f32.gmra.mrb[0].mxu0 %v1126
        %v1350 = vpop.f32.mrb[0].mxu0
        %v1351 = vadd.f32 0.0, %v1350
        %v1352 = vpop.f32.mrb[0].mxu0
        %1353 = vmatprep.mubr.f32.mxu0 0.0
        %1354 = vmatmul.mubr.f32.gmra.mrb[0].mxu0 %v1129
        %v1355 = vpop.f32.mrb[0].mxu0
        %v1356 = vadd.f32 0.0, %v1355
        %v1357 = vpop.f32.mrb[0].mxu0
        %1358 = vdwg.mxu0
        %v1359 = vadd.f32 %v841, %v1201
        %v1360 = vadd.f32 %v846, %v1206
        %v1361 = vadd.f32 %v851, %v1211
        %v1362 = vadd.f32 %v856, %v1216
        %v1363 = vadd.f32 %v861, %v1221
        %v1364 = vadd.f32 %v866, %v1226
        %v1365 = vadd.f32 %v871, %v1231
        %v1366 = vadd.f32 %v876, %v1236
        %v1367 = vadd.f32 %v881, %v1241
        %v1368 = vadd.f32 %v886, %v1246
        %v1369 = vadd.f32 %v891, %v1251
        %v1370 = vadd.f32 %v896, %v1256
        %v1371 = vadd.f32 %v901, %v1261
        %v1372 = vadd.f32 %v906, %v1266
        %v1373 = vadd.f32 %v911, %v1271
        %v1374 = vadd.f32 %v916, %v1276
        %v1375 = vadd.f32 %v921, %v1281
        %v1376 = vadd.f32 %v926, %v1286
        %v1377 = vadd.f32 %v931, %v1291
        %v1378 = vadd.f32 %v936, %v1296
        %v1379 = vadd.f32 %v941, %v1301
        %v1380 = vadd.f32 %v946, %v1306
        %v1381 = vadd.f32 %v951, %v1311
        %v1382 = vadd.f32 %v956, %v1316
        %v1383 = vadd.f32 %v961, %v1321
        %v1384 = vadd.f32 %v966, %v1326
        %v1385 = vadd.f32 %v971, %v1331
        %v1386 = vadd.f32 %v976, %v1336
        %v1387 = vadd.f32 %v981, %v1341
        %v1388 = vadd.f32 %v986, %v1346
        %v1389 = vadd.f32 %v991, %v1351
        %v1390 = vadd.f32 %v996, %v1356
        %s1391 = scalar_lea.vmem %s278, 48
        %v1392 = vld [vmem:[%s1391] sm:$0xff]
        %v1393 = vld [vmem:[%s1391 + $0x8] sm:$0xff]
        %v1394 = vld [vmem:[%s1391 + $0x10] sm:$0xff]
        %v1395 = vld [vmem:[%s1391 + $0x18] sm:$0xff]
        %v1396 = vld [vmem:[%s1391 + $0x20] sm:$0xff]
        %v1397 = vld [vmem:[%s1391 + $0x28] sm:$0xff]
        %v1398 = vld [vmem:[%s1391 + $0x30] sm:$0xff]
        %v1399 = vld [vmem:[%s1391 + $0x38] sm:$0xff]
        %v1400 = vld [vmem:[%s1391 + $0x40] sm:$0xff]
        %v1401 = vld [vmem:[%s1391 + $0x48] sm:$0xff]
        %v1402 = vld [vmem:[%s1391 + $0x50] sm:$0xff]
        %v1403 = vld [vmem:[%s1391 + $0x58] sm:$0xff]
        %v1404 = vld [vmem:[%s1391 + $0x60] sm:$0xff]
        %v1405 = vld [vmem:[%s1391 + $0x68] sm:$0xff]
        %v1406 = vld [vmem:[%s1391 + $0x70] sm:$0xff]
        %v1407 = vld [vmem:[%s1391 + $0x78] sm:$0xff]
        %v1408 = vld [vmem:[%s1391 + $0x80] sm:$0xff]
        %v1409 = vld [vmem:[%s1391 + $0x88] sm:$0xff]
        %v1410 = vld [vmem:[%s1391 + $0x90] sm:$0xff]
        %v1411 = vld [vmem:[%s1391 + $0x98] sm:$0xff]
        %v1412 = vld [vmem:[%s1391 + $0xa0] sm:$0xff]
        %v1413 = vld [vmem:[%s1391 + $0xa8] sm:$0xff]
        %v1414 = vld [vmem:[%s1391 + $0xb0] sm:$0xff]
        %v1415 = vld [vmem:[%s1391 + $0xb8] sm:$0xff]
        %v1416 = vld [vmem:[%s1391 + $0xc0] sm:$0xff]
        %v1417 = vld [vmem:[%s1391 + $0xc8] sm:$0xff]
        %v1418 = vld [vmem:[%s1391 + $0xd0] sm:$0xff]
        %v1419 = vld [vmem:[%s1391 + $0xd8] sm:$0xff]
        %v1420 = vld [vmem:[%s1391 + $0xe0] sm:$0xff]
        %v1421 = vld [vmem:[%s1391 + $0xe8] sm:$0xff]
        %v1422 = vld [vmem:[%s1391 + $0xf0] sm:$0xff]
        %v1423 = vld [vmem:[%s1391 + $0xf8] sm:$0xff]
        %s1424 = scalar_lea.vmem %s1, 48
        %v1425 = vld [vmem:[%s1424] sm:$0xff]
        %v1426 = vld [vmem:[%s1424 + $0x8] sm:$0x1]
        %v1428 = vsel %vm349, %v1392, 0
        %v1431 = vsel %vm349, %v1393, 0
        %v1434 = vsel %vm349, %v1394, 0
        %v1437 = vsel %vm349, %v1395, 0
        %v1440 = vsel %vm349, %v1396, 0
        %v1443 = vsel %vm349, %v1397, 0
        %v1446 = vsel %vm349, %v1398, 0
        %v1449 = vsel %vm349, %v1399, 0
        %v1452 = vsel %vm349, %v1400, 0
        %v1455 = vsel %vm349, %v1401, 0
        %v1458 = vsel %vm349, %v1402, 0
        %v1461 = vsel %vm349, %v1403, 0
        %v1464 = vsel %vm349, %v1404, 0
        %v1467 = vsel %vm349, %v1405, 0
        %v1470 = vsel %vm349, %v1406, 0
        %v1473 = vsel %vm349, %v1407, 0
        %v1476 = vsel %vm349, %v1408, 0
        %v1479 = vsel %vm349, %v1409, 0
        %v1482 = vsel %vm349, %v1410, 0
        %v1485 = vsel %vm349, %v1411, 0
        %v1488 = vsel %vm349, %v1412, 0
        %v1491 = vsel %vm349, %v1413, 0
        %v1494 = vsel %vm349, %v1414, 0
        %v1497 = vsel %vm349, %v1415, 0
        %v1500 = vsel %vm349, %v1416, 0
        %v1503 = vsel %vm349, %v1417, 0
        %v1506 = vsel %vm349, %v1418, 0
        %v1509 = vsel %vm349, %v1419, 0
        %v1512 = vsel %vm349, %v1420, 0
        %v1515 = vsel %vm349, %v1421, 0
        %v1518 = vsel %vm349, %v1422, 0
        %v1521 = vsel %vm349, %v1423, 0
        %v1524 = vsel %vm446, %v1426, 0
        %1526 = vmatprep.subr.mxu0 0.0
        %1527 = vmatpush1.msra.mxu0 %v1425
        %1528 = vmatprep.subr.mxu0 0.0
        %1529 = vmatpush1.msra.mxu0 %v1524
        %1530 = vmatprep.subr.mxu0 0.0
        %1531 = vmatpush1.msra.mxu0 0.0
        %1532 = vmatprep.subr.mxu0 0.0
        %1533 = vmatpush1.msra.mxu0 0.0
        %1534 = vmatprep.subr.mxu0 0.0
        %1535 = vmatpush1.msra.mxu0 0.0
        %1536 = vmatprep.subr.mxu0 0.0
        %1537 = vmatpush1.msra.mxu0 0.0
        %1538 = vmatprep.subr.mxu0 0.0
        %1539 = vmatpush1.msra.mxu0 0.0
        %1540 = vmatprep.subr.mxu0 0.0
        %1541 = vmatpush1.msra.mxu0 0.0
        %1542 = vmatprep.subr.mxu0 0.0
        %1543 = vmatpush1.msra.mxu0 0.0
        %1544 = vmatprep.subr.mxu0 0.0
        %1545 = vmatpush1.msra.mxu0 0.0
        %1546 = vmatprep.subr.mxu0 0.0
        %1547 = vmatpush1.msra.mxu0 0.0
        %1548 = vmatprep.subr.mxu0 0.0
        %1549 = vmatpush1.msra.mxu0 0.0
        %1550 = vmatprep.subr.mxu0 0.0
        %1551 = vmatpush1.msra.mxu0 0.0
        %1552 = vmatprep.subr.mxu0 0.0
        %1553 = vmatpush1.msra.mxu0 0.0
        %1554 = vmatprep.subr.mxu0 0.0
        %1555 = vmatpush1.msra.mxu0 0.0
        %1556 = vmatprep.subr.mxu0 0.0
        %1557 = vmatpush1.msra.mxu0 0.0
        %1558 = vmatprep.subr.mxu0 0.0
        %1559 = vmatpush1.msra.mxu0 0.0
        %1560 = vmatprep.subr.mxu0 0.0
        %1561 = vmatpush1.msra.mxu0 0.0
        %1562 = vmatprep.subr.mxu0 0.0
        %1563 = vmatpush1.msra.mxu0 0.0
        %1564 = vmatprep.subr.mxu0 0.0
        %1565 = vmatpush1.msra.mxu0 0.0
        %1566 = vmatprep.subr.mxu0 0.0
        %1567 = vmatpush1.msra.mxu0 0.0
        %1568 = vmatprep.subr.mxu0 0.0
        %1569 = vmatpush1.msra.mxu0 0.0
        %1570 = vmatprep.subr.mxu0 0.0
        %1571 = vmatpush1.msra.mxu0 0.0
        %1572 = vmatprep.subr.mxu0 0.0
        %1573 = vmatpush1.msra.mxu0 0.0
        %1574 = vmatprep.subr.mxu0 0.0
        %1575 = vmatpush1.msra.mxu0 0.0
        %1576 = vmatprep.subr.mxu0 0.0
        %1577 = vmatpush1.msra.mxu0 0.0
        %1578 = vmatprep.subr.mxu0 0.0
        %1579 = vmatpush1.msra.mxu0 0.0
        %1580 = vmatprep.subr.mxu0 0.0
        %1581 = vmatpush1.msra.mxu0 0.0
        %1582 = vmatprep.subr.mxu0 0.0
        %1583 = vmatpush1.msra.mxu0 0.0
        %1584 = vmatprep.subr.mxu0 0.0
        %1585 = vmatpush1.msra.mxu0 0.0
        %1586 = vmatprep.subr.mxu0 0.0
        %1587 = vmatpush1.msra.mxu0 0.0
        %1588 = vmatprep.subr.mxu0 0.0
        %1589 = vmatpush1.msra.mxu0 0.0
        %1590 = vmatprep.mubr.f32.mxu0 0.0
        %1591 = vmatmul.mubr.f32.gmra.mrb[0].mxu0 %v1428
        %v1592 = vpop.f32.mrb[0].mxu0
        %v1593 = vadd.f32 0.0, %v1592
        %v1594 = vpop.f32.mrb[0].mxu0
        %1595 = vmatprep.mubr.f32.mxu0 0.0
        %1596 = vmatmul.mubr.f32.gmra.mrb[0].mxu0 %v1431
        %v1597 = vpop.f32.mrb[0].mxu0
        %v1598 = vadd.f32 0.0, %v1597
        %v1599 = vpop.f32.mrb[0].mxu0
        %1600 = vmatprep.mubr.f32.mxu0 0.0
        %1601 = vmatmul.mubr.f32.gmra.mrb[0].mxu0 %v1434
        %v1602 = vpop.f32.mrb[0].mxu0
        %v1603 = vadd.f32 0.0, %v1602
        %v1604 = vpop.f32.mrb[0].mxu0
        %1605 = vmatprep.mubr.f32.mxu0 0.0
        %1606 = vmatmul.mubr.f32.gmra.mrb[0].mxu0 %v1437
        %v1607 = vpop.f32.mrb[0].mxu0
        %v1608 = vadd.f32 0.0, %v1607
        %v1609 = vpop.f32.mrb[0].mxu0
        %1610 = vmatprep.mubr.f32.mxu0 0.0
        %1611 = vmatmul.mubr.f32.gmra.mrb[0].mxu0 %v1440
        %v1612 = vpop.f32.mrb[0].mxu0
        %v1613 = vadd.f32 0.0, %v1612
        %v1614 = vpop.f32.mrb[0].mxu0
        %1615 = vmatprep.mubr.f32.mxu0 0.0
        %1616 = vmatmul.mubr.f32.gmra.mrb[0].mxu0 %v1443
        %v1617 = vpop.f32.mrb[0].mxu0
        %v1618 = vadd.f32 0.0, %v1617
        %v1619 = vpop.f32.mrb[0].mxu0
        %1620 = vmatprep.mubr.f32.mxu0 0.0
        %1621 = vmatmul.mubr.f32.gmra.mrb[0].mxu0 %v1446
        %v1622 = vpop.f32.mrb[0].mxu0
        %v1623 = vadd.f32 0.0, %v1622
        %v1624 = vpop.f32.mrb[0].mxu0
        %1625 = vmatprep.mubr.f32.mxu0 0.0
        %1626 = vmatmul.mubr.f32.gmra.mrb[0].mxu0 %v1449
        %v1627 = vpop.f32.mrb[0].mxu0
        %v1628 = vadd.f32 0.0, %v1627
        %v1629 = vpop.f32.mrb[0].mxu0
        %1630 = vmatprep.mubr.f32.mxu0 0.0
        %1631 = vmatmul.mubr.f32.gmra.mrb[0].mxu0 %v1452
        %v1632 = vpop.f32.mrb[0].mxu0
        %v1633 = vadd.f32 0.0, %v1632
        %v1634 = vpop.f32.mrb[0].mxu0
        %1635 = vmatprep.mubr.f32.mxu0 0.0
        %1636 = vmatmul.mubr.f32.gmra.mrb[0].mxu0 %v1455
        %v1637 = vpop.f32.mrb[0].mxu0
        %v1638 = vadd.f32 0.0, %v1637
        %v1639 = vpop.f32.mrb[0].mxu0
        %1640 = vmatprep.mubr.f32.mxu0 0.0
        %1641 = vmatmul.mubr.f32.gmra.mrb[0].mxu0 %v1458
        %v1642 = vpop.f32.mrb[0].mxu0
        %v1643 = vadd.f32 0.0, %v1642
        %v1644 = vpop.f32.mrb[0].mxu0
        %1645 = vmatprep.mubr.f32.mxu0 0.0
        %1646 = vmatmul.mubr.f32.gmra.mrb[0].mxu0 %v1461
        %v1647 = vpop.f32.mrb[0].mxu0
        %v1648 = vadd.f32 0.0, %v1647
        %v1649 = vpop.f32.mrb[0].mxu0
        %1650 = vmatprep.mubr.f32.mxu0 0.0
        %1651 = vmatmul.mubr.f32.gmra.mrb[0].mxu0 %v1464
        %v1652 = vpop.f32.mrb[0].mxu0
        %v1653 = vadd.f32 0.0, %v1652
        %v1654 = vpop.f32.mrb[0].mxu0
        %1655 = vmatprep.mubr.f32.mxu0 0.0
        %1656 = vmatmul.mubr.f32.gmra.mrb[0].mxu0 %v1467
        %v1657 = vpop.f32.mrb[0].mxu0
        %v1658 = vadd.f32 0.0, %v1657
        %v1659 = vpop.f32.mrb[0].mxu0
        %1660 = vmatprep.mubr.f32.mxu0 0.0
        %1661 = vmatmul.mubr.f32.gmra.mrb[0].mxu0 %v1470
        %v1662 = vpop.f32.mrb[0].mxu0
        %v1663 = vadd.f32 0.0, %v1662
        %v1664 = vpop.f32.mrb[0].mxu0
        %1665 = vmatprep.mubr.f32.mxu0 0.0
        %1666 = vmatmul.mubr.f32.gmra.mrb[0].mxu0 %v1473
        %v1667 = vpop.f32.mrb[0].mxu0
        %v1668 = vadd.f32 0.0, %v1667
        %v1669 = vpop.f32.mrb[0].mxu0
        %1670 = vmatprep.mubr.f32.mxu0 0.0
        %1671 = vmatmul.mubr.f32.gmra.mrb[0].mxu0 %v1476
        %v1672 = vpop.f32.mrb[0].mxu0
        %v1673 = vadd.f32 0.0, %v1672
        %v1674 = vpop.f32.mrb[0].mxu0
        %1675 = vmatprep.mubr.f32.mxu0 0.0
        %1676 = vmatmul.mubr.f32.gmra.mrb[0].mxu0 %v1479
        %v1677 = vpop.f32.mrb[0].mxu0
        %v1678 = vadd.f32 0.0, %v1677
        %v1679 = vpop.f32.mrb[0].mxu0
        %1680 = vmatprep.mubr.f32.mxu0 0.0
        %1681 = vmatmul.mubr.f32.gmra.mrb[0].mxu0 %v1482
        %v1682 = vpop.f32.mrb[0].mxu0
        %v1683 = vadd.f32 0.0, %v1682
        %v1684 = vpop.f32.mrb[0].mxu0
        %1685 = vmatprep.mubr.f32.mxu0 0.0
        %1686 = vmatmul.mubr.f32.gmra.mrb[0].mxu0 %v1485
        %v1687 = vpop.f32.mrb[0].mxu0
        %v1688 = vadd.f32 0.0, %v1687
        %v1689 = vpop.f32.mrb[0].mxu0
        %1690 = vmatprep.mubr.f32.mxu0 0.0
        %1691 = vmatmul.mubr.f32.gmra.mrb[0].mxu0 %v1488
        %v1692 = vpop.f32.mrb[0].mxu0
        %v1693 = vadd.f32 0.0, %v1692
        %v1694 = vpop.f32.mrb[0].mxu0
        %1695 = vmatprep.mubr.f32.mxu0 0.0
        %1696 = vmatmul.mubr.f32.gmra.mrb[0].mxu0 %v1491
        %v1697 = vpop.f32.mrb[0].mxu0
        %v1698 = vadd.f32 0.0, %v1697
        %v1699 = vpop.f32.mrb[0].mxu0
        %1700 = vmatprep.mubr.f32.mxu0 0.0
        %1701 = vmatmul.mubr.f32.gmra.mrb[0].mxu0 %v1494
        %v1702 = vpop.f32.mrb[0].mxu0
        %v1703 = vadd.f32 0.0, %v1702
        %v1704 = vpop.f32.mrb[0].mxu0
        %1705 = vmatprep.mubr.f32.mxu0 0.0
        %1706 = vmatmul.mubr.f32.gmra.mrb[0].mxu0 %v1497
        %v1707 = vpop.f32.mrb[0].mxu0
        %v1708 = vadd.f32 0.0, %v1707
        %v1709 = vpop.f32.mrb[0].mxu0
        %1710 = vmatprep.mubr.f32.mxu0 0.0
        %1711 = vmatmul.mubr.f32.gmra.mrb[0].mxu0 %v1500
        %v1712 = vpop.f32.mrb[0].mxu0
        %v1713 = vadd.f32 0.0, %v1712
        %v1714 = vpop.f32.mrb[0].mxu0
        %1715 = vmatprep.mubr.f32.mxu0 0.0
        %1716 = vmatmul.mubr.f32.gmra.mrb[0].mxu0 %v1503
        %v1717 = vpop.f32.mrb[0].mxu0
        %v1718 = vadd.f32 0.0, %v1717
        %v1719 = vpop.f32.mrb[0].mxu0
        %1720 = vmatprep.mubr.f32.mxu0 0.0
        %1721 = vmatmul.mubr.f32.gmra.mrb[0].mxu0 %v1506
        %v1722 = vpop.f32.mrb[0].mxu0
        %v1723 = vadd.f32 0.0, %v1722
        %v1724 = vpop.f32.mrb[0].mxu0
        %1725 = vmatprep.mubr.f32.mxu0 0.0
        %1726 = vmatmul.mubr.f32.gmra.mrb[0].mxu0 %v1509
        %v1727 = vpop.f32.mrb[0].mxu0
        %v1728 = vadd.f32 0.0, %v1727
        %v1729 = vpop.f32.mrb[0].mxu0
        %1730 = vmatprep.mubr.f32.mxu0 0.0
        %1731 = vmatmul.mubr.f32.gmra.mrb[0].mxu0 %v1512
        %v1732 = vpop.f32.mrb[0].mxu0
        %v1733 = vadd.f32 0.0, %v1732
        %v1734 = vpop.f32.mrb[0].mxu0
        %1735 = vmatprep.mubr.f32.mxu0 0.0
        %1736 = vmatmul.mubr.f32.gmra.mrb[0].mxu0 %v1515
        %v1737 = vpop.f32.mrb[0].mxu0
        %v1738 = vadd.f32 0.0, %v1737
        %v1739 = vpop.f32.mrb[0].mxu0
        %1740 = vmatprep.mubr.f32.mxu0 0.0
        %1741 = vmatmul.mubr.f32.gmra.mrb[0].mxu0 %v1518
        %v1742 = vpop.f32.mrb[0].mxu0
        %v1743 = vadd.f32 0.0, %v1742
        %v1744 = vpop.f32.mrb[0].mxu0
        %1745 = vmatprep.mubr.f32.mxu0 0.0
        %1746 = vmatmul.mubr.f32.gmra.mrb[0].mxu0 %v1521
        %v1747 = vpop.f32.mrb[0].mxu0
        %v1748 = vadd.f32 0.0, %v1747
        %v1749 = vpop.f32.mrb[0].mxu0
        %1750 = vdwg.mxu0
        %v1751 = vadd.f32 %v1359, %v1593
        %v1752 = vadd.f32 %v1360, %v1598
        %v1753 = vadd.f32 %v1361, %v1603
        %v1754 = vadd.f32 %v1362, %v1608
        %v1755 = vadd.f32 %v1363, %v1613
        %v1756 = vadd.f32 %v1364, %v1618
        %v1757 = vadd.f32 %v1365, %v1623
        %v1758 = vadd.f32 %v1366, %v1628
        %v1759 = vadd.f32 %v1367, %v1633
        %v1760 = vadd.f32 %v1368, %v1638
        %v1761 = vadd.f32 %v1369, %v1643
        %v1762 = vadd.f32 %v1370, %v1648
        %v1763 = vadd.f32 %v1371, %v1653
        %v1764 = vadd.f32 %v1372, %v1658
        %v1765 = vadd.f32 %v1373, %v1663
        %v1766 = vadd.f32 %v1374, %v1668
        %v1767 = vadd.f32 %v1375, %v1673
        %v1768 = vadd.f32 %v1376, %v1678
        %v1769 = vadd.f32 %v1377, %v1683
        %v1770 = vadd.f32 %v1378, %v1688
        %v1771 = vadd.f32 %v1379, %v1693
        %v1772 = vadd.f32 %v1380, %v1698
        %v1773 = vadd.f32 %v1381, %v1703
        %v1774 = vadd.f32 %v1382, %v1708
        %v1775 = vadd.f32 %v1383, %v1713
        %v1776 = vadd.f32 %v1384, %v1718
        %v1777 = vadd.f32 %v1385, %v1723
        %v1778 = vadd.f32 %v1386, %v1728
        %v1779 = vadd.f32 %v1387, %v1733
        %v1780 = vadd.f32 %v1388, %v1738
        %v1781 = vadd.f32 %v1389, %v1743
        %v1782 = vadd.f32 %v1390, %v1748
        %s1783 = scalar_lea.vmem %s278, 64
        %v1784 = vld [vmem:[%s1783] sm:$0xff]
        %v1785 = vld [vmem:[%s1783 + $0x8] sm:$0xff]
        %v1786 = vld [vmem:[%s1783 + $0x10] sm:$0xff]
        %v1787 = vld [vmem:[%s1783 + $0x18] sm:$0xff]
        %v1788 = vld [vmem:[%s1783 + $0x20] sm:$0xff]
        %v1789 = vld [vmem:[%s1783 + $0x28] sm:$0xff]
        %v1790 = vld [vmem:[%s1783 + $0x30] sm:$0xff]
        %v1791 = vld [vmem:[%s1783 + $0x38] sm:$0xff]
        %v1792 = vld [vmem:[%s1783 + $0x40] sm:$0xff]
        %v1793 = vld [vmem:[%s1783 + $0x48] sm:$0xff]
        %v1794 = vld [vmem:[%s1783 + $0x50] sm:$0xff]
        %v1795 = vld [vmem:[%s1783 + $0x58] sm:$0xff]
        %v1796 = vld [vmem:[%s1783 + $0x60] sm:$0xff]
        %v1797 = vld [vmem:[%s1783 + $0x68] sm:$0xff]
        %v1798 = vld [vmem:[%s1783 + $0x70] sm:$0xff]
        %v1799 = vld [vmem:[%s1783 + $0x78] sm:$0xff]
        %v1800 = vld [vmem:[%s1783 + $0x80] sm:$0xff]
        %v1801 = vld [vmem:[%s1783 + $0x88] sm:$0xff]
        %v1802 = vld [vmem:[%s1783 + $0x90] sm:$0xff]
        %v1803 = vld [vmem:[%s1783 + $0x98] sm:$0xff]
        %v1804 = vld [vmem:[%s1783 + $0xa0] sm:$0xff]
        %v1805 = vld [vmem:[%s1783 + $0xa8] sm:$0xff]
        %v1806 = vld [vmem:[%s1783 + $0xb0] sm:$0xff]
        %v1807 = vld [vmem:[%s1783 + $0xb8] sm:$0xff]
        %v1808 = vld [vmem:[%s1783 + $0xc0] sm:$0xff]
        %v1809 = vld [vmem:[%s1783 + $0xc8] sm:$0xff]
        %v1810 = vld [vmem:[%s1783 + $0xd0] sm:$0xff]
        %v1811 = vld [vmem:[%s1783 + $0xd8] sm:$0xff]
        %v1812 = vld [vmem:[%s1783 + $0xe0] sm:$0xff]
        %v1813 = vld [vmem:[%s1783 + $0xe8] sm:$0xff]
        %v1814 = vld [vmem:[%s1783 + $0xf0] sm:$0xff]
        %v1815 = vld [vmem:[%s1783 + $0xf8] sm:$0xff]
        %s1816 = scalar_lea.vmem %s1, 64
        %v1817 = vld [vmem:[%s1816] sm:$0xff]
        %v1818 = vld [vmem:[%s1816 + $0x8] sm:$0x1]
        %v1820 = vsel %vm349, %v1784, 0
        %v1823 = vsel %vm349, %v1785, 0
        %v1826 = vsel %vm349, %v1786, 0
        %v1829 = vsel %vm349, %v1787, 0
        %v1832 = vsel %vm349, %v1788, 0
        %v1835 = vsel %vm349, %v1789, 0
        %v1838 = vsel %vm349, %v1790, 0
        %v1841 = vsel %vm349, %v1791, 0
        %v1844 = vsel %vm349, %v1792, 0
        %v1847 = vsel %vm349, %v1793, 0
        %v1850 = vsel %vm349, %v1794, 0
        %v1853 = vsel %vm349, %v1795, 0
        %v1856 = vsel %vm349, %v1796, 0
        %v1859 = vsel %vm349, %v1797, 0
        %v1862 = vsel %vm349, %v1798, 0
        %v1865 = vsel %vm349, %v1799, 0
        %v1868 = vsel %vm349, %v1800, 0
        %v1871 = vsel %vm349, %v1801, 0
        %v1874 = vsel %vm349, %v1802, 0
        %v1877 = vsel %vm349, %v1803, 0
        %v1880 = vsel %vm349, %v1804, 0
        %v1883 = vsel %vm349, %v1805, 0
        %v1886 = vsel %vm349, %v1806, 0
        %v1889 = vsel %vm349, %v1807, 0
        %v1892 = vsel %vm349, %v1808, 0
        %v1895 = vsel %vm349, %v1809, 0
        %v1898 = vsel %vm349, %v1810, 0
        %v1901 = vsel %vm349, %v1811, 0
        %v1904 = vsel %vm349, %v1812, 0
        %v1907 = vsel %vm349, %v1813, 0
        %v1910 = vsel %vm349, %v1814, 0
        %v1913 = vsel %vm349, %v1815, 0
        %v1916 = vsel %vm446, %v1818, 0
        %1918 = vmatprep.subr.mxu0 0.0
        %1919 = vmatpush1.msra.mxu0 %v1817
        %1920 = vmatprep.subr.mxu0 0.0
        %1921 = vmatpush1.msra.mxu0 %v1916
        %1922 = vmatprep.subr.mxu0 0.0
        %1923 = vmatpush1.msra.mxu0 0.0
        %1924 = vmatprep.subr.mxu0 0.0
        %1925 = vmatpush1.msra.mxu0 0.0
        %1926 = vmatprep.subr.mxu0 0.0
        %1927 = vmatpush1.msra.mxu0 0.0
        %1928 = vmatprep.subr.mxu0 0.0
        %1929 = vmatpush1.msra.mxu0 0.0
        %1930 = vmatprep.subr.mxu0 0.0
        %1931 = vmatpush1.msra.mxu0 0.0
        %1932 = vmatprep.subr.mxu0 0.0
        %1933 = vmatpush1.msra.mxu0 0.0
        %1934 = vmatprep.subr.mxu0 0.0
        %1935 = vmatpush1.msra.mxu0 0.0
        %1936 = vmatprep.subr.mxu0 0.0
        %1937 = vmatpush1.msra.mxu0 0.0
        %1938 = vmatprep.subr.mxu0 0.0
        %1939 = vmatpush1.msra.mxu0 0.0
        %1940 = vmatprep.subr.mxu0 0.0
        %1941 = vmatpush1.msra.mxu0 0.0
        %1942 = vmatprep.subr.mxu0 0.0
        %1943 = vmatpush1.msra.mxu0 0.0
        %1944 = vmatprep.subr.mxu0 0.0
        %1945 = vmatpush1.msra.mxu0 0.0
        %1946 = vmatprep.subr.mxu0 0.0
        %1947 = vmatpush1.msra.mxu0 0.0
        %1948 = vmatprep.subr.mxu0 0.0
        %1949 = vmatpush1.msra.mxu0 0.0
        %1950 = vmatprep.subr.mxu0 0.0
        %1951 = vmatpush1.msra.mxu0 0.0
        %1952 = vmatprep.subr.mxu0 0.0
        %1953 = vmatpush1.msra.mxu0 0.0
        %1954 = vmatprep.subr.mxu0 0.0
        %1955 = vmatpush1.msra.mxu0 0.0
        %1956 = vmatprep.subr.mxu0 0.0
        %1957 = vmatpush1.msra.mxu0 0.0
        %1958 = vmatprep.subr.mxu0 0.0
        %1959 = vmatpush1.msra.mxu0 0.0
        %1960 = vmatprep.subr.mxu0 0.0
        %1961 = vmatpush1.msra.mxu0 0.0
        %1962 = vmatprep.subr.mxu0 0.0
        %1963 = vmatpush1.msra.mxu0 0.0
        %1964 = vmatprep.subr.mxu0 0.0
        %1965 = vmatpush1.msra.mxu0 0.0
        %1966 = vmatprep.subr.mxu0 0.0
        %1967 = vmatpush1.msra.mxu0 0.0
        %1968 = vmatprep.subr.mxu0 0.0
        %1969 = vmatpush1.msra.mxu0 0.0
        %1970 = vmatprep.subr.mxu0 0.0
        %1971 = vmatpush1.msra.mxu0 0.0
        %1972 = vmatprep.subr.mxu0 0.0
        %1973 = vmatpush1.msra.mxu0 0.0
        %1974 = vmatprep.subr.mxu0 0.0
        %1975 = vmatpush1.msra.mxu0 0.0
        %1976 = vmatprep.subr.mxu0 0.0
        %1977 = vmatpush1.msra.mxu0 0.0
        %1978 = vmatprep.subr.mxu0 0.0
        %1979 = vmatpush1.msra.mxu0 0.0
        %1980 = vmatprep.subr.mxu0 0.0
        %1981 = vmatpush1.msra.mxu0 0.0
        %1982 = vmatprep.mubr.f32.mxu0 0.0
        %1983 = vmatmul.mubr.f32.gmra.mrb[0].mxu0 %v1820
        %v1984 = vpop.f32.mrb[0].mxu0
        %v1985 = vadd.f32 0.0, %v1984
        %v1986 = vpop.f32.mrb[0].mxu0
        %1987 = vmatprep.mubr.f32.mxu0 0.0
        %1988 = vmatmul.mubr.f32.gmra.mrb[0].mxu0 %v1823
        %v1989 = vpop.f32.mrb[0].mxu0
        %v1990 = vadd.f32 0.0, %v1989
        %v1991 = vpop.f32.mrb[0].mxu0
        %1992 = vmatprep.mubr.f32.mxu0 0.0
        %1993 = vmatmul.mubr.f32.gmra.mrb[0].mxu0 %v1826
        %v1994 = vpop.f32.mrb[0].mxu0
        %v1995 = vadd.f32 0.0, %v1994
        %v1996 = vpop.f32.mrb[0].mxu0
        %1997 = vmatprep.mubr.f32.mxu0 0.0
        %1998 = vmatmul.mubr.f32.gmra.mrb[0].mxu0 %v1829
        %v1999 = vpop.f32.mrb[0].mxu0
        %v2000 = vadd.f32 0.0, %v1999
        %v2001 = vpop.f32.mrb[0].mxu0
        %2002 = vmatprep.mubr.f32.mxu0 0.0
        %2003 = vmatmul.mubr.f32.gmra.mrb[0].mxu0 %v1832
        %v2004 = vpop.f32.mrb[0].mxu0
        %v2005 = vadd.f32 0.0, %v2004
        %v2006 = vpop.f32.mrb[0].mxu0
        %2007 = vmatprep.mubr.f32.mxu0 0.0
        %2008 = vmatmul.mubr.f32.gmra.mrb[0].mxu0 %v1835
        %v2009 = vpop.f32.mrb[0].mxu0
        %v2010 = vadd.f32 0.0, %v2009
        %v2011 = vpop.f32.mrb[0].mxu0
        %2012 = vmatprep.mubr.f32.mxu0 0.0
        %2013 = vmatmul.mubr.f32.gmra.mrb[0].mxu0 %v1838
        %v2014 = vpop.f32.mrb[0].mxu0
        %v2015 = vadd.f32 0.0, %v2014
        %v2016 = vpop.f32.mrb[0].mxu0
        %2017 = vmatprep.mubr.f32.mxu0 0.0
        %2018 = vmatmul.mubr.f32.gmra.mrb[0].mxu0 %v1841
        %v2019 = vpop.f32.mrb[0].mxu0
        %v2020 = vadd.f32 0.0, %v2019
        %v2021 = vpop.f32.mrb[0].mxu0
        %2022 = vmatprep.mubr.f32.mxu0 0.0
        %2023 = vmatmul.mubr.f32.gmra.mrb[0].mxu0 %v1844
        %v2024 = vpop.f32.mrb[0].mxu0
        %v2025 = vadd.f32 0.0, %v2024
        %v2026 = vpop.f32.mrb[0].mxu0
        %2027 = vmatprep.mubr.f32.mxu0 0.0
        %2028 = vmatmul.mubr.f32.gmra.mrb[0].mxu0 %v1847
        %v2029 = vpop.f32.mrb[0].mxu0
        %v2030 = vadd.f32 0.0, %v2029
        %v2031 = vpop.f32.mrb[0].mxu0
        %2032 = vmatprep.mubr.f32.mxu0 0.0
        %2033 = vmatmul.mubr.f32.gmra.mrb[0].mxu0 %v1850
        %v2034 = vpop.f32.mrb[0].mxu0
        %v2035 = vadd.f32 0.0, %v2034
        %v2036 = vpop.f32.mrb[0].mxu0
        %2037 = vmatprep.mubr.f32.mxu0 0.0
        %2038 = vmatmul.mubr.f32.gmra.mrb[0].mxu0 %v1853
        %v2039 = vpop.f32.mrb[0].mxu0
        %v2040 = vadd.f32 0.0, %v2039
        %v2041 = vpop.f32.mrb[0].mxu0
        %2042 = vmatprep.mubr.f32.mxu0 0.0
        %2043 = vmatmul.mubr.f32.gmra.mrb[0].mxu0 %v1856
        %v2044 = vpop.f32.mrb[0].mxu0
        %v2045 = vadd.f32 0.0, %v2044
        %v2046 = vpop.f32.mrb[0].mxu0
        %2047 = vmatprep.mubr.f32.mxu0 0.0
        %2048 = vmatmul.mubr.f32.gmra.mrb[0].mxu0 %v1859
        %v2049 = vpop.f32.mrb[0].mxu0
        %v2050 = vadd.f32 0.0, %v2049
        %v2051 = vpop.f32.mrb[0].mxu0
        %2052 = vmatprep.mubr.f32.mxu0 0.0
        %2053 = vmatmul.mubr.f32.gmra.mrb[0].mxu0 %v1862
        %v2054 = vpop.f32.mrb[0].mxu0
        %v2055 = vadd.f32 0.0, %v2054
        %v2056 = vpop.f32.mrb[0].mxu0
        %2057 = vmatprep.mubr.f32.mxu0 0.0
        %2058 = vmatmul.mubr.f32.gmra.mrb[0].mxu0 %v1865
        %v2059 = vpop.f32.mrb[0].mxu0
        %v2060 = vadd.f32 0.0, %v2059
        %v2061 = vpop.f32.mrb[0].mxu0
        %2062 = vmatprep.mubr.f32.mxu0 0.0
        %2063 = vmatmul.mubr.f32.gmra.mrb[0].mxu0 %v1868
        %v2064 = vpop.f32.mrb[0].mxu0
        %v2065 = vadd.f32 0.0, %v2064
        %v2066 = vpop.f32.mrb[0].mxu0
        %2067 = vmatprep.mubr.f32.mxu0 0.0
        %2068 = vmatmul.mubr.f32.gmra.mrb[0].mxu0 %v1871
        %v2069 = vpop.f32.mrb[0].mxu0
        %v2070 = vadd.f32 0.0, %v2069
        %v2071 = vpop.f32.mrb[0].mxu0
        %2072 = vmatprep.mubr.f32.mxu0 0.0
        %2073 = vmatmul.mubr.f32.gmra.mrb[0].mxu0 %v1874
        %v2074 = vpop.f32.mrb[0].mxu0
        %v2075 = vadd.f32 0.0, %v2074
        %v2076 = vpop.f32.mrb[0].mxu0
        %2077 = vmatprep.mubr.f32.mxu0 0.0
        %2078 = vmatmul.mubr.f32.gmra.mrb[0].mxu0 %v1877
        %v2079 = vpop.f32.mrb[0].mxu0
        %v2080 = vadd.f32 0.0, %v2079
        %v2081 = vpop.f32.mrb[0].mxu0
        %2082 = vmatprep.mubr.f32.mxu0 0.0
        %2083 = vmatmul.mubr.f32.gmra.mrb[0].mxu0 %v1880
        %v2084 = vpop.f32.mrb[0].mxu0
        %v2085 = vadd.f32 0.0, %v2084
        %v2086 = vpop.f32.mrb[0].mxu0
        %2087 = vmatprep.mubr.f32.mxu0 0.0
        %2088 = vmatmul.mubr.f32.gmra.mrb[0].mxu0 %v1883
        %v2089 = vpop.f32.mrb[0].mxu0
        %v2090 = vadd.f32 0.0, %v2089
        %v2091 = vpop.f32.mrb[0].mxu0
        %2092 = vmatprep.mubr.f32.mxu0 0.0
        %2093 = vmatmul.mubr.f32.gmra.mrb[0].mxu0 %v1886
        %v2094 = vpop.f32.mrb[0].mxu0
        %v2095 = vadd.f32 0.0, %v2094
        %v2096 = vpop.f32.mrb[0].mxu0
        %2097 = vmatprep.mubr.f32.mxu0 0.0
        %2098 = vmatmul.mubr.f32.gmra.mrb[0].mxu0 %v1889
        %v2099 = vpop.f32.mrb[0].mxu0
        %v2100 = vadd.f32 0.0, %v2099
        %v2101 = vpop.f32.mrb[0].mxu0
        %2102 = vmatprep.mubr.f32.mxu0 0.0
        %2103 = vmatmul.mubr.f32.gmra.mrb[0].mxu0 %v1892
        %v2104 = vpop.f32.mrb[0].mxu0
        %v2105 = vadd.f32 0.0, %v2104
        %v2106 = vpop.f32.mrb[0].mxu0
        %2107 = vmatprep.mubr.f32.mxu0 0.0
        %2108 = vmatmul.mubr.f32.gmra.mrb[0].mxu0 %v1895
        %v2109 = vpop.f32.mrb[0].mxu0
        %v2110 = vadd.f32 0.0, %v2109
        %v2111 = vpop.f32.mrb[0].mxu0
        %2112 = vmatprep.mubr.f32.mxu0 0.0
        %2113 = vmatmul.mubr.f32.gmra.mrb[0].mxu0 %v1898
        %v2114 = vpop.f32.mrb[0].mxu0
        %v2115 = vadd.f32 0.0, %v2114
        %v2116 = vpop.f32.mrb[0].mxu0
        %2117 = vmatprep.mubr.f32.mxu0 0.0
        %2118 = vmatmul.mubr.f32.gmra.mrb[0].mxu0 %v1901
        %v2119 = vpop.f32.mrb[0].mxu0
        %v2120 = vadd.f32 0.0, %v2119
        %v2121 = vpop.f32.mrb[0].mxu0
        %2122 = vmatprep.mubr.f32.mxu0 0.0
        %2123 = vmatmul.mubr.f32.gmra.mrb[0].mxu0 %v1904
        %v2124 = vpop.f32.mrb[0].mxu0
        %v2125 = vadd.f32 0.0, %v2124
        %v2126 = vpop.f32.mrb[0].mxu0
        %2127 = vmatprep.mubr.f32.mxu0 0.0
        %2128 = vmatmul.mubr.f32.gmra.mrb[0].mxu0 %v1907
        %v2129 = vpop.f32.mrb[0].mxu0
        %v2130 = vadd.f32 0.0, %v2129
        %v2131 = vpop.f32.mrb[0].mxu0
        %2132 = vmatprep.mubr.f32.mxu0 0.0
        %2133 = vmatmul.mubr.f32.gmra.mrb[0].mxu0 %v1910
        %v2134 = vpop.f32.mrb[0].mxu0
        %v2135 = vadd.f32 0.0, %v2134
        %v2136 = vpop.f32.mrb[0].mxu0
        %2137 = vmatprep.mubr.f32.mxu0 0.0
        %2138 = vmatmul.mubr.f32.gmra.mrb[0].mxu0 %v1913
        %v2139 = vpop.f32.mrb[0].mxu0
        %v2140 = vadd.f32 0.0, %v2139
        %v2141 = vpop.f32.mrb[0].mxu0
        %2142 = vdwg.mxu0
        %v2143 = vadd.f32 %v1751, %v1985
        %v2144 = vadd.f32 %v1752, %v1990
        %v2145 = vadd.f32 %v1753, %v1995
        %v2146 = vadd.f32 %v1754, %v2000
        %v2147 = vadd.f32 %v1755, %v2005
        %v2148 = vadd.f32 %v1756, %v2010
        %v2149 = vadd.f32 %v1757, %v2015
        %v2150 = vadd.f32 %v1758, %v2020
        %v2151 = vadd.f32 %v1759, %v2025
        %v2152 = vadd.f32 %v1760, %v2030
        %v2153 = vadd.f32 %v1761, %v2035
        %v2154 = vadd.f32 %v1762, %v2040
        %v2155 = vadd.f32 %v1763, %v2045
        %v2156 = vadd.f32 %v1764, %v2050
        %v2157 = vadd.f32 %v1765, %v2055
        %v2158 = vadd.f32 %v1766, %v2060
        %v2159 = vadd.f32 %v1767, %v2065
        %v2160 = vadd.f32 %v1768, %v2070
        %v2161 = vadd.f32 %v1769, %v2075
        %v2162 = vadd.f32 %v1770, %v2080
        %v2163 = vadd.f32 %v1771, %v2085
        %v2164 = vadd.f32 %v1772, %v2090
        %v2165 = vadd.f32 %v1773, %v2095
        %v2166 = vadd.f32 %v1774, %v2100
        %v2167 = vadd.f32 %v1775, %v2105
        %v2168 = vadd.f32 %v1776, %v2110
        %v2169 = vadd.f32 %v1777, %v2115
        %v2170 = vadd.f32 %v1778, %v2120
        %v2171 = vadd.f32 %v1779, %v2125
        %v2172 = vadd.f32 %v1780, %v2130
        %v2173 = vadd.f32 %v1781, %v2135
        %v2174 = vadd.f32 %v1782, %v2140
        %s2175 = scalar_lea.vmem %s278, 80
        %v2176 = vld [vmem:[%s2175] sm:$0xff]
        %v2177 = vld [vmem:[%s2175 + $0x8] sm:$0xff]
        %v2178 = vld [vmem:[%s2175 + $0x10] sm:$0xff]
        %v2179 = vld [vmem:[%s2175 + $0x18] sm:$0xff]
        %v2180 = vld [vmem:[%s2175 + $0x20] sm:$0xff]
        %v2181 = vld [vmem:[%s2175 + $0x28] sm:$0xff]
        %v2182 = vld [vmem:[%s2175 + $0x30] sm:$0xff]
        %v2183 = vld [vmem:[%s2175 + $0x38] sm:$0xff]
        %v2184 = vld [vmem:[%s2175 + $0x40] sm:$0xff]
        %v2185 = vld [vmem:[%s2175 + $0x48] sm:$0xff]
        %v2186 = vld [vmem:[%s2175 + $0x50] sm:$0xff]
        %v2187 = vld [vmem:[%s2175 + $0x58] sm:$0xff]
        %v2188 = vld [vmem:[%s2175 + $0x60] sm:$0xff]
        %v2189 = vld [vmem:[%s2175 + $0x68] sm:$0xff]
        %v2190 = vld [vmem:[%s2175 + $0x70] sm:$0xff]
        %v2191 = vld [vmem:[%s2175 + $0x78] sm:$0xff]
        %v2192 = vld [vmem:[%s2175 + $0x80] sm:$0xff]
        %v2193 = vld [vmem:[%s2175 + $0x88] sm:$0xff]
        %v2194 = vld [vmem:[%s2175 + $0x90] sm:$0xff]
        %v2195 = vld [vmem:[%s2175 + $0x98] sm:$0xff]
        %v2196 = vld [vmem:[%s2175 + $0xa0] sm:$0xff]
        %v2197 = vld [vmem:[%s2175 + $0xa8] sm:$0xff]
        %v2198 = vld [vmem:[%s2175 + $0xb0] sm:$0xff]
        %v2199 = vld [vmem:[%s2175 + $0xb8] sm:$0xff]
        %v2200 = vld [vmem:[%s2175 + $0xc0] sm:$0xff]
        %v2201 = vld [vmem:[%s2175 + $0xc8] sm:$0xff]
        %v2202 = vld [vmem:[%s2175 + $0xd0] sm:$0xff]
        %v2203 = vld [vmem:[%s2175 + $0xd8] sm:$0xff]
        %v2204 = vld [vmem:[%s2175 + $0xe0] sm:$0xff]
        %v2205 = vld [vmem:[%s2175 + $0xe8] sm:$0xff]
        %v2206 = vld [vmem:[%s2175 + $0xf0] sm:$0xff]
        %v2207 = vld [vmem:[%s2175 + $0xf8] sm:$0xff]
        %s2208 = scalar_lea.vmem %s1, 80
        %v2209 = vld [vmem:[%s2208] sm:$0xff]
        %v2210 = vld [vmem:[%s2208 + $0x8] sm:$0x1]
        %v2212 = vsel %vm349, %v2176, 0
        %v2215 = vsel %vm349, %v2177, 0
        %v2218 = vsel %vm349, %v2178, 0
        %v2221 = vsel %vm349, %v2179, 0
        %v2224 = vsel %vm349, %v2180, 0
        %v2227 = vsel %vm349, %v2181, 0
        %v2230 = vsel %vm349, %v2182, 0
        %v2233 = vsel %vm349, %v2183, 0
        %v2236 = vsel %vm349, %v2184, 0
        %v2239 = vsel %vm349, %v2185, 0
        %v2242 = vsel %vm349, %v2186, 0
        %v2245 = vsel %vm349, %v2187, 0
        %v2248 = vsel %vm349, %v2188, 0
        %v2251 = vsel %vm349, %v2189, 0
        %v2254 = vsel %vm349, %v2190, 0
        %v2257 = vsel %vm349, %v2191, 0
        %v2260 = vsel %vm349, %v2192, 0
        %v2263 = vsel %vm349, %v2193, 0
        %v2266 = vsel %vm349, %v2194, 0
        %v2269 = vsel %vm349, %v2195, 0
        %v2272 = vsel %vm349, %v2196, 0
        %v2275 = vsel %vm349, %v2197, 0
        %v2278 = vsel %vm349, %v2198, 0
        %v2281 = vsel %vm349, %v2199, 0
        %v2284 = vsel %vm349, %v2200, 0
        %v2287 = vsel %vm349, %v2201, 0
        %v2290 = vsel %vm349, %v2202, 0
        %v2293 = vsel %vm349, %v2203, 0
        %v2296 = vsel %vm349, %v2204, 0
        %v2299 = vsel %vm349, %v2205, 0
        %v2302 = vsel %vm349, %v2206, 0
        %v2305 = vsel %vm349, %v2207, 0
        %v2308 = vsel %vm446, %v2210, 0
        %2310 = vmatprep.subr.mxu0 0.0
        %2311 = vmatpush1.msra.mxu0 %v2209
        %2312 = vmatprep.subr.mxu0 0.0
        %2313 = vmatpush1.msra.mxu0 %v2308
        %2314 = vmatprep.subr.mxu0 0.0
        %2315 = vmatpush1.msra.mxu0 0.0
        %2316 = vmatprep.subr.mxu0 0.0
        %2317 = vmatpush1.msra.mxu0 0.0
        %2318 = vmatprep.subr.mxu0 0.0
        %2319 = vmatpush1.msra.mxu0 0.0
        %2320 = vmatprep.subr.mxu0 0.0
        %2321 = vmatpush1.msra.mxu0 0.0
        %2322 = vmatprep.subr.mxu0 0.0
        %2323 = vmatpush1.msra.mxu0 0.0
        %2324 = vmatprep.subr.mxu0 0.0
        %2325 = vmatpush1.msra.mxu0 0.0
        %2326 = vmatprep.subr.mxu0 0.0
        %2327 = vmatpush1.msra.mxu0 0.0
        %2328 = vmatprep.subr.mxu0 0.0
        %2329 = vmatpush1.msra.mxu0 0.0
        %2330 = vmatprep.subr.mxu0 0.0
        %2331 = vmatpush1.msra.mxu0 0.0
        %2332 = vmatprep.subr.mxu0 0.0
        %2333 = vmatpush1.msra.mxu0 0.0
        %2334 = vmatprep.subr.mxu0 0.0
        %2335 = vmatpush1.msra.mxu0 0.0
        %2336 = vmatprep.subr.mxu0 0.0
        %2337 = vmatpush1.msra.mxu0 0.0
        %2338 = vmatprep.subr.mxu0 0.0
        %2339 = vmatpush1.msra.mxu0 0.0
        %2340 = vmatprep.subr.mxu0 0.0
        %2341 = vmatpush1.msra.mxu0 0.0
        %2342 = vmatprep.subr.mxu0 0.0
        %2343 = vmatpush1.msra.mxu0 0.0
        %2344 = vmatprep.subr.mxu0 0.0
        %2345 = vmatpush1.msra.mxu0 0.0
        %2346 = vmatprep.subr.mxu0 0.0
        %2347 = vmatpush1.msra.mxu0 0.0
        %2348 = vmatprep.subr.mxu0 0.0
        %2349 = vmatpush1.msra.mxu0 0.0
        %2350 = vmatprep.subr.mxu0 0.0
        %2351 = vmatpush1.msra.mxu0 0.0
        %2352 = vmatprep.subr.mxu0 0.0
        %2353 = vmatpush1.msra.mxu0 0.0
        %2354 = vmatprep.subr.mxu0 0.0
        %2355 = vmatpush1.msra.mxu0 0.0
        %2356 = vmatprep.subr.mxu0 0.0
        %2357 = vmatpush1.msra.mxu0 0.0
        %2358 = vmatprep.subr.mxu0 0.0
        %2359 = vmatpush1.msra.mxu0 0.0
        %2360 = vmatprep.subr.mxu0 0.0
        %2361 = vmatpush1.msra.mxu0 0.0
        %2362 = vmatprep.subr.mxu0 0.0
        %2363 = vmatpush1.msra.mxu0 0.0
        %2364 = vmatprep.subr.mxu0 0.0
        %2365 = vmatpush1.msra.mxu0 0.0
        %2366 = vmatprep.subr.mxu0 0.0
        %2367 = vmatpush1.msra.mxu0 0.0
        %2368 = vmatprep.subr.mxu0 0.0
        %2369 = vmatpush1.msra.mxu0 0.0
        %2370 = vmatprep.subr.mxu0 0.0
        %2371 = vmatpush1.msra.mxu0 0.0
        %2372 = vmatprep.subr.mxu0 0.0
        %2373 = vmatpush1.msra.mxu0 0.0
        %2374 = vmatprep.mubr.f32.mxu0 0.0
        %2375 = vmatmul.mubr.f32.gmra.mrb[0].mxu0 %v2212
        %v2376 = vpop.f32.mrb[0].mxu0
        %v2377 = vadd.f32 0.0, %v2376
        %v2378 = vpop.f32.mrb[0].mxu0
        %2379 = vmatprep.mubr.f32.mxu0 0.0
        %2380 = vmatmul.mubr.f32.gmra.mrb[0].mxu0 %v2215
        %v2381 = vpop.f32.mrb[0].mxu0
        %v2382 = vadd.f32 0.0, %v2381
        %v2383 = vpop.f32.mrb[0].mxu0
        %2384 = vmatprep.mubr.f32.mxu0 0.0
        %2385 = vmatmul.mubr.f32.gmra.mrb[0].mxu0 %v2218
        %v2386 = vpop.f32.mrb[0].mxu0
        %v2387 = vadd.f32 0.0, %v2386
        %v2388 = vpop.f32.mrb[0].mxu0
        %2389 = vmatprep.mubr.f32.mxu0 0.0
        %2390 = vmatmul.mubr.f32.gmra.mrb[0].mxu0 %v2221
        %v2391 = vpop.f32.mrb[0].mxu0
        %v2392 = vadd.f32 0.0, %v2391
        %v2393 = vpop.f32.mrb[0].mxu0
        %2394 = vmatprep.mubr.f32.mxu0 0.0
        %2395 = vmatmul.mubr.f32.gmra.mrb[0].mxu0 %v2224
        %v2396 = vpop.f32.mrb[0].mxu0
        %v2397 = vadd.f32 0.0, %v2396
        %v2398 = vpop.f32.mrb[0].mxu0
        %2399 = vmatprep.mubr.f32.mxu0 0.0
        %2400 = vmatmul.mubr.f32.gmra.mrb[0].mxu0 %v2227
        %v2401 = vpop.f32.mrb[0].mxu0
        %v2402 = vadd.f32 0.0, %v2401
        %v2403 = vpop.f32.mrb[0].mxu0
        %2404 = vmatprep.mubr.f32.mxu0 0.0
        %2405 = vmatmul.mubr.f32.gmra.mrb[0].mxu0 %v2230
        %v2406 = vpop.f32.mrb[0].mxu0
        %v2407 = vadd.f32 0.0, %v2406
        %v2408 = vpop.f32.mrb[0].mxu0
        %2409 = vmatprep.mubr.f32.mxu0 0.0
        %2410 = vmatmul.mubr.f32.gmra.mrb[0].mxu0 %v2233
        %v2411 = vpop.f32.mrb[0].mxu0
        %v2412 = vadd.f32 0.0, %v2411
        %v2413 = vpop.f32.mrb[0].mxu0
        %2414 = vmatprep.mubr.f32.mxu0 0.0
        %2415 = vmatmul.mubr.f32.gmra.mrb[0].mxu0 %v2236
        %v2416 = vpop.f32.mrb[0].mxu0
        %v2417 = vadd.f32 0.0, %v2416
        %v2418 = vpop.f32.mrb[0].mxu0
        %2419 = vmatprep.mubr.f32.mxu0 0.0
        %2420 = vmatmul.mubr.f32.gmra.mrb[0].mxu0 %v2239
        %v2421 = vpop.f32.mrb[0].mxu0
        %v2422 = vadd.f32 0.0, %v2421
        %v2423 = vpop.f32.mrb[0].mxu0
        %2424 = vmatprep.mubr.f32.mxu0 0.0
        %2425 = vmatmul.mubr.f32.gmra.mrb[0].mxu0 %v2242
        %v2426 = vpop.f32.mrb[0].mxu0
        %v2427 = vadd.f32 0.0, %v2426
        %v2428 = vpop.f32.mrb[0].mxu0
        %2429 = vmatprep.mubr.f32.mxu0 0.0
        %2430 = vmatmul.mubr.f32.gmra.mrb[0].mxu0 %v2245
        %v2431 = vpop.f32.mrb[0].mxu0
        %v2432 = vadd.f32 0.0, %v2431
        %v2433 = vpop.f32.mrb[0].mxu0
        %2434 = vmatprep.mubr.f32.mxu0 0.0
        %2435 = vmatmul.mubr.f32.gmra.mrb[0].mxu0 %v2248
        %v2436 = vpop.f32.mrb[0].mxu0
        %v2437 = vadd.f32 0.0, %v2436
        %v2438 = vpop.f32.mrb[0].mxu0
        %2439 = vmatprep.mubr.f32.mxu0 0.0
        %2440 = vmatmul.mubr.f32.gmra.mrb[0].mxu0 %v2251
        %v2441 = vpop.f32.mrb[0].mxu0
        %v2442 = vadd.f32 0.0, %v2441
        %v2443 = vpop.f32.mrb[0].mxu0
        %2444 = vmatprep.mubr.f32.mxu0 0.0
        %2445 = vmatmul.mubr.f32.gmra.mrb[0].mxu0 %v2254
        %v2446 = vpop.f32.mrb[0].mxu0
        %v2447 = vadd.f32 0.0, %v2446
        %v2448 = vpop.f32.mrb[0].mxu0
        %2449 = vmatprep.mubr.f32.mxu0 0.0
        %2450 = vmatmul.mubr.f32.gmra.mrb[0].mxu0 %v2257
        %v2451 = vpop.f32.mrb[0].mxu0
        %v2452 = vadd.f32 0.0, %v2451
        %v2453 = vpop.f32.mrb[0].mxu0
        %2454 = vmatprep.mubr.f32.mxu0 0.0
        %2455 = vmatmul.mubr.f32.gmra.mrb[0].mxu0 %v2260
        %v2456 = vpop.f32.mrb[0].mxu0
        %v2457 = vadd.f32 0.0, %v2456
        %v2458 = vpop.f32.mrb[0].mxu0
        %2459 = vmatprep.mubr.f32.mxu0 0.0
        %2460 = vmatmul.mubr.f32.gmra.mrb[0].mxu0 %v2263
        %v2461 = vpop.f32.mrb[0].mxu0
        %v2462 = vadd.f32 0.0, %v2461
        %v2463 = vpop.f32.mrb[0].mxu0
        %2464 = vmatprep.mubr.f32.mxu0 0.0
        %2465 = vmatmul.mubr.f32.gmra.mrb[0].mxu0 %v2266
        %v2466 = vpop.f32.mrb[0].mxu0
        %v2467 = vadd.f32 0.0, %v2466
        %v2468 = vpop.f32.mrb[0].mxu0
        %2469 = vmatprep.mubr.f32.mxu0 0.0
        %2470 = vmatmul.mubr.f32.gmra.mrb[0].mxu0 %v2269
        %v2471 = vpop.f32.mrb[0].mxu0
        %v2472 = vadd.f32 0.0, %v2471
        %v2473 = vpop.f32.mrb[0].mxu0
        %2474 = vmatprep.mubr.f32.mxu0 0.0
        %2475 = vmatmul.mubr.f32.gmra.mrb[0].mxu0 %v2272
        %v2476 = vpop.f32.mrb[0].mxu0
        %v2477 = vadd.f32 0.0, %v2476
        %v2478 = vpop.f32.mrb[0].mxu0
        %2479 = vmatprep.mubr.f32.mxu0 0.0
        %2480 = vmatmul.mubr.f32.gmra.mrb[0].mxu0 %v2275
        %v2481 = vpop.f32.mrb[0].mxu0
        %v2482 = vadd.f32 0.0, %v2481
        %v2483 = vpop.f32.mrb[0].mxu0
        %2484 = vmatprep.mubr.f32.mxu0 0.0
        %2485 = vmatmul.mubr.f32.gmra.mrb[0].mxu0 %v2278
        %v2486 = vpop.f32.mrb[0].mxu0
        %v2487 = vadd.f32 0.0, %v2486
        %v2488 = vpop.f32.mrb[0].mxu0
        %2489 = vmatprep.mubr.f32.mxu0 0.0
        %2490 = vmatmul.mubr.f32.gmra.mrb[0].mxu0 %v2281
        %v2491 = vpop.f32.mrb[0].mxu0
        %v2492 = vadd.f32 0.0, %v2491
        %v2493 = vpop.f32.mrb[0].mxu0
        %2494 = vmatprep.mubr.f32.mxu0 0.0
        %2495 = vmatmul.mubr.f32.gmra.mrb[0].mxu0 %v2284
        %v2496 = vpop.f32.mrb[0].mxu0
        %v2497 = vadd.f32 0.0, %v2496
        %v2498 = vpop.f32.mrb[0].mxu0
        %2499 = vmatprep.mubr.f32.mxu0 0.0
        %2500 = vmatmul.mubr.f32.gmra.mrb[0].mxu0 %v2287
        %v2501 = vpop.f32.mrb[0].mxu0
        %v2502 = vadd.f32 0.0, %v2501
        %v2503 = vpop.f32.mrb[0].mxu0
        %2504 = vmatprep.mubr.f32.mxu0 0.0
        %2505 = vmatmul.mubr.f32.gmra.mrb[0].mxu0 %v2290
        %v2506 = vpop.f32.mrb[0].mxu0
        %v2507 = vadd.f32 0.0, %v2506
        %v2508 = vpop.f32.mrb[0].mxu0
        %2509 = vmatprep.mubr.f32.mxu0 0.0
        %2510 = vmatmul.mubr.f32.gmra.mrb[0].mxu0 %v2293
        %v2511 = vpop.f32.mrb[0].mxu0
        %v2512 = vadd.f32 0.0, %v2511
        %v2513 = vpop.f32.mrb[0].mxu0
        %2514 = vmatprep.mubr.f32.mxu0 0.0
        %2515 = vmatmul.mubr.f32.gmra.mrb[0].mxu0 %v2296
        %v2516 = vpop.f32.mrb[0].mxu0
        %v2517 = vadd.f32 0.0, %v2516
        %v2518 = vpop.f32.mrb[0].mxu0
        %2519 = vmatprep.mubr.f32.mxu0 0.0
        %2520 = vmatmul.mubr.f32.gmra.mrb[0].mxu0 %v2299
        %v2521 = vpop.f32.mrb[0].mxu0
        %v2522 = vadd.f32 0.0, %v2521
        %v2523 = vpop.f32.mrb[0].mxu0
        %2524 = vmatprep.mubr.f32.mxu0 0.0
        %2525 = vmatmul.mubr.f32.gmra.mrb[0].mxu0 %v2302
        %v2526 = vpop.f32.mrb[0].mxu0
        %v2527 = vadd.f32 0.0, %v2526
        %v2528 = vpop.f32.mrb[0].mxu0
        %2529 = vmatprep.mubr.f32.mxu0 0.0
        %2530 = vmatmul.mubr.f32.gmra.mrb[0].mxu0 %v2305
        %v2531 = vpop.f32.mrb[0].mxu0
        %v2532 = vadd.f32 0.0, %v2531
        %v2533 = vpop.f32.mrb[0].mxu0
        %2534 = vdwg.mxu0
        %v2535 = vadd.f32 %v2143, %v2377
        %v2536 = vadd.f32 %v2144, %v2382
        %v2537 = vadd.f32 %v2145, %v2387
        %v2538 = vadd.f32 %v2146, %v2392
        %v2539 = vadd.f32 %v2147, %v2397
        %v2540 = vadd.f32 %v2148, %v2402
        %v2541 = vadd.f32 %v2149, %v2407
        %v2542 = vadd.f32 %v2150, %v2412
        %v2543 = vadd.f32 %v2151, %v2417
        %v2544 = vadd.f32 %v2152, %v2422
        %v2545 = vadd.f32 %v2153, %v2427
        %v2546 = vadd.f32 %v2154, %v2432
        %v2547 = vadd.f32 %v2155, %v2437
        %v2548 = vadd.f32 %v2156, %v2442
        %v2549 = vadd.f32 %v2157, %v2447
        %v2550 = vadd.f32 %v2158, %v2452
        %v2551 = vadd.f32 %v2159, %v2457
        %v2552 = vadd.f32 %v2160, %v2462
        %v2553 = vadd.f32 %v2161, %v2467
        %v2554 = vadd.f32 %v2162, %v2472
        %v2555 = vadd.f32 %v2163, %v2477
        %v2556 = vadd.f32 %v2164, %v2482
        %v2557 = vadd.f32 %v2165, %v2487
        %v2558 = vadd.f32 %v2166, %v2492
        %v2559 = vadd.f32 %v2167, %v2497
        %v2560 = vadd.f32 %v2168, %v2502
        %v2561 = vadd.f32 %v2169, %v2507
        %v2562 = vadd.f32 %v2170, %v2512
        %v2563 = vadd.f32 %v2171, %v2517
        %v2564 = vadd.f32 %v2172, %v2522
        %v2565 = vadd.f32 %v2173, %v2527
        %v2566 = vadd.f32 %v2174, %v2532
        %s2567 = scalar_lea.vmem %s278, 96
        %v2568 = vld [vmem:[%s2567] sm:$0xff]
        %v2569 = vld [vmem:[%s2567 + $0x8] sm:$0xff]
        %v2570 = vld [vmem:[%s2567 + $0x10] sm:$0xff]
        %v2571 = vld [vmem:[%s2567 + $0x18] sm:$0xff]
        %v2572 = vld [vmem:[%s2567 + $0x20] sm:$0xff]
        %v2573 = vld [vmem:[%s2567 + $0x28] sm:$0xff]
        %v2574 = vld [vmem:[%s2567 + $0x30] sm:$0xff]
        %v2575 = vld [vmem:[%s2567 + $0x38] sm:$0xff]
        %v2576 = vld [vmem:[%s2567 + $0x40] sm:$0xff]
        %v2577 = vld [vmem:[%s2567 + $0x48] sm:$0xff]
        %v2578 = vld [vmem:[%s2567 + $0x50] sm:$0xff]
        %v2579 = vld [vmem:[%s2567 + $0x58] sm:$0xff]
        %v2580 = vld [vmem:[%s2567 + $0x60] sm:$0xff]
        %v2581 = vld [vmem:[%s2567 + $0x68] sm:$0xff]
        %v2582 = vld [vmem:[%s2567 + $0x70] sm:$0xff]
        %v2583 = vld [vmem:[%s2567 + $0x78] sm:$0xff]
        %v2584 = vld [vmem:[%s2567 + $0x80] sm:$0xff]
        %v2585 = vld [vmem:[%s2567 + $0x88] sm:$0xff]
        %v2586 = vld [vmem:[%s2567 + $0x90] sm:$0xff]
        %v2587 = vld [vmem:[%s2567 + $0x98] sm:$0xff]
        %v2588 = vld [vmem:[%s2567 + $0xa0] sm:$0xff]
        %v2589 = vld [vmem:[%s2567 + $0xa8] sm:$0xff]
        %v2590 = vld [vmem:[%s2567 + $0xb0] sm:$0xff]
        %v2591 = vld [vmem:[%s2567 + $0xb8] sm:$0xff]
        %v2592 = vld [vmem:[%s2567 + $0xc0] sm:$0xff]
        %v2593 = vld [vmem:[%s2567 + $0xc8] sm:$0xff]
        %v2594 = vld [vmem:[%s2567 + $0xd0] sm:$0xff]
        %v2595 = vld [vmem:[%s2567 + $0xd8] sm:$0xff]
        %v2596 = vld [vmem:[%s2567 + $0xe0] sm:$0xff]
        %v2597 = vld [vmem:[%s2567 + $0xe8] sm:$0xff]
        %v2598 = vld [vmem:[%s2567 + $0xf0] sm:$0xff]
        %v2599 = vld [vmem:[%s2567 + $0xf8] sm:$0xff]
        %s2600 = scalar_lea.vmem %s1, 96
        %v2601 = vld [vmem:[%s2600] sm:$0xff]
        %v2602 = vld [vmem:[%s2600 + $0x8] sm:$0x1]
        %v2604 = vsel %vm349, %v2568, 0
        %v2607 = vsel %vm349, %v2569, 0
        %v2610 = vsel %vm349, %v2570, 0
        %v2613 = vsel %vm349, %v2571, 0
        %v2616 = vsel %vm349, %v2572, 0
        %v2619 = vsel %vm349, %v2573, 0
        %v2622 = vsel %vm349, %v2574, 0
        %v2625 = vsel %vm349, %v2575, 0
        %v2628 = vsel %vm349, %v2576, 0
        %v2631 = vsel %vm349, %v2577, 0
        %v2634 = vsel %vm349, %v2578, 0
        %v2637 = vsel %vm349, %v2579, 0
        %v2640 = vsel %vm349, %v2580, 0
        %v2643 = vsel %vm349, %v2581, 0
        %v2646 = vsel %vm349, %v2582, 0
        %v2649 = vsel %vm349, %v2583, 0
        %v2652 = vsel %vm349, %v2584, 0
        %v2655 = vsel %vm349, %v2585, 0
        %v2658 = vsel %vm349, %v2586, 0
        %v2661 = vsel %vm349, %v2587, 0
        %v2664 = vsel %vm349, %v2588, 0
        %v2667 = vsel %vm349, %v2589, 0
        %v2670 = vsel %vm349, %v2590, 0
        %v2673 = vsel %vm349, %v2591, 0
        %v2676 = vsel %vm349, %v2592, 0
        %v2679 = vsel %vm349, %v2593, 0
        %v2682 = vsel %vm349, %v2594, 0
        %v2685 = vsel %vm349, %v2595, 0
        %v2688 = vsel %vm349, %v2596, 0
        %v2691 = vsel %vm349, %v2597, 0
        %v2694 = vsel %vm349, %v2598, 0
        %v2697 = vsel %vm349, %v2599, 0
        %v2700 = vsel %vm446, %v2602, 0
        %2702 = vmatprep.subr.mxu0 0.0
        %2703 = vmatpush1.msra.mxu0 %v2601
        %2704 = vmatprep.subr.mxu0 0.0
        %2705 = vmatpush1.msra.mxu0 %v2700
        %2706 = vmatprep.subr.mxu0 0.0
        %2707 = vmatpush1.msra.mxu0 0.0
        %2708 = vmatprep.subr.mxu0 0.0
        %2709 = vmatpush1.msra.mxu0 0.0
        %2710 = vmatprep.subr.mxu0 0.0
        %2711 = vmatpush1.msra.mxu0 0.0
        %2712 = vmatprep.subr.mxu0 0.0
        %2713 = vmatpush1.msra.mxu0 0.0
        %2714 = vmatprep.subr.mxu0 0.0
        %2715 = vmatpush1.msra.mxu0 0.0
        %2716 = vmatprep.subr.mxu0 0.0
        %2717 = vmatpush1.msra.mxu0 0.0
        %2718 = vmatprep.subr.mxu0 0.0
        %2719 = vmatpush1.msra.mxu0 0.0
        %2720 = vmatprep.subr.mxu0 0.0
        %2721 = vmatpush1.msra.mxu0 0.0
        %2722 = vmatprep.subr.mxu0 0.0
        %2723 = vmatpush1.msra.mxu0 0.0
        %2724 = vmatprep.subr.mxu0 0.0
        %2725 = vmatpush1.msra.mxu0 0.0
        %2726 = vmatprep.subr.mxu0 0.0
        %2727 = vmatpush1.msra.mxu0 0.0
        %2728 = vmatprep.subr.mxu0 0.0
        %2729 = vmatpush1.msra.mxu0 0.0
        %2730 = vmatprep.subr.mxu0 0.0
        %2731 = vmatpush1.msra.mxu0 0.0
        %2732 = vmatprep.subr.mxu0 0.0
        %2733 = vmatpush1.msra.mxu0 0.0
        %2734 = vmatprep.subr.mxu0 0.0
        %2735 = vmatpush1.msra.mxu0 0.0
        %2736 = vmatprep.subr.mxu0 0.0
        %2737 = vmatpush1.msra.mxu0 0.0
        %2738 = vmatprep.subr.mxu0 0.0
        %2739 = vmatpush1.msra.mxu0 0.0
        %2740 = vmatprep.subr.mxu0 0.0
        %2741 = vmatpush1.msra.mxu0 0.0
        %2742 = vmatprep.subr.mxu0 0.0
        %2743 = vmatpush1.msra.mxu0 0.0
        %2744 = vmatprep.subr.mxu0 0.0
        %2745 = vmatpush1.msra.mxu0 0.0
        %2746 = vmatprep.subr.mxu0 0.0
        %2747 = vmatpush1.msra.mxu0 0.0
        %2748 = vmatprep.subr.mxu0 0.0
        %2749 = vmatpush1.msra.mxu0 0.0
        %2750 = vmatprep.subr.mxu0 0.0
        %2751 = vmatpush1.msra.mxu0 0.0
        %2752 = vmatprep.subr.mxu0 0.0
        %2753 = vmatpush1.msra.mxu0 0.0
        %2754 = vmatprep.subr.mxu0 0.0
        %2755 = vmatpush1.msra.mxu0 0.0
        %2756 = vmatprep.subr.mxu0 0.0
        %2757 = vmatpush1.msra.mxu0 0.0
        %2758 = vmatprep.subr.mxu0 0.0
        %2759 = vmatpush1.msra.mxu0 0.0
        %2760 = vmatprep.subr.mxu0 0.0
        %2761 = vmatpush1.msra.mxu0 0.0
        %2762 = vmatprep.subr.mxu0 0.0
        %2763 = vmatpush1.msra.mxu0 0.0
        %2764 = vmatprep.subr.mxu0 0.0
        %2765 = vmatpush1.msra.mxu0 0.0
        %2766 = vmatprep.mubr.f32.mxu0 0.0
        %2767 = vmatmul.mubr.f32.gmra.mrb[0].mxu0 %v2604
        %v2768 = vpop.f32.mrb[0].mxu0
        %v2769 = vadd.f32 0.0, %v2768
        %v2770 = vpop.f32.mrb[0].mxu0
        %2771 = vmatprep.mubr.f32.mxu0 0.0
        %2772 = vmatmul.mubr.f32.gmra.mrb[0].mxu0 %v2607
        %v2773 = vpop.f32.mrb[0].mxu0
        %v2774 = vadd.f32 0.0, %v2773
        %v2775 = vpop.f32.mrb[0].mxu0
        %2776 = vmatprep.mubr.f32.mxu0 0.0
        %2777 = vmatmul.mubr.f32.gmra.mrb[0].mxu0 %v2610
        %v2778 = vpop.f32.mrb[0].mxu0
        %v2779 = vadd.f32 0.0, %v2778
        %v2780 = vpop.f32.mrb[0].mxu0
        %2781 = vmatprep.mubr.f32.mxu0 0.0
        %2782 = vmatmul.mubr.f32.gmra.mrb[0].mxu0 %v2613
        %v2783 = vpop.f32.mrb[0].mxu0
        %v2784 = vadd.f32 0.0, %v2783
        %v2785 = vpop.f32.mrb[0].mxu0
        %2786 = vmatprep.mubr.f32.mxu0 0.0
        %2787 = vmatmul.mubr.f32.gmra.mrb[0].mxu0 %v2616
        %v2788 = vpop.f32.mrb[0].mxu0
        %v2789 = vadd.f32 0.0, %v2788
        %v2790 = vpop.f32.mrb[0].mxu0
        %2791 = vmatprep.mubr.f32.mxu0 0.0
        %2792 = vmatmul.mubr.f32.gmra.mrb[0].mxu0 %v2619
        %v2793 = vpop.f32.mrb[0].mxu0
        %v2794 = vadd.f32 0.0, %v2793
        %v2795 = vpop.f32.mrb[0].mxu0
        %2796 = vmatprep.mubr.f32.mxu0 0.0
        %2797 = vmatmul.mubr.f32.gmra.mrb[0].mxu0 %v2622
        %v2798 = vpop.f32.mrb[0].mxu0
        %v2799 = vadd.f32 0.0, %v2798
        %v2800 = vpop.f32.mrb[0].mxu0
        %2801 = vmatprep.mubr.f32.mxu0 0.0
        %2802 = vmatmul.mubr.f32.gmra.mrb[0].mxu0 %v2625
        %v2803 = vpop.f32.mrb[0].mxu0
        %v2804 = vadd.f32 0.0, %v2803
        %v2805 = vpop.f32.mrb[0].mxu0
        %2806 = vmatprep.mubr.f32.mxu0 0.0
        %2807 = vmatmul.mubr.f32.gmra.mrb[0].mxu0 %v2628
        %v2808 = vpop.f32.mrb[0].mxu0
        %v2809 = vadd.f32 0.0, %v2808
        %v2810 = vpop.f32.mrb[0].mxu0
        %2811 = vmatprep.mubr.f32.mxu0 0.0
        %2812 = vmatmul.mubr.f32.gmra.mrb[0].mxu0 %v2631
        %v2813 = vpop.f32.mrb[0].mxu0
        %v2814 = vadd.f32 0.0, %v2813
        %v2815 = vpop.f32.mrb[0].mxu0
        %2816 = vmatprep.mubr.f32.mxu0 0.0
        %2817 = vmatmul.mubr.f32.gmra.mrb[0].mxu0 %v2634
        %v2818 = vpop.f32.mrb[0].mxu0
        %v2819 = vadd.f32 0.0, %v2818
        %v2820 = vpop.f32.mrb[0].mxu0
        %2821 = vmatprep.mubr.f32.mxu0 0.0
        %2822 = vmatmul.mubr.f32.gmra.mrb[0].mxu0 %v2637
        %v2823 = vpop.f32.mrb[0].mxu0
        %v2824 = vadd.f32 0.0, %v2823
        %v2825 = vpop.f32.mrb[0].mxu0
        %2826 = vmatprep.mubr.f32.mxu0 0.0
        %2827 = vmatmul.mubr.f32.gmra.mrb[0].mxu0 %v2640
        %v2828 = vpop.f32.mrb[0].mxu0
        %v2829 = vadd.f32 0.0, %v2828
        %v2830 = vpop.f32.mrb[0].mxu0
        %2831 = vmatprep.mubr.f32.mxu0 0.0
        %2832 = vmatmul.mubr.f32.gmra.mrb[0].mxu0 %v2643
        %v2833 = vpop.f32.mrb[0].mxu0
        %v2834 = vadd.f32 0.0, %v2833
        %v2835 = vpop.f32.mrb[0].mxu0
        %2836 = vmatprep.mubr.f32.mxu0 0.0
        %2837 = vmatmul.mubr.f32.gmra.mrb[0].mxu0 %v2646
        %v2838 = vpop.f32.mrb[0].mxu0
        %v2839 = vadd.f32 0.0, %v2838
        %v2840 = vpop.f32.mrb[0].mxu0
        %2841 = vmatprep.mubr.f32.mxu0 0.0
        %2842 = vmatmul.mubr.f32.gmra.mrb[0].mxu0 %v2649
        %v2843 = vpop.f32.mrb[0].mxu0
        %v2844 = vadd.f32 0.0, %v2843
        %v2845 = vpop.f32.mrb[0].mxu0
        %2846 = vmatprep.mubr.f32.mxu0 0.0
        %2847 = vmatmul.mubr.f32.gmra.mrb[0].mxu0 %v2652
        %v2848 = vpop.f32.mrb[0].mxu0
        %v2849 = vadd.f32 0.0, %v2848
        %v2850 = vpop.f32.mrb[0].mxu0
        %2851 = vmatprep.mubr.f32.mxu0 0.0
        %2852 = vmatmul.mubr.f32.gmra.mrb[0].mxu0 %v2655
        %v2853 = vpop.f32.mrb[0].mxu0
        %v2854 = vadd.f32 0.0, %v2853
        %v2855 = vpop.f32.mrb[0].mxu0
        %2856 = vmatprep.mubr.f32.mxu0 0.0
        %2857 = vmatmul.mubr.f32.gmra.mrb[0].mxu0 %v2658
        %v2858 = vpop.f32.mrb[0].mxu0
        %v2859 = vadd.f32 0.0, %v2858
        %v2860 = vpop.f32.mrb[0].mxu0
        %2861 = vmatprep.mubr.f32.mxu0 0.0
        %2862 = vmatmul.mubr.f32.gmra.mrb[0].mxu0 %v2661
        %v2863 = vpop.f32.mrb[0].mxu0
        %v2864 = vadd.f32 0.0, %v2863
        %v2865 = vpop.f32.mrb[0].mxu0
        %2866 = vmatprep.mubr.f32.mxu0 0.0
        %2867 = vmatmul.mubr.f32.gmra.mrb[0].mxu0 %v2664
        %v2868 = vpop.f32.mrb[0].mxu0
        %v2869 = vadd.f32 0.0, %v2868
        %v2870 = vpop.f32.mrb[0].mxu0
        %2871 = vmatprep.mubr.f32.mxu0 0.0
        %2872 = vmatmul.mubr.f32.gmra.mrb[0].mxu0 %v2667
        %v2873 = vpop.f32.mrb[0].mxu0
        %v2874 = vadd.f32 0.0, %v2873
        %v2875 = vpop.f32.mrb[0].mxu0
        %2876 = vmatprep.mubr.f32.mxu0 0.0
        %2877 = vmatmul.mubr.f32.gmra.mrb[0].mxu0 %v2670
        %v2878 = vpop.f32.mrb[0].mxu0
        %v2879 = vadd.f32 0.0, %v2878
        %v2880 = vpop.f32.mrb[0].mxu0
        %2881 = vmatprep.mubr.f32.mxu0 0.0
        %2882 = vmatmul.mubr.f32.gmra.mrb[0].mxu0 %v2673
        %v2883 = vpop.f32.mrb[0].mxu0
        %v2884 = vadd.f32 0.0, %v2883
        %v2885 = vpop.f32.mrb[0].mxu0
        %2886 = vmatprep.mubr.f32.mxu0 0.0
        %2887 = vmatmul.mubr.f32.gmra.mrb[0].mxu0 %v2676
        %v2888 = vpop.f32.mrb[0].mxu0
        %v2889 = vadd.f32 0.0, %v2888
        %v2890 = vpop.f32.mrb[0].mxu0
        %2891 = vmatprep.mubr.f32.mxu0 0.0
        %2892 = vmatmul.mubr.f32.gmra.mrb[0].mxu0 %v2679
        %v2893 = vpop.f32.mrb[0].mxu0
        %v2894 = vadd.f32 0.0, %v2893
        %v2895 = vpop.f32.mrb[0].mxu0
        %2896 = vmatprep.mubr.f32.mxu0 0.0
        %2897 = vmatmul.mubr.f32.gmra.mrb[0].mxu0 %v2682
        %v2898 = vpop.f32.mrb[0].mxu0
        %v2899 = vadd.f32 0.0, %v2898
        %v2900 = vpop.f32.mrb[0].mxu0
        %2901 = vmatprep.mubr.f32.mxu0 0.0
        %2902 = vmatmul.mubr.f32.gmra.mrb[0].mxu0 %v2685
        %v2903 = vpop.f32.mrb[0].mxu0
        %v2904 = vadd.f32 0.0, %v2903
        %v2905 = vpop.f32.mrb[0].mxu0
        %2906 = vmatprep.mubr.f32.mxu0 0.0
        %2907 = vmatmul.mubr.f32.gmra.mrb[0].mxu0 %v2688
        %v2908 = vpop.f32.mrb[0].mxu0
        %v2909 = vadd.f32 0.0, %v2908
        %v2910 = vpop.f32.mrb[0].mxu0
        %2911 = vmatprep.mubr.f32.mxu0 0.0
        %2912 = vmatmul.mubr.f32.gmra.mrb[0].mxu0 %v2691
        %v2913 = vpop.f32.mrb[0].mxu0
        %v2914 = vadd.f32 0.0, %v2913
        %v2915 = vpop.f32.mrb[0].mxu0
        %2916 = vmatprep.mubr.f32.mxu0 0.0
        %2917 = vmatmul.mubr.f32.gmra.mrb[0].mxu0 %v2694
        %v2918 = vpop.f32.mrb[0].mxu0
        %v2919 = vadd.f32 0.0, %v2918
        %v2920 = vpop.f32.mrb[0].mxu0
        %2921 = vmatprep.mubr.f32.mxu0 0.0
        %2922 = vmatmul.mubr.f32.gmra.mrb[0].mxu0 %v2697
        %v2923 = vpop.f32.mrb[0].mxu0
        %v2924 = vadd.f32 0.0, %v2923
        %v2925 = vpop.f32.mrb[0].mxu0
        %2926 = vdwg.mxu0
        %v2927 = vadd.f32 %v2535, %v2769
        %v2928 = vadd.f32 %v2536, %v2774
        %v2929 = vadd.f32 %v2537, %v2779
        %v2930 = vadd.f32 %v2538, %v2784
        %v2931 = vadd.f32 %v2539, %v2789
        %v2932 = vadd.f32 %v2540, %v2794
        %v2933 = vadd.f32 %v2541, %v2799
        %v2934 = vadd.f32 %v2542, %v2804
        %v2935 = vadd.f32 %v2543, %v2809
        %v2936 = vadd.f32 %v2544, %v2814
        %v2937 = vadd.f32 %v2545, %v2819
        %v2938 = vadd.f32 %v2546, %v2824
        %v2939 = vadd.f32 %v2547, %v2829
        %v2940 = vadd.f32 %v2548, %v2834
        %v2941 = vadd.f32 %v2549, %v2839
        %v2942 = vadd.f32 %v2550, %v2844
        %v2943 = vadd.f32 %v2551, %v2849
        %v2944 = vadd.f32 %v2552, %v2854
        %v2945 = vadd.f32 %v2553, %v2859
        %v2946 = vadd.f32 %v2554, %v2864
        %v2947 = vadd.f32 %v2555, %v2869
        %v2948 = vadd.f32 %v2556, %v2874
        %v2949 = vadd.f32 %v2557, %v2879
        %v2950 = vadd.f32 %v2558, %v2884
        %v2951 = vadd.f32 %v2559, %v2889
        %v2952 = vadd.f32 %v2560, %v2894
        %v2953 = vadd.f32 %v2561, %v2899
        %v2954 = vadd.f32 %v2562, %v2904
        %v2955 = vadd.f32 %v2563, %v2909
        %v2956 = vadd.f32 %v2564, %v2914
        %v2957 = vadd.f32 %v2565, %v2919
        %v2958 = vadd.f32 %v2566, %v2924
        %s2959 = scalar_lea.vmem %s278, 112
        %v2960 = vld [vmem:[%s2959] sm:$0xff]
        %v2961 = vld [vmem:[%s2959 + $0x8] sm:$0xff]
        %v2962 = vld [vmem:[%s2959 + $0x10] sm:$0xff]
        %v2963 = vld [vmem:[%s2959 + $0x18] sm:$0xff]
        %v2964 = vld [vmem:[%s2959 + $0x20] sm:$0xff]
        %v2965 = vld [vmem:[%s2959 + $0x28] sm:$0xff]
        %v2966 = vld [vmem:[%s2959 + $0x30] sm:$0xff]
        %v2967 = vld [vmem:[%s2959 + $0x38] sm:$0xff]
        %v2968 = vld [vmem:[%s2959 + $0x40] sm:$0xff]
        %v2969 = vld [vmem:[%s2959 + $0x48] sm:$0xff]
        %v2970 = vld [vmem:[%s2959 + $0x50] sm:$0xff]
        %v2971 = vld [vmem:[%s2959 + $0x58] sm:$0xff]
        %v2972 = vld [vmem:[%s2959 + $0x60] sm:$0xff]
        %v2973 = vld [vmem:[%s2959 + $0x68] sm:$0xff]
        %v2974 = vld [vmem:[%s2959 + $0x70] sm:$0xff]
        %v2975 = vld [vmem:[%s2959 + $0x78] sm:$0xff]
        %v2976 = vld [vmem:[%s2959 + $0x80] sm:$0xff]
        %v2977 = vld [vmem:[%s2959 + $0x88] sm:$0xff]
        %v2978 = vld [vmem:[%s2959 + $0x90] sm:$0xff]
        %v2979 = vld [vmem:[%s2959 + $0x98] sm:$0xff]
        %v2980 = vld [vmem:[%s2959 + $0xa0] sm:$0xff]
        %v2981 = vld [vmem:[%s2959 + $0xa8] sm:$0xff]
        %v2982 = vld [vmem:[%s2959 + $0xb0] sm:$0xff]
        %v2983 = vld [vmem:[%s2959 + $0xb8] sm:$0xff]
        %v2984 = vld [vmem:[%s2959 + $0xc0] sm:$0xff]
        %v2985 = vld [vmem:[%s2959 + $0xc8] sm:$0xff]
        %v2986 = vld [vmem:[%s2959 + $0xd0] sm:$0xff]
        %v2987 = vld [vmem:[%s2959 + $0xd8] sm:$0xff]
        %v2988 = vld [vmem:[%s2959 + $0xe0] sm:$0xff]
        %v2989 = vld [vmem:[%s2959 + $0xe8] sm:$0xff]
        %v2990 = vld [vmem:[%s2959 + $0xf0] sm:$0xff]
        %v2991 = vld [vmem:[%s2959 + $0xf8] sm:$0xff]
        %s2992 = scalar_lea.vmem %s1, 112
        %v2993 = vld [vmem:[%s2992] sm:$0xff]
        %v2994 = vld [vmem:[%s2992 + $0x8] sm:$0x1]
        %v2996 = vsel %vm349, %v2960, 0
        %v2999 = vsel %vm349, %v2961, 0
        %v3002 = vsel %vm349, %v2962, 0
        %v3005 = vsel %vm349, %v2963, 0
        %v3008 = vsel %vm349, %v2964, 0
        %v3011 = vsel %vm349, %v2965, 0
        %v3014 = vsel %vm349, %v2966, 0
        %v3017 = vsel %vm349, %v2967, 0
        %v3020 = vsel %vm349, %v2968, 0
        %v3023 = vsel %vm349, %v2969, 0
        %v3026 = vsel %vm349, %v2970, 0
        %v3029 = vsel %vm349, %v2971, 0
        %v3032 = vsel %vm349, %v2972, 0
        %v3035 = vsel %vm349, %v2973, 0
        %v3038 = vsel %vm349, %v2974, 0
        %v3041 = vsel %vm349, %v2975, 0
        %v3044 = vsel %vm349, %v2976, 0
        %v3047 = vsel %vm349, %v2977, 0
        %v3050 = vsel %vm349, %v2978, 0
        %v3053 = vsel %vm349, %v2979, 0
        %v3056 = vsel %vm349, %v2980, 0
        %v3059 = vsel %vm349, %v2981, 0
        %v3062 = vsel %vm349, %v2982, 0
        %v3065 = vsel %vm349, %v2983, 0
        %v3068 = vsel %vm349, %v2984, 0
        %v3071 = vsel %vm349, %v2985, 0
        %v3074 = vsel %vm349, %v2986, 0
        %v3077 = vsel %vm349, %v2987, 0
        %v3080 = vsel %vm349, %v2988, 0
        %v3083 = vsel %vm349, %v2989, 0
        %v3086 = vsel %vm349, %v2990, 0
        %v3089 = vsel %vm349, %v2991, 0
        %v3092 = vsel %vm446, %v2994, 0
        %3094 = vmatprep.subr.mxu0 0.0
        %3095 = vmatpush1.msra.mxu0 %v2993
        %3096 = vmatprep.subr.mxu0 0.0
        %3097 = vmatpush1.msra.mxu0 %v3092
        %3098 = vmatprep.subr.mxu0 0.0
        %3099 = vmatpush1.msra.mxu0 0.0
        %3100 = vmatprep.subr.mxu0 0.0
        %3101 = vmatpush1.msra.mxu0 0.0
        %3102 = vmatprep.subr.mxu0 0.0
        %3103 = vmatpush1.msra.mxu0 0.0
        %3104 = vmatprep.subr.mxu0 0.0
        %3105 = vmatpush1.msra.mxu0 0.0
        %3106 = vmatprep.subr.mxu0 0.0
        %3107 = vmatpush1.msra.mxu0 0.0
        %3108 = vmatprep.subr.mxu0 0.0
        %3109 = vmatpush1.msra.mxu0 0.0
        %3110 = vmatprep.subr.mxu0 0.0
        %3111 = vmatpush1.msra.mxu0 0.0
        %3112 = vmatprep.subr.mxu0 0.0
        %3113 = vmatpush1.msra.mxu0 0.0
        %3114 = vmatprep.subr.mxu0 0.0
        %3115 = vmatpush1.msra.mxu0 0.0
        %3116 = vmatprep.subr.mxu0 0.0
        %3117 = vmatpush1.msra.mxu0 0.0
        %3118 = vmatprep.subr.mxu0 0.0
        %3119 = vmatpush1.msra.mxu0 0.0
        %3120 = vmatprep.subr.mxu0 0.0
        %3121 = vmatpush1.msra.mxu0 0.0
        %3122 = vmatprep.subr.mxu0 0.0
        %3123 = vmatpush1.msra.mxu0 0.0
        %3124 = vmatprep.subr.mxu0 0.0
        %3125 = vmatpush1.msra.mxu0 0.0
        %3126 = vmatprep.subr.mxu0 0.0
        %3127 = vmatpush1.msra.mxu0 0.0
        %3128 = vmatprep.subr.mxu0 0.0
        %3129 = vmatpush1.msra.mxu0 0.0
        %3130 = vmatprep.subr.mxu0 0.0
        %3131 = vmatpush1.msra.mxu0 0.0
        %3132 = vmatprep.subr.mxu0 0.0
        %3133 = vmatpush1.msra.mxu0 0.0
        %3134 = vmatprep.subr.mxu0 0.0
        %3135 = vmatpush1.msra.mxu0 0.0
        %3136 = vmatprep.subr.mxu0 0.0
        %3137 = vmatpush1.msra.mxu0 0.0
        %3138 = vmatprep.subr.mxu0 0.0
        %3139 = vmatpush1.msra.mxu0 0.0
        %3140 = vmatprep.subr.mxu0 0.0
        %3141 = vmatpush1.msra.mxu0 0.0
        %3142 = vmatprep.subr.mxu0 0.0
        %3143 = vmatpush1.msra.mxu0 0.0
        %3144 = vmatprep.subr.mxu0 0.0
        %3145 = vmatpush1.msra.mxu0 0.0
        %3146 = vmatprep.subr.mxu0 0.0
        %3147 = vmatpush1.msra.mxu0 0.0
        %3148 = vmatprep.subr.mxu0 0.0
        %3149 = vmatpush1.msra.mxu0 0.0
        %3150 = vmatprep.subr.mxu0 0.0
        %3151 = vmatpush1.msra.mxu0 0.0
        %3152 = vmatprep.subr.mxu0 0.0
        %3153 = vmatpush1.msra.mxu0 0.0
        %3154 = vmatprep.subr.mxu0 0.0
        %3155 = vmatpush1.msra.mxu0 0.0
        %3156 = vmatprep.subr.mxu0 0.0
        %3157 = vmatpush1.msra.mxu0 0.0
        %3158 = vmatprep.mubr.f32.mxu0 0.0
        %3159 = vmatmul.mubr.f32.gmra.mrb[0].mxu0 %v2996
        %v3160 = vpop.f32.mrb[0].mxu0
        %v3161 = vadd.f32 0.0, %v3160
        %v3162 = vpop.f32.mrb[0].mxu0
        %3163 = vmatprep.mubr.f32.mxu0 0.0
        %3164 = vmatmul.mubr.f32.gmra.mrb[0].mxu0 %v2999
        %v3165 = vpop.f32.mrb[0].mxu0
        %v3166 = vadd.f32 0.0, %v3165
        %v3167 = vpop.f32.mrb[0].mxu0
        %3168 = vmatprep.mubr.f32.mxu0 0.0
        %3169 = vmatmul.mubr.f32.gmra.mrb[0].mxu0 %v3002
        %v3170 = vpop.f32.mrb[0].mxu0
        %v3171 = vadd.f32 0.0, %v3170
        %v3172 = vpop.f32.mrb[0].mxu0
        %3173 = vmatprep.mubr.f32.mxu0 0.0
        %3174 = vmatmul.mubr.f32.gmra.mrb[0].mxu0 %v3005
        %v3175 = vpop.f32.mrb[0].mxu0
        %v3176 = vadd.f32 0.0, %v3175
        %v3177 = vpop.f32.mrb[0].mxu0
        %3178 = vmatprep.mubr.f32.mxu0 0.0
        %3179 = vmatmul.mubr.f32.gmra.mrb[0].mxu0 %v3008
        %v3180 = vpop.f32.mrb[0].mxu0
        %v3181 = vadd.f32 0.0, %v3180
        %v3182 = vpop.f32.mrb[0].mxu0
        %3183 = vmatprep.mubr.f32.mxu0 0.0
        %3184 = vmatmul.mubr.f32.gmra.mrb[0].mxu0 %v3011
        %v3185 = vpop.f32.mrb[0].mxu0
        %v3186 = vadd.f32 0.0, %v3185
        %v3187 = vpop.f32.mrb[0].mxu0
        %3188 = vmatprep.mubr.f32.mxu0 0.0
        %3189 = vmatmul.mubr.f32.gmra.mrb[0].mxu0 %v3014
        %v3190 = vpop.f32.mrb[0].mxu0
        %v3191 = vadd.f32 0.0, %v3190
        %v3192 = vpop.f32.mrb[0].mxu0
        %3193 = vmatprep.mubr.f32.mxu0 0.0
        %3194 = vmatmul.mubr.f32.gmra.mrb[0].mxu0 %v3017
        %v3195 = vpop.f32.mrb[0].mxu0
        %v3196 = vadd.f32 0.0, %v3195
        %v3197 = vpop.f32.mrb[0].mxu0
        %3198 = vmatprep.mubr.f32.mxu0 0.0
        %3199 = vmatmul.mubr.f32.gmra.mrb[0].mxu0 %v3020
        %v3200 = vpop.f32.mrb[0].mxu0
        %v3201 = vadd.f32 0.0, %v3200
        %v3202 = vpop.f32.mrb[0].mxu0
        %3203 = vmatprep.mubr.f32.mxu0 0.0
        %3204 = vmatmul.mubr.f32.gmra.mrb[0].mxu0 %v3023
        %v3205 = vpop.f32.mrb[0].mxu0
        %v3206 = vadd.f32 0.0, %v3205
        %v3207 = vpop.f32.mrb[0].mxu0
        %3208 = vmatprep.mubr.f32.mxu0 0.0
        %3209 = vmatmul.mubr.f32.gmra.mrb[0].mxu0 %v3026
        %v3210 = vpop.f32.mrb[0].mxu0
        %v3211 = vadd.f32 0.0, %v3210
        %v3212 = vpop.f32.mrb[0].mxu0
        %3213 = vmatprep.mubr.f32.mxu0 0.0
        %3214 = vmatmul.mubr.f32.gmra.mrb[0].mxu0 %v3029
        %v3215 = vpop.f32.mrb[0].mxu0
        %v3216 = vadd.f32 0.0, %v3215
        %v3217 = vpop.f32.mrb[0].mxu0
        %3218 = vmatprep.mubr.f32.mxu0 0.0
        %3219 = vmatmul.mubr.f32.gmra.mrb[0].mxu0 %v3032
        %v3220 = vpop.f32.mrb[0].mxu0
        %v3221 = vadd.f32 0.0, %v3220
        %v3222 = vpop.f32.mrb[0].mxu0
        %3223 = vmatprep.mubr.f32.mxu0 0.0
        %3224 = vmatmul.mubr.f32.gmra.mrb[0].mxu0 %v3035
        %v3225 = vpop.f32.mrb[0].mxu0
        %v3226 = vadd.f32 0.0, %v3225
        %v3227 = vpop.f32.mrb[0].mxu0
        %3228 = vmatprep.mubr.f32.mxu0 0.0
        %3229 = vmatmul.mubr.f32.gmra.mrb[0].mxu0 %v3038
        %v3230 = vpop.f32.mrb[0].mxu0
        %v3231 = vadd.f32 0.0, %v3230
        %v3232 = vpop.f32.mrb[0].mxu0
        %3233 = vmatprep.mubr.f32.mxu0 0.0
        %3234 = vmatmul.mubr.f32.gmra.mrb[0].mxu0 %v3041
        %v3235 = vpop.f32.mrb[0].mxu0
        %v3236 = vadd.f32 0.0, %v3235
        %v3237 = vpop.f32.mrb[0].mxu0
        %3238 = vmatprep.mubr.f32.mxu0 0.0
        %3239 = vmatmul.mubr.f32.gmra.mrb[0].mxu0 %v3044
        %v3240 = vpop.f32.mrb[0].mxu0
        %v3241 = vadd.f32 0.0, %v3240
        %v3242 = vpop.f32.mrb[0].mxu0
        %3243 = vmatprep.mubr.f32.mxu0 0.0
        %3244 = vmatmul.mubr.f32.gmra.mrb[0].mxu0 %v3047
        %v3245 = vpop.f32.mrb[0].mxu0
        %v3246 = vadd.f32 0.0, %v3245
        %v3247 = vpop.f32.mrb[0].mxu0
        %3248 = vmatprep.mubr.f32.mxu0 0.0
        %3249 = vmatmul.mubr.f32.gmra.mrb[0].mxu0 %v3050
        %v3250 = vpop.f32.mrb[0].mxu0
        %v3251 = vadd.f32 0.0, %v3250
        %v3252 = vpop.f32.mrb[0].mxu0
        %3253 = vmatprep.mubr.f32.mxu0 0.0
        %3254 = vmatmul.mubr.f32.gmra.mrb[0].mxu0 %v3053
        %v3255 = vpop.f32.mrb[0].mxu0
        %v3256 = vadd.f32 0.0, %v3255
        %v3257 = vpop.f32.mrb[0].mxu0
        %3258 = vmatprep.mubr.f32.mxu0 0.0
        %3259 = vmatmul.mubr.f32.gmra.mrb[0].mxu0 %v3056
        %v3260 = vpop.f32.mrb[0].mxu0
        %v3261 = vadd.f32 0.0, %v3260
        %v3262 = vpop.f32.mrb[0].mxu0
        %3263 = vmatprep.mubr.f32.mxu0 0.0
        %3264 = vmatmul.mubr.f32.gmra.mrb[0].mxu0 %v3059
        %v3265 = vpop.f32.mrb[0].mxu0
        %v3266 = vadd.f32 0.0, %v3265
        %v3267 = vpop.f32.mrb[0].mxu0
        %3268 = vmatprep.mubr.f32.mxu0 0.0
        %3269 = vmatmul.mubr.f32.gmra.mrb[0].mxu0 %v3062
        %v3270 = vpop.f32.mrb[0].mxu0
        %v3271 = vadd.f32 0.0, %v3270
        %v3272 = vpop.f32.mrb[0].mxu0
        %3273 = vmatprep.mubr.f32.mxu0 0.0
        %3274 = vmatmul.mubr.f32.gmra.mrb[0].mxu0 %v3065
        %v3275 = vpop.f32.mrb[0].mxu0
        %v3276 = vadd.f32 0.0, %v3275
        %v3277 = vpop.f32.mrb[0].mxu0
        %3278 = vmatprep.mubr.f32.mxu0 0.0
        %3279 = vmatmul.mubr.f32.gmra.mrb[0].mxu0 %v3068
        %v3280 = vpop.f32.mrb[0].mxu0
        %v3281 = vadd.f32 0.0, %v3280
        %v3282 = vpop.f32.mrb[0].mxu0
        %3283 = vmatprep.mubr.f32.mxu0 0.0
        %3284 = vmatmul.mubr.f32.gmra.mrb[0].mxu0 %v3071
        %v3285 = vpop.f32.mrb[0].mxu0
        %v3286 = vadd.f32 0.0, %v3285
        %v3287 = vpop.f32.mrb[0].mxu0
        %3288 = vmatprep.mubr.f32.mxu0 0.0
        %3289 = vmatmul.mubr.f32.gmra.mrb[0].mxu0 %v3074
        %v3290 = vpop.f32.mrb[0].mxu0
        %v3291 = vadd.f32 0.0, %v3290
        %v3292 = vpop.f32.mrb[0].mxu0
        %3293 = vmatprep.mubr.f32.mxu0 0.0
        %3294 = vmatmul.mubr.f32.gmra.mrb[0].mxu0 %v3077
        %v3295 = vpop.f32.mrb[0].mxu0
        %v3296 = vadd.f32 0.0, %v3295
        %v3297 = vpop.f32.mrb[0].mxu0
        %3298 = vmatprep.mubr.f32.mxu0 0.0
        %3299 = vmatmul.mubr.f32.gmra.mrb[0].mxu0 %v3080
        %v3300 = vpop.f32.mrb[0].mxu0
        %v3301 = vadd.f32 0.0, %v3300
        %v3302 = vpop.f32.mrb[0].mxu0
        %3303 = vmatprep.mubr.f32.mxu0 0.0
        %3304 = vmatmul.mubr.f32.gmra.mrb[0].mxu0 %v3083
        %v3305 = vpop.f32.mrb[0].mxu0
        %v3306 = vadd.f32 0.0, %v3305
        %v3307 = vpop.f32.mrb[0].mxu0
        %3308 = vmatprep.mubr.f32.mxu0 0.0
        %3309 = vmatmul.mubr.f32.gmra.mrb[0].mxu0 %v3086
        %v3310 = vpop.f32.mrb[0].mxu0
        %v3311 = vadd.f32 0.0, %v3310
        %v3312 = vpop.f32.mrb[0].mxu0
        %3313 = vmatprep.mubr.f32.mxu0 0.0
        %3314 = vmatmul.mubr.f32.gmra.mrb[0].mxu0 %v3089
        %v3315 = vpop.f32.mrb[0].mxu0
        %v3316 = vadd.f32 0.0, %v3315
        %v3317 = vpop.f32.mrb[0].mxu0
        %3318 = vdwg.mxu0
        %v3319 = vadd.f32 %v2927, %v3161
        %v3320 = vadd.f32 %v2928, %v3166
        %v3321 = vadd.f32 %v2929, %v3171
        %v3322 = vadd.f32 %v2930, %v3176
        %v3323 = vadd.f32 %v2931, %v3181
        %v3324 = vadd.f32 %v2932, %v3186
        %v3325 = vadd.f32 %v2933, %v3191
        %v3326 = vadd.f32 %v2934, %v3196
        %v3327 = vadd.f32 %v2935, %v3201
        %v3328 = vadd.f32 %v2936, %v3206
        %v3329 = vadd.f32 %v2937, %v3211
        %v3330 = vadd.f32 %v2938, %v3216
        %v3331 = vadd.f32 %v2939, %v3221
        %v3332 = vadd.f32 %v2940, %v3226
        %v3333 = vadd.f32 %v2941, %v3231
        %v3334 = vadd.f32 %v2942, %v3236
        %v3335 = vadd.f32 %v2943, %v3241
        %v3336 = vadd.f32 %v2944, %v3246
        %v3337 = vadd.f32 %v2945, %v3251
        %v3338 = vadd.f32 %v2946, %v3256
        %v3339 = vadd.f32 %v2947, %v3261
        %v3340 = vadd.f32 %v2948, %v3266
        %v3341 = vadd.f32 %v2949, %v3271
        %v3342 = vadd.f32 %v2950, %v3276
        %v3343 = vadd.f32 %v2951, %v3281
        %v3344 = vadd.f32 %v2952, %v3286
        %v3345 = vadd.f32 %v2953, %v3291
        %v3346 = vadd.f32 %v2954, %v3296
        %v3347 = vadd.f32 %v2955, %v3301
        %v3348 = vadd.f32 %v2956, %v3306
        %v3349 = vadd.f32 %v2957, %v3311
        %v3350 = vadd.f32 %v2958, %v3316
        %s3351 = scalar_lea.vmem %s278, 128
        %v3352 = vld [vmem:[%s3351] sm:$0xff]
        %v3353 = vld [vmem:[%s3351 + $0x8] sm:$0xff]
        %v3354 = vld [vmem:[%s3351 + $0x10] sm:$0xff]
        %v3355 = vld [vmem:[%s3351 + $0x18] sm:$0xff]
        %v3356 = vld [vmem:[%s3351 + $0x20] sm:$0xff]
        %v3357 = vld [vmem:[%s3351 + $0x28] sm:$0xff]
        %v3358 = vld [vmem:[%s3351 + $0x30] sm:$0xff]
        %v3359 = vld [vmem:[%s3351 + $0x38] sm:$0xff]
        %v3360 = vld [vmem:[%s3351 + $0x40] sm:$0xff]
        %v3361 = vld [vmem:[%s3351 + $0x48] sm:$0xff]
        %v3362 = vld [vmem:[%s3351 + $0x50] sm:$0xff]
        %v3363 = vld [vmem:[%s3351 + $0x58] sm:$0xff]
        %v3364 = vld [vmem:[%s3351 + $0x60] sm:$0xff]
        %v3365 = vld [vmem:[%s3351 + $0x68] sm:$0xff]
        %v3366 = vld [vmem:[%s3351 + $0x70] sm:$0xff]
        %v3367 = vld [vmem:[%s3351 + $0x78] sm:$0xff]
        %v3368 = vld [vmem:[%s3351 + $0x80] sm:$0xff]
        %v3369 = vld [vmem:[%s3351 + $0x88] sm:$0xff]
        %v3370 = vld [vmem:[%s3351 + $0x90] sm:$0xff]
        %v3371 = vld [vmem:[%s3351 + $0x98] sm:$0xff]
        %v3372 = vld [vmem:[%s3351 + $0xa0] sm:$0xff]
        %v3373 = vld [vmem:[%s3351 + $0xa8] sm:$0xff]
        %v3374 = vld [vmem:[%s3351 + $0xb0] sm:$0xff]
        %v3375 = vld [vmem:[%s3351 + $0xb8] sm:$0xff]
        %v3376 = vld [vmem:[%s3351 + $0xc0] sm:$0xff]
        %v3377 = vld [vmem:[%s3351 + $0xc8] sm:$0xff]
        %v3378 = vld [vmem:[%s3351 + $0xd0] sm:$0xff]
        %v3379 = vld [vmem:[%s3351 + $0xd8] sm:$0xff]
        %v3380 = vld [vmem:[%s3351 + $0xe0] sm:$0xff]
        %v3381 = vld [vmem:[%s3351 + $0xe8] sm:$0xff]
        %v3382 = vld [vmem:[%s3351 + $0xf0] sm:$0xff]
        %v3383 = vld [vmem:[%s3351 + $0xf8] sm:$0xff]
        %s3384 = scalar_lea.vmem %s1, 128
        %v3385 = vld [vmem:[%s3384] sm:$0xff]
        %v3386 = vld [vmem:[%s3384 + $0x8] sm:$0x1]
        %v3388 = vsel %vm349, %v3352, 0
        %v3391 = vsel %vm349, %v3353, 0
        %v3394 = vsel %vm349, %v3354, 0
        %v3397 = vsel %vm349, %v3355, 0
        %v3400 = vsel %vm349, %v3356, 0
        %v3403 = vsel %vm349, %v3357, 0
        %v3406 = vsel %vm349, %v3358, 0
        %v3409 = vsel %vm349, %v3359, 0
        %v3412 = vsel %vm349, %v3360, 0
        %v3415 = vsel %vm349, %v3361, 0
        %v3418 = vsel %vm349, %v3362, 0
        %v3421 = vsel %vm349, %v3363, 0
        %v3424 = vsel %vm349, %v3364, 0
        %v3427 = vsel %vm349, %v3365, 0
        %v3430 = vsel %vm349, %v3366, 0
        %v3433 = vsel %vm349, %v3367, 0
        %v3436 = vsel %vm349, %v3368, 0
        %v3439 = vsel %vm349, %v3369, 0
        %v3442 = vsel %vm349, %v3370, 0
        %v3445 = vsel %vm349, %v3371, 0
        %v3448 = vsel %vm349, %v3372, 0
        %v3451 = vsel %vm349, %v3373, 0
        %v3454 = vsel %vm349, %v3374, 0
        %v3457 = vsel %vm349, %v3375, 0
        %v3460 = vsel %vm349, %v3376, 0
        %v3463 = vsel %vm349, %v3377, 0
        %v3466 = vsel %vm349, %v3378, 0
        %v3469 = vsel %vm349, %v3379, 0
        %v3472 = vsel %vm349, %v3380, 0
        %v3475 = vsel %vm349, %v3381, 0
        %v3478 = vsel %vm349, %v3382, 0
        %v3481 = vsel %vm349, %v3383, 0
        %v3484 = vsel %vm446, %v3386, 0
        %3486 = vmatprep.subr.mxu0 0.0
        %3487 = vmatpush1.msra.mxu0 %v3385
        %3488 = vmatprep.subr.mxu0 0.0
        %3489 = vmatpush1.msra.mxu0 %v3484
        %3490 = vmatprep.subr.mxu0 0.0
        %3491 = vmatpush1.msra.mxu0 0.0
        %3492 = vmatprep.subr.mxu0 0.0
        %3493 = vmatpush1.msra.mxu0 0.0
        %3494 = vmatprep.subr.mxu0 0.0
        %3495 = vmatpush1.msra.mxu0 0.0
        %3496 = vmatprep.subr.mxu0 0.0
        %3497 = vmatpush1.msra.mxu0 0.0
        %3498 = vmatprep.subr.mxu0 0.0
        %3499 = vmatpush1.msra.mxu0 0.0
        %3500 = vmatprep.subr.mxu0 0.0
        %3501 = vmatpush1.msra.mxu0 0.0
        %3502 = vmatprep.subr.mxu0 0.0
        %3503 = vmatpush1.msra.mxu0 0.0
        %3504 = vmatprep.subr.mxu0 0.0
        %3505 = vmatpush1.msra.mxu0 0.0
        %3506 = vmatprep.subr.mxu0 0.0
        %3507 = vmatpush1.msra.mxu0 0.0
        %3508 = vmatprep.subr.mxu0 0.0
        %3509 = vmatpush1.msra.mxu0 0.0
        %3510 = vmatprep.subr.mxu0 0.0
        %3511 = vmatpush1.msra.mxu0 0.0
        %3512 = vmatprep.subr.mxu0 0.0
        %3513 = vmatpush1.msra.mxu0 0.0
        %3514 = vmatprep.subr.mxu0 0.0
        %3515 = vmatpush1.msra.mxu0 0.0
        %3516 = vmatprep.subr.mxu0 0.0
        %3517 = vmatpush1.msra.mxu0 0.0
        %3518 = vmatprep.subr.mxu0 0.0
        %3519 = vmatpush1.msra.mxu0 0.0
        %3520 = vmatprep.subr.mxu0 0.0
        %3521 = vmatpush1.msra.mxu0 0.0
        %3522 = vmatprep.subr.mxu0 0.0
        %3523 = vmatpush1.msra.mxu0 0.0
        %3524 = vmatprep.subr.mxu0 0.0
        %3525 = vmatpush1.msra.mxu0 0.0
        %3526 = vmatprep.subr.mxu0 0.0
        %3527 = vmatpush1.msra.mxu0 0.0
        %3528 = vmatprep.subr.mxu0 0.0
        %3529 = vmatpush1.msra.mxu0 0.0
        %3530 = vmatprep.subr.mxu0 0.0
        %3531 = vmatpush1.msra.mxu0 0.0
        %3532 = vmatprep.subr.mxu0 0.0
        %3533 = vmatpush1.msra.mxu0 0.0
        %3534 = vmatprep.subr.mxu0 0.0
        %3535 = vmatpush1.msra.mxu0 0.0
        %3536 = vmatprep.subr.mxu0 0.0
        %3537 = vmatpush1.msra.mxu0 0.0
        %3538 = vmatprep.subr.mxu0 0.0
        %3539 = vmatpush1.msra.mxu0 0.0
        %3540 = vmatprep.subr.mxu0 0.0
        %3541 = vmatpush1.msra.mxu0 0.0
        %3542 = vmatprep.subr.mxu0 0.0
        %3543 = vmatpush1.msra.mxu0 0.0
        %3544 = vmatprep.subr.mxu0 0.0
        %3545 = vmatpush1.msra.mxu0 0.0
        %3546 = vmatprep.subr.mxu0 0.0
        %3547 = vmatpush1.msra.mxu0 0.0
        %3548 = vmatprep.subr.mxu0 0.0
        %3549 = vmatpush1.msra.mxu0 0.0
        %3550 = vmatprep.mubr.f32.mxu0 0.0
        %3551 = vmatmul.mubr.f32.gmra.mrb[0].mxu0 %v3388
        %v3552 = vpop.f32.mrb[0].mxu0
        %v3553 = vadd.f32 0.0, %v3552
        %v3554 = vpop.f32.mrb[0].mxu0
        %3555 = vmatprep.mubr.f32.mxu0 0.0
        %3556 = vmatmul.mubr.f32.gmra.mrb[0].mxu0 %v3391
        %v3557 = vpop.f32.mrb[0].mxu0
        %v3558 = vadd.f32 0.0, %v3557
        %v3559 = vpop.f32.mrb[0].mxu0
        %3560 = vmatprep.mubr.f32.mxu0 0.0
        %3561 = vmatmul.mubr.f32.gmra.mrb[0].mxu0 %v3394
        %v3562 = vpop.f32.mrb[0].mxu0
        %v3563 = vadd.f32 0.0, %v3562
        %v3564 = vpop.f32.mrb[0].mxu0
        %3565 = vmatprep.mubr.f32.mxu0 0.0
        %3566 = vmatmul.mubr.f32.gmra.mrb[0].mxu0 %v3397
        %v3567 = vpop.f32.mrb[0].mxu0
        %v3568 = vadd.f32 0.0, %v3567
        %v3569 = vpop.f32.mrb[0].mxu0
        %3570 = vmatprep.mubr.f32.mxu0 0.0
        %3571 = vmatmul.mubr.f32.gmra.mrb[0].mxu0 %v3400
        %v3572 = vpop.f32.mrb[0].mxu0
        %v3573 = vadd.f32 0.0, %v3572
        %v3574 = vpop.f32.mrb[0].mxu0
        %3575 = vmatprep.mubr.f32.mxu0 0.0
        %3576 = vmatmul.mubr.f32.gmra.mrb[0].mxu0 %v3403
        %v3577 = vpop.f32.mrb[0].mxu0
        %v3578 = vadd.f32 0.0, %v3577
        %v3579 = vpop.f32.mrb[0].mxu0
        %3580 = vmatprep.mubr.f32.mxu0 0.0
        %3581 = vmatmul.mubr.f32.gmra.mrb[0].mxu0 %v3406
        %v3582 = vpop.f32.mrb[0].mxu0
        %v3583 = vadd.f32 0.0, %v3582
        %v3584 = vpop.f32.mrb[0].mxu0
        %3585 = vmatprep.mubr.f32.mxu0 0.0
        %3586 = vmatmul.mubr.f32.gmra.mrb[0].mxu0 %v3409
        %v3587 = vpop.f32.mrb[0].mxu0
        %v3588 = vadd.f32 0.0, %v3587
        %v3589 = vpop.f32.mrb[0].mxu0
        %3590 = vmatprep.mubr.f32.mxu0 0.0
        %3591 = vmatmul.mubr.f32.gmra.mrb[0].mxu0 %v3412
        %v3592 = vpop.f32.mrb[0].mxu0
        %v3593 = vadd.f32 0.0, %v3592
        %v3594 = vpop.f32.mrb[0].mxu0
        %3595 = vmatprep.mubr.f32.mxu0 0.0
        %3596 = vmatmul.mubr.f32.gmra.mrb[0].mxu0 %v3415
        %v3597 = vpop.f32.mrb[0].mxu0
        %v3598 = vadd.f32 0.0, %v3597
        %v3599 = vpop.f32.mrb[0].mxu0
        %3600 = vmatprep.mubr.f32.mxu0 0.0
        %3601 = vmatmul.mubr.f32.gmra.mrb[0].mxu0 %v3418
        %v3602 = vpop.f32.mrb[0].mxu0
        %v3603 = vadd.f32 0.0, %v3602
        %v3604 = vpop.f32.mrb[0].mxu0
        %3605 = vmatprep.mubr.f32.mxu0 0.0
        %3606 = vmatmul.mubr.f32.gmra.mrb[0].mxu0 %v3421
        %v3607 = vpop.f32.mrb[0].mxu0
        %v3608 = vadd.f32 0.0, %v3607
        %v3609 = vpop.f32.mrb[0].mxu0
        %3610 = vmatprep.mubr.f32.mxu0 0.0
        %3611 = vmatmul.mubr.f32.gmra.mrb[0].mxu0 %v3424
        %v3612 = vpop.f32.mrb[0].mxu0
        %v3613 = vadd.f32 0.0, %v3612
        %v3614 = vpop.f32.mrb[0].mxu0
        %3615 = vmatprep.mubr.f32.mxu0 0.0
        %3616 = vmatmul.mubr.f32.gmra.mrb[0].mxu0 %v3427
        %v3617 = vpop.f32.mrb[0].mxu0
        %v3618 = vadd.f32 0.0, %v3617
        %v3619 = vpop.f32.mrb[0].mxu0
        %3620 = vmatprep.mubr.f32.mxu0 0.0
        %3621 = vmatmul.mubr.f32.gmra.mrb[0].mxu0 %v3430
        %v3622 = vpop.f32.mrb[0].mxu0
        %v3623 = vadd.f32 0.0, %v3622
        %v3624 = vpop.f32.mrb[0].mxu0
        %3625 = vmatprep.mubr.f32.mxu0 0.0
        %3626 = vmatmul.mubr.f32.gmra.mrb[0].mxu0 %v3433
        %v3627 = vpop.f32.mrb[0].mxu0
        %v3628 = vadd.f32 0.0, %v3627
        %v3629 = vpop.f32.mrb[0].mxu0
        %3630 = vmatprep.mubr.f32.mxu0 0.0
        %3631 = vmatmul.mubr.f32.gmra.mrb[0].mxu0 %v3436
        %v3632 = vpop.f32.mrb[0].mxu0
        %v3633 = vadd.f32 0.0, %v3632
        %v3634 = vpop.f32.mrb[0].mxu0
        %3635 = vmatprep.mubr.f32.mxu0 0.0
        %3636 = vmatmul.mubr.f32.gmra.mrb[0].mxu0 %v3439
        %v3637 = vpop.f32.mrb[0].mxu0
        %v3638 = vadd.f32 0.0, %v3637
        %v3639 = vpop.f32.mrb[0].mxu0
        %3640 = vmatprep.mubr.f32.mxu0 0.0
        %3641 = vmatmul.mubr.f32.gmra.mrb[0].mxu0 %v3442
        %v3642 = vpop.f32.mrb[0].mxu0
        %v3643 = vadd.f32 0.0, %v3642
        %v3644 = vpop.f32.mrb[0].mxu0
        %3645 = vmatprep.mubr.f32.mxu0 0.0
        %3646 = vmatmul.mubr.f32.gmra.mrb[0].mxu0 %v3445
        %v3647 = vpop.f32.mrb[0].mxu0
        %v3648 = vadd.f32 0.0, %v3647
        %v3649 = vpop.f32.mrb[0].mxu0
        %3650 = vmatprep.mubr.f32.mxu0 0.0
        %3651 = vmatmul.mubr.f32.gmra.mrb[0].mxu0 %v3448
        %v3652 = vpop.f32.mrb[0].mxu0
        %v3653 = vadd.f32 0.0, %v3652
        %v3654 = vpop.f32.mrb[0].mxu0
        %3655 = vmatprep.mubr.f32.mxu0 0.0
        %3656 = vmatmul.mubr.f32.gmra.mrb[0].mxu0 %v3451
        %v3657 = vpop.f32.mrb[0].mxu0
        %v3658 = vadd.f32 0.0, %v3657
        %v3659 = vpop.f32.mrb[0].mxu0
        %3660 = vmatprep.mubr.f32.mxu0 0.0
        %3661 = vmatmul.mubr.f32.gmra.mrb[0].mxu0 %v3454
        %v3662 = vpop.f32.mrb[0].mxu0
        %v3663 = vadd.f32 0.0, %v3662
        %v3664 = vpop.f32.mrb[0].mxu0
        %3665 = vmatprep.mubr.f32.mxu0 0.0
        %3666 = vmatmul.mubr.f32.gmra.mrb[0].mxu0 %v3457
        %v3667 = vpop.f32.mrb[0].mxu0
        %v3668 = vadd.f32 0.0, %v3667
        %v3669 = vpop.f32.mrb[0].mxu0
        %3670 = vmatprep.mubr.f32.mxu0 0.0
        %3671 = vmatmul.mubr.f32.gmra.mrb[0].mxu0 %v3460
        %v3672 = vpop.f32.mrb[0].mxu0
        %v3673 = vadd.f32 0.0, %v3672
        %v3674 = vpop.f32.mrb[0].mxu0
        %3675 = vmatprep.mubr.f32.mxu0 0.0
        %3676 = vmatmul.mubr.f32.gmra.mrb[0].mxu0 %v3463
        %v3677 = vpop.f32.mrb[0].mxu0
        %v3678 = vadd.f32 0.0, %v3677
        %v3679 = vpop.f32.mrb[0].mxu0
        %3680 = vmatprep.mubr.f32.mxu0 0.0
        %3681 = vmatmul.mubr.f32.gmra.mrb[0].mxu0 %v3466
        %v3682 = vpop.f32.mrb[0].mxu0
        %v3683 = vadd.f32 0.0, %v3682
        %v3684 = vpop.f32.mrb[0].mxu0
        %3685 = vmatprep.mubr.f32.mxu0 0.0
        %3686 = vmatmul.mubr.f32.gmra.mrb[0].mxu0 %v3469
        %v3687 = vpop.f32.mrb[0].mxu0
        %v3688 = vadd.f32 0.0, %v3687
        %v3689 = vpop.f32.mrb[0].mxu0
        %3690 = vmatprep.mubr.f32.mxu0 0.0
        %3691 = vmatmul.mubr.f32.gmra.mrb[0].mxu0 %v3472
        %v3692 = vpop.f32.mrb[0].mxu0
        %v3693 = vadd.f32 0.0, %v3692
        %v3694 = vpop.f32.mrb[0].mxu0
        %3695 = vmatprep.mubr.f32.mxu0 0.0
        %3696 = vmatmul.mubr.f32.gmra.mrb[0].mxu0 %v3475
        %v3697 = vpop.f32.mrb[0].mxu0
        %v3698 = vadd.f32 0.0, %v3697
        %v3699 = vpop.f32.mrb[0].mxu0
        %3700 = vmatprep.mubr.f32.mxu0 0.0
        %3701 = vmatmul.mubr.f32.gmra.mrb[0].mxu0 %v3478
        %v3702 = vpop.f32.mrb[0].mxu0
        %v3703 = vadd.f32 0.0, %v3702
        %v3704 = vpop.f32.mrb[0].mxu0
        %3705 = vmatprep.mubr.f32.mxu0 0.0
        %3706 = vmatmul.mubr.f32.gmra.mrb[0].mxu0 %v3481
        %v3707 = vpop.f32.mrb[0].mxu0
        %v3708 = vadd.f32 0.0, %v3707
        %v3709 = vpop.f32.mrb[0].mxu0
        %3710 = vdwg.mxu0
        %v3711 = vadd.f32 %v3319, %v3553
        %v3712 = vadd.f32 %v3320, %v3558
        %v3713 = vadd.f32 %v3321, %v3563
        %v3714 = vadd.f32 %v3322, %v3568
        %v3715 = vadd.f32 %v3323, %v3573
        %v3716 = vadd.f32 %v3324, %v3578
        %v3717 = vadd.f32 %v3325, %v3583
        %v3718 = vadd.f32 %v3326, %v3588
        %v3719 = vadd.f32 %v3327, %v3593
        %v3720 = vadd.f32 %v3328, %v3598
        %v3721 = vadd.f32 %v3329, %v3603
        %v3722 = vadd.f32 %v3330, %v3608
        %v3723 = vadd.f32 %v3331, %v3613
        %v3724 = vadd.f32 %v3332, %v3618
        %v3725 = vadd.f32 %v3333, %v3623
        %v3726 = vadd.f32 %v3334, %v3628
        %v3727 = vadd.f32 %v3335, %v3633
        %v3728 = vadd.f32 %v3336, %v3638
        %v3729 = vadd.f32 %v3337, %v3643
        %v3730 = vadd.f32 %v3338, %v3648
        %v3731 = vadd.f32 %v3339, %v3653
        %v3732 = vadd.f32 %v3340, %v3658
        %v3733 = vadd.f32 %v3341, %v3663
        %v3734 = vadd.f32 %v3342, %v3668
        %v3735 = vadd.f32 %v3343, %v3673
        %v3736 = vadd.f32 %v3344, %v3678
        %v3737 = vadd.f32 %v3345, %v3683
        %v3738 = vadd.f32 %v3346, %v3688
        %v3739 = vadd.f32 %v3347, %v3693
        %v3740 = vadd.f32 %v3348, %v3698
        %v3741 = vadd.f32 %v3349, %v3703
        %v3742 = vadd.f32 %v3350, %v3708
        %v3743 = vld [vmem:[%s2] sm:$0x1]
        %v3745 = vlaneseq
        %v3746 = vshrl.u32 %v3745, 7
        %v3747 = vsub.s32 0, %v3746
        %v3748 = vrot.slane %v3743, %v3747
        %v3750 = vadd.f32 %v3711, %v3748
        %v3751 = vadd.f32 %v3712, %v3748
        %v3752 = vadd.f32 %v3713, %v3748
        %v3753 = vadd.f32 %v3714, %v3748
        %v3754 = vadd.f32 %v3715, %v3748
        %v3755 = vadd.f32 %v3716, %v3748
        %v3756 = vadd.f32 %v3717, %v3748
        %v3757 = vadd.f32 %v3718, %v3748
        %v3758 = vadd.f32 %v3719, %v3748
        %v3759 = vadd.f32 %v3720, %v3748
        %v3760 = vadd.f32 %v3721, %v3748
        %v3761 = vadd.f32 %v3722, %v3748
        %v3762 = vadd.f32 %v3723, %v3748
        %v3763 = vadd.f32 %v3724, %v3748
        %v3764 = vadd.f32 %v3725, %v3748
        %v3765 = vadd.f32 %v3726, %v3748
        %v3766 = vadd.f32 %v3727, %v3748
        %v3767 = vadd.f32 %v3728, %v3748
        %v3768 = vadd.f32 %v3729, %v3748
        %v3769 = vadd.f32 %v3730, %v3748
        %v3770 = vadd.f32 %v3731, %v3748
        %v3771 = vadd.f32 %v3732, %v3748
        %v3772 = vadd.f32 %v3733, %v3748
        %v3773 = vadd.f32 %v3734, %v3748
        %v3774 = vadd.f32 %v3735, %v3748
        %v3775 = vadd.f32 %v3736, %v3748
        %v3776 = vadd.f32 %v3737, %v3748
        %v3777 = vadd.f32 %v3738, %v3748
        %v3778 = vadd.f32 %v3739, %v3748
        %v3779 = vadd.f32 %v3740, %v3748
        %v3780 = vadd.f32 %v3741, %v3748
        %v3781 = vadd.f32 %v3742, %v3748
        %v3782 = vmax.f32 %v3750, 0.0
        %v3783 = vmax.f32 %v3751, 0.0
        %v3784 = vmax.f32 %v3752, 0.0
        %v3785 = vmax.f32 %v3753, 0.0
        %v3786 = vmax.f32 %v3754, 0.0
        %v3787 = vmax.f32 %v3755, 0.0
        %v3788 = vmax.f32 %v3756, 0.0
        %v3789 = vmax.f32 %v3757, 0.0
        %v3790 = vmax.f32 %v3758, 0.0
        %v3791 = vmax.f32 %v3759, 0.0
        %v3792 = vmax.f32 %v3760, 0.0
        %v3793 = vmax.f32 %v3761, 0.0
        %v3794 = vmax.f32 %v3762, 0.0
        %v3795 = vmax.f32 %v3763, 0.0
        %v3796 = vmax.f32 %v3764, 0.0
        %v3797 = vmax.f32 %v3765, 0.0
        %v3798 = vmax.f32 %v3766, 0.0
        %v3799 = vmax.f32 %v3767, 0.0
        %v3800 = vmax.f32 %v3768, 0.0
        %v3801 = vmax.f32 %v3769, 0.0
        %v3802 = vmax.f32 %v3770, 0.0
        %v3803 = vmax.f32 %v3771, 0.0
        %v3804 = vmax.f32 %v3772, 0.0
        %v3805 = vmax.f32 %v3773, 0.0
        %v3806 = vmax.f32 %v3774, 0.0
        %v3807 = vmax.f32 %v3775, 0.0
        %v3808 = vmax.f32 %v3776, 0.0
        %v3809 = vmax.f32 %v3777, 0.0
        %v3810 = vmax.f32 %v3778, 0.0
        %v3811 = vmax.f32 %v3779, 0.0
        %v3812 = vmax.f32 %v3780, 0.0
        %v3813 = vmax.f32 %v3781, 0.0
        %v3814 = vld [vmem:[%s3] sm:$0xff]
        %v3815 = vld [vmem:[%s3 + $0x8] sm:$0xff]
        %v3816 = vld [vmem:[%s3 + $0x10] sm:$0xff]
        %v3817 = vld [vmem:[%s3 + $0x18] sm:$0xff]
        %v3818 = vld [vmem:[%s3 + $0x20] sm:$0xff]
        %v3819 = vld [vmem:[%s3 + $0x28] sm:$0xff]
        %v3820 = vld [vmem:[%s3 + $0x30] sm:$0xff]
        %v3821 = vld [vmem:[%s3 + $0x38] sm:$0xff]
        %v3822 = vld [vmem:[%s4] sm:$0x1]
        %v3824 = vlaneseq
        %v3825 = vshrl.u32 %v3824, 7
        %v3826 = vsub.s32 0, %v3825
        %v3827 = vrot.slane %v3822, %v3826
        %vm3829 = vcmask 523264
        %v3831 = vsel %vm3829, %v3782, 0
        %v3834 = vsel %vm3829, %v3783, 0
        %v3837 = vsel %vm3829, %v3784, 0
        %v3840 = vsel %vm3829, %v3785, 0
        %v3843 = vsel %vm3829, %v3786, 0
        %v3846 = vsel %vm3829, %v3787, 0
        %v3849 = vsel %vm3829, %v3788, 0
        %v3852 = vsel %vm3829, %v3789, 0
        %v3855 = vsel %vm3829, %v3790, 0
        %v3858 = vsel %vm3829, %v3791, 0
        %v3861 = vsel %vm3829, %v3792, 0
        %v3864 = vsel %vm3829, %v3793, 0
        %v3867 = vsel %vm3829, %v3794, 0
        %v3870 = vsel %vm3829, %v3795, 0
        %v3873 = vsel %vm3829, %v3796, 0
        %v3876 = vsel %vm3829, %v3797, 0
        %v3879 = vsel %vm3829, %v3798, 0
        %v3882 = vsel %vm3829, %v3799, 0
        %v3885 = vsel %vm3829, %v3800, 0
        %v3888 = vsel %vm3829, %v3801, 0
        %v3891 = vsel %vm3829, %v3802, 0
        %v3894 = vsel %vm3829, %v3803, 0
        %v3897 = vsel %vm3829, %v3804, 0
        %v3900 = vsel %vm3829, %v3805, 0
        %v3903 = vsel %vm3829, %v3806, 0
        %v3906 = vsel %vm3829, %v3807, 0
        %v3909 = vsel %vm3829, %v3808, 0
        %v3912 = vsel %vm3829, %v3809, 0
        %v3915 = vsel %vm3829, %v3810, 0
        %v3918 = vsel %vm3829, %v3811, 0
        %v3921 = vsel %vm3829, %v3812, 0
        %v3924 = vsel %vm3829, %v3813, 0
        %3926 = vmatprep.subr.mxu0 0.0
        %3927 = vmatpush1.msra.mxu0 %v3814
        %3928 = vmatprep.subr.mxu0 0.0
        %3929 = vmatpush1.msra.mxu0 %v3815
        %3930 = vmatprep.subr.mxu0 0.0
        %3931 = vmatpush1.msra.mxu0 %v3816
        %3932 = vmatprep.subr.mxu0 0.0
        %3933 = vmatpush1.msra.mxu0 %v3817
        %3934 = vmatprep.subr.mxu0 0.0
        %3935 = vmatpush1.msra.mxu0 %v3818
        %3936 = vmatprep.subr.mxu0 0.0
        %3937 = vmatpush1.msra.mxu0 %v3819
        %3938 = vmatprep.subr.mxu0 0.0
        %3939 = vmatpush1.msra.mxu0 %v3820
        %3940 = vmatprep.subr.mxu0 0.0
        %3941 = vmatpush1.msra.mxu0 %v3821
        %3942 = vmatprep.subr.mxu0 0.0
        %3943 = vmatpush1.msra.mxu0 0.0
        %3944 = vmatprep.subr.mxu0 0.0
        %3945 = vmatpush1.msra.mxu0 0.0
        %3946 = vmatprep.subr.mxu0 0.0
        %3947 = vmatpush1.msra.mxu0 0.0
        %3948 = vmatprep.subr.mxu0 0.0
        %3949 = vmatpush1.msra.mxu0 0.0
        %3950 = vmatprep.subr.mxu0 0.0
        %3951 = vmatpush1.msra.mxu0 0.0
        %3952 = vmatprep.subr.mxu0 0.0
        %3953 = vmatpush1.msra.mxu0 0.0
        %3954 = vmatprep.subr.mxu0 0.0
        %3955 = vmatpush1.msra.mxu0 0.0
        %3956 = vmatprep.subr.mxu0 0.0
        %3957 = vmatpush1.msra.mxu0 0.0
        %3958 = vmatprep.subr.mxu0 0.0
        %3959 = vmatpush1.msra.mxu0 0.0
        %3960 = vmatprep.subr.mxu0 0.0
        %3961 = vmatpush1.msra.mxu0 0.0
        %3962 = vmatprep.subr.mxu0 0.0
        %3963 = vmatpush1.msra.mxu0 0.0
        %3964 = vmatprep.subr.mxu0 0.0
        %3965 = vmatpush1.msra.mxu0 0.0
        %3966 = vmatprep.subr.mxu0 0.0
        %3967 = vmatpush1.msra.mxu0 0.0
        %3968 = vmatprep.subr.mxu0 0.0
        %3969 = vmatpush1.msra.mxu0 0.0
        %3970 = vmatprep.subr.mxu0 0.0
        %3971 = vmatpush1.msra.mxu0 0.0
        %3972 = vmatprep.subr.mxu0 0.0
        %3973 = vmatpush1.msra.mxu0 0.0
        %3974 = vmatprep.subr.mxu0 0.0
        %3975 = vmatpush1.msra.mxu0 0.0
        %3976 = vmatprep.subr.mxu0 0.0
        %3977 = vmatpush1.msra.mxu0 0.0
        %3978 = vmatprep.subr.mxu0 0.0
        %3979 = vmatpush1.msra.mxu0 0.0
        %3980 = vmatprep.subr.mxu0 0.0
        %3981 = vmatpush1.msra.mxu0 0.0
        %3982 = vmatprep.subr.mxu0 0.0
        %3983 = vmatpush1.msra.mxu0 0.0
        %3984 = vmatprep.subr.mxu0 0.0
        %3985 = vmatpush1.msra.mxu0 0.0
        %3986 = vmatprep.subr.mxu0 0.0
        %3987 = vmatpush1.msra.mxu0 0.0
        %3988 = vmatprep.subr.mxu0 0.0
        %3989 = vmatpush1.msra.mxu0 0.0
        %3990 = vmatprep.mubr.f32.mxu0 0.0
        %3991 = vmatmul.mubr.f32.gmra.mrb[0].mxu0 %v3831
        %v3992 = vpop.f32.mrb[0].mxu0
        %v3993 = vadd.f32 %v3827, %v3992
        %v3994 = vpop.f32.mrb[0].mxu0
        %3995 = vmatprep.mubr.f32.mxu0 0.0
        %3996 = vmatmul.mubr.f32.gmra.mrb[0].mxu0 %v3834
        %v3997 = vpop.f32.mrb[0].mxu0
        %v3998 = vadd.f32 %v3827, %v3997
        %v3999 = vpop.f32.mrb[0].mxu0
        %4000 = vmatprep.mubr.f32.mxu0 0.0
        %4001 = vmatmul.mubr.f32.gmra.mrb[0].mxu0 %v3837
        %v4002 = vpop.f32.mrb[0].mxu0
        %v4003 = vadd.f32 %v3827, %v4002
        %v4004 = vpop.f32.mrb[0].mxu0
        %4005 = vmatprep.mubr.f32.mxu0 0.0
        %4006 = vmatmul.mubr.f32.gmra.mrb[0].mxu0 %v3840
        %v4007 = vpop.f32.mrb[0].mxu0
        %v4008 = vadd.f32 %v3827, %v4007
        %v4009 = vpop.f32.mrb[0].mxu0
        %4010 = vmatprep.mubr.f32.mxu0 0.0
        %4011 = vmatmul.mubr.f32.gmra.mrb[0].mxu0 %v3843
        %v4012 = vpop.f32.mrb[0].mxu0
        %v4013 = vadd.f32 %v3827, %v4012
        %v4014 = vpop.f32.mrb[0].mxu0
        %4015 = vmatprep.mubr.f32.mxu0 0.0
        %4016 = vmatmul.mubr.f32.gmra.mrb[0].mxu0 %v3846
        %v4017 = vpop.f32.mrb[0].mxu0
        %v4018 = vadd.f32 %v3827, %v4017
        %v4019 = vpop.f32.mrb[0].mxu0
        %4020 = vmatprep.mubr.f32.mxu0 0.0
        %4021 = vmatmul.mubr.f32.gmra.mrb[0].mxu0 %v3849
        %v4022 = vpop.f32.mrb[0].mxu0
        %v4023 = vadd.f32 %v3827, %v4022
        %v4024 = vpop.f32.mrb[0].mxu0
        %4025 = vmatprep.mubr.f32.mxu0 0.0
        %4026 = vmatmul.mubr.f32.gmra.mrb[0].mxu0 %v3852
        %v4027 = vpop.f32.mrb[0].mxu0
        %v4028 = vadd.f32 %v3827, %v4027
        %v4029 = vpop.f32.mrb[0].mxu0
        %4030 = vmatprep.mubr.f32.mxu0 0.0
        %4031 = vmatmul.mubr.f32.gmra.mrb[0].mxu0 %v3855
        %v4032 = vpop.f32.mrb[0].mxu0
        %v4033 = vadd.f32 %v3827, %v4032
        %v4034 = vpop.f32.mrb[0].mxu0
        %4035 = vmatprep.mubr.f32.mxu0 0.0
        %4036 = vmatmul.mubr.f32.gmra.mrb[0].mxu0 %v3858
        %v4037 = vpop.f32.mrb[0].mxu0
        %v4038 = vadd.f32 %v3827, %v4037
        %v4039 = vpop.f32.mrb[0].mxu0
        %4040 = vmatprep.mubr.f32.mxu0 0.0
        %4041 = vmatmul.mubr.f32.gmra.mrb[0].mxu0 %v3861
        %v4042 = vpop.f32.mrb[0].mxu0
        %v4043 = vadd.f32 %v3827, %v4042
        %v4044 = vpop.f32.mrb[0].mxu0
        %4045 = vmatprep.mubr.f32.mxu0 0.0
        %4046 = vmatmul.mubr.f32.gmra.mrb[0].mxu0 %v3864
        %v4047 = vpop.f32.mrb[0].mxu0
        %v4048 = vadd.f32 %v3827, %v4047
        %v4049 = vpop.f32.mrb[0].mxu0
        %4050 = vmatprep.mubr.f32.mxu0 0.0
        %4051 = vmatmul.mubr.f32.gmra.mrb[0].mxu0 %v3867
        %v4052 = vpop.f32.mrb[0].mxu0
        %v4053 = vadd.f32 %v3827, %v4052
        %v4054 = vpop.f32.mrb[0].mxu0
        %4055 = vmatprep.mubr.f32.mxu0 0.0
        %4056 = vmatmul.mubr.f32.gmra.mrb[0].mxu0 %v3870
        %v4057 = vpop.f32.mrb[0].mxu0
        %v4058 = vadd.f32 %v3827, %v4057
        %v4059 = vpop.f32.mrb[0].mxu0
        %4060 = vmatprep.mubr.f32.mxu0 0.0
        %4061 = vmatmul.mubr.f32.gmra.mrb[0].mxu0 %v3873
        %v4062 = vpop.f32.mrb[0].mxu0
        %v4063 = vadd.f32 %v3827, %v4062
        %v4064 = vpop.f32.mrb[0].mxu0
        %4065 = vmatprep.mubr.f32.mxu0 0.0
        %4066 = vmatmul.mubr.f32.gmra.mrb[0].mxu0 %v3876
        %v4067 = vpop.f32.mrb[0].mxu0
        %v4068 = vadd.f32 %v3827, %v4067
        %v4069 = vpop.f32.mrb[0].mxu0
        %4070 = vmatprep.mubr.f32.mxu0 0.0
        %4071 = vmatmul.mubr.f32.gmra.mrb[0].mxu0 %v3879
        %v4072 = vpop.f32.mrb[0].mxu0
        %v4073 = vadd.f32 %v3827, %v4072
        %v4074 = vpop.f32.mrb[0].mxu0
        %4075 = vmatprep.mubr.f32.mxu0 0.0
        %4076 = vmatmul.mubr.f32.gmra.mrb[0].mxu0 %v3882
        %v4077 = vpop.f32.mrb[0].mxu0
        %v4078 = vadd.f32 %v3827, %v4077
        %v4079 = vpop.f32.mrb[0].mxu0
        %4080 = vmatprep.mubr.f32.mxu0 0.0
        %4081 = vmatmul.mubr.f32.gmra.mrb[0].mxu0 %v3885
        %v4082 = vpop.f32.mrb[0].mxu0
        %v4083 = vadd.f32 %v3827, %v4082
        %v4084 = vpop.f32.mrb[0].mxu0
        %4085 = vmatprep.mubr.f32.mxu0 0.0
        %4086 = vmatmul.mubr.f32.gmra.mrb[0].mxu0 %v3888
        %v4087 = vpop.f32.mrb[0].mxu0
        %v4088 = vadd.f32 %v3827, %v4087
        %v4089 = vpop.f32.mrb[0].mxu0
        %4090 = vmatprep.mubr.f32.mxu0 0.0
        %4091 = vmatmul.mubr.f32.gmra.mrb[0].mxu0 %v3891
        %v4092 = vpop.f32.mrb[0].mxu0
        %v4093 = vadd.f32 %v3827, %v4092
        %v4094 = vpop.f32.mrb[0].mxu0
        %4095 = vmatprep.mubr.f32.mxu0 0.0
        %4096 = vmatmul.mubr.f32.gmra.mrb[0].mxu0 %v3894
        %v4097 = vpop.f32.mrb[0].mxu0
        %v4098 = vadd.f32 %v3827, %v4097
        %v4099 = vpop.f32.mrb[0].mxu0
        %4100 = vmatprep.mubr.f32.mxu0 0.0
        %4101 = vmatmul.mubr.f32.gmra.mrb[0].mxu0 %v3897
        %v4102 = vpop.f32.mrb[0].mxu0
        %v4103 = vadd.f32 %v3827, %v4102
        %v4104 = vpop.f32.mrb[0].mxu0
        %4105 = vmatprep.mubr.f32.mxu0 0.0
        %4106 = vmatmul.mubr.f32.gmra.mrb[0].mxu0 %v3900
        %v4107 = vpop.f32.mrb[0].mxu0
        %v4108 = vadd.f32 %v3827, %v4107
        %v4109 = vpop.f32.mrb[0].mxu0
        %4110 = vmatprep.mubr.f32.mxu0 0.0
        %4111 = vmatmul.mubr.f32.gmra.mrb[0].mxu0 %v3903
        %v4112 = vpop.f32.mrb[0].mxu0
        %v4113 = vadd.f32 %v3827, %v4112
        %v4114 = vpop.f32.mrb[0].mxu0
        %4115 = vmatprep.mubr.f32.mxu0 0.0
        %4116 = vmatmul.mubr.f32.gmra.mrb[0].mxu0 %v3906
        %v4117 = vpop.f32.mrb[0].mxu0
        %v4118 = vadd.f32 %v3827, %v4117
        %v4119 = vpop.f32.mrb[0].mxu0
        %4120 = vmatprep.mubr.f32.mxu0 0.0
        %4121 = vmatmul.mubr.f32.gmra.mrb[0].mxu0 %v3909
        %v4122 = vpop.f32.mrb[0].mxu0
        %v4123 = vadd.f32 %v3827, %v4122
        %v4124 = vpop.f32.mrb[0].mxu0
        %4125 = vmatprep.mubr.f32.mxu0 0.0
        %4126 = vmatmul.mubr.f32.gmra.mrb[0].mxu0 %v3912
        %v4127 = vpop.f32.mrb[0].mxu0
        %v4128 = vadd.f32 %v3827, %v4127
        %v4129 = vpop.f32.mrb[0].mxu0
        %4130 = vmatprep.mubr.f32.mxu0 0.0
        %4131 = vmatmul.mubr.f32.gmra.mrb[0].mxu0 %v3915
        %v4132 = vpop.f32.mrb[0].mxu0
        %v4133 = vadd.f32 %v3827, %v4132
        %v4134 = vpop.f32.mrb[0].mxu0
        %4135 = vmatprep.mubr.f32.mxu0 0.0
        %4136 = vmatmul.mubr.f32.gmra.mrb[0].mxu0 %v3918
        %v4137 = vpop.f32.mrb[0].mxu0
        %v4138 = vadd.f32 %v3827, %v4137
        %v4139 = vpop.f32.mrb[0].mxu0
        %4140 = vmatprep.mubr.f32.mxu0 0.0
        %4141 = vmatmul.mubr.f32.gmra.mrb[0].mxu0 %v3921
        %v4142 = vpop.f32.mrb[0].mxu0
        %v4143 = vadd.f32 %v3827, %v4142
        %v4144 = vpop.f32.mrb[0].mxu0
        %4145 = vmatprep.mubr.f32.mxu0 0.0
        %4146 = vmatmul.mubr.f32.gmra.mrb[0].mxu0 %v3924
        %v4147 = vpop.f32.mrb[0].mxu0
        %v4148 = vadd.f32 %v3827, %v4147
        %v4149 = vpop.f32.mrb[0].mxu0
        %4150 = vdwg.mxu0
        %v4151 = vmax.f32 %v3993, 0.0
        %v4152 = vmax.f32 %v3998, 0.0
        %v4153 = vmax.f32 %v4003, 0.0
        %v4154 = vmax.f32 %v4008, 0.0
        %v4155 = vmax.f32 %v4013, 0.0
        %v4156 = vmax.f32 %v4018, 0.0
        %v4157 = vmax.f32 %v4023, 0.0
        %v4158 = vmax.f32 %v4028, 0.0
        %v4159 = vmax.f32 %v4033, 0.0
        %v4160 = vmax.f32 %v4038, 0.0
        %v4161 = vmax.f32 %v4043, 0.0
        %v4162 = vmax.f32 %v4048, 0.0
        %v4163 = vmax.f32 %v4053, 0.0
        %v4164 = vmax.f32 %v4058, 0.0
        %v4165 = vmax.f32 %v4063, 0.0
        %v4166 = vmax.f32 %v4068, 0.0
        %v4167 = vmax.f32 %v4073, 0.0
        %v4168 = vmax.f32 %v4078, 0.0
        %v4169 = vmax.f32 %v4083, 0.0
        %v4170 = vmax.f32 %v4088, 0.0
        %v4171 = vmax.f32 %v4093, 0.0
        %v4172 = vmax.f32 %v4098, 0.0
        %v4173 = vmax.f32 %v4103, 0.0
        %v4174 = vmax.f32 %v4108, 0.0
        %v4175 = vmax.f32 %v4113, 0.0
        %v4176 = vmax.f32 %v4118, 0.0
        %v4177 = vmax.f32 %v4123, 0.0
        %v4178 = vmax.f32 %v4128, 0.0
        %v4179 = vmax.f32 %v4133, 0.0
        %v4180 = vmax.f32 %v4138, 0.0
        %v4181 = vmax.f32 %v4143, 0.0
        %v4182 = vmax.f32 %v4148, 0.0
        %vm4183 = vcmask 261120
        %4184 = vst.msk [vmem:[#allocation2] sm:$0xff] %vm4183, 0.0
        %4185 = vst.msk [vmem:[#allocation2 + $0x8] sm:$0xff] %vm4183, 0.0
        %vm4186 = vcmask 257024
        %4187 = vst.msk [vmem:[#allocation2 + $0x10] sm:$0xf] %vm4186, 0.0
        %4188 = vst.msk [vmem:[#allocation2 + $0x18] sm:$0xff] %vm4183, 0.0
        %4189 = vst.msk [vmem:[#allocation2 + $0x20] sm:$0xff] %vm4183, 0.0
        %4190 = vst.msk [vmem:[#allocation2 + $0x28] sm:$0xf] %vm4186, 0.0
        %4191 = vst.msk [vmem:[#allocation2 + $0x30] sm:$0xff] %vm4183, 0.0
        %4192 = vst.msk [vmem:[#allocation2 + $0x38] sm:$0xff] %vm4183, 0.0
        %4193 = vst.msk [vmem:[#allocation2 + $0x40] sm:$0xf] %vm4186, 0.0
        %4194 = vst.msk [vmem:[#allocation2 + $0x48] sm:$0xff] %vm4183, 0.0
        %4195 = vst.msk [vmem:[#allocation2 + $0x50] sm:$0xff] %vm4183, 0.0
        %4196 = vst.msk [vmem:[#allocation2 + $0x58] sm:$0xf] %vm4186, 0.0
        %4197 = vst.msk [vmem:[#allocation2 + $0x60] sm:$0xff] %vm4183, 0.0
        %4198 = vst.msk [vmem:[#allocation2 + $0x68] sm:$0xff] %vm4183, 0.0
        %4199 = vst.msk [vmem:[#allocation2 + $0x70] sm:$0xf] %vm4186, 0.0
        %4200 = vst.msk [vmem:[#allocation2 + $0x78] sm:$0xff] %vm4183, 0.0
        %4201 = vst.msk [vmem:[#allocation2 + $0x80] sm:$0xff] %vm4183, 0.0
        %4202 = vst.msk [vmem:[#allocation2 + $0x88] sm:$0xf] %vm4186, 0.0
        %4203 = vst.msk [vmem:[#allocation2 + $0x90] sm:$0xff] %vm4183, 0.0
        %4204 = vst.msk [vmem:[#allocation2 + $0x98] sm:$0xff] %vm4183, 0.0
        %4205 = vst.msk [vmem:[#allocation2 + $0xa0] sm:$0xf] %vm4186, 0.0
        %4206 = vst.msk [vmem:[#allocation2 + $0xa8] sm:$0xff] %vm4183, 0.0
        %4207 = vst.msk [vmem:[#allocation2 + $0xb0] sm:$0xff] %vm4183, 0.0
        %4208 = vst.msk [vmem:[#allocation2 + $0xb8] sm:$0xf] %vm4186, 0.0
        %4209 = vst.msk [vmem:[#allocation2 + $0xc0] sm:$0xff] %vm4183, 0.0
        %4210 = vst.msk [vmem:[#allocation2 + $0xc8] sm:$0xff] %vm4183, 0.0
        %4211 = vst.msk [vmem:[#allocation2 + $0xd0] sm:$0xf] %vm4186, 0.0
        %4212 = vst.msk [vmem:[#allocation2 + $0xd8] sm:$0xff] %vm4183, 0.0
        %4213 = vst.msk [vmem:[#allocation2 + $0xe0] sm:$0xff] %vm4183, 0.0
        %4214 = vst.msk [vmem:[#allocation2 + $0xe8] sm:$0xf] %vm4186, 0.0
        %4215 = vst.msk [vmem:[#allocation2 + $0xf0] sm:$0xff] %vm4183, 0.0
        %4216 = vst.msk [vmem:[#allocation2 + $0xf8] sm:$0xff] %vm4183, 0.0
        %4217 = vst.msk [vmem:[#allocation2 + $0x100] sm:$0xf] %vm4186, 0.0
        %4218 = vst.msk [vmem:[#allocation2 + $0x108] sm:$0xff] %vm4183, 0.0
        %4219 = vst.msk [vmem:[#allocation2 + $0x110] sm:$0xff] %vm4183, 0.0
        %4220 = vst.msk [vmem:[#allocation2 + $0x118] sm:$0xf] %vm4186, 0.0
        %4221 = vst.msk [vmem:[#allocation2 + $0x120] sm:$0xff] %vm4183, 0.0
        %4222 = vst.msk [vmem:[#allocation2 + $0x128] sm:$0xff] %vm4183, 0.0
        %4223 = vst.msk [vmem:[#allocation2 + $0x130] sm:$0xf] %vm4186, 0.0
        %4224 = vst.msk [vmem:[#allocation2 + $0x138] sm:$0xff] %vm4183, 0.0
        %4225 = vst.msk [vmem:[#allocation2 + $0x140] sm:$0xff] %vm4183, 0.0
        %4226 = vst.msk [vmem:[#allocation2 + $0x148] sm:$0xf] %vm4186, 0.0
        %4227 = vst.msk [vmem:[#allocation2 + $0x150] sm:$0xff] %vm4183, 0.0
        %4228 = vst.msk [vmem:[#allocation2 + $0x158] sm:$0xff] %vm4183, 0.0
        %4229 = vst.msk [vmem:[#allocation2 + $0x160] sm:$0xf] %vm4186, 0.0
        %4230 = vst.msk [vmem:[#allocation2 + $0x168] sm:$0xff] %vm4183, 0.0
        %4231 = vst.msk [vmem:[#allocation2 + $0x170] sm:$0xff] %vm4183, 0.0
        %4232 = vst.msk [vmem:[#allocation2 + $0x178] sm:$0xf] %vm4186, 0.0
        %4233 = vst.msk [vmem:[#allocation2 + $0x180] sm:$0xff] %vm4183, 0.0
        %4234 = vst.msk [vmem:[#allocation2 + $0x188] sm:$0xff] %vm4183, 0.0
        %4235 = vst.msk [vmem:[#allocation2 + $0x190] sm:$0xf] %vm4186, 0.0
        %4236 = vst.msk [vmem:[#allocation2 + $0x198] sm:$0xff] %vm4183, 0.0
        %4237 = vst.msk [vmem:[#allocation2 + $0x1a0] sm:$0xff] %vm4183, 0.0
        %4238 = vst.msk [vmem:[#allocation2 + $0x1a8] sm:$0xf] %vm4186, 0.0
        %4239 = vst.msk [vmem:[#allocation2 + $0x1b0] sm:$0xff] %vm4183, 0.0
        %4240 = vst.msk [vmem:[#allocation2 + $0x1b8] sm:$0xff] %vm4183, 0.0
        %4241 = vst.msk [vmem:[#allocation2 + $0x1c0] sm:$0xf] %vm4186, 0.0
        %4242 = vst.msk [vmem:[#allocation2 + $0x1c8] sm:$0xff] %vm4183, 0.0
        %4243 = vst.msk [vmem:[#allocation2 + $0x1d0] sm:$0xff] %vm4183, 0.0
        %4244 = vst.msk [vmem:[#allocation2 + $0x1d8] sm:$0xf] %vm4186, 0.0
        %s4245 = scalar_lea.vmem [#allocation2], 48
        %4246 = vst.msk [vmem:[%s4245 + $0x2] sm:$0xff] %vm4183, %v4151
        %4247 = vst.msk [vmem:[%s4245 + $0xa] sm:$0xff] %vm4183, %v4152
        %4248 = vst.msk [vmem:[%s4245 + $0x1a] sm:$0xff] %vm4183, %v4153
        %4249 = vst.msk [vmem:[%s4245 + $0x22] sm:$0xff] %vm4183, %v4154
        %4250 = vst.msk [vmem:[%s4245 + $0x32] sm:$0xff] %vm4183, %v4155
        %4251 = vst.msk [vmem:[%s4245 + $0x3a] sm:$0xff] %vm4183, %v4156
        %4252 = vst.msk [vmem:[%s4245 + $0x4a] sm:$0xff] %vm4183, %v4157
        %4253 = vst.msk [vmem:[%s4245 + $0x52] sm:$0xff] %vm4183, %v4158
        %4254 = vst.msk [vmem:[%s4245 + $0x62] sm:$0xff] %vm4183, %v4159
        %4255 = vst.msk [vmem:[%s4245 + $0x6a] sm:$0xff] %vm4183, %v4160
        %4256 = vst.msk [vmem:[%s4245 + $0x7a] sm:$0xff] %vm4183, %v4161
        %4257 = vst.msk [vmem:[%s4245 + $0x82] sm:$0xff] %vm4183, %v4162
        %4258 = vst.msk [vmem:[%s4245 + $0x92] sm:$0xff] %vm4183, %v4163
        %4259 = vst.msk [vmem:[%s4245 + $0x9a] sm:$0xff] %vm4183, %v4164
        %4260 = vst.msk [vmem:[%s4245 + $0xaa] sm:$0xff] %vm4183, %v4165
        %4261 = vst.msk [vmem:[%s4245 + $0xb2] sm:$0xff] %vm4183, %v4166
        %4262 = vst.msk [vmem:[%s4245 + $0xc2] sm:$0xff] %vm4183, %v4167
        %4263 = vst.msk [vmem:[%s4245 + $0xca] sm:$0xff] %vm4183, %v4168
        %4264 = vst.msk [vmem:[%s4245 + $0xda] sm:$0xff] %vm4183, %v4169
        %4265 = vst.msk [vmem:[%s4245 + $0xe2] sm:$0xff] %vm4183, %v4170
        %4266 = vst.msk [vmem:[%s4245 + $0xf2] sm:$0xff] %vm4183, %v4171
        %4267 = vst.msk [vmem:[%s4245 + $0xfa] sm:$0xff] %vm4183, %v4172
        %4268 = vst.msk [vmem:[%s4245 + $0x10a] sm:$0xff] %vm4183, %v4173
        %4269 = vst.msk [vmem:[%s4245 + $0x112] sm:$0xff] %vm4183, %v4174
        %4270 = vst.msk [vmem:[%s4245 + $0x122] sm:$0xff] %vm4183, %v4175
        %4271 = vst.msk [vmem:[%s4245 + $0x12a] sm:$0xff] %vm4183, %v4176
        %4272 = vst.msk [vmem:[%s4245 + $0x13a] sm:$0xff] %vm4183, %v4177
        %4273 = vst.msk [vmem:[%s4245 + $0x142] sm:$0xff] %vm4183, %v4178
        %4274 = vst.msk [vmem:[%s4245 + $0x152] sm:$0xff] %vm4183, %v4179
        %4275 = vst.msk [vmem:[%s4245 + $0x15a] sm:$0xff] %vm4183, %v4180
        %4276 = vst.msk [vmem:[%s4245 + $0x16a] sm:$0xff] %vm4183, %v4181
        %4277 = vst.msk [vmem:[%s4245 + $0x172] sm:$0xff] %vm4183, %v4182
        %v4278 = vld [vmem:[#allocation2] sm:$0xff]
        %v4279 = vld [vmem:[#allocation2 + $0x8] sm:$0xff]
        %v4280 = vld [vmem:[#allocation2 + $0x18] sm:$0xff]
        %v4281 = vld [vmem:[#allocation2 + $0x20] sm:$0xff]
        %v4282 = vld [vmem:[#allocation2 + $0x30] sm:$0xff]
        %v4283 = vld [vmem:[#allocation2 + $0x38] sm:$0xff]
        %v4284 = vld [vmem:[#allocation2 + $0x48] sm:$0xff]
        %v4285 = vld [vmem:[#allocation2 + $0x50] sm:$0xff]
        %v4286 = vld [vmem:[#allocation2 + $0x60] sm:$0xff]
        %v4287 = vld [vmem:[#allocation2 + $0x68] sm:$0xff]
        %v4288 = vld [vmem:[#allocation2 + $0x78] sm:$0xff]
        %v4289 = vld [vmem:[#allocation2 + $0x80] sm:$0xff]
        %v4290 = vld [vmem:[#allocation2 + $0x90] sm:$0xff]
        %v4291 = vld [vmem:[#allocation2 + $0x98] sm:$0xff]
        %v4292 = vld [vmem:[#allocation2 + $0xa8] sm:$0xff]
        %v4293 = vld [vmem:[#allocation2 + $0xb0] sm:$0xff]
        %v4294 = vld [vmem:[#allocation2 + $0xc0] sm:$0xff]
        %v4295 = vld [vmem:[#allocation2 + $0xc8] sm:$0xff]
        %v4296 = vld [vmem:[#allocation2 + $0xd8] sm:$0xff]
        %v4297 = vld [vmem:[#allocation2 + $0xe0] sm:$0xff]
        %v4298 = vld [vmem:[#allocation2 + $0xf0] sm:$0xff]
        %v4299 = vld [vmem:[#allocation2 + $0xf8] sm:$0xff]
        %v4300 = vld [vmem:[#allocation2 + $0x108] sm:$0xff]
        %v4301 = vld [vmem:[#allocation2 + $0x110] sm:$0xff]
        %v4302 = vld [vmem:[#allocation2 + $0x120] sm:$0xff]
        %v4303 = vld [vmem:[#allocation2 + $0x128] sm:$0xff]
        %v4304 = vld [vmem:[#allocation2 + $0x138] sm:$0xff]
        %v4305 = vld [vmem:[#allocation2 + $0x140] sm:$0xff]
        %v4306 = vld [vmem:[#allocation2 + $0x150] sm:$0xff]
        %v4307 = vld [vmem:[#allocation2 + $0x158] sm:$0xff]
        %v4308 = vld [vmem:[#allocation2 + $0x168] sm:$0xff]
        %v4309 = vld [vmem:[#allocation2 + $0x170] sm:$0xff]
        %v4310 = vld [vmem:[%s5] sm:$0x1]
        %v4312 = vlaneseq
        %v4313 = vshrl.u32 %v4312, 7
        %v4314 = vsub.s32 0, %v4313
        %v4315 = vrot.slane %v4310, %v4314
        %v4317 = vmul.f32 %v4278, %v4315
        %v4318 = vmul.f32 %v4279, %v4315
        %v4319 = vmul.f32 %v4280, %v4315
        %v4320 = vmul.f32 %v4281, %v4315
        %v4321 = vmul.f32 %v4282, %v4315
        %v4322 = vmul.f32 %v4283, %v4315
        %v4323 = vmul.f32 %v4284, %v4315
        %v4324 = vmul.f32 %v4285, %v4315
        %v4325 = vmul.f32 %v4286, %v4315
        %v4326 = vmul.f32 %v4287, %v4315
        %v4327 = vmul.f32 %v4288, %v4315
        %v4328 = vmul.f32 %v4289, %v4315
        %v4329 = vmul.f32 %v4290, %v4315
        %v4330 = vmul.f32 %v4291, %v4315
        %v4331 = vmul.f32 %v4292, %v4315
        %v4332 = vmul.f32 %v4293, %v4315
        %v4333 = vmul.f32 %v4294, %v4315
        %v4334 = vmul.f32 %v4295, %v4315
        %v4335 = vmul.f32 %v4296, %v4315
        %v4336 = vmul.f32 %v4297, %v4315
        %v4337 = vmul.f32 %v4298, %v4315
        %v4338 = vmul.f32 %v4299, %v4315
        %v4339 = vmul.f32 %v4300, %v4315
        %v4340 = vmul.f32 %v4301, %v4315
        %v4341 = vmul.f32 %v4302, %v4315
        %v4342 = vmul.f32 %v4303, %v4315
        %v4343 = vmul.f32 %v4304, %v4315
        %v4344 = vmul.f32 %v4305, %v4315
        %v4345 = vmul.f32 %v4306, %v4315
        %v4346 = vmul.f32 %v4307, %v4315
        %v4347 = vmul.f32 %v4308, %v4315
        %v4348 = vmul.f32 %v4309, %v4315
        %v4349 = vadd.f32 %v4317, 0.0
        %v4350 = vadd.f32 %v4318, 0.0
        %v4351 = vadd.f32 %v4319, 0.0
        %v4352 = vadd.f32 %v4320, 0.0
        %v4353 = vadd.f32 %v4321, 0.0
        %v4354 = vadd.f32 %v4322, 0.0
        %v4355 = vadd.f32 %v4323, 0.0
        %v4356 = vadd.f32 %v4324, 0.0
        %v4357 = vadd.f32 %v4325, 0.0
        %v4358 = vadd.f32 %v4326, 0.0
        %v4359 = vadd.f32 %v4327, 0.0
        %v4360 = vadd.f32 %v4328, 0.0
        %v4361 = vadd.f32 %v4329, 0.0
        %v4362 = vadd.f32 %v4330, 0.0
        %v4363 = vadd.f32 %v4331, 0.0
        %v4364 = vadd.f32 %v4332, 0.0
        %v4365 = vadd.f32 %v4333, 0.0
        %v4366 = vadd.f32 %v4334, 0.0
        %v4367 = vadd.f32 %v4335, 0.0
        %v4368 = vadd.f32 %v4336, 0.0
        %v4369 = vadd.f32 %v4337, 0.0
        %v4370 = vadd.f32 %v4338, 0.0
        %v4371 = vadd.f32 %v4339, 0.0
        %v4372 = vadd.f32 %v4340, 0.0
        %v4373 = vadd.f32 %v4341, 0.0
        %v4374 = vadd.f32 %v4342, 0.0
        %v4375 = vadd.f32 %v4343, 0.0
        %v4376 = vadd.f32 %v4344, 0.0
        %v4377 = vadd.f32 %v4345, 0.0
        %v4378 = vadd.f32 %v4346, 0.0
        %v4379 = vadd.f32 %v4347, 0.0
        %v4380 = vadd.f32 %v4348, 0.0
        %v4381 = vld [vmem:[#allocation2 + $0x1] sm:$0xff]
        %v4382 = vld [vmem:[#allocation2 + $0x9] sm:$0xff]
        %v4383 = vld [vmem:[#allocation2 + $0x19] sm:$0xff]
        %v4384 = vld [vmem:[#allocation2 + $0x21] sm:$0xff]
        %v4385 = vld [vmem:[#allocation2 + $0x31] sm:$0xff]
        %v4386 = vld [vmem:[#allocation2 + $0x39] sm:$0xff]
        %v4387 = vld [vmem:[#allocation2 + $0x49] sm:$0xff]
        %v4388 = vld [vmem:[#allocation2 + $0x51] sm:$0xff]
        %v4389 = vld [vmem:[#allocation2 + $0x61] sm:$0xff]
        %v4390 = vld [vmem:[#allocation2 + $0x69] sm:$0xff]
        %v4391 = vld [vmem:[#allocation2 + $0x79] sm:$0xff]
        %v4392 = vld [vmem:[#allocation2 + $0x81] sm:$0xff]
        %v4393 = vld [vmem:[#allocation2 + $0x91] sm:$0xff]
        %v4394 = vld [vmem:[#allocation2 + $0x99] sm:$0xff]
        %v4395 = vld [vmem:[#allocation2 + $0xa9] sm:$0xff]
        %v4396 = vld [vmem:[#allocation2 + $0xb1] sm:$0xff]
        %v4397 = vld [vmem:[#allocation2 + $0xc1] sm:$0xff]
        %v4398 = vld [vmem:[#allocation2 + $0xc9] sm:$0xff]
        %v4399 = vld [vmem:[#allocation2 + $0xd9] sm:$0xff]
        %v4400 = vld [vmem:[#allocation2 + $0xe1] sm:$0xff]
        %v4401 = vld [vmem:[#allocation2 + $0xf1] sm:$0xff]
        %v4402 = vld [vmem:[#allocation2 + $0xf9] sm:$0xff]
        %v4403 = vld [vmem:[#allocation2 + $0x109] sm:$0xff]
        %v4404 = vld [vmem:[#allocation2 + $0x111] sm:$0xff]
        %v4405 = vld [vmem:[#allocation2 + $0x121] sm:$0xff]
        %v4406 = vld [vmem:[#allocation2 + $0x129] sm:$0xff]
        %v4407 = vld [vmem:[#allocation2 + $0x139] sm:$0xff]
        %v4408 = vld [vmem:[#allocation2 + $0x141] sm:$0xff]
        %v4409 = vld [vmem:[#allocation2 + $0x151] sm:$0xff]
        %v4410 = vld [vmem:[#allocation2 + $0x159] sm:$0xff]
        %v4411 = vld [vmem:[#allocation2 + $0x169] sm:$0xff]
        %v4412 = vld [vmem:[#allocation2 + $0x171] sm:$0xff]
        %s4413 = scalar_lea.vmem %s5, 1
        %v4414 = vld [vmem:[%s4413] sm:$0x1]
        %v4416 = vlaneseq
        %v4417 = vshrl.u32 %v4416, 7
        %v4418 = vsub.s32 0, %v4417
        %v4419 = vrot.slane %v4414, %v4418
        %v4421 = vmul.f32 %v4381, %v4419
        %v4422 = vmul.f32 %v4382, %v4419
        %v4423 = vmul.f32 %v4383, %v4419
        %v4424 = vmul.f32 %v4384, %v4419
        %v4425 = vmul.f32 %v4385, %v4419
        %v4426 = vmul.f32 %v4386, %v4419
        %v4427 = vmul.f32 %v4387, %v4419
        %v4428 = vmul.f32 %v4388, %v4419
        %v4429 = vmul.f32 %v4389, %v4419
        %v4430 = vmul.f32 %v4390, %v4419
        %v4431 = vmul.f32 %v4391, %v4419
        %v4432 = vmul.f32 %v4392, %v4419
        %v4433 = vmul.f32 %v4393, %v4419
        %v4434 = vmul.f32 %v4394, %v4419
        %v4435 = vmul.f32 %v4395, %v4419
        %v4436 = vmul.f32 %v4396, %v4419
        %v4437 = vmul.f32 %v4397, %v4419
        %v4438 = vmul.f32 %v4398, %v4419
        %v4439 = vmul.f32 %v4399, %v4419
        %v4440 = vmul.f32 %v4400, %v4419
        %v4441 = vmul.f32 %v4401, %v4419
        %v4442 = vmul.f32 %v4402, %v4419
        %v4443 = vmul.f32 %v4403, %v4419
        %v4444 = vmul.f32 %v4404, %v4419
        %v4445 = vmul.f32 %v4405, %v4419
        %v4446 = vmul.f32 %v4406, %v4419
        %v4447 = vmul.f32 %v4407, %v4419
        %v4448 = vmul.f32 %v4408, %v4419
        %v4449 = vmul.f32 %v4409, %v4419
        %v4450 = vmul.f32 %v4410, %v4419
        %v4451 = vmul.f32 %v4411, %v4419
        %v4452 = vmul.f32 %v4412, %v4419
        %v4453 = vadd.f32 %v4349, %v4421
        %v4454 = vadd.f32 %v4350, %v4422
        %v4455 = vadd.f32 %v4351, %v4423
        %v4456 = vadd.f32 %v4352, %v4424
        %v4457 = vadd.f32 %v4353, %v4425
        %v4458 = vadd.f32 %v4354, %v4426
        %v4459 = vadd.f32 %v4355, %v4427
        %v4460 = vadd.f32 %v4356, %v4428
        %v4461 = vadd.f32 %v4357, %v4429
        %v4462 = vadd.f32 %v4358, %v4430
        %v4463 = vadd.f32 %v4359, %v4431
        %v4464 = vadd.f32 %v4360, %v4432
        %v4465 = vadd.f32 %v4361, %v4433
        %v4466 = vadd.f32 %v4362, %v4434
        %v4467 = vadd.f32 %v4363, %v4435
        %v4468 = vadd.f32 %v4364, %v4436
        %v4469 = vadd.f32 %v4365, %v4437
        %v4470 = vadd.f32 %v4366, %v4438
        %v4471 = vadd.f32 %v4367, %v4439
        %v4472 = vadd.f32 %v4368, %v4440
        %v4473 = vadd.f32 %v4369, %v4441
        %v4474 = vadd.f32 %v4370, %v4442
        %v4475 = vadd.f32 %v4371, %v4443
        %v4476 = vadd.f32 %v4372, %v4444
        %v4477 = vadd.f32 %v4373, %v4445
        %v4478 = vadd.f32 %v4374, %v4446
        %v4479 = vadd.f32 %v4375, %v4447
        %v4480 = vadd.f32 %v4376, %v4448
        %v4481 = vadd.f32 %v4377, %v4449
        %v4482 = vadd.f32 %v4378, %v4450
        %v4483 = vadd.f32 %v4379, %v4451
        %v4484 = vadd.f32 %v4380, %v4452
        %v4485 = vld [vmem:[#allocation2 + $0x2] sm:$0xff]
        %v4486 = vld [vmem:[#allocation2 + $0xa] sm:$0xff]
        %v4487 = vld [vmem:[#allocation2 + $0x1a] sm:$0xff]
        %v4488 = vld [vmem:[#allocation2 + $0x22] sm:$0xff]
        %v4489 = vld [vmem:[#allocation2 + $0x32] sm:$0xff]
        %v4490 = vld [vmem:[#allocation2 + $0x3a] sm:$0xff]
        %v4491 = vld [vmem:[#allocation2 + $0x4a] sm:$0xff]
        %v4492 = vld [vmem:[#allocation2 + $0x52] sm:$0xff]
        %v4493 = vld [vmem:[#allocation2 + $0x62] sm:$0xff]
        %v4494 = vld [vmem:[#allocation2 + $0x6a] sm:$0xff]
        %v4495 = vld [vmem:[#allocation2 + $0x7a] sm:$0xff]
        %v4496 = vld [vmem:[#allocation2 + $0x82] sm:$0xff]
        %v4497 = vld [vmem:[#allocation2 + $0x92] sm:$0xff]
        %v4498 = vld [vmem:[#allocation2 + $0x9a] sm:$0xff]
        %v4499 = vld [vmem:[#allocation2 + $0xaa] sm:$0xff]
        %v4500 = vld [vmem:[#allocation2 + $0xb2] sm:$0xff]
        %v4501 = vld [vmem:[#allocation2 + $0xc2] sm:$0xff]
        %v4502 = vld [vmem:[#allocation2 + $0xca] sm:$0xff]
        %v4503 = vld [vmem:[#allocation2 + $0xda] sm:$0xff]
        %v4504 = vld [vmem:[#allocation2 + $0xe2] sm:$0xff]
        %v4505 = vld [vmem:[#allocation2 + $0xf2] sm:$0xff]
        %v4506 = vld [vmem:[#allocation2 + $0xfa] sm:$0xff]
        %v4507 = vld [vmem:[#allocation2 + $0x10a] sm:$0xff]
        %v4508 = vld [vmem:[#allocation2 + $0x112] sm:$0xff]
        %v4509 = vld [vmem:[#allocation2 + $0x122] sm:$0xff]
        %v4510 = vld [vmem:[#allocation2 + $0x12a] sm:$0xff]
        %v4511 = vld [vmem:[#allocation2 + $0x13a] sm:$0xff]
        %v4512 = vld [vmem:[#allocation2 + $0x142] sm:$0xff]
        %v4513 = vld [vmem:[#allocation2 + $0x152] sm:$0xff]
        %v4514 = vld [vmem:[#allocation2 + $0x15a] sm:$0xff]
        %v4515 = vld [vmem:[#allocation2 + $0x16a] sm:$0xff]
        %v4516 = vld [vmem:[#allocation2 + $0x172] sm:$0xff]
        %s4517 = scalar_lea.vmem %s5, 2
        %v4518 = vld [vmem:[%s4517] sm:$0x1]
        %v4520 = vlaneseq
        %v4521 = vshrl.u32 %v4520, 7
        %v4522 = vsub.s32 0, %v4521
        %v4523 = vrot.slane %v4518, %v4522
        %v4525 = vmul.f32 %v4485, %v4523
        %v4526 = vmul.f32 %v4486, %v4523
        %v4527 = vmul.f32 %v4487, %v4523
        %v4528 = vmul.f32 %v4488, %v4523
        %v4529 = vmul.f32 %v4489, %v4523
        %v4530 = vmul.f32 %v4490, %v4523
        %v4531 = vmul.f32 %v4491, %v4523
        %v4532 = vmul.f32 %v4492, %v4523
        %v4533 = vmul.f32 %v4493, %v4523
        %v4534 = vmul.f32 %v4494, %v4523
        %v4535 = vmul.f32 %v4495, %v4523
        %v4536 = vmul.f32 %v4496, %v4523
        %v4537 = vmul.f32 %v4497, %v4523
        %v4538 = vmul.f32 %v4498, %v4523
        %v4539 = vmul.f32 %v4499, %v4523
        %v4540 = vmul.f32 %v4500, %v4523
        %v4541 = vmul.f32 %v4501, %v4523
        %v4542 = vmul.f32 %v4502, %v4523
        %v4543 = vmul.f32 %v4503, %v4523
        %v4544 = vmul.f32 %v4504, %v4523
        %v4545 = vmul.f32 %v4505, %v4523
        %v4546 = vmul.f32 %v4506, %v4523
        %v4547 = vmul.f32 %v4507, %v4523
        %v4548 = vmul.f32 %v4508, %v4523
        %v4549 = vmul.f32 %v4509, %v4523
        %v4550 = vmul.f32 %v4510, %v4523
        %v4551 = vmul.f32 %v4511, %v4523
        %v4552 = vmul.f32 %v4512, %v4523
        %v4553 = vmul.f32 %v4513, %v4523
        %v4554 = vmul.f32 %v4514, %v4523
        %v4555 = vmul.f32 %v4515, %v4523
        %v4556 = vmul.f32 %v4516, %v4523
        %v4557 = vadd.f32 %v4453, %v4525
        %v4558 = vadd.f32 %v4454, %v4526
        %v4559 = vadd.f32 %v4455, %v4527
        %v4560 = vadd.f32 %v4456, %v4528
        %v4561 = vadd.f32 %v4457, %v4529
        %v4562 = vadd.f32 %v4458, %v4530
        %v4563 = vadd.f32 %v4459, %v4531
        %v4564 = vadd.f32 %v4460, %v4532
        %v4565 = vadd.f32 %v4461, %v4533
        %v4566 = vadd.f32 %v4462, %v4534
        %v4567 = vadd.f32 %v4463, %v4535
        %v4568 = vadd.f32 %v4464, %v4536
        %v4569 = vadd.f32 %v4465, %v4537
        %v4570 = vadd.f32 %v4466, %v4538
        %v4571 = vadd.f32 %v4467, %v4539
        %v4572 = vadd.f32 %v4468, %v4540
        %v4573 = vadd.f32 %v4469, %v4541
        %v4574 = vadd.f32 %v4470, %v4542
        %v4575 = vadd.f32 %v4471, %v4543
        %v4576 = vadd.f32 %v4472, %v4544
        %v4577 = vadd.f32 %v4473, %v4545
        %v4578 = vadd.f32 %v4474, %v4546
        %v4579 = vadd.f32 %v4475, %v4547
        %v4580 = vadd.f32 %v4476, %v4548
        %v4581 = vadd.f32 %v4477, %v4549
        %v4582 = vadd.f32 %v4478, %v4550
        %v4583 = vadd.f32 %v4479, %v4551
        %v4584 = vadd.f32 %v4480, %v4552
        %v4585 = vadd.f32 %v4481, %v4553
        %v4586 = vadd.f32 %v4482, %v4554
        %v4587 = vadd.f32 %v4483, %v4555
        %v4588 = vadd.f32 %v4484, %v4556
        %v4589 = vld [vmem:[#allocation2 + $0x3] sm:$0xff]
        %v4590 = vld [vmem:[#allocation2 + $0xb] sm:$0xff]
        %v4591 = vld [vmem:[#allocation2 + $0x1b] sm:$0xff]
        %v4592 = vld [vmem:[#allocation2 + $0x23] sm:$0xff]
        %v4593 = vld [vmem:[#allocation2 + $0x33] sm:$0xff]
        %v4594 = vld [vmem:[#allocation2 + $0x3b] sm:$0xff]
        %v4595 = vld [vmem:[#allocation2 + $0x4b] sm:$0xff]
        %v4596 = vld [vmem:[#allocation2 + $0x53] sm:$0xff]
        %v4597 = vld [vmem:[#allocation2 + $0x63] sm:$0xff]
        %v4598 = vld [vmem:[#allocation2 + $0x6b] sm:$0xff]
        %v4599 = vld [vmem:[#allocation2 + $0x7b] sm:$0xff]
        %v4600 = vld [vmem:[#allocation2 + $0x83] sm:$0xff]
        %v4601 = vld [vmem:[#allocation2 + $0x93] sm:$0xff]
        %v4602 = vld [vmem:[#allocation2 + $0x9b] sm:$0xff]
        %v4603 = vld [vmem:[#allocation2 + $0xab] sm:$0xff]
        %v4604 = vld [vmem:[#allocation2 + $0xb3] sm:$0xff]
        %v4605 = vld [vmem:[#allocation2 + $0xc3] sm:$0xff]
        %v4606 = vld [vmem:[#allocation2 + $0xcb] sm:$0xff]
        %v4607 = vld [vmem:[#allocation2 + $0xdb] sm:$0xff]
        %v4608 = vld [vmem:[#allocation2 + $0xe3] sm:$0xff]
        %v4609 = vld [vmem:[#allocation2 + $0xf3] sm:$0xff]
        %v4610 = vld [vmem:[#allocation2 + $0xfb] sm:$0xff]
        %v4611 = vld [vmem:[#allocation2 + $0x10b] sm:$0xff]
        %v4612 = vld [vmem:[#allocation2 + $0x113] sm:$0xff]
        %v4613 = vld [vmem:[#allocation2 + $0x123] sm:$0xff]
        %v4614 = vld [vmem:[#allocation2 + $0x12b] sm:$0xff]
        %v4615 = vld [vmem:[#allocation2 + $0x13b] sm:$0xff]
        %v4616 = vld [vmem:[#allocation2 + $0x143] sm:$0xff]
        %v4617 = vld [vmem:[#allocation2 + $0x153] sm:$0xff]
        %v4618 = vld [vmem:[#allocation2 + $0x15b] sm:$0xff]
        %v4619 = vld [vmem:[#allocation2 + $0x16b] sm:$0xff]
        %v4620 = vld [vmem:[#allocation2 + $0x173] sm:$0xff]
        %s4621 = scalar_lea.vmem %s5, 3
        %v4622 = vld [vmem:[%s4621] sm:$0x1]
        %v4624 = vlaneseq
        %v4625 = vshrl.u32 %v4624, 7
        %v4626 = vsub.s32 0, %v4625
        %v4627 = vrot.slane %v4622, %v4626
        %v4629 = vmul.f32 %v4589, %v4627
        %v4630 = vmul.f32 %v4590, %v4627
        %v4631 = vmul.f32 %v4591, %v4627
        %v4632 = vmul.f32 %v4592, %v4627
        %v4633 = vmul.f32 %v4593, %v4627
        %v4634 = vmul.f32 %v4594, %v4627
        %v4635 = vmul.f32 %v4595, %v4627
        %v4636 = vmul.f32 %v4596, %v4627
        %v4637 = vmul.f32 %v4597, %v4627
        %v4638 = vmul.f32 %v4598, %v4627
        %v4639 = vmul.f32 %v4599, %v4627
        %v4640 = vmul.f32 %v4600, %v4627
        %v4641 = vmul.f32 %v4601, %v4627
        %v4642 = vmul.f32 %v4602, %v4627
        %v4643 = vmul.f32 %v4603, %v4627
        %v4644 = vmul.f32 %v4604, %v4627
        %v4645 = vmul.f32 %v4605, %v4627
        %v4646 = vmul.f32 %v4606, %v4627
        %v4647 = vmul.f32 %v4607, %v4627
        %v4648 = vmul.f32 %v4608, %v4627
        %v4649 = vmul.f32 %v4609, %v4627
        %v4650 = vmul.f32 %v4610, %v4627
        %v4651 = vmul.f32 %v4611, %v4627
        %v4652 = vmul.f32 %v4612, %v4627
        %v4653 = vmul.f32 %v4613, %v4627
        %v4654 = vmul.f32 %v4614, %v4627
        %v4655 = vmul.f32 %v4615, %v4627
        %v4656 = vmul.f32 %v4616, %v4627
        %v4657 = vmul.f32 %v4617, %v4627
        %v4658 = vmul.f32 %v4618, %v4627
        %v4659 = vmul.f32 %v4619, %v4627
        %v4660 = vmul.f32 %v4620, %v4627
        %v4661 = vadd.f32 %v4557, %v4629
        %v4662 = vadd.f32 %v4558, %v4630
        %v4663 = vadd.f32 %v4559, %v4631
        %v4664 = vadd.f32 %v4560, %v4632
        %v4665 = vadd.f32 %v4561, %v4633
        %v4666 = vadd.f32 %v4562, %v4634
        %v4667 = vadd.f32 %v4563, %v4635
        %v4668 = vadd.f32 %v4564, %v4636
        %v4669 = vadd.f32 %v4565, %v4637
        %v4670 = vadd.f32 %v4566, %v4638
        %v4671 = vadd.f32 %v4567, %v4639
        %v4672 = vadd.f32 %v4568, %v4640
        %v4673 = vadd.f32 %v4569, %v4641
        %v4674 = vadd.f32 %v4570, %v4642
        %v4675 = vadd.f32 %v4571, %v4643
        %v4676 = vadd.f32 %v4572, %v4644
        %v4677 = vadd.f32 %v4573, %v4645
        %v4678 = vadd.f32 %v4574, %v4646
        %v4679 = vadd.f32 %v4575, %v4647
        %v4680 = vadd.f32 %v4576, %v4648
        %v4681 = vadd.f32 %v4577, %v4649
        %v4682 = vadd.f32 %v4578, %v4650
        %v4683 = vadd.f32 %v4579, %v4651
        %v4684 = vadd.f32 %v4580, %v4652
        %v4685 = vadd.f32 %v4581, %v4653
        %v4686 = vadd.f32 %v4582, %v4654
        %v4687 = vadd.f32 %v4583, %v4655
        %v4688 = vadd.f32 %v4584, %v4656
        %v4689 = vadd.f32 %v4585, %v4657
        %v4690 = vadd.f32 %v4586, %v4658
        %v4691 = vadd.f32 %v4587, %v4659
        %v4692 = vadd.f32 %v4588, %v4660
        %v4693 = vld [vmem:[#allocation2 + $0x4] sm:$0xff]
        %v4694 = vld [vmem:[#allocation2 + $0xc] sm:$0xff]
        %v4695 = vld [vmem:[#allocation2 + $0x1c] sm:$0xff]
        %v4696 = vld [vmem:[#allocation2 + $0x24] sm:$0xff]
        %v4697 = vld [vmem:[#allocation2 + $0x34] sm:$0xff]
        %v4698 = vld [vmem:[#allocation2 + $0x3c] sm:$0xff]
        %v4699 = vld [vmem:[#allocation2 + $0x4c] sm:$0xff]
        %v4700 = vld [vmem:[#allocation2 + $0x54] sm:$0xff]
        %v4701 = vld [vmem:[#allocation2 + $0x64] sm:$0xff]
        %v4702 = vld [vmem:[#allocation2 + $0x6c] sm:$0xff]
        %v4703 = vld [vmem:[#allocation2 + $0x7c] sm:$0xff]
        %v4704 = vld [vmem:[#allocation2 + $0x84] sm:$0xff]
        %v4705 = vld [vmem:[#allocation2 + $0x94] sm:$0xff]
        %v4706 = vld [vmem:[#allocation2 + $0x9c] sm:$0xff]
        %v4707 = vld [vmem:[#allocation2 + $0xac] sm:$0xff]
        %v4708 = vld [vmem:[#allocation2 + $0xb4] sm:$0xff]
        %v4709 = vld [vmem:[#allocation2 + $0xc4] sm:$0xff]
        %v4710 = vld [vmem:[#allocation2 + $0xcc] sm:$0xff]
        %v4711 = vld [vmem:[#allocation2 + $0xdc] sm:$0xff]
        %v4712 = vld [vmem:[#allocation2 + $0xe4] sm:$0xff]
        %v4713 = vld [vmem:[#allocation2 + $0xf4] sm:$0xff]
        %v4714 = vld [vmem:[#allocation2 + $0xfc] sm:$0xff]
        %v4715 = vld [vmem:[#allocation2 + $0x10c] sm:$0xff]
        %v4716 = vld [vmem:[#allocation2 + $0x114] sm:$0xff]
        %v4717 = vld [vmem:[#allocation2 + $0x124] sm:$0xff]
        %v4718 = vld [vmem:[#allocation2 + $0x12c] sm:$0xff]
        %v4719 = vld [vmem:[#allocation2 + $0x13c] sm:$0xff]
        %v4720 = vld [vmem:[#allocation2 + $0x144] sm:$0xff]
        %v4721 = vld [vmem:[#allocation2 + $0x154] sm:$0xff]
        %v4722 = vld [vmem:[#allocation2 + $0x15c] sm:$0xff]
        %v4723 = vld [vmem:[#allocation2 + $0x16c] sm:$0xff]
        %v4724 = vld [vmem:[#allocation2 + $0x174] sm:$0xff]
        %s4725 = scalar_lea.vmem %s5, 4
        %v4726 = vld [vmem:[%s4725] sm:$0x1]
        %v4728 = vlaneseq
        %v4729 = vshrl.u32 %v4728, 7
        %v4730 = vsub.s32 0, %v4729
        %v4731 = vrot.slane %v4726, %v4730
        %v4733 = vmul.f32 %v4693, %v4731
        %v4734 = vmul.f32 %v4694, %v4731
        %v4735 = vmul.f32 %v4695, %v4731
        %v4736 = vmul.f32 %v4696, %v4731
        %v4737 = vmul.f32 %v4697, %v4731
        %v4738 = vmul.f32 %v4698, %v4731
        %v4739 = vmul.f32 %v4699, %v4731
        %v4740 = vmul.f32 %v4700, %v4731
        %v4741 = vmul.f32 %v4701, %v4731
        %v4742 = vmul.f32 %v4702, %v4731
        %v4743 = vmul.f32 %v4703, %v4731
        %v4744 = vmul.f32 %v4704, %v4731
        %v4745 = vmul.f32 %v4705, %v4731
        %v4746 = vmul.f32 %v4706, %v4731
        %v4747 = vmul.f32 %v4707, %v4731
        %v4748 = vmul.f32 %v4708, %v4731
        %v4749 = vmul.f32 %v4709, %v4731
        %v4750 = vmul.f32 %v4710, %v4731
        %v4751 = vmul.f32 %v4711, %v4731
        %v4752 = vmul.f32 %v4712, %v4731
        %v4753 = vmul.f32 %v4713, %v4731
        %v4754 = vmul.f32 %v4714, %v4731
        %v4755 = vmul.f32 %v4715, %v4731
        %v4756 = vmul.f32 %v4716, %v4731
        %v4757 = vmul.f32 %v4717, %v4731
        %v4758 = vmul.f32 %v4718, %v4731
        %v4759 = vmul.f32 %v4719, %v4731
        %v4760 = vmul.f32 %v4720, %v4731
        %v4761 = vmul.f32 %v4721, %v4731
        %v4762 = vmul.f32 %v4722, %v4731
        %v4763 = vmul.f32 %v4723, %v4731
        %v4764 = vmul.f32 %v4724, %v4731
        %v4765 = vadd.f32 %v4661, %v4733
        %v4766 = vadd.f32 %v4662, %v4734
        %v4767 = vadd.f32 %v4663, %v4735
        %v4768 = vadd.f32 %v4664, %v4736
        %v4769 = vadd.f32 %v4665, %v4737
        %v4770 = vadd.f32 %v4666, %v4738
        %v4771 = vadd.f32 %v4667, %v4739
        %v4772 = vadd.f32 %v4668, %v4740
        %v4773 = vadd.f32 %v4669, %v4741
        %v4774 = vadd.f32 %v4670, %v4742
        %v4775 = vadd.f32 %v4671, %v4743
        %v4776 = vadd.f32 %v4672, %v4744
        %v4777 = vadd.f32 %v4673, %v4745
        %v4778 = vadd.f32 %v4674, %v4746
        %v4779 = vadd.f32 %v4675, %v4747
        %v4780 = vadd.f32 %v4676, %v4748
        %v4781 = vadd.f32 %v4677, %v4749
        %v4782 = vadd.f32 %v4678, %v4750
        %v4783 = vadd.f32 %v4679, %v4751
        %v4784 = vadd.f32 %v4680, %v4752
        %v4785 = vadd.f32 %v4681, %v4753
        %v4786 = vadd.f32 %v4682, %v4754
        %v4787 = vadd.f32 %v4683, %v4755
        %v4788 = vadd.f32 %v4684, %v4756
        %v4789 = vadd.f32 %v4685, %v4757
        %v4790 = vadd.f32 %v4686, %v4758
        %v4791 = vadd.f32 %v4687, %v4759
        %v4792 = vadd.f32 %v4688, %v4760
        %v4793 = vadd.f32 %v4689, %v4761
        %v4794 = vadd.f32 %v4690, %v4762
        %v4795 = vadd.f32 %v4691, %v4763
        %v4796 = vadd.f32 %v4692, %v4764
        %s4797 = scalar_lea.vmem [#allocation2], 24
        %v4798 = vld [vmem:[%s4797] sm:$0xff]
        %v4799 = vld [vmem:[%s4797 + $0x8] sm:$0xff]
        %v4800 = vld [vmem:[%s4797 + $0x18] sm:$0xff]
        %v4801 = vld [vmem:[%s4797 + $0x20] sm:$0xff]
        %v4802 = vld [vmem:[%s4797 + $0x30] sm:$0xff]
        %v4803 = vld [vmem:[%s4797 + $0x38] sm:$0xff]
        %v4804 = vld [vmem:[%s4797 + $0x48] sm:$0xff]
        %v4805 = vld [vmem:[%s4797 + $0x50] sm:$0xff]
        %v4806 = vld [vmem:[%s4797 + $0x60] sm:$0xff]
        %v4807 = vld [vmem:[%s4797 + $0x68] sm:$0xff]
        %v4808 = vld [vmem:[%s4797 + $0x78] sm:$0xff]
        %v4809 = vld [vmem:[%s4797 + $0x80] sm:$0xff]
        %v4810 = vld [vmem:[%s4797 + $0x90] sm:$0xff]
        %v4811 = vld [vmem:[%s4797 + $0x98] sm:$0xff]
        %v4812 = vld [vmem:[%s4797 + $0xa8] sm:$0xff]
        %v4813 = vld [vmem:[%s4797 + $0xb0] sm:$0xff]
        %v4814 = vld [vmem:[%s4797 + $0xc0] sm:$0xff]
        %v4815 = vld [vmem:[%s4797 + $0xc8] sm:$0xff]
        %v4816 = vld [vmem:[%s4797 + $0xd8] sm:$0xff]
        %v4817 = vld [vmem:[%s4797 + $0xe0] sm:$0xff]
        %v4818 = vld [vmem:[%s4797 + $0xf0] sm:$0xff]
        %v4819 = vld [vmem:[%s4797 + $0xf8] sm:$0xff]
        %v4820 = vld [vmem:[%s4797 + $0x108] sm:$0xff]
        %v4821 = vld [vmem:[%s4797 + $0x110] sm:$0xff]
        %v4822 = vld [vmem:[%s4797 + $0x120] sm:$0xff]
        %v4823 = vld [vmem:[%s4797 + $0x128] sm:$0xff]
        %v4824 = vld [vmem:[%s4797 + $0x138] sm:$0xff]
        %v4825 = vld [vmem:[%s4797 + $0x140] sm:$0xff]
        %v4826 = vld [vmem:[%s4797 + $0x150] sm:$0xff]
        %v4827 = vld [vmem:[%s4797 + $0x158] sm:$0xff]
        %v4828 = vld [vmem:[%s4797 + $0x168] sm:$0xff]
        %v4829 = vld [vmem:[%s4797 + $0x170] sm:$0xff]
        %s4830 = scalar_lea.vmem %s5, 5
        %v4831 = vld [vmem:[%s4830] sm:$0x1]
        %v4833 = vlaneseq
        %v4834 = vshrl.u32 %v4833, 7
        %v4835 = vsub.s32 0, %v4834
        %v4836 = vrot.slane %v4831, %v4835
        %v4838 = vmul.f32 %v4798, %v4836
        %v4839 = vmul.f32 %v4799, %v4836
        %v4840 = vmul.f32 %v4800, %v4836
        %v4841 = vmul.f32 %v4801, %v4836
        %v4842 = vmul.f32 %v4802, %v4836
        %v4843 = vmul.f32 %v4803, %v4836
        %v4844 = vmul.f32 %v4804, %v4836
        %v4845 = vmul.f32 %v4805, %v4836
        %v4846 = vmul.f32 %v4806, %v4836
        %v4847 = vmul.f32 %v4807, %v4836
        %v4848 = vmul.f32 %v4808, %v4836
        %v4849 = vmul.f32 %v4809, %v4836
        %v4850 = vmul.f32 %v4810, %v4836
        %v4851 = vmul.f32 %v4811, %v4836
        %v4852 = vmul.f32 %v4812, %v4836
        %v4853 = vmul.f32 %v4813, %v4836
        %v4854 = vmul.f32 %v4814, %v4836
        %v4855 = vmul.f32 %v4815, %v4836
        %v4856 = vmul.f32 %v4816, %v4836
        %v4857 = vmul.f32 %v4817, %v4836
        %v4858 = vmul.f32 %v4818, %v4836
        %v4859 = vmul.f32 %v4819, %v4836
        %v4860 = vmul.f32 %v4820, %v4836
        %v4861 = vmul.f32 %v4821, %v4836
        %v4862 = vmul.f32 %v4822, %v4836
        %v4863 = vmul.f32 %v4823, %v4836
        %v4864 = vmul.f32 %v4824, %v4836
        %v4865 = vmul.f32 %v4825, %v4836
        %v4866 = vmul.f32 %v4826, %v4836
        %v4867 = vmul.f32 %v4827, %v4836
        %v4868 = vmul.f32 %v4828, %v4836
        %v4869 = vmul.f32 %v4829, %v4836
        %v4870 = vadd.f32 %v4765, %v4838
        %v4871 = vadd.f32 %v4766, %v4839
        %v4872 = vadd.f32 %v4767, %v4840
        %v4873 = vadd.f32 %v4768, %v4841
        %v4874 = vadd.f32 %v4769, %v4842
        %v4875 = vadd.f32 %v4770, %v4843
        %v4876 = vadd.f32 %v4771, %v4844
        %v4877 = vadd.f32 %v4772, %v4845
        %v4878 = vadd.f32 %v4773, %v4846
        %v4879 = vadd.f32 %v4774, %v4847
        %v4880 = vadd.f32 %v4775, %v4848
        %v4881 = vadd.f32 %v4776, %v4849
        %v4882 = vadd.f32 %v4777, %v4850
        %v4883 = vadd.f32 %v4778, %v4851
        %v4884 = vadd.f32 %v4779, %v4852
        %v4885 = vadd.f32 %v4780, %v4853
        %v4886 = vadd.f32 %v4781, %v4854
        %v4887 = vadd.f32 %v4782, %v4855
        %v4888 = vadd.f32 %v4783, %v4856
        %v4889 = vadd.f32 %v4784, %v4857
        %v4890 = vadd.f32 %v4785, %v4858
        %v4891 = vadd.f32 %v4786, %v4859
        %v4892 = vadd.f32 %v4787, %v4860
        %v4893 = vadd.f32 %v4788, %v4861
        %v4894 = vadd.f32 %v4789, %v4862
        %v4895 = vadd.f32 %v4790, %v4863
        %v4896 = vadd.f32 %v4791, %v4864
        %v4897 = vadd.f32 %v4792, %v4865
        %v4898 = vadd.f32 %v4793, %v4866
        %v4899 = vadd.f32 %v4794, %v4867
        %v4900 = vadd.f32 %v4795, %v4868
        %v4901 = vadd.f32 %v4796, %v4869
        %v4902 = vld [vmem:[%s4797 + $0x1] sm:$0xff]
        %v4903 = vld [vmem:[%s4797 + $0x9] sm:$0xff]
        %v4904 = vld [vmem:[%s4797 + $0x19] sm:$0xff]
        %v4905 = vld [vmem:[%s4797 + $0x21] sm:$0xff]
        %v4906 = vld [vmem:[%s4797 + $0x31] sm:$0xff]
        %v4907 = vld [vmem:[%s4797 + $0x39] sm:$0xff]
        %v4908 = vld [vmem:[%s4797 + $0x49] sm:$0xff]
        %v4909 = vld [vmem:[%s4797 + $0x51] sm:$0xff]
        %v4910 = vld [vmem:[%s4797 + $0x61] sm:$0xff]
        %v4911 = vld [vmem:[%s4797 + $0x69] sm:$0xff]
        %v4912 = vld [vmem:[%s4797 + $0x79] sm:$0xff]
        %v4913 = vld [vmem:[%s4797 + $0x81] sm:$0xff]
        %v4914 = vld [vmem:[%s4797 + $0x91] sm:$0xff]
        %v4915 = vld [vmem:[%s4797 + $0x99] sm:$0xff]
        %v4916 = vld [vmem:[%s4797 + $0xa9] sm:$0xff]
        %v4917 = vld [vmem:[%s4797 + $0xb1] sm:$0xff]
        %v4918 = vld [vmem:[%s4797 + $0xc1] sm:$0xff]
        %v4919 = vld [vmem:[%s4797 + $0xc9] sm:$0xff]
        %v4920 = vld [vmem:[%s4797 + $0xd9] sm:$0xff]
        %v4921 = vld [vmem:[%s4797 + $0xe1] sm:$0xff]
        %v4922 = vld [vmem:[%s4797 + $0xf1] sm:$0xff]
        %v4923 = vld [vmem:[%s4797 + $0xf9] sm:$0xff]
        %v4924 = vld [vmem:[%s4797 + $0x109] sm:$0xff]
        %v4925 = vld [vmem:[%s4797 + $0x111] sm:$0xff]
        %v4926 = vld [vmem:[%s4797 + $0x121] sm:$0xff]
        %v4927 = vld [vmem:[%s4797 + $0x129] sm:$0xff]
        %v4928 = vld [vmem:[%s4797 + $0x139] sm:$0xff]
        %v4929 = vld [vmem:[%s4797 + $0x141] sm:$0xff]
        %v4930 = vld [vmem:[%s4797 + $0x151] sm:$0xff]
        %v4931 = vld [vmem:[%s4797 + $0x159] sm:$0xff]
        %v4932 = vld [vmem:[%s4797 + $0x169] sm:$0xff]
        %v4933 = vld [vmem:[%s4797 + $0x171] sm:$0xff]
        %s4934 = scalar_lea.vmem %s5, 6
        %v4935 = vld [vmem:[%s4934] sm:$0x1]
        %v4937 = vlaneseq
        %v4938 = vshrl.u32 %v4937, 7
        %v4939 = vsub.s32 0, %v4938
        %v4940 = vrot.slane %v4935, %v4939
        %v4942 = vmul.f32 %v4902, %v4940
        %v4943 = vmul.f32 %v4903, %v4940
        %v4944 = vmul.f32 %v4904, %v4940
        %v4945 = vmul.f32 %v4905, %v4940
        %v4946 = vmul.f32 %v4906, %v4940
        %v4947 = vmul.f32 %v4907, %v4940
        %v4948 = vmul.f32 %v4908, %v4940
        %v4949 = vmul.f32 %v4909, %v4940
        %v4950 = vmul.f32 %v4910, %v4940
        %v4951 = vmul.f32 %v4911, %v4940
        %v4952 = vmul.f32 %v4912, %v4940
        %v4953 = vmul.f32 %v4913, %v4940
        %v4954 = vmul.f32 %v4914, %v4940
        %v4955 = vmul.f32 %v4915, %v4940
        %v4956 = vmul.f32 %v4916, %v4940
        %v4957 = vmul.f32 %v4917, %v4940
        %v4958 = vmul.f32 %v4918, %v4940
        %v4959 = vmul.f32 %v4919, %v4940
        %v4960 = vmul.f32 %v4920, %v4940
        %v4961 = vmul.f32 %v4921, %v4940
        %v4962 = vmul.f32 %v4922, %v4940
        %v4963 = vmul.f32 %v4923, %v4940
        %v4964 = vmul.f32 %v4924, %v4940
        %v4965 = vmul.f32 %v4925, %v4940
        %v4966 = vmul.f32 %v4926, %v4940
        %v4967 = vmul.f32 %v4927, %v4940
        %v4968 = vmul.f32 %v4928, %v4940
        %v4969 = vmul.f32 %v4929, %v4940
        %v4970 = vmul.f32 %v4930, %v4940
        %v4971 = vmul.f32 %v4931, %v4940
        %v4972 = vmul.f32 %v4932, %v4940
        %v4973 = vmul.f32 %v4933, %v4940
        %v4974 = vadd.f32 %v4870, %v4942
        %v4975 = vadd.f32 %v4871, %v4943
        %v4976 = vadd.f32 %v4872, %v4944
        %v4977 = vadd.f32 %v4873, %v4945
        %v4978 = vadd.f32 %v4874, %v4946
        %v4979 = vadd.f32 %v4875, %v4947
        %v4980 = vadd.f32 %v4876, %v4948
        %v4981 = vadd.f32 %v4877, %v4949
        %v4982 = vadd.f32 %v4878, %v4950
        %v4983 = vadd.f32 %v4879, %v4951
        %v4984 = vadd.f32 %v4880, %v4952
        %v4985 = vadd.f32 %v4881, %v4953
        %v4986 = vadd.f32 %v4882, %v4954
        %v4987 = vadd.f32 %v4883, %v4955
        %v4988 = vadd.f32 %v4884, %v4956
        %v4989 = vadd.f32 %v4885, %v4957
        %v4990 = vadd.f32 %v4886, %v4958
        %v4991 = vadd.f32 %v4887, %v4959
        %v4992 = vadd.f32 %v4888, %v4960
        %v4993 = vadd.f32 %v4889, %v4961
        %v4994 = vadd.f32 %v4890, %v4962
        %v4995 = vadd.f32 %v4891, %v4963
        %v4996 = vadd.f32 %v4892, %v4964
        %v4997 = vadd.f32 %v4893, %v4965
        %v4998 = vadd.f32 %v4894, %v4966
        %v4999 = vadd.f32 %v4895, %v4967
        %v5000 = vadd.f32 %v4896, %v4968
        %v5001 = vadd.f32 %v4897, %v4969
        %v5002 = vadd.f32 %v4898, %v4970
        %v5003 = vadd.f32 %v4899, %v4971
        %v5004 = vadd.f32 %v4900, %v4972
        %v5005 = vadd.f32 %v4901, %v4973
        %v5006 = vld [vmem:[%s4797 + $0x2] sm:$0xff]
        %v5007 = vld [vmem:[%s4797 + $0xa] sm:$0xff]
        %v5008 = vld [vmem:[%s4797 + $0x1a] sm:$0xff]
        %v5009 = vld [vmem:[%s4797 + $0x22] sm:$0xff]
        %v5010 = vld [vmem:[%s4797 + $0x32] sm:$0xff]
        %v5011 = vld [vmem:[%s4797 + $0x3a] sm:$0xff]
        %v5012 = vld [vmem:[%s4797 + $0x4a] sm:$0xff]
        %v5013 = vld [vmem:[%s4797 + $0x52] sm:$0xff]
        %v5014 = vld [vmem:[%s4797 + $0x62] sm:$0xff]
        %v5015 = vld [vmem:[%s4797 + $0x6a] sm:$0xff]
        %v5016 = vld [vmem:[%s4797 + $0x7a] sm:$0xff]
        %v5017 = vld [vmem:[%s4797 + $0x82] sm:$0xff]
        %v5018 = vld [vmem:[%s4797 + $0x92] sm:$0xff]
        %v5019 = vld [vmem:[%s4797 + $0x9a] sm:$0xff]
        %v5020 = vld [vmem:[%s4797 + $0xaa] sm:$0xff]
        %v5021 = vld [vmem:[%s4797 + $0xb2] sm:$0xff]
        %v5022 = vld [vmem:[%s4797 + $0xc2] sm:$0xff]
        %v5023 = vld [vmem:[%s4797 + $0xca] sm:$0xff]
        %v5024 = vld [vmem:[%s4797 + $0xda] sm:$0xff]
        %v5025 = vld [vmem:[%s4797 + $0xe2] sm:$0xff]
        %v5026 = vld [vmem:[%s4797 + $0xf2] sm:$0xff]
        %v5027 = vld [vmem:[%s4797 + $0xfa] sm:$0xff]
        %v5028 = vld [vmem:[%s4797 + $0x10a] sm:$0xff]
        %v5029 = vld [vmem:[%s4797 + $0x112] sm:$0xff]
        %v5030 = vld [vmem:[%s4797 + $0x122] sm:$0xff]
        %v5031 = vld [vmem:[%s4797 + $0x12a] sm:$0xff]
        %v5032 = vld [vmem:[%s4797 + $0x13a] sm:$0xff]
        %v5033 = vld [vmem:[%s4797 + $0x142] sm:$0xff]
        %v5034 = vld [vmem:[%s4797 + $0x152] sm:$0xff]
        %v5035 = vld [vmem:[%s4797 + $0x15a] sm:$0xff]
        %v5036 = vld [vmem:[%s4797 + $0x16a] sm:$0xff]
        %v5037 = vld [vmem:[%s4797 + $0x172] sm:$0xff]
        %s5038 = scalar_lea.vmem %s5, 7
        %v5039 = vld [vmem:[%s5038] sm:$0x1]
        %v5041 = vlaneseq
        %v5042 = vshrl.u32 %v5041, 7
        %v5043 = vsub.s32 0, %v5042
        %v5044 = vrot.slane %v5039, %v5043
        %v5046 = vmul.f32 %v5006, %v5044
        %v5047 = vmul.f32 %v5007, %v5044
        %v5048 = vmul.f32 %v5008, %v5044
        %v5049 = vmul.f32 %v5009, %v5044
        %v5050 = vmul.f32 %v5010, %v5044
        %v5051 = vmul.f32 %v5011, %v5044
        %v5052 = vmul.f32 %v5012, %v5044
        %v5053 = vmul.f32 %v5013, %v5044
        %v5054 = vmul.f32 %v5014, %v5044
        %v5055 = vmul.f32 %v5015, %v5044
        %v5056 = vmul.f32 %v5016, %v5044
        %v5057 = vmul.f32 %v5017, %v5044
        %v5058 = vmul.f32 %v5018, %v5044
        %v5059 = vmul.f32 %v5019, %v5044
        %v5060 = vmul.f32 %v5020, %v5044
        %v5061 = vmul.f32 %v5021, %v5044
        %v5062 = vmul.f32 %v5022, %v5044
        %v5063 = vmul.f32 %v5023, %v5044
        %v5064 = vmul.f32 %v5024, %v5044
        %v5065 = vmul.f32 %v5025, %v5044
        %v5066 = vmul.f32 %v5026, %v5044
        %v5067 = vmul.f32 %v5027, %v5044
        %v5068 = vmul.f32 %v5028, %v5044
        %v5069 = vmul.f32 %v5029, %v5044
        %v5070 = vmul.f32 %v5030, %v5044
        %v5071 = vmul.f32 %v5031, %v5044
        %v5072 = vmul.f32 %v5032, %v5044
        %v5073 = vmul.f32 %v5033, %v5044
        %v5074 = vmul.f32 %v5034, %v5044
        %v5075 = vmul.f32 %v5035, %v5044
        %v5076 = vmul.f32 %v5036, %v5044
        %v5077 = vmul.f32 %v5037, %v5044
        %v5078 = vadd.f32 %v4974, %v5046
        %v5079 = vadd.f32 %v4975, %v5047
        %v5080 = vadd.f32 %v4976, %v5048
        %v5081 = vadd.f32 %v4977, %v5049
        %v5082 = vadd.f32 %v4978, %v5050
        %v5083 = vadd.f32 %v4979, %v5051
        %v5084 = vadd.f32 %v4980, %v5052
        %v5085 = vadd.f32 %v4981, %v5053
        %v5086 = vadd.f32 %v4982, %v5054
        %v5087 = vadd.f32 %v4983, %v5055
        %v5088 = vadd.f32 %v4984, %v5056
        %v5089 = vadd.f32 %v4985, %v5057
        %v5090 = vadd.f32 %v4986, %v5058
        %v5091 = vadd.f32 %v4987, %v5059
        %v5092 = vadd.f32 %v4988, %v5060
        %v5093 = vadd.f32 %v4989, %v5061
        %v5094 = vadd.f32 %v4990, %v5062
        %v5095 = vadd.f32 %v4991, %v5063
        %v5096 = vadd.f32 %v4992, %v5064
        %v5097 = vadd.f32 %v4993, %v5065
        %v5098 = vadd.f32 %v4994, %v5066
        %v5099 = vadd.f32 %v4995, %v5067
        %v5100 = vadd.f32 %v4996, %v5068
        %v5101 = vadd.f32 %v4997, %v5069
        %v5102 = vadd.f32 %v4998, %v5070
        %v5103 = vadd.f32 %v4999, %v5071
        %v5104 = vadd.f32 %v5000, %v5072
        %v5105 = vadd.f32 %v5001, %v5073
        %v5106 = vadd.f32 %v5002, %v5074
        %v5107 = vadd.f32 %v5003, %v5075
        %v5108 = vadd.f32 %v5004, %v5076
        %v5109 = vadd.f32 %v5005, %v5077
        %v5110 = vld [vmem:[%s4797 + $0x3] sm:$0xff]
        %v5111 = vld [vmem:[%s4797 + $0xb] sm:$0xff]
        %v5112 = vld [vmem:[%s4797 + $0x1b] sm:$0xff]
        %v5113 = vld [vmem:[%s4797 + $0x23] sm:$0xff]
        %v5114 = vld [vmem:[%s4797 + $0x33] sm:$0xff]
        %v5115 = vld [vmem:[%s4797 + $0x3b] sm:$0xff]
        %v5116 = vld [vmem:[%s4797 + $0x4b] sm:$0xff]
        %v5117 = vld [vmem:[%s4797 + $0x53] sm:$0xff]
        %v5118 = vld [vmem:[%s4797 + $0x63] sm:$0xff]
        %v5119 = vld [vmem:[%s4797 + $0x6b] sm:$0xff]
        %v5120 = vld [vmem:[%s4797 + $0x7b] sm:$0xff]
        %v5121 = vld [vmem:[%s4797 + $0x83] sm:$0xff]
        %v5122 = vld [vmem:[%s4797 + $0x93] sm:$0xff]
        %v5123 = vld [vmem:[%s4797 + $0x9b] sm:$0xff]
        %v5124 = vld [vmem:[%s4797 + $0xab] sm:$0xff]
        %v5125 = vld [vmem:[%s4797 + $0xb3] sm:$0xff]
        %v5126 = vld [vmem:[%s4797 + $0xc3] sm:$0xff]
        %v5127 = vld [vmem:[%s4797 + $0xcb] sm:$0xff]
        %v5128 = vld [vmem:[%s4797 + $0xdb] sm:$0xff]
        %v5129 = vld [vmem:[%s4797 + $0xe3] sm:$0xff]
        %v5130 = vld [vmem:[%s4797 + $0xf3] sm:$0xff]
        %v5131 = vld [vmem:[%s4797 + $0xfb] sm:$0xff]
        %v5132 = vld [vmem:[%s4797 + $0x10b] sm:$0xff]
        %v5133 = vld [vmem:[%s4797 + $0x113] sm:$0xff]
        %v5134 = vld [vmem:[%s4797 + $0x123] sm:$0xff]
        %v5135 = vld [vmem:[%s4797 + $0x12b] sm:$0xff]
        %v5136 = vld [vmem:[%s4797 + $0x13b] sm:$0xff]
        %v5137 = vld [vmem:[%s4797 + $0x143] sm:$0xff]
        %v5138 = vld [vmem:[%s4797 + $0x153] sm:$0xff]
        %v5139 = vld [vmem:[%s4797 + $0x15b] sm:$0xff]
        %v5140 = vld [vmem:[%s4797 + $0x16b] sm:$0xff]
        %v5141 = vld [vmem:[%s4797 + $0x173] sm:$0xff]
        %s5142 = scalar_lea.vmem %s5, 8
        %v5143 = vld [vmem:[%s5142] sm:$0x1]
        %v5145 = vlaneseq
        %v5146 = vshrl.u32 %v5145, 7
        %v5147 = vsub.s32 0, %v5146
        %v5148 = vrot.slane %v5143, %v5147
        %v5150 = vmul.f32 %v5110, %v5148
        %v5151 = vmul.f32 %v5111, %v5148
        %v5152 = vmul.f32 %v5112, %v5148
        %v5153 = vmul.f32 %v5113, %v5148
        %v5154 = vmul.f32 %v5114, %v5148
        %v5155 = vmul.f32 %v5115, %v5148
        %v5156 = vmul.f32 %v5116, %v5148
        %v5157 = vmul.f32 %v5117, %v5148
        %v5158 = vmul.f32 %v5118, %v5148
        %v5159 = vmul.f32 %v5119, %v5148
        %v5160 = vmul.f32 %v5120, %v5148
        %v5161 = vmul.f32 %v5121, %v5148
        %v5162 = vmul.f32 %v5122, %v5148
        %v5163 = vmul.f32 %v5123, %v5148
        %v5164 = vmul.f32 %v5124, %v5148
        %v5165 = vmul.f32 %v5125, %v5148
        %v5166 = vmul.f32 %v5126, %v5148
        %v5167 = vmul.f32 %v5127, %v5148
        %v5168 = vmul.f32 %v5128, %v5148
        %v5169 = vmul.f32 %v5129, %v5148
        %v5170 = vmul.f32 %v5130, %v5148
        %v5171 = vmul.f32 %v5131, %v5148
        %v5172 = vmul.f32 %v5132, %v5148
        %v5173 = vmul.f32 %v5133, %v5148
        %v5174 = vmul.f32 %v5134, %v5148
        %v5175 = vmul.f32 %v5135, %v5148
        %v5176 = vmul.f32 %v5136, %v5148
        %v5177 = vmul.f32 %v5137, %v5148
        %v5178 = vmul.f32 %v5138, %v5148
        %v5179 = vmul.f32 %v5139, %v5148
        %v5180 = vmul.f32 %v5140, %v5148
        %v5181 = vmul.f32 %v5141, %v5148
        %v5182 = vadd.f32 %v5078, %v5150
        %v5183 = vadd.f32 %v5079, %v5151
        %v5184 = vadd.f32 %v5080, %v5152
        %v5185 = vadd.f32 %v5081, %v5153
        %v5186 = vadd.f32 %v5082, %v5154
        %v5187 = vadd.f32 %v5083, %v5155
        %v5188 = vadd.f32 %v5084, %v5156
        %v5189 = vadd.f32 %v5085, %v5157
        %v5190 = vadd.f32 %v5086, %v5158
        %v5191 = vadd.f32 %v5087, %v5159
        %v5192 = vadd.f32 %v5088, %v5160
        %v5193 = vadd.f32 %v5089, %v5161
        %v5194 = vadd.f32 %v5090, %v5162
        %v5195 = vadd.f32 %v5091, %v5163
        %v5196 = vadd.f32 %v5092, %v5164
        %v5197 = vadd.f32 %v5093, %v5165
        %v5198 = vadd.f32 %v5094, %v5166
        %v5199 = vadd.f32 %v5095, %v5167
        %v5200 = vadd.f32 %v5096, %v5168
        %v5201 = vadd.f32 %v5097, %v5169
        %v5202 = vadd.f32 %v5098, %v5170
        %v5203 = vadd.f32 %v5099, %v5171
        %v5204 = vadd.f32 %v5100, %v5172
        %v5205 = vadd.f32 %v5101, %v5173
        %v5206 = vadd.f32 %v5102, %v5174
        %v5207 = vadd.f32 %v5103, %v5175
        %v5208 = vadd.f32 %v5104, %v5176
        %v5209 = vadd.f32 %v5105, %v5177
        %v5210 = vadd.f32 %v5106, %v5178
        %v5211 = vadd.f32 %v5107, %v5179
        %v5212 = vadd.f32 %v5108, %v5180
        %v5213 = vadd.f32 %v5109, %v5181
        %v5214 = vld [vmem:[%s4797 + $0x4] sm:$0xff]
        %v5215 = vld [vmem:[%s4797 + $0xc] sm:$0xff]
        %v5216 = vld [vmem:[%s4797 + $0x1c] sm:$0xff]
        %v5217 = vld [vmem:[%s4797 + $0x24] sm:$0xff]
        %v5218 = vld [vmem:[%s4797 + $0x34] sm:$0xff]
        %v5219 = vld [vmem:[%s4797 + $0x3c] sm:$0xff]
        %v5220 = vld [vmem:[%s4797 + $0x4c] sm:$0xff]
        %v5221 = vld [vmem:[%s4797 + $0x54] sm:$0xff]
        %v5222 = vld [vmem:[%s4797 + $0x64] sm:$0xff]
        %v5223 = vld [vmem:[%s4797 + $0x6c] sm:$0xff]
        %v5224 = vld [vmem:[%s4797 + $0x7c] sm:$0xff]
        %v5225 = vld [vmem:[%s4797 + $0x84] sm:$0xff]
        %v5226 = vld [vmem:[%s4797 + $0x94] sm:$0xff]
        %v5227 = vld [vmem:[%s4797 + $0x9c] sm:$0xff]
        %v5228 = vld [vmem:[%s4797 + $0xac] sm:$0xff]
        %v5229 = vld [vmem:[%s4797 + $0xb4] sm:$0xff]
        %v5230 = vld [vmem:[%s4797 + $0xc4] sm:$0xff]
        %v5231 = vld [vmem:[%s4797 + $0xcc] sm:$0xff]
        %v5232 = vld [vmem:[%s4797 + $0xdc] sm:$0xff]
        %v5233 = vld [vmem:[%s4797 + $0xe4] sm:$0xff]
        %v5234 = vld [vmem:[%s4797 + $0xf4] sm:$0xff]
        %v5235 = vld [vmem:[%s4797 + $0xfc] sm:$0xff]
        %v5236 = vld [vmem:[%s4797 + $0x10c] sm:$0xff]
        %v5237 = vld [vmem:[%s4797 + $0x114] sm:$0xff]
        %v5238 = vld [vmem:[%s4797 + $0x124] sm:$0xff]
        %v5239 = vld [vmem:[%s4797 + $0x12c] sm:$0xff]
        %v5240 = vld [vmem:[%s4797 + $0x13c] sm:$0xff]
        %v5241 = vld [vmem:[%s4797 + $0x144] sm:$0xff]
        %v5242 = vld [vmem:[%s4797 + $0x154] sm:$0xff]
        %v5243 = vld [vmem:[%s4797 + $0x15c] sm:$0xff]
        %v5244 = vld [vmem:[%s4797 + $0x16c] sm:$0xff]
        %v5245 = vld [vmem:[%s4797 + $0x174] sm:$0xff]
        %s5246 = scalar_lea.vmem %s5, 9
        %v5247 = vld [vmem:[%s5246] sm:$0x1]
        %v5249 = vlaneseq
        %v5250 = vshrl.u32 %v5249, 7
        %v5251 = vsub.s32 0, %v5250
        %v5252 = vrot.slane %v5247, %v5251
        %v5254 = vmul.f32 %v5214, %v5252
        %v5255 = vmul.f32 %v5215, %v5252
        %v5256 = vmul.f32 %v5216, %v5252
        %v5257 = vmul.f32 %v5217, %v5252
        %v5258 = vmul.f32 %v5218, %v5252
        %v5259 = vmul.f32 %v5219, %v5252
        %v5260 = vmul.f32 %v5220, %v5252
        %v5261 = vmul.f32 %v5221, %v5252
        %v5262 = vmul.f32 %v5222, %v5252
        %v5263 = vmul.f32 %v5223, %v5252
        %v5264 = vmul.f32 %v5224, %v5252
        %v5265 = vmul.f32 %v5225, %v5252
        %v5266 = vmul.f32 %v5226, %v5252
        %v5267 = vmul.f32 %v5227, %v5252
        %v5268 = vmul.f32 %v5228, %v5252
        %v5269 = vmul.f32 %v5229, %v5252
        %v5270 = vmul.f32 %v5230, %v5252
        %v5271 = vmul.f32 %v5231, %v5252
        %v5272 = vmul.f32 %v5232, %v5252
        %v5273 = vmul.f32 %v5233, %v5252
        %v5274 = vmul.f32 %v5234, %v5252
        %v5275 = vmul.f32 %v5235, %v5252
        %v5276 = vmul.f32 %v5236, %v5252
        %v5277 = vmul.f32 %v5237, %v5252
        %v5278 = vmul.f32 %v5238, %v5252
        %v5279 = vmul.f32 %v5239, %v5252
        %v5280 = vmul.f32 %v5240, %v5252
        %v5281 = vmul.f32 %v5241, %v5252
        %v5282 = vmul.f32 %v5242, %v5252
        %v5283 = vmul.f32 %v5243, %v5252
        %v5284 = vmul.f32 %v5244, %v5252
        %v5285 = vmul.f32 %v5245, %v5252
        %v5286 = vadd.f32 %v5182, %v5254
        %v5287 = vadd.f32 %v5183, %v5255
        %v5288 = vadd.f32 %v5184, %v5256
        %v5289 = vadd.f32 %v5185, %v5257
        %v5290 = vadd.f32 %v5186, %v5258
        %v5291 = vadd.f32 %v5187, %v5259
        %v5292 = vadd.f32 %v5188, %v5260
        %v5293 = vadd.f32 %v5189, %v5261
        %v5294 = vadd.f32 %v5190, %v5262
        %v5295 = vadd.f32 %v5191, %v5263
        %v5296 = vadd.f32 %v5192, %v5264
        %v5297 = vadd.f32 %v5193, %v5265
        %v5298 = vadd.f32 %v5194, %v5266
        %v5299 = vadd.f32 %v5195, %v5267
        %v5300 = vadd.f32 %v5196, %v5268
        %v5301 = vadd.f32 %v5197, %v5269
        %v5302 = vadd.f32 %v5198, %v5270
        %v5303 = vadd.f32 %v5199, %v5271
        %v5304 = vadd.f32 %v5200, %v5272
        %v5305 = vadd.f32 %v5201, %v5273
        %v5306 = vadd.f32 %v5202, %v5274
        %v5307 = vadd.f32 %v5203, %v5275
        %v5308 = vadd.f32 %v5204, %v5276
        %v5309 = vadd.f32 %v5205, %v5277
        %v5310 = vadd.f32 %v5206, %v5278
        %v5311 = vadd.f32 %v5207, %v5279
        %v5312 = vadd.f32 %v5208, %v5280
        %v5313 = vadd.f32 %v5209, %v5281
        %v5314 = vadd.f32 %v5210, %v5282
        %v5315 = vadd.f32 %v5211, %v5283
        %v5316 = vadd.f32 %v5212, %v5284
        %v5317 = vadd.f32 %v5213, %v5285
        %v5318 = vld [vmem:[%s4245] sm:$0xff]
        %v5319 = vld [vmem:[%s4245 + $0x8] sm:$0xff]
        %v5320 = vld [vmem:[%s4245 + $0x18] sm:$0xff]
        %v5321 = vld [vmem:[%s4245 + $0x20] sm:$0xff]
        %v5322 = vld [vmem:[%s4245 + $0x30] sm:$0xff]
        %v5323 = vld [vmem:[%s4245 + $0x38] sm:$0xff]
        %v5324 = vld [vmem:[%s4245 + $0x48] sm:$0xff]
        %v5325 = vld [vmem:[%s4245 + $0x50] sm:$0xff]
        %v5326 = vld [vmem:[%s4245 + $0x60] sm:$0xff]
        %v5327 = vld [vmem:[%s4245 + $0x68] sm:$0xff]
        %v5328 = vld [vmem:[%s4245 + $0x78] sm:$0xff]
        %v5329 = vld [vmem:[%s4245 + $0x80] sm:$0xff]
        %v5330 = vld [vmem:[%s4245 + $0x90] sm:$0xff]
        %v5331 = vld [vmem:[%s4245 + $0x98] sm:$0xff]
        %v5332 = vld [vmem:[%s4245 + $0xa8] sm:$0xff]
        %v5333 = vld [vmem:[%s4245 + $0xb0] sm:$0xff]
        %v5334 = vld [vmem:[%s4245 + $0xc0] sm:$0xff]
        %v5335 = vld [vmem:[%s4245 + $0xc8] sm:$0xff]
        %v5336 = vld [vmem:[%s4245 + $0xd8] sm:$0xff]
        %v5337 = vld [vmem:[%s4245 + $0xe0] sm:$0xff]
        %v5338 = vld [vmem:[%s4245 + $0xf0] sm:$0xff]
        %v5339 = vld [vmem:[%s4245 + $0xf8] sm:$0xff]
        %v5340 = vld [vmem:[%s4245 + $0x108] sm:$0xff]
        %v5341 = vld [vmem:[%s4245 + $0x110] sm:$0xff]
        %v5342 = vld [vmem:[%s4245 + $0x120] sm:$0xff]
        %v5343 = vld [vmem:[%s4245 + $0x128] sm:$0xff]
        %v5344 = vld [vmem:[%s4245 + $0x138] sm:$0xff]
        %v5345 = vld [vmem:[%s4245 + $0x140] sm:$0xff]
        %v5346 = vld [vmem:[%s4245 + $0x150] sm:$0xff]
        %v5347 = vld [vmem:[%s4245 + $0x158] sm:$0xff]
        %v5348 = vld [vmem:[%s4245 + $0x168] sm:$0xff]
        %v5349 = vld [vmem:[%s4245 + $0x170] sm:$0xff]
        %s5350 = scalar_lea.vmem %s5, 10
        %v5351 = vld [vmem:[%s5350] sm:$0x1]
        %v5353 = vlaneseq
        %v5354 = vshrl.u32 %v5353, 7
        %v5355 = vsub.s32 0, %v5354
        %v5356 = vrot.slane %v5351, %v5355
        %v5358 = vmul.f32 %v5318, %v5356
        %v5359 = vmul.f32 %v5319, %v5356
        %v5360 = vmul.f32 %v5320, %v5356
        %v5361 = vmul.f32 %v5321, %v5356
        %v5362 = vmul.f32 %v5322, %v5356
        %v5363 = vmul.f32 %v5323, %v5356
        %v5364 = vmul.f32 %v5324, %v5356
        %v5365 = vmul.f32 %v5325, %v5356
        %v5366 = vmul.f32 %v5326, %v5356
        %v5367 = vmul.f32 %v5327, %v5356
        %v5368 = vmul.f32 %v5328, %v5356
        %v5369 = vmul.f32 %v5329, %v5356
        %v5370 = vmul.f32 %v5330, %v5356
        %v5371 = vmul.f32 %v5331, %v5356
        %v5372 = vmul.f32 %v5332, %v5356
        %v5373 = vmul.f32 %v5333, %v5356
        %v5374 = vmul.f32 %v5334, %v5356
        %v5375 = vmul.f32 %v5335, %v5356
        %v5376 = vmul.f32 %v5336, %v5356
        %v5377 = vmul.f32 %v5337, %v5356
        %v5378 = vmul.f32 %v5338, %v5356
        %v5379 = vmul.f32 %v5339, %v5356
        %v5380 = vmul.f32 %v5340, %v5356
        %v5381 = vmul.f32 %v5341, %v5356
        %v5382 = vmul.f32 %v5342, %v5356
        %v5383 = vmul.f32 %v5343, %v5356
        %v5384 = vmul.f32 %v5344, %v5356
        %v5385 = vmul.f32 %v5345, %v5356
        %v5386 = vmul.f32 %v5346, %v5356
        %v5387 = vmul.f32 %v5347, %v5356
        %v5388 = vmul.f32 %v5348, %v5356
        %v5389 = vmul.f32 %v5349, %v5356
        %v5390 = vadd.f32 %v5286, %v5358
        %v5391 = vadd.f32 %v5287, %v5359
        %v5392 = vadd.f32 %v5288, %v5360
        %v5393 = vadd.f32 %v5289, %v5361
        %v5394 = vadd.f32 %v5290, %v5362
        %v5395 = vadd.f32 %v5291, %v5363
        %v5396 = vadd.f32 %v5292, %v5364
        %v5397 = vadd.f32 %v5293, %v5365
        %v5398 = vadd.f32 %v5294, %v5366
        %v5399 = vadd.f32 %v5295, %v5367
        %v5400 = vadd.f32 %v5296, %v5368
        %v5401 = vadd.f32 %v5297, %v5369
        %v5402 = vadd.f32 %v5298, %v5370
        %v5403 = vadd.f32 %v5299, %v5371
        %v5404 = vadd.f32 %v5300, %v5372
        %v5405 = vadd.f32 %v5301, %v5373
        %v5406 = vadd.f32 %v5302, %v5374
        %v5407 = vadd.f32 %v5303, %v5375
        %v5408 = vadd.f32 %v5304, %v5376
        %v5409 = vadd.f32 %v5305, %v5377
        %v5410 = vadd.f32 %v5306, %v5378
        %v5411 = vadd.f32 %v5307, %v5379
        %v5412 = vadd.f32 %v5308, %v5380
        %v5413 = vadd.f32 %v5309, %v5381
        %v5414 = vadd.f32 %v5310, %v5382
        %v5415 = vadd.f32 %v5311, %v5383
        %v5416 = vadd.f32 %v5312, %v5384
        %v5417 = vadd.f32 %v5313, %v5385
        %v5418 = vadd.f32 %v5314, %v5386
        %v5419 = vadd.f32 %v5315, %v5387
        %v5420 = vadd.f32 %v5316, %v5388
        %v5421 = vadd.f32 %v5317, %v5389
        %v5422 = vld [vmem:[%s4245 + $0x1] sm:$0xff]
        %v5423 = vld [vmem:[%s4245 + $0x9] sm:$0xff]
        %v5424 = vld [vmem:[%s4245 + $0x19] sm:$0xff]
        %v5425 = vld [vmem:[%s4245 + $0x21] sm:$0xff]
        %v5426 = vld [vmem:[%s4245 + $0x31] sm:$0xff]
        %v5427 = vld [vmem:[%s4245 + $0x39] sm:$0xff]
        %v5428 = vld [vmem:[%s4245 + $0x49] sm:$0xff]
        %v5429 = vld [vmem:[%s4245 + $0x51] sm:$0xff]
        %v5430 = vld [vmem:[%s4245 + $0x61] sm:$0xff]
        %v5431 = vld [vmem:[%s4245 + $0x69] sm:$0xff]
        %v5432 = vld [vmem:[%s4245 + $0x79] sm:$0xff]
        %v5433 = vld [vmem:[%s4245 + $0x81] sm:$0xff]
        %v5434 = vld [vmem:[%s4245 + $0x91] sm:$0xff]
        %v5435 = vld [vmem:[%s4245 + $0x99] sm:$0xff]
        %v5436 = vld [vmem:[%s4245 + $0xa9] sm:$0xff]
        %v5437 = vld [vmem:[%s4245 + $0xb1] sm:$0xff]
        %v5438 = vld [vmem:[%s4245 + $0xc1] sm:$0xff]
        %v5439 = vld [vmem:[%s4245 + $0xc9] sm:$0xff]
        %v5440 = vld [vmem:[%s4245 + $0xd9] sm:$0xff]
        %v5441 = vld [vmem:[%s4245 + $0xe1] sm:$0xff]
        %v5442 = vld [vmem:[%s4245 + $0xf1] sm:$0xff]
        %v5443 = vld [vmem:[%s4245 + $0xf9] sm:$0xff]
        %v5444 = vld [vmem:[%s4245 + $0x109] sm:$0xff]
        %v5445 = vld [vmem:[%s4245 + $0x111] sm:$0xff]
        %v5446 = vld [vmem:[%s4245 + $0x121] sm:$0xff]
        %v5447 = vld [vmem:[%s4245 + $0x129] sm:$0xff]
        %v5448 = vld [vmem:[%s4245 + $0x139] sm:$0xff]
        %v5449 = vld [vmem:[%s4245 + $0x141] sm:$0xff]
        %v5450 = vld [vmem:[%s4245 + $0x151] sm:$0xff]
        %v5451 = vld [vmem:[%s4245 + $0x159] sm:$0xff]
        %v5452 = vld [vmem:[%s4245 + $0x169] sm:$0xff]
        %v5453 = vld [vmem:[%s4245 + $0x171] sm:$0xff]
        %s5454 = scalar_lea.vmem %s5, 11
        %v5455 = vld [vmem:[%s5454] sm:$0x1]
        %v5457 = vlaneseq
        %v5458 = vshrl.u32 %v5457, 7
        %v5459 = vsub.s32 0, %v5458
        %v5460 = vrot.slane %v5455, %v5459
        %v5462 = vmul.f32 %v5422, %v5460
        %v5463 = vmul.f32 %v5423, %v5460
        %v5464 = vmul.f32 %v5424, %v5460
        %v5465 = vmul.f32 %v5425, %v5460
        %v5466 = vmul.f32 %v5426, %v5460
        %v5467 = vmul.f32 %v5427, %v5460
        %v5468 = vmul.f32 %v5428, %v5460
        %v5469 = vmul.f32 %v5429, %v5460
        %v5470 = vmul.f32 %v5430, %v5460
        %v5471 = vmul.f32 %v5431, %v5460
        %v5472 = vmul.f32 %v5432, %v5460
        %v5473 = vmul.f32 %v5433, %v5460
        %v5474 = vmul.f32 %v5434, %v5460
        %v5475 = vmul.f32 %v5435, %v5460
        %v5476 = vmul.f32 %v5436, %v5460
        %v5477 = vmul.f32 %v5437, %v5460
        %v5478 = vmul.f32 %v5438, %v5460
        %v5479 = vmul.f32 %v5439, %v5460
        %v5480 = vmul.f32 %v5440, %v5460
        %v5481 = vmul.f32 %v5441, %v5460
        %v5482 = vmul.f32 %v5442, %v5460
        %v5483 = vmul.f32 %v5443, %v5460
        %v5484 = vmul.f32 %v5444, %v5460
        %v5485 = vmul.f32 %v5445, %v5460
        %v5486 = vmul.f32 %v5446, %v5460
        %v5487 = vmul.f32 %v5447, %v5460
        %v5488 = vmul.f32 %v5448, %v5460
        %v5489 = vmul.f32 %v5449, %v5460
        %v5490 = vmul.f32 %v5450, %v5460
        %v5491 = vmul.f32 %v5451, %v5460
        %v5492 = vmul.f32 %v5452, %v5460
        %v5493 = vmul.f32 %v5453, %v5460
        %v5494 = vadd.f32 %v5390, %v5462
        %v5495 = vadd.f32 %v5391, %v5463
        %v5496 = vadd.f32 %v5392, %v5464
        %v5497 = vadd.f32 %v5393, %v5465
        %v5498 = vadd.f32 %v5394, %v5466
        %v5499 = vadd.f32 %v5395, %v5467
        %v5500 = vadd.f32 %v5396, %v5468
        %v5501 = vadd.f32 %v5397, %v5469
        %v5502 = vadd.f32 %v5398, %v5470
        %v5503 = vadd.f32 %v5399, %v5471
        %v5504 = vadd.f32 %v5400, %v5472
        %v5505 = vadd.f32 %v5401, %v5473
        %v5506 = vadd.f32 %v5402, %v5474
        %v5507 = vadd.f32 %v5403, %v5475
        %v5508 = vadd.f32 %v5404, %v5476
        %v5509 = vadd.f32 %v5405, %v5477
        %v5510 = vadd.f32 %v5406, %v5478
        %v5511 = vadd.f32 %v5407, %v5479
        %v5512 = vadd.f32 %v5408, %v5480
        %v5513 = vadd.f32 %v5409, %v5481
        %v5514 = vadd.f32 %v5410, %v5482
        %v5515 = vadd.f32 %v5411, %v5483
        %v5516 = vadd.f32 %v5412, %v5484
        %v5517 = vadd.f32 %v5413, %v5485
        %v5518 = vadd.f32 %v5414, %v5486
        %v5519 = vadd.f32 %v5415, %v5487
        %v5520 = vadd.f32 %v5416, %v5488
        %v5521 = vadd.f32 %v5417, %v5489
        %v5522 = vadd.f32 %v5418, %v5490
        %v5523 = vadd.f32 %v5419, %v5491
        %v5524 = vadd.f32 %v5420, %v5492
        %v5525 = vadd.f32 %v5421, %v5493
        %v5526 = vld [vmem:[%s4245 + $0x2] sm:$0xff]
        %v5527 = vld [vmem:[%s4245 + $0xa] sm:$0xff]
        %v5528 = vld [vmem:[%s4245 + $0x1a] sm:$0xff]
        %v5529 = vld [vmem:[%s4245 + $0x22] sm:$0xff]
        %v5530 = vld [vmem:[%s4245 + $0x32] sm:$0xff]
        %v5531 = vld [vmem:[%s4245 + $0x3a] sm:$0xff]
        %v5532 = vld [vmem:[%s4245 + $0x4a] sm:$0xff]
        %v5533 = vld [vmem:[%s4245 + $0x52] sm:$0xff]
        %v5534 = vld [vmem:[%s4245 + $0x62] sm:$0xff]
        %v5535 = vld [vmem:[%s4245 + $0x6a] sm:$0xff]
        %v5536 = vld [vmem:[%s4245 + $0x7a] sm:$0xff]
        %v5537 = vld [vmem:[%s4245 + $0x82] sm:$0xff]
        %v5538 = vld [vmem:[%s4245 + $0x92] sm:$0xff]
        %v5539 = vld [vmem:[%s4245 + $0x9a] sm:$0xff]
        %v5540 = vld [vmem:[%s4245 + $0xaa] sm:$0xff]
        %v5541 = vld [vmem:[%s4245 + $0xb2] sm:$0xff]
        %v5542 = vld [vmem:[%s4245 + $0xc2] sm:$0xff]
        %v5543 = vld [vmem:[%s4245 + $0xca] sm:$0xff]
        %v5544 = vld [vmem:[%s4245 + $0xda] sm:$0xff]
        %v5545 = vld [vmem:[%s4245 + $0xe2] sm:$0xff]
        %v5546 = vld [vmem:[%s4245 + $0xf2] sm:$0xff]
        %v5547 = vld [vmem:[%s4245 + $0xfa] sm:$0xff]
        %v5548 = vld [vmem:[%s4245 + $0x10a] sm:$0xff]
        %v5549 = vld [vmem:[%s4245 + $0x112] sm:$0xff]
        %v5550 = vld [vmem:[%s4245 + $0x122] sm:$0xff]
        %v5551 = vld [vmem:[%s4245 + $0x12a] sm:$0xff]
        %v5552 = vld [vmem:[%s4245 + $0x13a] sm:$0xff]
        %v5553 = vld [vmem:[%s4245 + $0x142] sm:$0xff]
        %v5554 = vld [vmem:[%s4245 + $0x152] sm:$0xff]
        %v5555 = vld [vmem:[%s4245 + $0x15a] sm:$0xff]
        %v5556 = vld [vmem:[%s4245 + $0x16a] sm:$0xff]
        %v5557 = vld [vmem:[%s4245 + $0x172] sm:$0xff]
        %s5558 = scalar_lea.vmem %s5, 12
        %v5559 = vld [vmem:[%s5558] sm:$0x1]
        %v5561 = vlaneseq
        %v5562 = vshrl.u32 %v5561, 7
        %v5563 = vsub.s32 0, %v5562
        %v5564 = vrot.slane %v5559, %v5563
        %v5566 = vmul.f32 %v5526, %v5564
        %v5567 = vmul.f32 %v5527, %v5564
        %v5568 = vmul.f32 %v5528, %v5564
        %v5569 = vmul.f32 %v5529, %v5564
        %v5570 = vmul.f32 %v5530, %v5564
        %v5571 = vmul.f32 %v5531, %v5564
        %v5572 = vmul.f32 %v5532, %v5564
        %v5573 = vmul.f32 %v5533, %v5564
        %v5574 = vmul.f32 %v5534, %v5564
        %v5575 = vmul.f32 %v5535, %v5564
        %v5576 = vmul.f32 %v5536, %v5564
        %v5577 = vmul.f32 %v5537, %v5564
        %v5578 = vmul.f32 %v5538, %v5564
        %v5579 = vmul.f32 %v5539, %v5564
        %v5580 = vmul.f32 %v5540, %v5564
        %v5581 = vmul.f32 %v5541, %v5564
        %v5582 = vmul.f32 %v5542, %v5564
        %v5583 = vmul.f32 %v5543, %v5564
        %v5584 = vmul.f32 %v5544, %v5564
        %v5585 = vmul.f32 %v5545, %v5564
        %v5586 = vmul.f32 %v5546, %v5564
        %v5587 = vmul.f32 %v5547, %v5564
        %v5588 = vmul.f32 %v5548, %v5564
        %v5589 = vmul.f32 %v5549, %v5564
        %v5590 = vmul.f32 %v5550, %v5564
        %v5591 = vmul.f32 %v5551, %v5564
        %v5592 = vmul.f32 %v5552, %v5564
        %v5593 = vmul.f32 %v5553, %v5564
        %v5594 = vmul.f32 %v5554, %v5564
        %v5595 = vmul.f32 %v5555, %v5564
        %v5596 = vmul.f32 %v5556, %v5564
        %v5597 = vmul.f32 %v5557, %v5564
        %v5598 = vadd.f32 %v5494, %v5566
        %v5599 = vadd.f32 %v5495, %v5567
        %v5600 = vadd.f32 %v5496, %v5568
        %v5601 = vadd.f32 %v5497, %v5569
        %v5602 = vadd.f32 %v5498, %v5570
        %v5603 = vadd.f32 %v5499, %v5571
        %v5604 = vadd.f32 %v5500, %v5572
        %v5605 = vadd.f32 %v5501, %v5573
        %v5606 = vadd.f32 %v5502, %v5574
        %v5607 = vadd.f32 %v5503, %v5575
        %v5608 = vadd.f32 %v5504, %v5576
        %v5609 = vadd.f32 %v5505, %v5577
        %v5610 = vadd.f32 %v5506, %v5578
        %v5611 = vadd.f32 %v5507, %v5579
        %v5612 = vadd.f32 %v5508, %v5580
        %v5613 = vadd.f32 %v5509, %v5581
        %v5614 = vadd.f32 %v5510, %v5582
        %v5615 = vadd.f32 %v5511, %v5583
        %v5616 = vadd.f32 %v5512, %v5584
        %v5617 = vadd.f32 %v5513, %v5585
        %v5618 = vadd.f32 %v5514, %v5586
        %v5619 = vadd.f32 %v5515, %v5587
        %v5620 = vadd.f32 %v5516, %v5588
        %v5621 = vadd.f32 %v5517, %v5589
        %v5622 = vadd.f32 %v5518, %v5590
        %v5623 = vadd.f32 %v5519, %v5591
        %v5624 = vadd.f32 %v5520, %v5592
        %v5625 = vadd.f32 %v5521, %v5593
        %v5626 = vadd.f32 %v5522, %v5594
        %v5627 = vadd.f32 %v5523, %v5595
        %v5628 = vadd.f32 %v5524, %v5596
        %v5629 = vadd.f32 %v5525, %v5597
        %v5630 = vld [vmem:[%s4245 + $0x3] sm:$0xff]
        %v5631 = vld [vmem:[%s4245 + $0xb] sm:$0xff]
        %v5632 = vld [vmem:[%s4245 + $0x1b] sm:$0xff]
        %v5633 = vld [vmem:[%s4245 + $0x23] sm:$0xff]
        %v5634 = vld [vmem:[%s4245 + $0x33] sm:$0xff]
        %v5635 = vld [vmem:[%s4245 + $0x3b] sm:$0xff]
        %v5636 = vld [vmem:[%s4245 + $0x4b] sm:$0xff]
        %v5637 = vld [vmem:[%s4245 + $0x53] sm:$0xff]
        %v5638 = vld [vmem:[%s4245 + $0x63] sm:$0xff]
        %v5639 = vld [vmem:[%s4245 + $0x6b] sm:$0xff]
        %v5640 = vld [vmem:[%s4245 + $0x7b] sm:$0xff]
        %v5641 = vld [vmem:[%s4245 + $0x83] sm:$0xff]
        %v5642 = vld [vmem:[%s4245 + $0x93] sm:$0xff]
        %v5643 = vld [vmem:[%s4245 + $0x9b] sm:$0xff]
        %v5644 = vld [vmem:[%s4245 + $0xab] sm:$0xff]
        %v5645 = vld [vmem:[%s4245 + $0xb3] sm:$0xff]
        %v5646 = vld [vmem:[%s4245 + $0xc3] sm:$0xff]
        %v5647 = vld [vmem:[%s4245 + $0xcb] sm:$0xff]
        %v5648 = vld [vmem:[%s4245 + $0xdb] sm:$0xff]
        %v5649 = vld [vmem:[%s4245 + $0xe3] sm:$0xff]
        %v5650 = vld [vmem:[%s4245 + $0xf3] sm:$0xff]
        %v5651 = vld [vmem:[%s4245 + $0xfb] sm:$0xff]
        %v5652 = vld [vmem:[%s4245 + $0x10b] sm:$0xff]
        %v5653 = vld [vmem:[%s4245 + $0x113] sm:$0xff]
        %v5654 = vld [vmem:[%s4245 + $0x123] sm:$0xff]
        %v5655 = vld [vmem:[%s4245 + $0x12b] sm:$0xff]
        %v5656 = vld [vmem:[%s4245 + $0x13b] sm:$0xff]
        %v5657 = vld [vmem:[%s4245 + $0x143] sm:$0xff]
        %v5658 = vld [vmem:[%s4245 + $0x153] sm:$0xff]
        %v5659 = vld [vmem:[%s4245 + $0x15b] sm:$0xff]
        %v5660 = vld [vmem:[%s4245 + $0x16b] sm:$0xff]
        %v5661 = vld [vmem:[%s4245 + $0x173] sm:$0xff]
        %s5662 = scalar_lea.vmem %s5, 13
        %v5663 = vld [vmem:[%s5662] sm:$0x1]
        %v5665 = vlaneseq
        %v5666 = vshrl.u32 %v5665, 7
        %v5667 = vsub.s32 0, %v5666
        %v5668 = vrot.slane %v5663, %v5667
        %v5670 = vmul.f32 %v5630, %v5668
        %v5671 = vmul.f32 %v5631, %v5668
        %v5672 = vmul.f32 %v5632, %v5668
        %v5673 = vmul.f32 %v5633, %v5668
        %v5674 = vmul.f32 %v5634, %v5668
        %v5675 = vmul.f32 %v5635, %v5668
        %v5676 = vmul.f32 %v5636, %v5668
        %v5677 = vmul.f32 %v5637, %v5668
        %v5678 = vmul.f32 %v5638, %v5668
        %v5679 = vmul.f32 %v5639, %v5668
        %v5680 = vmul.f32 %v5640, %v5668
        %v5681 = vmul.f32 %v5641, %v5668
        %v5682 = vmul.f32 %v5642, %v5668
        %v5683 = vmul.f32 %v5643, %v5668
        %v5684 = vmul.f32 %v5644, %v5668
        %v5685 = vmul.f32 %v5645, %v5668
        %v5686 = vmul.f32 %v5646, %v5668
        %v5687 = vmul.f32 %v5647, %v5668
        %v5688 = vmul.f32 %v5648, %v5668
        %v5689 = vmul.f32 %v5649, %v5668
        %v5690 = vmul.f32 %v5650, %v5668
        %v5691 = vmul.f32 %v5651, %v5668
        %v5692 = vmul.f32 %v5652, %v5668
        %v5693 = vmul.f32 %v5653, %v5668
        %v5694 = vmul.f32 %v5654, %v5668
        %v5695 = vmul.f32 %v5655, %v5668
        %v5696 = vmul.f32 %v5656, %v5668
        %v5697 = vmul.f32 %v5657, %v5668
        %v5698 = vmul.f32 %v5658, %v5668
        %v5699 = vmul.f32 %v5659, %v5668
        %v5700 = vmul.f32 %v5660, %v5668
        %v5701 = vmul.f32 %v5661, %v5668
        %v5702 = vadd.f32 %v5598, %v5670
        %v5703 = vadd.f32 %v5599, %v5671
        %v5704 = vadd.f32 %v5600, %v5672
        %v5705 = vadd.f32 %v5601, %v5673
        %v5706 = vadd.f32 %v5602, %v5674
        %v5707 = vadd.f32 %v5603, %v5675
        %v5708 = vadd.f32 %v5604, %v5676
        %v5709 = vadd.f32 %v5605, %v5677
        %v5710 = vadd.f32 %v5606, %v5678
        %v5711 = vadd.f32 %v5607, %v5679
        %v5712 = vadd.f32 %v5608, %v5680
        %v5713 = vadd.f32 %v5609, %v5681
        %v5714 = vadd.f32 %v5610, %v5682
        %v5715 = vadd.f32 %v5611, %v5683
        %v5716 = vadd.f32 %v5612, %v5684
        %v5717 = vadd.f32 %v5613, %v5685
        %v5718 = vadd.f32 %v5614, %v5686
        %v5719 = vadd.f32 %v5615, %v5687
        %v5720 = vadd.f32 %v5616, %v5688
        %v5721 = vadd.f32 %v5617, %v5689
        %v5722 = vadd.f32 %v5618, %v5690
        %v5723 = vadd.f32 %v5619, %v5691
        %v5724 = vadd.f32 %v5620, %v5692
        %v5725 = vadd.f32 %v5621, %v5693
        %v5726 = vadd.f32 %v5622, %v5694
        %v5727 = vadd.f32 %v5623, %v5695
        %v5728 = vadd.f32 %v5624, %v5696
        %v5729 = vadd.f32 %v5625, %v5697
        %v5730 = vadd.f32 %v5626, %v5698
        %v5731 = vadd.f32 %v5627, %v5699
        %v5732 = vadd.f32 %v5628, %v5700
        %v5733 = vadd.f32 %v5629, %v5701
        %v5734 = vld [vmem:[%s4245 + $0x4] sm:$0xff]
        %v5735 = vld [vmem:[%s4245 + $0xc] sm:$0xff]
        %v5736 = vld [vmem:[%s4245 + $0x1c] sm:$0xff]
        %v5737 = vld [vmem:[%s4245 + $0x24] sm:$0xff]
        %v5738 = vld [vmem:[%s4245 + $0x34] sm:$0xff]
        %v5739 = vld [vmem:[%s4245 + $0x3c] sm:$0xff]
        %v5740 = vld [vmem:[%s4245 + $0x4c] sm:$0xff]
        %v5741 = vld [vmem:[%s4245 + $0x54] sm:$0xff]
        %v5742 = vld [vmem:[%s4245 + $0x64] sm:$0xff]
        %v5743 = vld [vmem:[%s4245 + $0x6c] sm:$0xff]
        %v5744 = vld [vmem:[%s4245 + $0x7c] sm:$0xff]
        %v5745 = vld [vmem:[%s4245 + $0x84] sm:$0xff]
        %v5746 = vld [vmem:[%s4245 + $0x94] sm:$0xff]
        %v5747 = vld [vmem:[%s4245 + $0x9c] sm:$0xff]
        %v5748 = vld [vmem:[%s4245 + $0xac] sm:$0xff]
        %v5749 = vld [vmem:[%s4245 + $0xb4] sm:$0xff]
        %v5750 = vld [vmem:[%s4245 + $0xc4] sm:$0xff]
        %v5751 = vld [vmem:[%s4245 + $0xcc] sm:$0xff]
        %v5752 = vld [vmem:[%s4245 + $0xdc] sm:$0xff]
        %v5753 = vld [vmem:[%s4245 + $0xe4] sm:$0xff]
        %v5754 = vld [vmem:[%s4245 + $0xf4] sm:$0xff]
        %v5755 = vld [vmem:[%s4245 + $0xfc] sm:$0xff]
        %v5756 = vld [vmem:[%s4245 + $0x10c] sm:$0xff]
        %v5757 = vld [vmem:[%s4245 + $0x114] sm:$0xff]
        %v5758 = vld [vmem:[%s4245 + $0x124] sm:$0xff]
        %v5759 = vld [vmem:[%s4245 + $0x12c] sm:$0xff]
        %v5760 = vld [vmem:[%s4245 + $0x13c] sm:$0xff]
        %v5761 = vld [vmem:[%s4245 + $0x144] sm:$0xff]
        %v5762 = vld [vmem:[%s4245 + $0x154] sm:$0xff]
        %v5763 = vld [vmem:[%s4245 + $0x15c] sm:$0xff]
        %v5764 = vld [vmem:[%s4245 + $0x16c] sm:$0xff]
        %v5765 = vld [vmem:[%s4245 + $0x174] sm:$0xff]
        %s5766 = scalar_lea.vmem %s5, 14
        %v5767 = vld [vmem:[%s5766] sm:$0x1]
        %v5769 = vlaneseq
        %v5770 = vshrl.u32 %v5769, 7
        %v5771 = vsub.s32 0, %v5770
        %v5772 = vrot.slane %v5767, %v5771
        %v5774 = vmul.f32 %v5734, %v5772
        %v5775 = vmul.f32 %v5735, %v5772
        %v5776 = vmul.f32 %v5736, %v5772
        %v5777 = vmul.f32 %v5737, %v5772
        %v5778 = vmul.f32 %v5738, %v5772
        %v5779 = vmul.f32 %v5739, %v5772
        %v5780 = vmul.f32 %v5740, %v5772
        %v5781 = vmul.f32 %v5741, %v5772
        %v5782 = vmul.f32 %v5742, %v5772
        %v5783 = vmul.f32 %v5743, %v5772
        %v5784 = vmul.f32 %v5744, %v5772
        %v5785 = vmul.f32 %v5745, %v5772
        %v5786 = vmul.f32 %v5746, %v5772
        %v5787 = vmul.f32 %v5747, %v5772
        %v5788 = vmul.f32 %v5748, %v5772
        %v5789 = vmul.f32 %v5749, %v5772
        %v5790 = vmul.f32 %v5750, %v5772
        %v5791 = vmul.f32 %v5751, %v5772
        %v5792 = vmul.f32 %v5752, %v5772
        %v5793 = vmul.f32 %v5753, %v5772
        %v5794 = vmul.f32 %v5754, %v5772
        %v5795 = vmul.f32 %v5755, %v5772
        %v5796 = vmul.f32 %v5756, %v5772
        %v5797 = vmul.f32 %v5757, %v5772
        %v5798 = vmul.f32 %v5758, %v5772
        %v5799 = vmul.f32 %v5759, %v5772
        %v5800 = vmul.f32 %v5760, %v5772
        %v5801 = vmul.f32 %v5761, %v5772
        %v5802 = vmul.f32 %v5762, %v5772
        %v5803 = vmul.f32 %v5763, %v5772
        %v5804 = vmul.f32 %v5764, %v5772
        %v5805 = vmul.f32 %v5765, %v5772
        %v5806 = vadd.f32 %v5702, %v5774
        %v5807 = vadd.f32 %v5703, %v5775
        %v5808 = vadd.f32 %v5704, %v5776
        %v5809 = vadd.f32 %v5705, %v5777
        %v5810 = vadd.f32 %v5706, %v5778
        %v5811 = vadd.f32 %v5707, %v5779
        %v5812 = vadd.f32 %v5708, %v5780
        %v5813 = vadd.f32 %v5709, %v5781
        %v5814 = vadd.f32 %v5710, %v5782
        %v5815 = vadd.f32 %v5711, %v5783
        %v5816 = vadd.f32 %v5712, %v5784
        %v5817 = vadd.f32 %v5713, %v5785
        %v5818 = vadd.f32 %v5714, %v5786
        %v5819 = vadd.f32 %v5715, %v5787
        %v5820 = vadd.f32 %v5716, %v5788
        %v5821 = vadd.f32 %v5717, %v5789
        %v5822 = vadd.f32 %v5718, %v5790
        %v5823 = vadd.f32 %v5719, %v5791
        %v5824 = vadd.f32 %v5720, %v5792
        %v5825 = vadd.f32 %v5721, %v5793
        %v5826 = vadd.f32 %v5722, %v5794
        %v5827 = vadd.f32 %v5723, %v5795
        %v5828 = vadd.f32 %v5724, %v5796
        %v5829 = vadd.f32 %v5725, %v5797
        %v5830 = vadd.f32 %v5726, %v5798
        %v5831 = vadd.f32 %v5727, %v5799
        %v5832 = vadd.f32 %v5728, %v5800
        %v5833 = vadd.f32 %v5729, %v5801
        %v5834 = vadd.f32 %v5730, %v5802
        %v5835 = vadd.f32 %v5731, %v5803
        %v5836 = vadd.f32 %v5732, %v5804
        %v5837 = vadd.f32 %v5733, %v5805
        %s5838 = scalar_lea.vmem [#allocation2], 72
        %v5839 = vld [vmem:[%s5838] sm:$0xff]
        %v5840 = vld [vmem:[%s5838 + $0x8] sm:$0xff]
        %v5841 = vld [vmem:[%s5838 + $0x18] sm:$0xff]
        %v5842 = vld [vmem:[%s5838 + $0x20] sm:$0xff]
        %v5843 = vld [vmem:[%s5838 + $0x30] sm:$0xff]
        %v5844 = vld [vmem:[%s5838 + $0x38] sm:$0xff]
        %v5845 = vld [vmem:[%s5838 + $0x48] sm:$0xff]
        %v5846 = vld [vmem:[%s5838 + $0x50] sm:$0xff]
        %v5847 = vld [vmem:[%s5838 + $0x60] sm:$0xff]
        %v5848 = vld [vmem:[%s5838 + $0x68] sm:$0xff]
        %v5849 = vld [vmem:[%s5838 + $0x78] sm:$0xff]
        %v5850 = vld [vmem:[%s5838 + $0x80] sm:$0xff]
        %v5851 = vld [vmem:[%s5838 + $0x90] sm:$0xff]
        %v5852 = vld [vmem:[%s5838 + $0x98] sm:$0xff]
        %v5853 = vld [vmem:[%s5838 + $0xa8] sm:$0xff]
        %v5854 = vld [vmem:[%s5838 + $0xb0] sm:$0xff]
        %v5855 = vld [vmem:[%s5838 + $0xc0] sm:$0xff]
        %v5856 = vld [vmem:[%s5838 + $0xc8] sm:$0xff]
        %v5857 = vld [vmem:[%s5838 + $0xd8] sm:$0xff]
        %v5858 = vld [vmem:[%s5838 + $0xe0] sm:$0xff]
        %v5859 = vld [vmem:[%s5838 + $0xf0] sm:$0xff]
        %v5860 = vld [vmem:[%s5838 + $0xf8] sm:$0xff]
        %v5861 = vld [vmem:[%s5838 + $0x108] sm:$0xff]
        %v5862 = vld [vmem:[%s5838 + $0x110] sm:$0xff]
        %v5863 = vld [vmem:[%s5838 + $0x120] sm:$0xff]
        %v5864 = vld [vmem:[%s5838 + $0x128] sm:$0xff]
        %v5865 = vld [vmem:[%s5838 + $0x138] sm:$0xff]
        %v5866 = vld [vmem:[%s5838 + $0x140] sm:$0xff]
        %v5867 = vld [vmem:[%s5838 + $0x150] sm:$0xff]
        %v5868 = vld [vmem:[%s5838 + $0x158] sm:$0xff]
        %v5869 = vld [vmem:[%s5838 + $0x168] sm:$0xff]
        %v5870 = vld [vmem:[%s5838 + $0x170] sm:$0xff]
        %s5871 = scalar_lea.vmem %s5, 15
        %v5872 = vld [vmem:[%s5871] sm:$0x1]
        %v5874 = vlaneseq
        %v5875 = vshrl.u32 %v5874, 7
        %v5876 = vsub.s32 0, %v5875
        %v5877 = vrot.slane %v5872, %v5876
        %v5879 = vmul.f32 %v5839, %v5877
        %v5880 = vmul.f32 %v5840, %v5877
        %v5881 = vmul.f32 %v5841, %v5877
        %v5882 = vmul.f32 %v5842, %v5877
        %v5883 = vmul.f32 %v5843, %v5877
        %v5884 = vmul.f32 %v5844, %v5877
        %v5885 = vmul.f32 %v5845, %v5877
        %v5886 = vmul.f32 %v5846, %v5877
        %v5887 = vmul.f32 %v5847, %v5877
        %v5888 = vmul.f32 %v5848, %v5877
        %v5889 = vmul.f32 %v5849, %v5877
        %v5890 = vmul.f32 %v5850, %v5877
        %v5891 = vmul.f32 %v5851, %v5877
        %v5892 = vmul.f32 %v5852, %v5877
        %v5893 = vmul.f32 %v5853, %v5877
        %v5894 = vmul.f32 %v5854, %v5877
        %v5895 = vmul.f32 %v5855, %v5877
        %v5896 = vmul.f32 %v5856, %v5877
        %v5897 = vmul.f32 %v5857, %v5877
        %v5898 = vmul.f32 %v5858, %v5877
        %v5899 = vmul.f32 %v5859, %v5877
        %v5900 = vmul.f32 %v5860, %v5877
        %v5901 = vmul.f32 %v5861, %v5877
        %v5902 = vmul.f32 %v5862, %v5877
        %v5903 = vmul.f32 %v5863, %v5877
        %v5904 = vmul.f32 %v5864, %v5877
        %v5905 = vmul.f32 %v5865, %v5877
        %v5906 = vmul.f32 %v5866, %v5877
        %v5907 = vmul.f32 %v5867, %v5877
        %v5908 = vmul.f32 %v5868, %v5877
        %v5909 = vmul.f32 %v5869, %v5877
        %v5910 = vmul.f32 %v5870, %v5877
        %v5911 = vadd.f32 %v5806, %v5879
        %v5912 = vadd.f32 %v5807, %v5880
        %v5913 = vadd.f32 %v5808, %v5881
        %v5914 = vadd.f32 %v5809, %v5882
        %v5915 = vadd.f32 %v5810, %v5883
        %v5916 = vadd.f32 %v5811, %v5884
        %v5917 = vadd.f32 %v5812, %v5885
        %v5918 = vadd.f32 %v5813, %v5886
        %v5919 = vadd.f32 %v5814, %v5887
        %v5920 = vadd.f32 %v5815, %v5888
        %v5921 = vadd.f32 %v5816, %v5889
        %v5922 = vadd.f32 %v5817, %v5890
        %v5923 = vadd.f32 %v5818, %v5891
        %v5924 = vadd.f32 %v5819, %v5892
        %v5925 = vadd.f32 %v5820, %v5893
        %v5926 = vadd.f32 %v5821, %v5894
        %v5927 = vadd.f32 %v5822, %v5895
        %v5928 = vadd.f32 %v5823, %v5896
        %v5929 = vadd.f32 %v5824, %v5897
        %v5930 = vadd.f32 %v5825, %v5898
        %v5931 = vadd.f32 %v5826, %v5899
        %v5932 = vadd.f32 %v5827, %v5900
        %v5933 = vadd.f32 %v5828, %v5901
        %v5934 = vadd.f32 %v5829, %v5902
        %v5935 = vadd.f32 %v5830, %v5903
        %v5936 = vadd.f32 %v5831, %v5904
        %v5937 = vadd.f32 %v5832, %v5905
        %v5938 = vadd.f32 %v5833, %v5906
        %v5939 = vadd.f32 %v5834, %v5907
        %v5940 = vadd.f32 %v5835, %v5908
        %v5941 = vadd.f32 %v5836, %v5909
        %v5942 = vadd.f32 %v5837, %v5910
        %v5943 = vld [vmem:[%s5838 + $0x1] sm:$0xff]
        %v5944 = vld [vmem:[%s5838 + $0x9] sm:$0xff]
        %v5945 = vld [vmem:[%s5838 + $0x19] sm:$0xff]
        %v5946 = vld [vmem:[%s5838 + $0x21] sm:$0xff]
        %v5947 = vld [vmem:[%s5838 + $0x31] sm:$0xff]
        %v5948 = vld [vmem:[%s5838 + $0x39] sm:$0xff]
        %v5949 = vld [vmem:[%s5838 + $0x49] sm:$0xff]
        %v5950 = vld [vmem:[%s5838 + $0x51] sm:$0xff]
        %v5951 = vld [vmem:[%s5838 + $0x61] sm:$0xff]
        %v5952 = vld [vmem:[%s5838 + $0x69] sm:$0xff]
        %v5953 = vld [vmem:[%s5838 + $0x79] sm:$0xff]
        %v5954 = vld [vmem:[%s5838 + $0x81] sm:$0xff]
        %v5955 = vld [vmem:[%s5838 + $0x91] sm:$0xff]
        %v5956 = vld [vmem:[%s5838 + $0x99] sm:$0xff]
        %v5957 = vld [vmem:[%s5838 + $0xa9] sm:$0xff]
        %v5958 = vld [vmem:[%s5838 + $0xb1] sm:$0xff]
        %v5959 = vld [vmem:[%s5838 + $0xc1] sm:$0xff]
        %v5960 = vld [vmem:[%s5838 + $0xc9] sm:$0xff]
        %v5961 = vld [vmem:[%s5838 + $0xd9] sm:$0xff]
        %v5962 = vld [vmem:[%s5838 + $0xe1] sm:$0xff]
        %v5963 = vld [vmem:[%s5838 + $0xf1] sm:$0xff]
        %v5964 = vld [vmem:[%s5838 + $0xf9] sm:$0xff]
        %v5965 = vld [vmem:[%s5838 + $0x109] sm:$0xff]
        %v5966 = vld [vmem:[%s5838 + $0x111] sm:$0xff]
        %v5967 = vld [vmem:[%s5838 + $0x121] sm:$0xff]
        %v5968 = vld [vmem:[%s5838 + $0x129] sm:$0xff]
        %v5969 = vld [vmem:[%s5838 + $0x139] sm:$0xff]
        %v5970 = vld [vmem:[%s5838 + $0x141] sm:$0xff]
        %v5971 = vld [vmem:[%s5838 + $0x151] sm:$0xff]
        %v5972 = vld [vmem:[%s5838 + $0x159] sm:$0xff]
        %v5973 = vld [vmem:[%s5838 + $0x169] sm:$0xff]
        %v5974 = vld [vmem:[%s5838 + $0x171] sm:$0xff]
        %s5975 = scalar_lea.vmem %s5, 16
        %v5976 = vld [vmem:[%s5975] sm:$0x1]
        %v5978 = vlaneseq
        %v5979 = vshrl.u32 %v5978, 7
        %v5980 = vsub.s32 0, %v5979
        %v5981 = vrot.slane %v5976, %v5980
        %v5983 = vmul.f32 %v5943, %v5981
        %v5984 = vmul.f32 %v5944, %v5981
        %v5985 = vmul.f32 %v5945, %v5981
        %v5986 = vmul.f32 %v5946, %v5981
        %v5987 = vmul.f32 %v5947, %v5981
        %v5988 = vmul.f32 %v5948, %v5981
        %v5989 = vmul.f32 %v5949, %v5981
        %v5990 = vmul.f32 %v5950, %v5981
        %v5991 = vmul.f32 %v5951, %v5981
        %v5992 = vmul.f32 %v5952, %v5981
        %v5993 = vmul.f32 %v5953, %v5981
        %v5994 = vmul.f32 %v5954, %v5981
        %v5995 = vmul.f32 %v5955, %v5981
        %v5996 = vmul.f32 %v5956, %v5981
        %v5997 = vmul.f32 %v5957, %v5981
        %v5998 = vmul.f32 %v5958, %v5981
        %v5999 = vmul.f32 %v5959, %v5981
        %v6000 = vmul.f32 %v5960, %v5981
        %v6001 = vmul.f32 %v5961, %v5981
        %v6002 = vmul.f32 %v5962, %v5981
        %v6003 = vmul.f32 %v5963, %v5981
        %v6004 = vmul.f32 %v5964, %v5981
        %v6005 = vmul.f32 %v5965, %v5981
        %v6006 = vmul.f32 %v5966, %v5981
        %v6007 = vmul.f32 %v5967, %v5981
        %v6008 = vmul.f32 %v5968, %v5981
        %v6009 = vmul.f32 %v5969, %v5981
        %v6010 = vmul.f32 %v5970, %v5981
        %v6011 = vmul.f32 %v5971, %v5981
        %v6012 = vmul.f32 %v5972, %v5981
        %v6013 = vmul.f32 %v5973, %v5981
        %v6014 = vmul.f32 %v5974, %v5981
        %v6015 = vadd.f32 %v5911, %v5983
        %v6016 = vadd.f32 %v5912, %v5984
        %v6017 = vadd.f32 %v5913, %v5985
        %v6018 = vadd.f32 %v5914, %v5986
        %v6019 = vadd.f32 %v5915, %v5987
        %v6020 = vadd.f32 %v5916, %v5988
        %v6021 = vadd.f32 %v5917, %v5989
        %v6022 = vadd.f32 %v5918, %v5990
        %v6023 = vadd.f32 %v5919, %v5991
        %v6024 = vadd.f32 %v5920, %v5992
        %v6025 = vadd.f32 %v5921, %v5993
        %v6026 = vadd.f32 %v5922, %v5994
        %v6027 = vadd.f32 %v5923, %v5995
        %v6028 = vadd.f32 %v5924, %v5996
        %v6029 = vadd.f32 %v5925, %v5997
        %v6030 = vadd.f32 %v5926, %v5998
        %v6031 = vadd.f32 %v5927, %v5999
        %v6032 = vadd.f32 %v5928, %v6000
        %v6033 = vadd.f32 %v5929, %v6001
        %v6034 = vadd.f32 %v5930, %v6002
        %v6035 = vadd.f32 %v5931, %v6003
        %v6036 = vadd.f32 %v5932, %v6004
        %v6037 = vadd.f32 %v5933, %v6005
        %v6038 = vadd.f32 %v5934, %v6006
        %v6039 = vadd.f32 %v5935, %v6007
        %v6040 = vadd.f32 %v5936, %v6008
        %v6041 = vadd.f32 %v5937, %v6009
        %v6042 = vadd.f32 %v5938, %v6010
        %v6043 = vadd.f32 %v5939, %v6011
        %v6044 = vadd.f32 %v5940, %v6012
        %v6045 = vadd.f32 %v5941, %v6013
        %v6046 = vadd.f32 %v5942, %v6014
        %v6047 = vld [vmem:[%s5838 + $0x2] sm:$0xff]
        %v6048 = vld [vmem:[%s5838 + $0xa] sm:$0xff]
        %v6049 = vld [vmem:[%s5838 + $0x1a] sm:$0xff]
        %v6050 = vld [vmem:[%s5838 + $0x22] sm:$0xff]
        %v6051 = vld [vmem:[%s5838 + $0x32] sm:$0xff]
        %v6052 = vld [vmem:[%s5838 + $0x3a] sm:$0xff]
        %v6053 = vld [vmem:[%s5838 + $0x4a] sm:$0xff]
        %v6054 = vld [vmem:[%s5838 + $0x52] sm:$0xff]
        %v6055 = vld [vmem:[%s5838 + $0x62] sm:$0xff]
        %v6056 = vld [vmem:[%s5838 + $0x6a] sm:$0xff]
        %v6057 = vld [vmem:[%s5838 + $0x7a] sm:$0xff]
        %v6058 = vld [vmem:[%s5838 + $0x82] sm:$0xff]
        %v6059 = vld [vmem:[%s5838 + $0x92] sm:$0xff]
        %v6060 = vld [vmem:[%s5838 + $0x9a] sm:$0xff]
        %v6061 = vld [vmem:[%s5838 + $0xaa] sm:$0xff]
        %v6062 = vld [vmem:[%s5838 + $0xb2] sm:$0xff]
        %v6063 = vld [vmem:[%s5838 + $0xc2] sm:$0xff]
        %v6064 = vld [vmem:[%s5838 + $0xca] sm:$0xff]
        %v6065 = vld [vmem:[%s5838 + $0xda] sm:$0xff]
        %v6066 = vld [vmem:[%s5838 + $0xe2] sm:$0xff]
        %v6067 = vld [vmem:[%s5838 + $0xf2] sm:$0xff]
        %v6068 = vld [vmem:[%s5838 + $0xfa] sm:$0xff]
        %v6069 = vld [vmem:[%s5838 + $0x10a] sm:$0xff]
        %v6070 = vld [vmem:[%s5838 + $0x112] sm:$0xff]
        %v6071 = vld [vmem:[%s5838 + $0x122] sm:$0xff]
        %v6072 = vld [vmem:[%s5838 + $0x12a] sm:$0xff]
        %v6073 = vld [vmem:[%s5838 + $0x13a] sm:$0xff]
        %v6074 = vld [vmem:[%s5838 + $0x142] sm:$0xff]
        %v6075 = vld [vmem:[%s5838 + $0x152] sm:$0xff]
        %v6076 = vld [vmem:[%s5838 + $0x15a] sm:$0xff]
        %v6077 = vld [vmem:[%s5838 + $0x16a] sm:$0xff]
        %v6078 = vld [vmem:[%s5838 + $0x172] sm:$0xff]
        %s6079 = scalar_lea.vmem %s5, 17
        %v6080 = vld [vmem:[%s6079] sm:$0x1]
        %v6082 = vlaneseq
        %v6083 = vshrl.u32 %v6082, 7
        %v6084 = vsub.s32 0, %v6083
        %v6085 = vrot.slane %v6080, %v6084
        %v6087 = vmul.f32 %v6047, %v6085
        %v6088 = vmul.f32 %v6048, %v6085
        %v6089 = vmul.f32 %v6049, %v6085
        %v6090 = vmul.f32 %v6050, %v6085
        %v6091 = vmul.f32 %v6051, %v6085
        %v6092 = vmul.f32 %v6052, %v6085
        %v6093 = vmul.f32 %v6053, %v6085
        %v6094 = vmul.f32 %v6054, %v6085
        %v6095 = vmul.f32 %v6055, %v6085
        %v6096 = vmul.f32 %v6056, %v6085
        %v6097 = vmul.f32 %v6057, %v6085
        %v6098 = vmul.f32 %v6058, %v6085
        %v6099 = vmul.f32 %v6059, %v6085
        %v6100 = vmul.f32 %v6060, %v6085
        %v6101 = vmul.f32 %v6061, %v6085
        %v6102 = vmul.f32 %v6062, %v6085
        %v6103 = vmul.f32 %v6063, %v6085
        %v6104 = vmul.f32 %v6064, %v6085
        %v6105 = vmul.f32 %v6065, %v6085
        %v6106 = vmul.f32 %v6066, %v6085
        %v6107 = vmul.f32 %v6067, %v6085
        %v6108 = vmul.f32 %v6068, %v6085
        %v6109 = vmul.f32 %v6069, %v6085
        %v6110 = vmul.f32 %v6070, %v6085
        %v6111 = vmul.f32 %v6071, %v6085
        %v6112 = vmul.f32 %v6072, %v6085
        %v6113 = vmul.f32 %v6073, %v6085
        %v6114 = vmul.f32 %v6074, %v6085
        %v6115 = vmul.f32 %v6075, %v6085
        %v6116 = vmul.f32 %v6076, %v6085
        %v6117 = vmul.f32 %v6077, %v6085
        %v6118 = vmul.f32 %v6078, %v6085
        %v6119 = vadd.f32 %v6015, %v6087
        %v6120 = vadd.f32 %v6016, %v6088
        %v6121 = vadd.f32 %v6017, %v6089
        %v6122 = vadd.f32 %v6018, %v6090
        %v6123 = vadd.f32 %v6019, %v6091
        %v6124 = vadd.f32 %v6020, %v6092
        %v6125 = vadd.f32 %v6021, %v6093
        %v6126 = vadd.f32 %v6022, %v6094
        %v6127 = vadd.f32 %v6023, %v6095
        %v6128 = vadd.f32 %v6024, %v6096
        %v6129 = vadd.f32 %v6025, %v6097
        %v6130 = vadd.f32 %v6026, %v6098
        %v6131 = vadd.f32 %v6027, %v6099
        %v6132 = vadd.f32 %v6028, %v6100
        %v6133 = vadd.f32 %v6029, %v6101
        %v6134 = vadd.f32 %v6030, %v6102
        %v6135 = vadd.f32 %v6031, %v6103
        %v6136 = vadd.f32 %v6032, %v6104
        %v6137 = vadd.f32 %v6033, %v6105
        %v6138 = vadd.f32 %v6034, %v6106
        %v6139 = vadd.f32 %v6035, %v6107
        %v6140 = vadd.f32 %v6036, %v6108
        %v6141 = vadd.f32 %v6037, %v6109
        %v6142 = vadd.f32 %v6038, %v6110
        %v6143 = vadd.f32 %v6039, %v6111
        %v6144 = vadd.f32 %v6040, %v6112
        %v6145 = vadd.f32 %v6041, %v6113
        %v6146 = vadd.f32 %v6042, %v6114
        %v6147 = vadd.f32 %v6043, %v6115
        %v6148 = vadd.f32 %v6044, %v6116
        %v6149 = vadd.f32 %v6045, %v6117
        %v6150 = vadd.f32 %v6046, %v6118
        %v6151 = vld [vmem:[%s5838 + $0x3] sm:$0xff]
        %v6152 = vld [vmem:[%s5838 + $0xb] sm:$0xff]
        %v6153 = vld [vmem:[%s5838 + $0x1b] sm:$0xff]
        %v6154 = vld [vmem:[%s5838 + $0x23] sm:$0xff]
        %v6155 = vld [vmem:[%s5838 + $0x33] sm:$0xff]
        %v6156 = vld [vmem:[%s5838 + $0x3b] sm:$0xff]
        %v6157 = vld [vmem:[%s5838 + $0x4b] sm:$0xff]
        %v6158 = vld [vmem:[%s5838 + $0x53] sm:$0xff]
        %v6159 = vld [vmem:[%s5838 + $0x63] sm:$0xff]
        %v6160 = vld [vmem:[%s5838 + $0x6b] sm:$0xff]
        %v6161 = vld [vmem:[%s5838 + $0x7b] sm:$0xff]
        %v6162 = vld [vmem:[%s5838 + $0x83] sm:$0xff]
        %v6163 = vld [vmem:[%s5838 + $0x93] sm:$0xff]
        %v6164 = vld [vmem:[%s5838 + $0x9b] sm:$0xff]
        %v6165 = vld [vmem:[%s5838 + $0xab] sm:$0xff]
        %v6166 = vld [vmem:[%s5838 + $0xb3] sm:$0xff]
        %v6167 = vld [vmem:[%s5838 + $0xc3] sm:$0xff]
        %v6168 = vld [vmem:[%s5838 + $0xcb] sm:$0xff]
        %v6169 = vld [vmem:[%s5838 + $0xdb] sm:$0xff]
        %v6170 = vld [vmem:[%s5838 + $0xe3] sm:$0xff]
        %v6171 = vld [vmem:[%s5838 + $0xf3] sm:$0xff]
        %v6172 = vld [vmem:[%s5838 + $0xfb] sm:$0xff]
        %v6173 = vld [vmem:[%s5838 + $0x10b] sm:$0xff]
        %v6174 = vld [vmem:[%s5838 + $0x113] sm:$0xff]
        %v6175 = vld [vmem:[%s5838 + $0x123] sm:$0xff]
        %v6176 = vld [vmem:[%s5838 + $0x12b] sm:$0xff]
        %v6177 = vld [vmem:[%s5838 + $0x13b] sm:$0xff]
        %v6178 = vld [vmem:[%s5838 + $0x143] sm:$0xff]
        %v6179 = vld [vmem:[%s5838 + $0x153] sm:$0xff]
        %v6180 = vld [vmem:[%s5838 + $0x15b] sm:$0xff]
        %v6181 = vld [vmem:[%s5838 + $0x16b] sm:$0xff]
        %v6182 = vld [vmem:[%s5838 + $0x173] sm:$0xff]
        %s6183 = scalar_lea.vmem %s5, 18
        %v6184 = vld [vmem:[%s6183] sm:$0x1]
        %v6186 = vlaneseq
        %v6187 = vshrl.u32 %v6186, 7
        %v6188 = vsub.s32 0, %v6187
        %v6189 = vrot.slane %v6184, %v6188
        %v6191 = vmul.f32 %v6151, %v6189
        %v6192 = vmul.f32 %v6152, %v6189
        %v6193 = vmul.f32 %v6153, %v6189
        %v6194 = vmul.f32 %v6154, %v6189
        %v6195 = vmul.f32 %v6155, %v6189
        %v6196 = vmul.f32 %v6156, %v6189
        %v6197 = vmul.f32 %v6157, %v6189
        %v6198 = vmul.f32 %v6158, %v6189
        %v6199 = vmul.f32 %v6159, %v6189
        %v6200 = vmul.f32 %v6160, %v6189
        %v6201 = vmul.f32 %v6161, %v6189
        %v6202 = vmul.f32 %v6162, %v6189
        %v6203 = vmul.f32 %v6163, %v6189
        %v6204 = vmul.f32 %v6164, %v6189
        %v6205 = vmul.f32 %v6165, %v6189
        %v6206 = vmul.f32 %v6166, %v6189
        %v6207 = vmul.f32 %v6167, %v6189
        %v6208 = vmul.f32 %v6168, %v6189
        %v6209 = vmul.f32 %v6169, %v6189
        %v6210 = vmul.f32 %v6170, %v6189
        %v6211 = vmul.f32 %v6171, %v6189
        %v6212 = vmul.f32 %v6172, %v6189
        %v6213 = vmul.f32 %v6173, %v6189
        %v6214 = vmul.f32 %v6174, %v6189
        %v6215 = vmul.f32 %v6175, %v6189
        %v6216 = vmul.f32 %v6176, %v6189
        %v6217 = vmul.f32 %v6177, %v6189
        %v6218 = vmul.f32 %v6178, %v6189
        %v6219 = vmul.f32 %v6179, %v6189
        %v6220 = vmul.f32 %v6180, %v6189
        %v6221 = vmul.f32 %v6181, %v6189
        %v6222 = vmul.f32 %v6182, %v6189
        %v6223 = vadd.f32 %v6119, %v6191
        %v6224 = vadd.f32 %v6120, %v6192
        %v6225 = vadd.f32 %v6121, %v6193
        %v6226 = vadd.f32 %v6122, %v6194
        %v6227 = vadd.f32 %v6123, %v6195
        %v6228 = vadd.f32 %v6124, %v6196
        %v6229 = vadd.f32 %v6125, %v6197
        %v6230 = vadd.f32 %v6126, %v6198
        %v6231 = vadd.f32 %v6127, %v6199
        %v6232 = vadd.f32 %v6128, %v6200
        %v6233 = vadd.f32 %v6129, %v6201
        %v6234 = vadd.f32 %v6130, %v6202
        %v6235 = vadd.f32 %v6131, %v6203
        %v6236 = vadd.f32 %v6132, %v6204
        %v6237 = vadd.f32 %v6133, %v6205
        %v6238 = vadd.f32 %v6134, %v6206
        %v6239 = vadd.f32 %v6135, %v6207
        %v6240 = vadd.f32 %v6136, %v6208
        %v6241 = vadd.f32 %v6137, %v6209
        %v6242 = vadd.f32 %v6138, %v6210
        %v6243 = vadd.f32 %v6139, %v6211
        %v6244 = vadd.f32 %v6140, %v6212
        %v6245 = vadd.f32 %v6141, %v6213
        %v6246 = vadd.f32 %v6142, %v6214
        %v6247 = vadd.f32 %v6143, %v6215
        %v6248 = vadd.f32 %v6144, %v6216
        %v6249 = vadd.f32 %v6145, %v6217
        %v6250 = vadd.f32 %v6146, %v6218
        %v6251 = vadd.f32 %v6147, %v6219
        %v6252 = vadd.f32 %v6148, %v6220
        %v6253 = vadd.f32 %v6149, %v6221
        %v6254 = vadd.f32 %v6150, %v6222
        %v6255 = vld [vmem:[%s5838 + $0x4] sm:$0xff]
        %v6256 = vld [vmem:[%s5838 + $0xc] sm:$0xff]
        %v6257 = vld [vmem:[%s5838 + $0x1c] sm:$0xff]
        %v6258 = vld [vmem:[%s5838 + $0x24] sm:$0xff]
        %v6259 = vld [vmem:[%s5838 + $0x34] sm:$0xff]
        %v6260 = vld [vmem:[%s5838 + $0x3c] sm:$0xff]
        %v6261 = vld [vmem:[%s5838 + $0x4c] sm:$0xff]
        %v6262 = vld [vmem:[%s5838 + $0x54] sm:$0xff]
        %v6263 = vld [vmem:[%s5838 + $0x64] sm:$0xff]
        %v6264 = vld [vmem:[%s5838 + $0x6c] sm:$0xff]
        %v6265 = vld [vmem:[%s5838 + $0x7c] sm:$0xff]
        %v6266 = vld [vmem:[%s5838 + $0x84] sm:$0xff]
        %v6267 = vld [vmem:[%s5838 + $0x94] sm:$0xff]
        %v6268 = vld [vmem:[%s5838 + $0x9c] sm:$0xff]
        %v6269 = vld [vmem:[%s5838 + $0xac] sm:$0xff]
        %v6270 = vld [vmem:[%s5838 + $0xb4] sm:$0xff]
        %v6271 = vld [vmem:[%s5838 + $0xc4] sm:$0xff]
        %v6272 = vld [vmem:[%s5838 + $0xcc] sm:$0xff]
        %v6273 = vld [vmem:[%s5838 + $0xdc] sm:$0xff]
        %v6274 = vld [vmem:[%s5838 + $0xe4] sm:$0xff]
        %v6275 = vld [vmem:[%s5838 + $0xf4] sm:$0xff]
        %v6276 = vld [vmem:[%s5838 + $0xfc] sm:$0xff]
        %v6277 = vld [vmem:[%s5838 + $0x10c] sm:$0xff]
        %v6278 = vld [vmem:[%s5838 + $0x114] sm:$0xff]
        %v6279 = vld [vmem:[%s5838 + $0x124] sm:$0xff]
        %v6280 = vld [vmem:[%s5838 + $0x12c] sm:$0xff]
        %v6281 = vld [vmem:[%s5838 + $0x13c] sm:$0xff]
        %v6282 = vld [vmem:[%s5838 + $0x144] sm:$0xff]
        %v6283 = vld [vmem:[%s5838 + $0x154] sm:$0xff]
        %v6284 = vld [vmem:[%s5838 + $0x15c] sm:$0xff]
        %v6285 = vld [vmem:[%s5838 + $0x16c] sm:$0xff]
        %v6286 = vld [vmem:[%s5838 + $0x174] sm:$0xff]
        %s6287 = scalar_lea.vmem %s5, 19
        %v6288 = vld [vmem:[%s6287] sm:$0x1]
        %v6290 = vlaneseq
        %v6291 = vshrl.u32 %v6290, 7
        %v6292 = vsub.s32 0, %v6291
        %v6293 = vrot.slane %v6288, %v6292
        %v6295 = vmul.f32 %v6255, %v6293
        %v6296 = vmul.f32 %v6256, %v6293
        %v6297 = vmul.f32 %v6257, %v6293
        %v6298 = vmul.f32 %v6258, %v6293
        %v6299 = vmul.f32 %v6259, %v6293
        %v6300 = vmul.f32 %v6260, %v6293
        %v6301 = vmul.f32 %v6261, %v6293
        %v6302 = vmul.f32 %v6262, %v6293
        %v6303 = vmul.f32 %v6263, %v6293
        %v6304 = vmul.f32 %v6264, %v6293
        %v6305 = vmul.f32 %v6265, %v6293
        %v6306 = vmul.f32 %v6266, %v6293
        %v6307 = vmul.f32 %v6267, %v6293
        %v6308 = vmul.f32 %v6268, %v6293
        %v6309 = vmul.f32 %v6269, %v6293
        %v6310 = vmul.f32 %v6270, %v6293
        %v6311 = vmul.f32 %v6271, %v6293
        %v6312 = vmul.f32 %v6272, %v6293
        %v6313 = vmul.f32 %v6273, %v6293
        %v6314 = vmul.f32 %v6274, %v6293
        %v6315 = vmul.f32 %v6275, %v6293
        %v6316 = vmul.f32 %v6276, %v6293
        %v6317 = vmul.f32 %v6277, %v6293
        %v6318 = vmul.f32 %v6278, %v6293
        %v6319 = vmul.f32 %v6279, %v6293
        %v6320 = vmul.f32 %v6280, %v6293
        %v6321 = vmul.f32 %v6281, %v6293
        %v6322 = vmul.f32 %v6282, %v6293
        %v6323 = vmul.f32 %v6283, %v6293
        %v6324 = vmul.f32 %v6284, %v6293
        %v6325 = vmul.f32 %v6285, %v6293
        %v6326 = vmul.f32 %v6286, %v6293
        %v6327 = vadd.f32 %v6223, %v6295
        %v6328 = vadd.f32 %v6224, %v6296
        %v6329 = vadd.f32 %v6225, %v6297
        %v6330 = vadd.f32 %v6226, %v6298
        %v6331 = vadd.f32 %v6227, %v6299
        %v6332 = vadd.f32 %v6228, %v6300
        %v6333 = vadd.f32 %v6229, %v6301
        %v6334 = vadd.f32 %v6230, %v6302
        %v6335 = vadd.f32 %v6231, %v6303
        %v6336 = vadd.f32 %v6232, %v6304
        %v6337 = vadd.f32 %v6233, %v6305
        %v6338 = vadd.f32 %v6234, %v6306
        %v6339 = vadd.f32 %v6235, %v6307
        %v6340 = vadd.f32 %v6236, %v6308
        %v6341 = vadd.f32 %v6237, %v6309
        %v6342 = vadd.f32 %v6238, %v6310
        %v6343 = vadd.f32 %v6239, %v6311
        %v6344 = vadd.f32 %v6240, %v6312
        %v6345 = vadd.f32 %v6241, %v6313
        %v6346 = vadd.f32 %v6242, %v6314
        %v6347 = vadd.f32 %v6243, %v6315
        %v6348 = vadd.f32 %v6244, %v6316
        %v6349 = vadd.f32 %v6245, %v6317
        %v6350 = vadd.f32 %v6246, %v6318
        %v6351 = vadd.f32 %v6247, %v6319
        %v6352 = vadd.f32 %v6248, %v6320
        %v6353 = vadd.f32 %v6249, %v6321
        %v6354 = vadd.f32 %v6250, %v6322
        %v6355 = vadd.f32 %v6251, %v6323
        %v6356 = vadd.f32 %v6252, %v6324
        %v6357 = vadd.f32 %v6253, %v6325
        %v6358 = vadd.f32 %v6254, %v6326
        %s6359 = scalar_lea.vmem [#allocation2], 96
        %v6360 = vld [vmem:[%s6359] sm:$0xff]
        %v6361 = vld [vmem:[%s6359 + $0x8] sm:$0xff]
        %v6362 = vld [vmem:[%s6359 + $0x18] sm:$0xff]
        %v6363 = vld [vmem:[%s6359 + $0x20] sm:$0xff]
        %v6364 = vld [vmem:[%s6359 + $0x30] sm:$0xff]
        %v6365 = vld [vmem:[%s6359 + $0x38] sm:$0xff]
        %v6366 = vld [vmem:[%s6359 + $0x48] sm:$0xff]
        %v6367 = vld [vmem:[%s6359 + $0x50] sm:$0xff]
        %v6368 = vld [vmem:[%s6359 + $0x60] sm:$0xff]
        %v6369 = vld [vmem:[%s6359 + $0x68] sm:$0xff]
        %v6370 = vld [vmem:[%s6359 + $0x78] sm:$0xff]
        %v6371 = vld [vmem:[%s6359 + $0x80] sm:$0xff]
        %v6372 = vld [vmem:[%s6359 + $0x90] sm:$0xff]
        %v6373 = vld [vmem:[%s6359 + $0x98] sm:$0xff]
        %v6374 = vld [vmem:[%s6359 + $0xa8] sm:$0xff]
        %v6375 = vld [vmem:[%s6359 + $0xb0] sm:$0xff]
        %v6376 = vld [vmem:[%s6359 + $0xc0] sm:$0xff]
        %v6377 = vld [vmem:[%s6359 + $0xc8] sm:$0xff]
        %v6378 = vld [vmem:[%s6359 + $0xd8] sm:$0xff]
        %v6379 = vld [vmem:[%s6359 + $0xe0] sm:$0xff]
        %v6380 = vld [vmem:[%s6359 + $0xf0] sm:$0xff]
        %v6381 = vld [vmem:[%s6359 + $0xf8] sm:$0xff]
        %v6382 = vld [vmem:[%s6359 + $0x108] sm:$0xff]
        %v6383 = vld [vmem:[%s6359 + $0x110] sm:$0xff]
        %v6384 = vld [vmem:[%s6359 + $0x120] sm:$0xff]
        %v6385 = vld [vmem:[%s6359 + $0x128] sm:$0xff]
        %v6386 = vld [vmem:[%s6359 + $0x138] sm:$0xff]
        %v6387 = vld [vmem:[%s6359 + $0x140] sm:$0xff]
        %v6388 = vld [vmem:[%s6359 + $0x150] sm:$0xff]
        %v6389 = vld [vmem:[%s6359 + $0x158] sm:$0xff]
        %v6390 = vld [vmem:[%s6359 + $0x168] sm:$0xff]
        %v6391 = vld [vmem:[%s6359 + $0x170] sm:$0xff]
        %s6392 = scalar_lea.vmem %s5, 20
        %v6393 = vld [vmem:[%s6392] sm:$0x1]
        %v6395 = vlaneseq
        %v6396 = vshrl.u32 %v6395, 7
        %v6397 = vsub.s32 0, %v6396
        %v6398 = vrot.slane %v6393, %v6397
        %v6400 = vmul.f32 %v6360, %v6398
        %v6401 = vmul.f32 %v6361, %v6398
        %v6402 = vmul.f32 %v6362, %v6398
        %v6403 = vmul.f32 %v6363, %v6398
        %v6404 = vmul.f32 %v6364, %v6398
        %v6405 = vmul.f32 %v6365, %v6398
        %v6406 = vmul.f32 %v6366, %v6398
        %v6407 = vmul.f32 %v6367, %v6398
        %v6408 = vmul.f32 %v6368, %v6398
        %v6409 = vmul.f32 %v6369, %v6398
        %v6410 = vmul.f32 %v6370, %v6398
        %v6411 = vmul.f32 %v6371, %v6398
        %v6412 = vmul.f32 %v6372, %v6398
        %v6413 = vmul.f32 %v6373, %v6398
        %v6414 = vmul.f32 %v6374, %v6398
        %v6415 = vmul.f32 %v6375, %v6398
        %v6416 = vmul.f32 %v6376, %v6398
        %v6417 = vmul.f32 %v6377, %v6398
        %v6418 = vmul.f32 %v6378, %v6398
        %v6419 = vmul.f32 %v6379, %v6398
        %v6420 = vmul.f32 %v6380, %v6398
        %v6421 = vmul.f32 %v6381, %v6398
        %v6422 = vmul.f32 %v6382, %v6398
        %v6423 = vmul.f32 %v6383, %v6398
        %v6424 = vmul.f32 %v6384, %v6398
        %v6425 = vmul.f32 %v6385, %v6398
        %v6426 = vmul.f32 %v6386, %v6398
        %v6427 = vmul.f32 %v6387, %v6398
        %v6428 = vmul.f32 %v6388, %v6398
        %v6429 = vmul.f32 %v6389, %v6398
        %v6430 = vmul.f32 %v6390, %v6398
        %v6431 = vmul.f32 %v6391, %v6398
        %v6432 = vadd.f32 %v6327, %v6400
        %v6433 = vadd.f32 %v6328, %v6401
        %v6434 = vadd.f32 %v6329, %v6402
        %v6435 = vadd.f32 %v6330, %v6403
        %v6436 = vadd.f32 %v6331, %v6404
        %v6437 = vadd.f32 %v6332, %v6405
        %v6438 = vadd.f32 %v6333, %v6406
        %v6439 = vadd.f32 %v6334, %v6407
        %v6440 = vadd.f32 %v6335, %v6408
        %v6441 = vadd.f32 %v6336, %v6409
        %v6442 = vadd.f32 %v6337, %v6410
        %v6443 = vadd.f32 %v6338, %v6411
        %v6444 = vadd.f32 %v6339, %v6412
        %v6445 = vadd.f32 %v6340, %v6413
        %v6446 = vadd.f32 %v6341, %v6414
        %v6447 = vadd.f32 %v6342, %v6415
        %v6448 = vadd.f32 %v6343, %v6416
        %v6449 = vadd.f32 %v6344, %v6417
        %v6450 = vadd.f32 %v6345, %v6418
        %v6451 = vadd.f32 %v6346, %v6419
        %v6452 = vadd.f32 %v6347, %v6420
        %v6453 = vadd.f32 %v6348, %v6421
        %v6454 = vadd.f32 %v6349, %v6422
        %v6455 = vadd.f32 %v6350, %v6423
        %v6456 = vadd.f32 %v6351, %v6424
        %v6457 = vadd.f32 %v6352, %v6425
        %v6458 = vadd.f32 %v6353, %v6426
        %v6459 = vadd.f32 %v6354, %v6427
        %v6460 = vadd.f32 %v6355, %v6428
        %v6461 = vadd.f32 %v6356, %v6429
        %v6462 = vadd.f32 %v6357, %v6430
        %v6463 = vadd.f32 %v6358, %v6431
        %v6464 = vld [vmem:[%s6359 + $0x1] sm:$0xff]
        %v6465 = vld [vmem:[%s6359 + $0x9] sm:$0xff]
        %v6466 = vld [vmem:[%s6359 + $0x19] sm:$0xff]
        %v6467 = vld [vmem:[%s6359 + $0x21] sm:$0xff]
        %v6468 = vld [vmem:[%s6359 + $0x31] sm:$0xff]
        %v6469 = vld [vmem:[%s6359 + $0x39] sm:$0xff]
        %v6470 = vld [vmem:[%s6359 + $0x49] sm:$0xff]
        %v6471 = vld [vmem:[%s6359 + $0x51] sm:$0xff]
        %v6472 = vld [vmem:[%s6359 + $0x61] sm:$0xff]
        %v6473 = vld [vmem:[%s6359 + $0x69] sm:$0xff]
        %v6474 = vld [vmem:[%s6359 + $0x79] sm:$0xff]
        %v6475 = vld [vmem:[%s6359 + $0x81] sm:$0xff]
        %v6476 = vld [vmem:[%s6359 + $0x91] sm:$0xff]
        %v6477 = vld [vmem:[%s6359 + $0x99] sm:$0xff]
        %v6478 = vld [vmem:[%s6359 + $0xa9] sm:$0xff]
        %v6479 = vld [vmem:[%s6359 + $0xb1] sm:$0xff]
        %v6480 = vld [vmem:[%s6359 + $0xc1] sm:$0xff]
        %v6481 = vld [vmem:[%s6359 + $0xc9] sm:$0xff]
        %v6482 = vld [vmem:[%s6359 + $0xd9] sm:$0xff]
        %v6483 = vld [vmem:[%s6359 + $0xe1] sm:$0xff]
        %v6484 = vld [vmem:[%s6359 + $0xf1] sm:$0xff]
        %v6485 = vld [vmem:[%s6359 + $0xf9] sm:$0xff]
        %v6486 = vld [vmem:[%s6359 + $0x109] sm:$0xff]
        %v6487 = vld [vmem:[%s6359 + $0x111] sm:$0xff]
        %v6488 = vld [vmem:[%s6359 + $0x121] sm:$0xff]
        %v6489 = vld [vmem:[%s6359 + $0x129] sm:$0xff]
        %v6490 = vld [vmem:[%s6359 + $0x139] sm:$0xff]
        %v6491 = vld [vmem:[%s6359 + $0x141] sm:$0xff]
        %v6492 = vld [vmem:[%s6359 + $0x151] sm:$0xff]
        %v6493 = vld [vmem:[%s6359 + $0x159] sm:$0xff]
        %v6494 = vld [vmem:[%s6359 + $0x169] sm:$0xff]
        %v6495 = vld [vmem:[%s6359 + $0x171] sm:$0xff]
        %s6496 = scalar_lea.vmem %s5, 21
        %v6497 = vld [vmem:[%s6496] sm:$0x1]
        %v6499 = vlaneseq
        %v6500 = vshrl.u32 %v6499, 7
        %v6501 = vsub.s32 0, %v6500
        %v6502 = vrot.slane %v6497, %v6501
        %v6504 = vmul.f32 %v6464, %v6502
        %v6505 = vmul.f32 %v6465, %v6502
        %v6506 = vmul.f32 %v6466, %v6502
        %v6507 = vmul.f32 %v6467, %v6502
        %v6508 = vmul.f32 %v6468, %v6502
        %v6509 = vmul.f32 %v6469, %v6502
        %v6510 = vmul.f32 %v6470, %v6502
        %v6511 = vmul.f32 %v6471, %v6502
        %v6512 = vmul.f32 %v6472, %v6502
        %v6513 = vmul.f32 %v6473, %v6502
        %v6514 = vmul.f32 %v6474, %v6502
        %v6515 = vmul.f32 %v6475, %v6502
        %v6516 = vmul.f32 %v6476, %v6502
        %v6517 = vmul.f32 %v6477, %v6502
        %v6518 = vmul.f32 %v6478, %v6502
        %v6519 = vmul.f32 %v6479, %v6502
        %v6520 = vmul.f32 %v6480, %v6502
        %v6521 = vmul.f32 %v6481, %v6502
        %v6522 = vmul.f32 %v6482, %v6502
        %v6523 = vmul.f32 %v6483, %v6502
        %v6524 = vmul.f32 %v6484, %v6502
        %v6525 = vmul.f32 %v6485, %v6502
        %v6526 = vmul.f32 %v6486, %v6502
        %v6527 = vmul.f32 %v6487, %v6502
        %v6528 = vmul.f32 %v6488, %v6502
        %v6529 = vmul.f32 %v6489, %v6502
        %v6530 = vmul.f32 %v6490, %v6502
        %v6531 = vmul.f32 %v6491, %v6502
        %v6532 = vmul.f32 %v6492, %v6502
        %v6533 = vmul.f32 %v6493, %v6502
        %v6534 = vmul.f32 %v6494, %v6502
        %v6535 = vmul.f32 %v6495, %v6502
        %v6536 = vadd.f32 %v6432, %v6504
        %v6537 = vadd.f32 %v6433, %v6505
        %v6538 = vadd.f32 %v6434, %v6506
        %v6539 = vadd.f32 %v6435, %v6507
        %v6540 = vadd.f32 %v6436, %v6508
        %v6541 = vadd.f32 %v6437, %v6509
        %v6542 = vadd.f32 %v6438, %v6510
        %v6543 = vadd.f32 %v6439, %v6511
        %v6544 = vadd.f32 %v6440, %v6512
        %v6545 = vadd.f32 %v6441, %v6513
        %v6546 = vadd.f32 %v6442, %v6514
        %v6547 = vadd.f32 %v6443, %v6515
        %v6548 = vadd.f32 %v6444, %v6516
        %v6549 = vadd.f32 %v6445, %v6517
        %v6550 = vadd.f32 %v6446, %v6518
        %v6551 = vadd.f32 %v6447, %v6519
        %v6552 = vadd.f32 %v6448, %v6520
        %v6553 = vadd.f32 %v6449, %v6521
        %v6554 = vadd.f32 %v6450, %v6522
        %v6555 = vadd.f32 %v6451, %v6523
        %v6556 = vadd.f32 %v6452, %v6524
        %v6557 = vadd.f32 %v6453, %v6525
        %v6558 = vadd.f32 %v6454, %v6526
        %v6559 = vadd.f32 %v6455, %v6527
        %v6560 = vadd.f32 %v6456, %v6528
        %v6561 = vadd.f32 %v6457, %v6529
        %v6562 = vadd.f32 %v6458, %v6530
        %v6563 = vadd.f32 %v6459, %v6531
        %v6564 = vadd.f32 %v6460, %v6532
        %v6565 = vadd.f32 %v6461, %v6533
        %v6566 = vadd.f32 %v6462, %v6534
        %v6567 = vadd.f32 %v6463, %v6535
        %v6568 = vld [vmem:[%s6359 + $0x2] sm:$0xff]
        %v6569 = vld [vmem:[%s6359 + $0xa] sm:$0xff]
        %v6570 = vld [vmem:[%s6359 + $0x1a] sm:$0xff]
        %v6571 = vld [vmem:[%s6359 + $0x22] sm:$0xff]
        %v6572 = vld [vmem:[%s6359 + $0x32] sm:$0xff]
        %v6573 = vld [vmem:[%s6359 + $0x3a] sm:$0xff]
        %v6574 = vld [vmem:[%s6359 + $0x4a] sm:$0xff]
        %v6575 = vld [vmem:[%s6359 + $0x52] sm:$0xff]
        %v6576 = vld [vmem:[%s6359 + $0x62] sm:$0xff]
        %v6577 = vld [vmem:[%s6359 + $0x6a] sm:$0xff]
        %v6578 = vld [vmem:[%s6359 + $0x7a] sm:$0xff]
        %v6579 = vld [vmem:[%s6359 + $0x82] sm:$0xff]
        %v6580 = vld [vmem:[%s6359 + $0x92] sm:$0xff]
        %v6581 = vld [vmem:[%s6359 + $0x9a] sm:$0xff]
        %v6582 = vld [vmem:[%s6359 + $0xaa] sm:$0xff]
        %v6583 = vld [vmem:[%s6359 + $0xb2] sm:$0xff]
        %v6584 = vld [vmem:[%s6359 + $0xc2] sm:$0xff]
        %v6585 = vld [vmem:[%s6359 + $0xca] sm:$0xff]
        %v6586 = vld [vmem:[%s6359 + $0xda] sm:$0xff]
        %v6587 = vld [vmem:[%s6359 + $0xe2] sm:$0xff]
        %v6588 = vld [vmem:[%s6359 + $0xf2] sm:$0xff]
        %v6589 = vld [vmem:[%s6359 + $0xfa] sm:$0xff]
        %v6590 = vld [vmem:[%s6359 + $0x10a] sm:$0xff]
        %v6591 = vld [vmem:[%s6359 + $0x112] sm:$0xff]
        %v6592 = vld [vmem:[%s6359 + $0x122] sm:$0xff]
        %v6593 = vld [vmem:[%s6359 + $0x12a] sm:$0xff]
        %v6594 = vld [vmem:[%s6359 + $0x13a] sm:$0xff]
        %v6595 = vld [vmem:[%s6359 + $0x142] sm:$0xff]
        %v6596 = vld [vmem:[%s6359 + $0x152] sm:$0xff]
        %v6597 = vld [vmem:[%s6359 + $0x15a] sm:$0xff]
        %v6598 = vld [vmem:[%s6359 + $0x16a] sm:$0xff]
        %v6599 = vld [vmem:[%s6359 + $0x172] sm:$0xff]
        %s6600 = scalar_lea.vmem %s5, 22
        %v6601 = vld [vmem:[%s6600] sm:$0x1]
        %v6603 = vlaneseq
        %v6604 = vshrl.u32 %v6603, 7
        %v6605 = vsub.s32 0, %v6604
        %v6606 = vrot.slane %v6601, %v6605
        %v6608 = vmul.f32 %v6568, %v6606
        %v6609 = vmul.f32 %v6569, %v6606
        %v6610 = vmul.f32 %v6570, %v6606
        %v6611 = vmul.f32 %v6571, %v6606
        %v6612 = vmul.f32 %v6572, %v6606
        %v6613 = vmul.f32 %v6573, %v6606
        %v6614 = vmul.f32 %v6574, %v6606
        %v6615 = vmul.f32 %v6575, %v6606
        %v6616 = vmul.f32 %v6576, %v6606
        %v6617 = vmul.f32 %v6577, %v6606
        %v6618 = vmul.f32 %v6578, %v6606
        %v6619 = vmul.f32 %v6579, %v6606
        %v6620 = vmul.f32 %v6580, %v6606
        %v6621 = vmul.f32 %v6581, %v6606
        %v6622 = vmul.f32 %v6582, %v6606
        %v6623 = vmul.f32 %v6583, %v6606
        %v6624 = vmul.f32 %v6584, %v6606
        %v6625 = vmul.f32 %v6585, %v6606
        %v6626 = vmul.f32 %v6586, %v6606
        %v6627 = vmul.f32 %v6587, %v6606
        %v6628 = vmul.f32 %v6588, %v6606
        %v6629 = vmul.f32 %v6589, %v6606
        %v6630 = vmul.f32 %v6590, %v6606
        %v6631 = vmul.f32 %v6591, %v6606
        %v6632 = vmul.f32 %v6592, %v6606
        %v6633 = vmul.f32 %v6593, %v6606
        %v6634 = vmul.f32 %v6594, %v6606
        %v6635 = vmul.f32 %v6595, %v6606
        %v6636 = vmul.f32 %v6596, %v6606
        %v6637 = vmul.f32 %v6597, %v6606
        %v6638 = vmul.f32 %v6598, %v6606
        %v6639 = vmul.f32 %v6599, %v6606
        %v6640 = vadd.f32 %v6536, %v6608
        %v6641 = vadd.f32 %v6537, %v6609
        %v6642 = vadd.f32 %v6538, %v6610
        %v6643 = vadd.f32 %v6539, %v6611
        %v6644 = vadd.f32 %v6540, %v6612
        %v6645 = vadd.f32 %v6541, %v6613
        %v6646 = vadd.f32 %v6542, %v6614
        %v6647 = vadd.f32 %v6543, %v6615
        %v6648 = vadd.f32 %v6544, %v6616
        %v6649 = vadd.f32 %v6545, %v6617
        %v6650 = vadd.f32 %v6546, %v6618
        %v6651 = vadd.f32 %v6547, %v6619
        %v6652 = vadd.f32 %v6548, %v6620
        %v6653 = vadd.f32 %v6549, %v6621
        %v6654 = vadd.f32 %v6550, %v6622
        %v6655 = vadd.f32 %v6551, %v6623
        %v6656 = vadd.f32 %v6552, %v6624
        %v6657 = vadd.f32 %v6553, %v6625
        %v6658 = vadd.f32 %v6554, %v6626
        %v6659 = vadd.f32 %v6555, %v6627
        %v6660 = vadd.f32 %v6556, %v6628
        %v6661 = vadd.f32 %v6557, %v6629
        %v6662 = vadd.f32 %v6558, %v6630
        %v6663 = vadd.f32 %v6559, %v6631
        %v6664 = vadd.f32 %v6560, %v6632
        %v6665 = vadd.f32 %v6561, %v6633
        %v6666 = vadd.f32 %v6562, %v6634
        %v6667 = vadd.f32 %v6563, %v6635
        %v6668 = vadd.f32 %v6564, %v6636
        %v6669 = vadd.f32 %v6565, %v6637
        %v6670 = vadd.f32 %v6566, %v6638
        %v6671 = vadd.f32 %v6567, %v6639
        %v6672 = vld [vmem:[%s6359 + $0x3] sm:$0xff]
        %v6673 = vld [vmem:[%s6359 + $0xb] sm:$0xff]
        %v6674 = vld [vmem:[%s6359 + $0x1b] sm:$0xff]
        %v6675 = vld [vmem:[%s6359 + $0x23] sm:$0xff]
        %v6676 = vld [vmem:[%s6359 + $0x33] sm:$0xff]
        %v6677 = vld [vmem:[%s6359 + $0x3b] sm:$0xff]
        %v6678 = vld [vmem:[%s6359 + $0x4b] sm:$0xff]
        %v6679 = vld [vmem:[%s6359 + $0x53] sm:$0xff]
        %v6680 = vld [vmem:[%s6359 + $0x63] sm:$0xff]
        %v6681 = vld [vmem:[%s6359 + $0x6b] sm:$0xff]
        %v6682 = vld [vmem:[%s6359 + $0x7b] sm:$0xff]
        %v6683 = vld [vmem:[%s6359 + $0x83] sm:$0xff]
        %v6684 = vld [vmem:[%s6359 + $0x93] sm:$0xff]
        %v6685 = vld [vmem:[%s6359 + $0x9b] sm:$0xff]
        %v6686 = vld [vmem:[%s6359 + $0xab] sm:$0xff]
        %v6687 = vld [vmem:[%s6359 + $0xb3] sm:$0xff]
        %v6688 = vld [vmem:[%s6359 + $0xc3] sm:$0xff]
        %v6689 = vld [vmem:[%s6359 + $0xcb] sm:$0xff]
        %v6690 = vld [vmem:[%s6359 + $0xdb] sm:$0xff]
        %v6691 = vld [vmem:[%s6359 + $0xe3] sm:$0xff]
        %v6692 = vld [vmem:[%s6359 + $0xf3] sm:$0xff]
        %v6693 = vld [vmem:[%s6359 + $0xfb] sm:$0xff]
        %v6694 = vld [vmem:[%s6359 + $0x10b] sm:$0xff]
        %v6695 = vld [vmem:[%s6359 + $0x113] sm:$0xff]
        %v6696 = vld [vmem:[%s6359 + $0x123] sm:$0xff]
        %v6697 = vld [vmem:[%s6359 + $0x12b] sm:$0xff]
        %v6698 = vld [vmem:[%s6359 + $0x13b] sm:$0xff]
        %v6699 = vld [vmem:[%s6359 + $0x143] sm:$0xff]
        %v6700 = vld [vmem:[%s6359 + $0x153] sm:$0xff]
        %v6701 = vld [vmem:[%s6359 + $0x15b] sm:$0xff]
        %v6702 = vld [vmem:[%s6359 + $0x16b] sm:$0xff]
        %v6703 = vld [vmem:[%s6359 + $0x173] sm:$0xff]
        %s6704 = scalar_lea.vmem %s5, 23
        %v6705 = vld [vmem:[%s6704] sm:$0x1]
        %v6707 = vlaneseq
        %v6708 = vshrl.u32 %v6707, 7
        %v6709 = vsub.s32 0, %v6708
        %v6710 = vrot.slane %v6705, %v6709
        %v6712 = vmul.f32 %v6672, %v6710
        %v6713 = vmul.f32 %v6673, %v6710
        %v6714 = vmul.f32 %v6674, %v6710
        %v6715 = vmul.f32 %v6675, %v6710
        %v6716 = vmul.f32 %v6676, %v6710
        %v6717 = vmul.f32 %v6677, %v6710
        %v6718 = vmul.f32 %v6678, %v6710
        %v6719 = vmul.f32 %v6679, %v6710
        %v6720 = vmul.f32 %v6680, %v6710
        %v6721 = vmul.f32 %v6681, %v6710
        %v6722 = vmul.f32 %v6682, %v6710
        %v6723 = vmul.f32 %v6683, %v6710
        %v6724 = vmul.f32 %v6684, %v6710
        %v6725 = vmul.f32 %v6685, %v6710
        %v6726 = vmul.f32 %v6686, %v6710
        %v6727 = vmul.f32 %v6687, %v6710
        %v6728 = vmul.f32 %v6688, %v6710
        %v6729 = vmul.f32 %v6689, %v6710
        %v6730 = vmul.f32 %v6690, %v6710
        %v6731 = vmul.f32 %v6691, %v6710
        %v6732 = vmul.f32 %v6692, %v6710
        %v6733 = vmul.f32 %v6693, %v6710
        %v6734 = vmul.f32 %v6694, %v6710
        %v6735 = vmul.f32 %v6695, %v6710
        %v6736 = vmul.f32 %v6696, %v6710
        %v6737 = vmul.f32 %v6697, %v6710
        %v6738 = vmul.f32 %v6698, %v6710
        %v6739 = vmul.f32 %v6699, %v6710
        %v6740 = vmul.f32 %v6700, %v6710
        %v6741 = vmul.f32 %v6701, %v6710
        %v6742 = vmul.f32 %v6702, %v6710
        %v6743 = vmul.f32 %v6703, %v6710
        %v6744 = vadd.f32 %v6640, %v6712
        %v6745 = vadd.f32 %v6641, %v6713
        %v6746 = vadd.f32 %v6642, %v6714
        %v6747 = vadd.f32 %v6643, %v6715
        %v6748 = vadd.f32 %v6644, %v6716
        %v6749 = vadd.f32 %v6645, %v6717
        %v6750 = vadd.f32 %v6646, %v6718
        %v6751 = vadd.f32 %v6647, %v6719
        %v6752 = vadd.f32 %v6648, %v6720
        %v6753 = vadd.f32 %v6649, %v6721
        %v6754 = vadd.f32 %v6650, %v6722
        %v6755 = vadd.f32 %v6651, %v6723
        %v6756 = vadd.f32 %v6652, %v6724
        %v6757 = vadd.f32 %v6653, %v6725
        %v6758 = vadd.f32 %v6654, %v6726
        %v6759 = vadd.f32 %v6655, %v6727
        %v6760 = vadd.f32 %v6656, %v6728
        %v6761 = vadd.f32 %v6657, %v6729
        %v6762 = vadd.f32 %v6658, %v6730
        %v6763 = vadd.f32 %v6659, %v6731
        %v6764 = vadd.f32 %v6660, %v6732
        %v6765 = vadd.f32 %v6661, %v6733
        %v6766 = vadd.f32 %v6662, %v6734
        %v6767 = vadd.f32 %v6663, %v6735
        %v6768 = vadd.f32 %v6664, %v6736
        %v6769 = vadd.f32 %v6665, %v6737
        %v6770 = vadd.f32 %v6666, %v6738
        %v6771 = vadd.f32 %v6667, %v6739
        %v6772 = vadd.f32 %v6668, %v6740
        %v6773 = vadd.f32 %v6669, %v6741
        %v6774 = vadd.f32 %v6670, %v6742
        %v6775 = vadd.f32 %v6671, %v6743
        %v6776 = vld [vmem:[%s6359 + $0x4] sm:$0xff]
        %v6777 = vld [vmem:[%s6359 + $0xc] sm:$0xff]
        %v6778 = vld [vmem:[%s6359 + $0x1c] sm:$0xff]
        %v6779 = vld [vmem:[%s6359 + $0x24] sm:$0xff]
        %v6780 = vld [vmem:[%s6359 + $0x34] sm:$0xff]
        %v6781 = vld [vmem:[%s6359 + $0x3c] sm:$0xff]
        %v6782 = vld [vmem:[%s6359 + $0x4c] sm:$0xff]
        %v6783 = vld [vmem:[%s6359 + $0x54] sm:$0xff]
        %v6784 = vld [vmem:[%s6359 + $0x64] sm:$0xff]
        %v6785 = vld [vmem:[%s6359 + $0x6c] sm:$0xff]
        %v6786 = vld [vmem:[%s6359 + $0x7c] sm:$0xff]
        %v6787 = vld [vmem:[%s6359 + $0x84] sm:$0xff]
        %v6788 = vld [vmem:[%s6359 + $0x94] sm:$0xff]
        %v6789 = vld [vmem:[%s6359 + $0x9c] sm:$0xff]
        %v6790 = vld [vmem:[%s6359 + $0xac] sm:$0xff]
        %v6791 = vld [vmem:[%s6359 + $0xb4] sm:$0xff]
        %v6792 = vld [vmem:[%s6359 + $0xc4] sm:$0xff]
        %v6793 = vld [vmem:[%s6359 + $0xcc] sm:$0xff]
        %v6794 = vld [vmem:[%s6359 + $0xdc] sm:$0xff]
        %v6795 = vld [vmem:[%s6359 + $0xe4] sm:$0xff]
        %v6796 = vld [vmem:[%s6359 + $0xf4] sm:$0xff]
        %v6797 = vld [vmem:[%s6359 + $0xfc] sm:$0xff]
        %v6798 = vld [vmem:[%s6359 + $0x10c] sm:$0xff]
        %v6799 = vld [vmem:[%s6359 + $0x114] sm:$0xff]
        %v6800 = vld [vmem:[%s6359 + $0x124] sm:$0xff]
        %v6801 = vld [vmem:[%s6359 + $0x12c] sm:$0xff]
        %v6802 = vld [vmem:[%s6359 + $0x13c] sm:$0xff]
        %v6803 = vld [vmem:[%s6359 + $0x144] sm:$0xff]
        %v6804 = vld [vmem:[%s6359 + $0x154] sm:$0xff]
        %v6805 = vld [vmem:[%s6359 + $0x15c] sm:$0xff]
        %v6806 = vld [vmem:[%s6359 + $0x16c] sm:$0xff]
        %v6807 = vld [vmem:[%s6359 + $0x174] sm:$0xff]
        %s6808 = scalar_lea.vmem %s5, 24
        %v6809 = vld [vmem:[%s6808] sm:$0x1]
        %v6811 = vlaneseq
        %v6812 = vshrl.u32 %v6811, 7
        %v6813 = vsub.s32 0, %v6812
        %v6814 = vrot.slane %v6809, %v6813
        %v6816 = vmul.f32 %v6776, %v6814
        %v6817 = vmul.f32 %v6777, %v6814
        %v6818 = vmul.f32 %v6778, %v6814
        %v6819 = vmul.f32 %v6779, %v6814
        %v6820 = vmul.f32 %v6780, %v6814
        %v6821 = vmul.f32 %v6781, %v6814
        %v6822 = vmul.f32 %v6782, %v6814
        %v6823 = vmul.f32 %v6783, %v6814
        %v6824 = vmul.f32 %v6784, %v6814
        %v6825 = vmul.f32 %v6785, %v6814
        %v6826 = vmul.f32 %v6786, %v6814
        %v6827 = vmul.f32 %v6787, %v6814
        %v6828 = vmul.f32 %v6788, %v6814
        %v6829 = vmul.f32 %v6789, %v6814
        %v6830 = vmul.f32 %v6790, %v6814
        %v6831 = vmul.f32 %v6791, %v6814
        %v6832 = vmul.f32 %v6792, %v6814
        %v6833 = vmul.f32 %v6793, %v6814
        %v6834 = vmul.f32 %v6794, %v6814
        %v6835 = vmul.f32 %v6795, %v6814
        %v6836 = vmul.f32 %v6796, %v6814
        %v6837 = vmul.f32 %v6797, %v6814
        %v6838 = vmul.f32 %v6798, %v6814
        %v6839 = vmul.f32 %v6799, %v6814
        %v6840 = vmul.f32 %v6800, %v6814
        %v6841 = vmul.f32 %v6801, %v6814
        %v6842 = vmul.f32 %v6802, %v6814
        %v6843 = vmul.f32 %v6803, %v6814
        %v6844 = vmul.f32 %v6804, %v6814
        %v6845 = vmul.f32 %v6805, %v6814
        %v6846 = vmul.f32 %v6806, %v6814
        %v6847 = vmul.f32 %v6807, %v6814
        %v6848 = vadd.f32 %v6744, %v6816
        %v6849 = vadd.f32 %v6745, %v6817
        %v6850 = vadd.f32 %v6746, %v6818
        %v6851 = vadd.f32 %v6747, %v6819
        %v6852 = vadd.f32 %v6748, %v6820
        %v6853 = vadd.f32 %v6749, %v6821
        %v6854 = vadd.f32 %v6750, %v6822
        %v6855 = vadd.f32 %v6751, %v6823
        %v6856 = vadd.f32 %v6752, %v6824
        %v6857 = vadd.f32 %v6753, %v6825
        %v6858 = vadd.f32 %v6754, %v6826
        %v6859 = vadd.f32 %v6755, %v6827
        %v6860 = vadd.f32 %v6756, %v6828
        %v6861 = vadd.f32 %v6757, %v6829
        %v6862 = vadd.f32 %v6758, %v6830
        %v6863 = vadd.f32 %v6759, %v6831
        %v6864 = vadd.f32 %v6760, %v6832
        %v6865 = vadd.f32 %v6761, %v6833
        %v6866 = vadd.f32 %v6762, %v6834
        %v6867 = vadd.f32 %v6763, %v6835
        %v6868 = vadd.f32 %v6764, %v6836
        %v6869 = vadd.f32 %v6765, %v6837
        %v6870 = vadd.f32 %v6766, %v6838
        %v6871 = vadd.f32 %v6767, %v6839
        %v6872 = vadd.f32 %v6768, %v6840
        %v6873 = vadd.f32 %v6769, %v6841
        %v6874 = vadd.f32 %v6770, %v6842
        %v6875 = vadd.f32 %v6771, %v6843
        %v6876 = vadd.f32 %v6772, %v6844
        %v6877 = vadd.f32 %v6773, %v6845
        %v6878 = vadd.f32 %v6774, %v6846
        %v6879 = vadd.f32 %v6775, %v6847
        %v6880 = vsel %vm4183, %v6848, 0.0
        %6881 = vadd.xlane.f32.xlu0 %v6880
        %v6882 = vpop.xlane.xlu0 %6881
        %v6883 = vsel %vm4183, %v6849, 0.0
        %6884 = vadd.xlane.f32.xlu0 %v6883
        %v6885 = vpop.xlane.xlu0 %6884
        %v6886 = vsel %vm4183, %v6850, 0.0
        %6887 = vadd.xlane.f32.xlu0 %v6886
        %v6888 = vpop.xlane.xlu0 %6887
        %v6889 = vsel %vm4183, %v6851, 0.0
        %6890 = vadd.xlane.f32.xlu0 %v6889
        %v6891 = vpop.xlane.xlu0 %6890
        %v6892 = vsel %vm4183, %v6852, 0.0
        %6893 = vadd.xlane.f32.xlu0 %v6892
        %v6894 = vpop.xlane.xlu0 %6893
        %v6895 = vsel %vm4183, %v6853, 0.0
        %6896 = vadd.xlane.f32.xlu0 %v6895
        %v6897 = vpop.xlane.xlu0 %6896
        %v6898 = vsel %vm4183, %v6854, 0.0
        %6899 = vadd.xlane.f32.xlu0 %v6898
        %v6900 = vpop.xlane.xlu0 %6899
        %v6901 = vsel %vm4183, %v6855, 0.0
        %6902 = vadd.xlane.f32.xlu0 %v6901
        %v6903 = vpop.xlane.xlu0 %6902
        %v6904 = vsel %vm4183, %v6856, 0.0
        %6905 = vadd.xlane.f32.xlu0 %v6904
        %v6906 = vpop.xlane.xlu0 %6905
        %v6907 = vsel %vm4183, %v6857, 0.0
        %6908 = vadd.xlane.f32.xlu0 %v6907
        %v6909 = vpop.xlane.xlu0 %6908
        %v6910 = vsel %vm4183, %v6858, 0.0
        %6911 = vadd.xlane.f32.xlu0 %v6910
        %v6912 = vpop.xlane.xlu0 %6911
        %v6913 = vsel %vm4183, %v6859, 0.0
        %6914 = vadd.xlane.f32.xlu0 %v6913
        %v6915 = vpop.xlane.xlu0 %6914
        %v6916 = vsel %vm4183, %v6860, 0.0
        %6917 = vadd.xlane.f32.xlu0 %v6916
        %v6918 = vpop.xlane.xlu0 %6917
        %v6919 = vsel %vm4183, %v6861, 0.0
        %6920 = vadd.xlane.f32.xlu0 %v6919
        %v6921 = vpop.xlane.xlu0 %6920
        %v6922 = vsel %vm4183, %v6862, 0.0
        %6923 = vadd.xlane.f32.xlu0 %v6922
        %v6924 = vpop.xlane.xlu0 %6923
        %v6925 = vsel %vm4183, %v6863, 0.0
        %6926 = vadd.xlane.f32.xlu0 %v6925
        %v6927 = vpop.xlane.xlu0 %6926
        %v6928 = vsel %vm4183, %v6864, 0.0
        %6929 = vadd.xlane.f32.xlu0 %v6928
        %v6930 = vpop.xlane.xlu0 %6929
        %v6931 = vsel %vm4183, %v6865, 0.0
        %6932 = vadd.xlane.f32.xlu0 %v6931
        %v6933 = vpop.xlane.xlu0 %6932
        %v6934 = vsel %vm4183, %v6866, 0.0
        %6935 = vadd.xlane.f32.xlu0 %v6934
        %v6936 = vpop.xlane.xlu0 %6935
        %v6937 = vsel %vm4183, %v6867, 0.0
        %6938 = vadd.xlane.f32.xlu0 %v6937
        %v6939 = vpop.xlane.xlu0 %6938
        %v6940 = vsel %vm4183, %v6868, 0.0
        %6941 = vadd.xlane.f32.xlu0 %v6940
        %v6942 = vpop.xlane.xlu0 %6941
        %v6943 = vsel %vm4183, %v6869, 0.0
        %6944 = vadd.xlane.f32.xlu0 %v6943
        %v6945 = vpop.xlane.xlu0 %6944
        %v6946 = vsel %vm4183, %v6870, 0.0
        %6947 = vadd.xlane.f32.xlu0 %v6946
        %v6948 = vpop.xlane.xlu0 %6947
        %v6949 = vsel %vm4183, %v6871, 0.0
        %6950 = vadd.xlane.f32.xlu0 %v6949
        %v6951 = vpop.xlane.xlu0 %6950
        %v6952 = vsel %vm4183, %v6872, 0.0
        %6953 = vadd.xlane.f32.xlu0 %v6952
        %v6954 = vpop.xlane.xlu0 %6953
        %v6955 = vsel %vm4183, %v6873, 0.0
        %6956 = vadd.xlane.f32.xlu0 %v6955
        %v6957 = vpop.xlane.xlu0 %6956
        %v6958 = vsel %vm4183, %v6874, 0.0
        %6959 = vadd.xlane.f32.xlu0 %v6958
        %v6960 = vpop.xlane.xlu0 %6959
        %v6961 = vsel %vm4183, %v6875, 0.0
        %6962 = vadd.xlane.f32.xlu0 %v6961
        %v6963 = vpop.xlane.xlu0 %6962
        %v6964 = vsel %vm4183, %v6876, 0.0
        %6965 = vadd.xlane.f32.xlu0 %v6964
        %v6966 = vpop.xlane.xlu0 %6965
        %v6967 = vsel %vm4183, %v6877, 0.0
        %6968 = vadd.xlane.f32.xlu0 %v6967
        %v6969 = vpop.xlane.xlu0 %6968
        %v6970 = vsel %vm4183, %v6878, 0.0
        %6971 = vadd.xlane.f32.xlu0 %v6970
        %v6972 = vpop.xlane.xlu0 %6971
        %v6973 = vsel %vm4183, %v6879, 0.0
        %6974 = vadd.xlane.f32.xlu0 %v6973
        %v6975 = vpop.xlane.xlu0 %6974
        %v6976 = vld [vmem:[#allocation3] sm:$0x1]
        %v6978 = vlaneseq
        %v6979 = vshrl.u32 %v6978, 7
        %v6980 = vsub.s32 0, %v6979
        %v6981 = vrot.slane %v6976, %v6980
        %6982 = vset.pattern.permute.xlu0 0
        %6983 = vperm.xlu0 %6982, %v6981
        %v6984 = vpop.permute.xlu0 %6983
        %v6986 = vadd.f32 %v6882, %v6984
        %v6987 = vadd.f32 %v6885, %v6984
        %v6988 = vadd.f32 %v6888, %v6984
        %v6989 = vadd.f32 %v6891, %v6984
        %v6990 = vadd.f32 %v6894, %v6984
        %v6991 = vadd.f32 %v6897, %v6984
        %v6992 = vadd.f32 %v6900, %v6984
        %v6993 = vadd.f32 %v6903, %v6984
        %v6994 = vadd.f32 %v6906, %v6984
        %v6995 = vadd.f32 %v6909, %v6984
        %v6996 = vadd.f32 %v6912, %v6984
        %v6997 = vadd.f32 %v6915, %v6984
        %v6998 = vadd.f32 %v6918, %v6984
        %v6999 = vadd.f32 %v6921, %v6984
        %v7000 = vadd.f32 %v6924, %v6984
        %v7001 = vadd.f32 %v6927, %v6984
        %v7002 = vadd.f32 %v6930, %v6984
        %v7003 = vadd.f32 %v6933, %v6984
        %v7004 = vadd.f32 %v6936, %v6984
        %v7005 = vadd.f32 %v6939, %v6984
        %v7006 = vadd.f32 %v6942, %v6984
        %v7007 = vadd.f32 %v6945, %v6984
        %v7008 = vadd.f32 %v6948, %v6984
        %v7009 = vadd.f32 %v6951, %v6984
        %v7010 = vadd.f32 %v6954, %v6984
        %v7011 = vadd.f32 %v6957, %v6984
        %v7012 = vadd.f32 %v6960, %v6984
        %v7013 = vadd.f32 %v6963, %v6984
        %v7014 = vadd.f32 %v6966, %v6984
        %v7015 = vadd.f32 %v6969, %v6984
        %v7016 = vadd.f32 %v6972, %v6984
        %v7017 = vadd.f32 %v6975, %v6984
        %v7050 = vlaneseq
        %v7051 = vand.u32 %v7050, 127
        %v7052 = vlaneseq
        %v7053 = vshrl.u32 %v7052, 7
        %v7054 = vsub.s32 %v7051, %v7053
        %v7055 = vrot.slane %v6986, %v7054
        %v7056 = vadd.s32 %v7051, 4294967288
        %v7057 = vlaneseq
        %v7058 = vshrl.u32 %v7057, 7
        %v7059 = vsub.s32 %v7056, %v7058
        %v7060 = vrot.slane %v6987, %v7059
        %vm7061 = vcmask 130112
        %v7062 = vsel %vm7061, %v7060, %v7055
        %v7063 = vlaneseq
        %v7064 = vshrl.u32 %v7063, 7
        %v7065 = vsub.s32 %v7051, %v7064
        %v7066 = vrot.slane %v6988, %v7065
        %v7067 = vlaneseq
        %v7068 = vshrl.u32 %v7067, 7
        %v7069 = vsub.s32 %v7056, %v7068
        %v7070 = vrot.slane %v6989, %v7069
        %v7071 = vsel %vm7061, %v7070, %v7066
        %v7072 = vlaneseq
        %v7073 = vshrl.u32 %v7072, 7
        %v7074 = vsub.s32 %v7051, %v7073
        %v7075 = vrot.slane %v6990, %v7074
        %v7076 = vlaneseq
        %v7077 = vshrl.u32 %v7076, 7
        %v7078 = vsub.s32 %v7056, %v7077
        %v7079 = vrot.slane %v6991, %v7078
        %v7080 = vsel %vm7061, %v7079, %v7075
        %v7081 = vlaneseq
        %v7082 = vshrl.u32 %v7081, 7
        %v7083 = vsub.s32 %v7051, %v7082
        %v7084 = vrot.slane %v6992, %v7083
        %v7085 = vlaneseq
        %v7086 = vshrl.u32 %v7085, 7
        %v7087 = vsub.s32 %v7056, %v7086
        %v7088 = vrot.slane %v6993, %v7087
        %v7089 = vsel %vm7061, %v7088, %v7084
        %v7090 = vlaneseq
        %v7091 = vshrl.u32 %v7090, 7
        %v7092 = vsub.s32 %v7051, %v7091
        %v7093 = vrot.slane %v6994, %v7092
        %v7094 = vlaneseq
        %v7095 = vshrl.u32 %v7094, 7
        %v7096 = vsub.s32 %v7056, %v7095
        %v7097 = vrot.slane %v6995, %v7096
        %v7098 = vsel %vm7061, %v7097, %v7093
        %v7099 = vlaneseq
        %v7100 = vshrl.u32 %v7099, 7
        %v7101 = vsub.s32 %v7051, %v7100
        %v7102 = vrot.slane %v6996, %v7101
        %v7103 = vlaneseq
        %v7104 = vshrl.u32 %v7103, 7
        %v7105 = vsub.s32 %v7056, %v7104
        %v7106 = vrot.slane %v6997, %v7105
        %v7107 = vsel %vm7061, %v7106, %v7102
        %v7108 = vlaneseq
        %v7109 = vshrl.u32 %v7108, 7
        %v7110 = vsub.s32 %v7051, %v7109
        %v7111 = vrot.slane %v6998, %v7110
        %v7112 = vlaneseq
        %v7113 = vshrl.u32 %v7112, 7
        %v7114 = vsub.s32 %v7056, %v7113
        %v7115 = vrot.slane %v6999, %v7114
        %v7116 = vsel %vm7061, %v7115, %v7111
        %v7117 = vlaneseq
        %v7118 = vshrl.u32 %v7117, 7
        %v7119 = vsub.s32 %v7051, %v7118
        %v7120 = vrot.slane %v7000, %v7119
        %v7121 = vlaneseq
        %v7122 = vshrl.u32 %v7121, 7
        %v7123 = vsub.s32 %v7056, %v7122
        %v7124 = vrot.slane %v7001, %v7123
        %v7125 = vsel %vm7061, %v7124, %v7120
        %v7126 = vlaneseq
        %v7127 = vshrl.u32 %v7126, 7
        %v7128 = vsub.s32 %v7051, %v7127
        %v7129 = vrot.slane %v7002, %v7128
        %v7130 = vlaneseq
        %v7131 = vshrl.u32 %v7130, 7
        %v7132 = vsub.s32 %v7056, %v7131
        %v7133 = vrot.slane %v7003, %v7132
        %v7134 = vsel %vm7061, %v7133, %v7129
        %v7135 = vlaneseq
        %v7136 = vshrl.u32 %v7135, 7
        %v7137 = vsub.s32 %v7051, %v7136
        %v7138 = vrot.slane %v7004, %v7137
        %v7139 = vlaneseq
        %v7140 = vshrl.u32 %v7139, 7
        %v7141 = vsub.s32 %v7056, %v7140
        %v7142 = vrot.slane %v7005, %v7141
        %v7143 = vsel %vm7061, %v7142, %v7138
        %v7144 = vlaneseq
        %v7145 = vshrl.u32 %v7144, 7
        %v7146 = vsub.s32 %v7051, %v7145
        %v7147 = vrot.slane %v7006, %v7146
        %v7148 = vlaneseq
        %v7149 = vshrl.u32 %v7148, 7
        %v7150 = vsub.s32 %v7056, %v7149
        %v7151 = vrot.slane %v7007, %v7150
        %v7152 = vsel %vm7061, %v7151, %v7147
        %v7153 = vlaneseq
        %v7154 = vshrl.u32 %v7153, 7
        %v7155 = vsub.s32 %v7051, %v7154
        %v7156 = vrot.slane %v7008, %v7155
        %v7157 = vlaneseq
        %v7158 = vshrl.u32 %v7157, 7
        %v7159 = vsub.s32 %v7056, %v7158
        %v7160 = vrot.slane %v7009, %v7159
        %v7161 = vsel %vm7061, %v7160, %v7156
        %v7162 = vlaneseq
        %v7163 = vshrl.u32 %v7162, 7
        %v7164 = vsub.s32 %v7051, %v7163
        %v7165 = vrot.slane %v7010, %v7164
        %v7166 = vlaneseq
        %v7167 = vshrl.u32 %v7166, 7
        %v7168 = vsub.s32 %v7056, %v7167
        %v7169 = vrot.slane %v7011, %v7168
        %v7170 = vsel %vm7061, %v7169, %v7165
        %v7171 = vlaneseq
        %v7172 = vshrl.u32 %v7171, 7
        %v7173 = vsub.s32 %v7051, %v7172
        %v7174 = vrot.slane %v7012, %v7173
        %v7175 = vlaneseq
        %v7176 = vshrl.u32 %v7175, 7
        %v7177 = vsub.s32 %v7056, %v7176
        %v7178 = vrot.slane %v7013, %v7177
        %v7179 = vsel %vm7061, %v7178, %v7174
        %v7180 = vlaneseq
        %v7181 = vshrl.u32 %v7180, 7
        %v7182 = vsub.s32 %v7051, %v7181
        %v7183 = vrot.slane %v7014, %v7182
        %v7184 = vlaneseq
        %v7185 = vshrl.u32 %v7184, 7
        %v7186 = vsub.s32 %v7056, %v7185
        %v7187 = vrot.slane %v7015, %v7186
        %v7188 = vsel %vm7061, %v7187, %v7183
        %v7189 = vlaneseq
        %v7190 = vshrl.u32 %v7189, 7
        %v7191 = vsub.s32 %v7051, %v7190
        %v7192 = vrot.slane %v7016, %v7191
        %v7193 = vlaneseq
        %v7194 = vshrl.u32 %v7193, 7
        %v7195 = vsub.s32 %v7056, %v7194
        %v7196 = vrot.slane %v7017, %v7195
        %v7197 = vsel %vm7061, %v7196, %v7192
        %vm7198 = vcmask 1041409
        %v7199 = vsel %vm7198, %v7071, %v7062
        %vm7200 = vcmask 1042434
        %v7201 = vsel %vm7200, %v7080, %v7199
        %vm7202 = vcmask 1043459
        %v7203 = vsel %vm7202, %v7089, %v7201
        %vm7204 = vcmask 1044484
        %v7205 = vsel %vm7204, %v7098, %v7203
        %vm7206 = vcmask 1045509
        %v7207 = vsel %vm7206, %v7107, %v7205
        %vm7208 = vcmask 1046534
        %v7209 = vsel %vm7208, %v7116, %v7207
        %vm7210 = vcmask 1047559
        %v7211 = vsel %vm7210, %v7125, %v7209
        %v7212 = vsel %vm7198, %v7143, %v7134
        %v7213 = vsel %vm7200, %v7152, %v7212
        %v7214 = vsel %vm7202, %v7161, %v7213
        %v7215 = vsel %vm7204, %v7170, %v7214
        %v7216 = vsel %vm7206, %v7179, %v7215
        %v7217 = vsel %vm7208, %v7188, %v7216
        %v7218 = vsel %vm7210, %v7197, %v7217
        %vm7221 = vcmask 130048
        %7222 = vst.msk [vmem:[%s273] sm:$0xff] %vm7221, %v7211
        %7223 = vst.msk [vmem:[%s273 + $0x8] sm:$0xff] %vm7221, %v7218
        %s7224 = sand.u32 %s183, 1
        %s7225 = scalar_lea.sflag [#allocation5], %s7224
        %s7226 = sand.u32 %s183, 1
        %s7227 = smul.addr %s7226, 16
        %s7228 = scalar_lea.vmem [#allocation4], %s7227
        // Predicated region
        $region49: #{srcnn_forward.1} parent=47 // pred_check
          %p7229 = pneg %p193
        $region50: #{srcnn_forward.1} parent=47 // pred_check_branch
          %7231 = sbr.rel (%p7229) target = $region52
        $region51: #{srcnn_forward.1} parent=47 // pred_region
          %s7233 = ssub.s32 256, 256
          %7234 = vsyncadd %s7225, %s7233
          %s7235 = smul.addr %s23, 2
          %s7236 = smul.addr %s7235, 128
          %s7237 = scalar_lea.hbm %s7, %s7236
          %s7238 = sshll.u32 %s7228, 4
          %s7239 = int_to_ptr.vmem [resolvable:$true] %s7238
          %7244 = dma.vmem_to_hbm [thread:$0]  %s7239, 256, %s7237, %s7225, 128, 128, 8
        $region52: #{srcnn_forward.1} parent=47 // pred_fallthru
          _
      $region48: #{srcnn_forward.1} parent=5 // pred_fallthru
        _
      %p7245 = scmp.le.s32.totalorder 2, %s18
      // Predicated region
      $region53: #{srcnn_forward.1} parent=5 // pred_check
        %p7246 = pneg %p7245
      $region54: #{srcnn_forward.1} parent=5 // pred_check_branch
        %7248 = sbr.rel (%p7246) target = $region56
      $region55: #{srcnn_forward.1} parent=5 // pred_region
        %s7249 = ssub.s32 %s18, 2
        // Predicated region
        $region57: #{srcnn_forward.1} parent=55 // pred_check
          %p7250 = pneg %p199
        $region58: #{srcnn_forward.1} parent=55 // pred_check_branch
          %7252 = sbr.rel (%p7250) target = $region60
        $region59: #{srcnn_forward.1} parent=55 // pred_region
          %s7253 = sand.u32 %s184, 1
          %s7254 = scalar_lea.sflag [#allocation5], %s7253
          %s7255 = sand.u32 %s184, 1
          %s7256 = smul.addr %s7255, 16
          %s7257 = scalar_lea.vmem [#allocation4], %s7256
          %7258 = dma.done %s7254, 256
        $region60: #{srcnn_forward.1} parent=55 // pred_fallthru
          _
      $region56: #{srcnn_forward.1} parent=5 // pred_fallthru
        _
    $region6: #{srcnn_forward.1} parent=1 // loop_footer
      %s22 = sadd.s32 1, %s18
    $region7: #{srcnn_forward.1} parent=1 // loop_footer_branch
      %17 = sbr.rel target = $region3
    $region8: #{srcnn_forward.1} parent=1 // loop_exit
      _
    %7259 = vsyncpa [#allocation5], 1
    %s7260 = scalar_lea.sflag [#allocation5], 1
    %7261 = vsyncpa %s7260, 1

</llo_original>
